<compile_context>
chip_gen: v6e
topology: v6e:2x2x1
jax: 0.10.0
libtpu: 0.0.40
codegen_flags: <defaults>
</compile_context>

<pallas_src>
import functools

import jax
import jax.numpy as jnp
from jax import lax
from jax.experimental import pallas as pl
from jax.experimental.pallas import tpu as pltpu


def _fid_kernel(s1_hbm, s2_hbm, out_ref, s1_v, s2_v, copy_sem, *,
                num_approx_iters: int, eps: float, d_orig: int):
    f32 = jnp.float32
    d_pad = s1_v.shape[0]

    # One-shot HBM -> VMEM copies (single-buffered: there is no "next" block
    # to prefetch, so auto double-buffering would only waste VMEM).
    c1 = pltpu.make_async_copy(s1_hbm, s1_v, copy_sem.at[0])
    c2 = pltpu.make_async_copy(s2_hbm, s2_v, copy_sem.at[1])
    c1.start()
    c2.start()
    c1.wait()
    c2.wait()

    # Diagonal predicate from 2-D iotas (TPU-friendly, no gathers).
    row = lax.broadcasted_iota(jnp.int32, (d_pad, d_pad), 0)
    col = lax.broadcasted_iota(jnp.int32, (d_pad, d_pad), 1)
    on_diag = row == col
    eye = jnp.where(on_diag, f32(1.0), f32(0.0))  # the single full-size mask kept

    # A = sigma1 @ sigma2 (MXU), with eps added only on the *original*
    # diagonal: the padded rows/cols of A -- and hence of every Newton-Schulz
    # iterate Y -- stay exactly zero, so tr(Y * eye) needs no correction.
    a = jnp.dot(s1_v[...], s2_v[...], preferred_element_type=f32)
    a = jnp.where(on_diag & (row < d_orig), a + f32(eps), a)

    # Newton-Schulz iteration for sqrtm(A):
    #   Y0 = A / ||A||_F, Z0 = I
    #   T = 1.5*I - 0.5*(Z @ Y);  Y <- Y @ T;  Z <- T @ Z
    #   sqrtm(A) ~= sqrt(||A||_F) * Y
    norm_a = jnp.sqrt(jnp.sum(a * a))
    norm_a = jnp.maximum(norm_a, f32(1e-30))  # guard: (near-)zero covariances
    y0 = a * (f32(1.0) / norm_a)
    z0 = eye

    def ns_step(carry):
        y, z = carry
        # 1.5*eye recomputed inline: one extra vmul per element per iteration,
        # negligible next to three D_pad^3 matmuls, and no extra live matrix.
        t = f32(1.5) * eye - f32(0.5) * jnp.dot(z, y, preferred_element_type=f32)
        return (jnp.dot(y, t, preferred_element_type=f32),
                jnp.dot(t, z, preferred_element_type=f32))

    if d_pad <= 128:
        # Tiny problem: full unroll (static trip count, scheduler visibility).
        y, z = y0, z0
        for _ in range(num_approx_iters):
            y, z = ns_step((y, z))
    else:
        # MXU-bound regime: fori_loop bounds Y/Z/T live ranges to one iteration
        # and keeps code size / VMEM pressure flat in num_approx_iters.
        y, z = lax.fori_loop(0, num_approx_iters,
                             lambda _, c: ns_step(c), (y0, z0), unroll=2)

    # tr(sqrtm(A)) = sqrt(||A||_F) * tr(Y); padded diagonal of Y is zero.
    tr_sqrt = jnp.sqrt(norm_a) * jnp.sum(y * eye)

    # The O(D) terms (mean diff, tr(sigma1), tr(sigma2)) live in the wrapper.
    out_ref[0, 0] = -f32(2.0) * tr_sqrt


def fid_loss(mu1, sigma1, mu2, sigma2, *, num_approx_iters: int = 50,
             eps: float = 1e-6):
    """Pallas TPU implementation of the FID between N(mu1, sigma1) and N(mu2, sigma2)."""
    f32 = jnp.float32
    mu1 = jnp.asarray(mu1, f32)
    mu2 = jnp.asarray(mu2, f32)
    s1 = jnp.asarray(sigma1, f32)
    s2 = jnp.asarray(sigma2, f32)
    D = s1.shape[0]

    # O(D) terms: cheap, independent of the iteration, kept in the wrapper.
    diff = mu1 - mu2
    mean_term = jnp.sum(diff * diff)
    tr_s1 = jnp.trace(s1)
    tr_s2 = jnp.trace(s2)

    # Pad the feature dim to a multiple of 128 lanes for clean (8,128) tiling.
    D_pad = max(128, ((D + 127) // 128) * 128)
    pad = D_pad - D
    s1_p = jnp.pad(s1, ((0, pad), (0, pad)))
    s2_p = jnp.pad(s2, ((0, pad), (0, pad)))

    kernel = functools.partial(_fid_kernel,
                               num_approx_iters=num_approx_iters,
                               eps=float(eps), d_orig=D)

    # Generation-aware VMEM budget: 2 sigma copies + ~5 full-size f32
    # temporaries, clamped to ~90% of physical VMEM (64 MiB on v7x,
    # 128 MiB on v5e/v6e).
    bytes_needed = 8 * D_pad * D_pad * 4 + (2 << 20)
    try:
        vmem_cap = int(getattr(pltpu.get_tpu_info(), "vmem_capacity_bytes",
                               64 * 1024 * 1024))
    except Exception:  # pragma: no cover - info query unavailable
        vmem_cap = 64 * 1024 * 1024
    vmem_limit = int(min(max(bytes_needed, 16 << 20), int(vmem_cap * 0.9)))

    out = pl.pallas_call(
        kernel,
        out_shape=jax.ShapeDtypeStruct((1, 1), f32),
        in_specs=[pl.BlockSpec(memory_space=pl.ANY),    # sigma1 stays in HBM
                  pl.BlockSpec(memory_space=pl.ANY)],   # sigma2 stays in HBM
        out_specs=pl.BlockSpec(memory_space=pltpu.SMEM),
        scratch_shapes=[pltpu.VMEM((D_pad, D_pad), f32),   # sigma1 (single copy)
                        pltpu.VMEM((D_pad, D_pad), f32),   # sigma2 (single copy)
                        pltpu.SemaphoreType.DMA((2,))],
        compiler_params=pltpu.CompilerParams(vmem_limit_bytes=vmem_limit),
    )(s1_p, s2_p)

    return mean_term + tr_s1 + tr_s2 + out[0, 0]


def _fid_reference(mu1, sigma1, mu2, sigma2, num_approx_iters=50, eps=1e-6):
    """Pure-JAX reference of the same Newton-Schulz FID (for sanity checking)."""
    D = sigma1.shape[0]
    eye = jnp.eye(D, dtype=jnp.float32)
    a = sigma1 @ sigma2 + eps * eye
    norm_a = jnp.sqrt(jnp.sum(a * a))
    y = a * (1.0 / norm_a)
    z = eye
    for _ in range(num_approx_iters):
        t = 1.5 * eye - 0.5 * (z @ y)
        y, z = y @ t, t @ z
    tr_sqrt = jnp.sqrt(norm_a) * jnp.trace(y)
    diff = mu1 - mu2
    return (jnp.sum(diff * diff) + jnp.trace(sigma1) + jnp.trace(sigma2)
            - 2.0 * tr_sqrt)


if __name__ == "__main__":
    D = 64           # feature dimension of the Gaussian statistics (demo size)
    NUM_ITERS = 20   # 15-20 Newton-Schulz iterations are standard for f32 FID

    key = jax.random.PRNGKey(0)
    k1, k2, k3, k4 = jax.random.split(key, 4)

    mu1 = jax.random.normal(k1, (D,), jnp.float32)
    mu2 = jax.random.normal(k2, (D,), jnp.float32)

    a1 = jax.random.normal(k3, (D, D), jnp.float32)
    a2 = jax.random.normal(k4, (D, D), jnp.float32)
    # Symmetric positive-definite covariances.
    sigma1 = a1 @ a1.T / D + 0.1 * jnp.eye(D, dtype=jnp.float32)
    sigma2 = a2 @ a2.T / D + 0.1 * jnp.eye(D, dtype=jnp.float32)

    out = fid_loss(mu1, sigma1, mu2, sigma2,
                   num_approx_iters=NUM_ITERS, eps=1e-6)
    out = jax.block_until_ready(out)

    ref = _fid_reference(mu1, sigma1, mu2, sigma2,
                         num_approx_iters=NUM_ITERS, eps=1e-6)
    assert jnp.isfinite(out), "kernel produced non-finite FID"
    assert jnp.abs(out - ref) / (jnp.abs(ref) + 1e-6) < 1e-3, (out, ref)

    print("KERNEL_OK")
</pallas_src>

<mosaic_0001>
module attributes {stable_mosaic.version = 11 : i64} {
  func.func @_fid_kernel(%arg0: memref<128x128xf32, #tpu.memory_space<any>>, %arg1: memref<128x128xf32, #tpu.memory_space<any>>, %arg2: memref<1x1xf32, #tpu.memory_space<smem>>, %arg3: memref<128x128xf32, #tpu.memory_space<vmem>>, %arg4: memref<128x128xf32, #tpu.memory_space<vmem>>, %arg5: memref<2x!tpu.dma_semaphore, #tpu.memory_space<semaphore_mem>>) attributes {dimension_semantics = [], scalar_prefetch = 0 : i64, scratch_operands = 3 : i64, tpu.core_type = #tpu.core_type<tc>} {
    %c0_i32 = arith.constant 0 : i32
    %0 = tpu.memref_slice %arg5[%c0_i32] : memref<2x!tpu.dma_semaphore, #tpu.memory_space<semaphore_mem>> -> memref<1x!tpu.dma_semaphore, #tpu.memory_space<semaphore_mem>>
    %1 = tpu.memref_squeeze %0 : memref<1x!tpu.dma_semaphore, #tpu.memory_space<semaphore_mem>> -> memref<!tpu.dma_semaphore, #tpu.memory_space<semaphore_mem>>
    tpu.enqueue_dma source(%arg0 : memref<128x128xf32, #tpu.memory_space<any>>) target(%arg3 : memref<128x128xf32, #tpu.memory_space<vmem>>) target_semaphore(%1 : memref<!tpu.dma_semaphore, #tpu.memory_space<semaphore_mem>>)
    %c1_i32 = arith.constant 1 : i32
    %2 = tpu.memref_slice %arg5[%c1_i32] : memref<2x!tpu.dma_semaphore, #tpu.memory_space<semaphore_mem>> -> memref<1x!tpu.dma_semaphore, #tpu.memory_space<semaphore_mem>>
    %3 = tpu.memref_squeeze %2 : memref<1x!tpu.dma_semaphore, #tpu.memory_space<semaphore_mem>> -> memref<!tpu.dma_semaphore, #tpu.memory_space<semaphore_mem>>
    tpu.enqueue_dma source(%arg1 : memref<128x128xf32, #tpu.memory_space<any>>) target(%arg4 : memref<128x128xf32, #tpu.memory_space<vmem>>) target_semaphore(%3 : memref<!tpu.dma_semaphore, #tpu.memory_space<semaphore_mem>>)
    %c0_i32_0 = arith.constant 0 : i32
    %4 = tpu.memref_slice %arg5[%c0_i32_0] : memref<2x!tpu.dma_semaphore, #tpu.memory_space<semaphore_mem>> -> memref<1x!tpu.dma_semaphore, #tpu.memory_space<semaphore_mem>>
    %5 = tpu.memref_squeeze %4 : memref<1x!tpu.dma_semaphore, #tpu.memory_space<semaphore_mem>> -> memref<!tpu.dma_semaphore, #tpu.memory_space<semaphore_mem>>
    tpu.wait_dma2 semaphore(%5 : memref<!tpu.dma_semaphore, #tpu.memory_space<semaphore_mem>>) src(%arg0 : memref<128x128xf32, #tpu.memory_space<any>>) dst(%arg3 : memref<128x128xf32, #tpu.memory_space<vmem>>)
    %c1_i32_1 = arith.constant 1 : i32
    %6 = tpu.memref_slice %arg5[%c1_i32_1] : memref<2x!tpu.dma_semaphore, #tpu.memory_space<semaphore_mem>> -> memref<1x!tpu.dma_semaphore, #tpu.memory_space<semaphore_mem>>
    %7 = tpu.memref_squeeze %6 : memref<1x!tpu.dma_semaphore, #tpu.memory_space<semaphore_mem>> -> memref<!tpu.dma_semaphore, #tpu.memory_space<semaphore_mem>>
    tpu.wait_dma2 semaphore(%7 : memref<!tpu.dma_semaphore, #tpu.memory_space<semaphore_mem>>) src(%arg1 : memref<128x128xf32, #tpu.memory_space<any>>) dst(%arg4 : memref<128x128xf32, #tpu.memory_space<vmem>>)
    %8 = tpu.iota {dimensions = array<i32: 0>} : vector<128x128xi32>
    %9 = tpu.iota {dimensions = array<i32: 1>} : vector<128x128xi32>
    %10 = arith.cmpi eq, %8, %9 : vector<128x128xi32>
    %cst = arith.constant 1.000000e+00 : f32
    %cst_2 = arith.constant 0.000000e+00 : f32
    %11 = vector.broadcast %cst : f32 to vector<128x128xf32>
    %12 = vector.broadcast %cst_2 : f32 to vector<128x128xf32>
    %13 = arith.select %10, %11, %12 : vector<128x128xi1>, vector<128x128xf32>
    %c0 = arith.constant 0 : index
    %c0_3 = arith.constant 0 : index
    %14 = vector.load %arg3[%c0, %c0_3] : memref<128x128xf32, #tpu.memory_space<vmem>>, vector<128x128xf32>
    %c0_4 = arith.constant 0 : index
    %c0_5 = arith.constant 0 : index
    %15 = vector.load %arg4[%c0_4, %c0_5] : memref<128x128xf32, #tpu.memory_space<vmem>>, vector<128x128xf32>
    %cst_6 = arith.constant dense<0.000000e+00> : vector<128x128xf32>
    %16 = tpu.matmul %14, %15, %cst_6 {dimension_numbers = #tpu.dot_dimension_numbers<[1], [0], [0], [1], [0, 0, 1, 1], [], []>} : vector<128x128xf32>, vector<128x128xf32>, vector<128x128xf32> -> vector<128x128xf32>
    %c64_i32 = arith.constant 64 : i32
    %17 = vector.broadcast %c64_i32 : i32 to vector<128x128xi32>
    %18 = arith.cmpi slt, %8, %17 : vector<128x128xi32>
    %19 = arith.andi %10, %18 : vector<128x128xi1>
    %cst_7 = arith.constant 9.99999997E-7 : f32
    %20 = vector.broadcast %cst_7 : f32 to vector<128x128xf32>
    %21 = arith.addf %16, %20 : vector<128x128xf32>
    %22 = arith.select %19, %21, %16 : vector<128x128xi1>, vector<128x128xf32>
    %23 = arith.mulf %22, %22 : vector<128x128xf32>
    %24 = vector.shape_cast %23 : vector<128x128xf32> to vector<1x128x128xf32>
    %cst_8 = arith.constant dense<0.000000e+00> : vector<1xf32>
    %25 = vector.multi_reduction <add>, %24, %cst_8 [1, 2] : vector<1x128x128xf32> to vector<1xf32>
    %26 = vector.shape_cast %25 : vector<1xf32> to vector<1x1x1xf32>
    %27 = vector.extract %26[0, 0, 0] : f32 from vector<1x1x1xf32>
    %28 = math.sqrt %27 : f32
    %cst_9 = arith.constant 1.000000e-30 : f32
    %29 = arith.maximumf %28, %cst_9 : f32
    %cst_10 = arith.constant 1.000000e+00 : f32
    %30 = arith.divf %cst_10, %29 : f32
    %31 = vector.broadcast %30 : f32 to vector<128x128xf32>
    %32 = arith.mulf %22, %31 : vector<128x128xf32>
    %cst_11 = arith.constant 1.500000e+00 : f32
    %33 = vector.broadcast %cst_11 : f32 to vector<128x128xf32>
    %34 = arith.mulf %33, %13 : vector<128x128xf32>
    %cst_12 = arith.constant dense<0.000000e+00> : vector<128x128xf32>
    %35 = tpu.matmul %13, %32, %cst_12 {dimension_numbers = #tpu.dot_dimension_numbers<[1], [0], [0], [1], [0, 0, 1, 1], [], []>} : vector<128x128xf32>, vector<128x128xf32>, vector<128x128xf32> -> vector<128x128xf32>
    %cst_13 = arith.constant 5.000000e-01 : f32
    %36 = vector.broadcast %cst_13 : f32 to vector<128x128xf32>
    %37 = arith.mulf %36, %35 : vector<128x128xf32>
    %38 = arith.subf %34, %37 : vector<128x128xf32>
    %cst_14 = arith.constant dense<0.000000e+00> : vector<128x128xf32>
    %39 = tpu.matmul %32, %38, %cst_14 {dimension_numbers = #tpu.dot_dimension_numbers<[1], [0], [0], [1], [0, 0, 1, 1], [], []>} : vector<128x128xf32>, vector<128x128xf32>, vector<128x128xf32> -> vector<128x128xf32>
    %cst_15 = arith.constant dense<0.000000e+00> : vector<128x128xf32>
    %40 = tpu.matmul %38, %13, %cst_15 {dimension_numbers = #tpu.dot_dimension_numbers<[1], [0], [0], [1], [0, 0, 1, 1], [], []>} : vector<128x128xf32>, vector<128x128xf32>, vector<128x128xf32> -> vector<128x128xf32>
    %cst_16 = arith.constant 1.500000e+00 : f32
    %41 = vector.broadcast %cst_16 : f32 to vector<128x128xf32>
    %42 = arith.mulf %41, %13 : vector<128x128xf32>
    %cst_17 = arith.constant dense<0.000000e+00> : vector<128x128xf32>
    %43 = tpu.matmul %40, %39, %cst_17 {dimension_numbers = #tpu.dot_dimension_numbers<[1], [0], [0], [1], [0, 0, 1, 1], [], []>} : vector<128x128xf32>, vector<128x128xf32>, vector<128x128xf32> -> vector<128x128xf32>
    %cst_18 = arith.constant 5.000000e-01 : f32
    %44 = vector.broadcast %cst_18 : f32 to vector<128x128xf32>
    %45 = arith.mulf %44, %43 : vector<128x128xf32>
    %46 = arith.subf %42, %45 : vector<128x128xf32>
    %cst_19 = arith.constant dense<0.000000e+00> : vector<128x128xf32>
    %47 = tpu.matmul %39, %46, %cst_19 {dimension_numbers = #tpu.dot_dimension_numbers<[1], [0], [0], [1], [0, 0, 1, 1], [], []>} : vector<128x128xf32>, vector<128x128xf32>, vector<128x128xf32> -> vector<128x128xf32>
    %cst_20 = arith.constant dense<0.000000e+00> : vector<128x128xf32>
    %48 = tpu.matmul %46, %40, %cst_20 {dimension_numbers = #tpu.dot_dimension_numbers<[1], [0], [0], [1], [0, 0, 1, 1], [], []>} : vector<128x128xf32>, vector<128x128xf32>, vector<128x128xf32> -> vector<128x128xf32>
    %cst_21 = arith.constant 1.500000e+00 : f32
    %49 = vector.broadcast %cst_21 : f32 to vector<128x128xf32>
    %50 = arith.mulf %49, %13 : vector<128x128xf32>
    %cst_22 = arith.constant dense<0.000000e+00> : vector<128x128xf32>
    %51 = tpu.matmul %48, %47, %cst_22 {dimension_numbers = #tpu.dot_dimension_numbers<[1], [0], [0], [1], [0, 0, 1, 1], [], []>} : vector<128x128xf32>, vector<128x128xf32>, vector<128x128xf32> -> vector<128x128xf32>
    %cst_23 = arith.constant 5.000000e-01 : f32
    %52 = vector.broadcast %cst_23 : f32 to vector<128x128xf32>
    %53 = arith.mulf %52, %51 : vector<128x128xf32>
    %54 = arith.subf %50, %53 : vector<128x128xf32>
    %cst_24 = arith.constant dense<0.000000e+00> : vector<128x128xf32>
    %55 = tpu.matmul %47, %54, %cst_24 {dimension_numbers = #tpu.dot_dimension_numbers<[1], [0], [0], [1], [0, 0, 1, 1], [], []>} : vector<128x128xf32>, vector<128x128xf32>, vector<128x128xf32> -> vector<128x128xf32>
    %cst_25 = arith.constant dense<0.000000e+00> : vector<128x128xf32>
    %56 = tpu.matmul %54, %48, %cst_25 {dimension_numbers = #tpu.dot_dimension_numbers<[1], [0], [0], [1], [0, 0, 1, 1], [], []>} : vector<128x128xf32>, vector<128x128xf32>, vector<128x128xf32> -> vector<128x128xf32>
    %cst_26 = arith.constant 1.500000e+00 : f32
    %57 = vector.broadcast %cst_26 : f32 to vector<128x128xf32>
    %58 = arith.mulf %57, %13 : vector<128x128xf32>
    %cst_27 = arith.constant dense<0.000000e+00> : vector<128x128xf32>
    %59 = tpu.matmul %56, %55, %cst_27 {dimension_numbers = #tpu.dot_dimension_numbers<[1], [0], [0], [1], [0, 0, 1, 1], [], []>} : vector<128x128xf32>, vector<128x128xf32>, vector<128x128xf32> -> vector<128x128xf32>
    %cst_28 = arith.constant 5.000000e-01 : f32
    %60 = vector.broadcast %cst_28 : f32 to vector<128x128xf32>
    %61 = arith.mulf %60, %59 : vector<128x128xf32>
    %62 = arith.subf %58, %61 : vector<128x128xf32>
    %cst_29 = arith.constant dense<0.000000e+00> : vector<128x128xf32>
    %63 = tpu.matmul %55, %62, %cst_29 {dimension_numbers = #tpu.dot_dimension_numbers<[1], [0], [0], [1], [0, 0, 1, 1], [], []>} : vector<128x128xf32>, vector<128x128xf32>, vector<128x128xf32> -> vector<128x128xf32>
    %cst_30 = arith.constant dense<0.000000e+00> : vector<128x128xf32>
    %64 = tpu.matmul %62, %56, %cst_30 {dimension_numbers = #tpu.dot_dimension_numbers<[1], [0], [0], [1], [0, 0, 1, 1], [], []>} : vector<128x128xf32>, vector<128x128xf32>, vector<128x128xf32> -> vector<128x128xf32>
    %cst_31 = arith.constant 1.500000e+00 : f32
    %65 = vector.broadcast %cst_31 : f32 to vector<128x128xf32>
    %66 = arith.mulf %65, %13 : vector<128x128xf32>
    %cst_32 = arith.constant dense<0.000000e+00> : vector<128x128xf32>
    %67 = tpu.matmul %64, %63, %cst_32 {dimension_numbers = #tpu.dot_dimension_numbers<[1], [0], [0], [1], [0, 0, 1, 1], [], []>} : vector<128x128xf32>, vector<128x128xf32>, vector<128x128xf32> -> vector<128x128xf32>
    %cst_33 = arith.constant 5.000000e-01 : f32
    %68 = vector.broadcast %cst_33 : f32 to vector<128x128xf32>
    %69 = arith.mulf %68, %67 : vector<128x128xf32>
    %70 = arith.subf %66, %69 : vector<128x128xf32>
    %cst_34 = arith.constant dense<0.000000e+00> : vector<128x128xf32>
    %71 = tpu.matmul %63, %70, %cst_34 {dimension_numbers = #tpu.dot_dimension_numbers<[1], [0], [0], [1], [0, 0, 1, 1], [], []>} : vector<128x128xf32>, vector<128x128xf32>, vector<128x128xf32> -> vector<128x128xf32>
    %cst_35 = arith.constant dense<0.000000e+00> : vector<128x128xf32>
    %72 = tpu.matmul %70, %64, %cst_35 {dimension_numbers = #tpu.dot_dimension_numbers<[1], [0], [0], [1], [0, 0, 1, 1], [], []>} : vector<128x128xf32>, vector<128x128xf32>, vector<128x128xf32> -> vector<128x128xf32>
    %cst_36 = arith.constant 1.500000e+00 : f32
    %73 = vector.broadcast %cst_36 : f32 to vector<128x128xf32>
    %74 = arith.mulf %73, %13 : vector<128x128xf32>
    %cst_37 = arith.constant dense<0.000000e+00> : vector<128x128xf32>
    %75 = tpu.matmul %72, %71, %cst_37 {dimension_numbers = #tpu.dot_dimension_numbers<[1], [0], [0], [1], [0, 0, 1, 1], [], []>} : vector<128x128xf32>, vector<128x128xf32>, vector<128x128xf32> -> vector<128x128xf32>
    %cst_38 = arith.constant 5.000000e-01 : f32
    %76 = vector.broadcast %cst_38 : f32 to vector<128x128xf32>
    %77 = arith.mulf %76, %75 : vector<128x128xf32>
    %78 = arith.subf %74, %77 : vector<128x128xf32>
    %cst_39 = arith.constant dense<0.000000e+00> : vector<128x128xf32>
    %79 = tpu.matmul %71, %78, %cst_39 {dimension_numbers = #tpu.dot_dimension_numbers<[1], [0], [0], [1], [0, 0, 1, 1], [], []>} : vector<128x128xf32>, vector<128x128xf32>, vector<128x128xf32> -> vector<128x128xf32>
    %cst_40 = arith.constant dense<0.000000e+00> : vector<128x128xf32>
    %80 = tpu.matmul %78, %72, %cst_40 {dimension_numbers = #tpu.dot_dimension_numbers<[1], [0], [0], [1], [0, 0, 1, 1], [], []>} : vector<128x128xf32>, vector<128x128xf32>, vector<128x128xf32> -> vector<128x128xf32>
    %cst_41 = arith.constant 1.500000e+00 : f32
    %81 = vector.broadcast %cst_41 : f32 to vector<128x128xf32>
    %82 = arith.mulf %81, %13 : vector<128x128xf32>
    %cst_42 = arith.constant dense<0.000000e+00> : vector<128x128xf32>
    %83 = tpu.matmul %80, %79, %cst_42 {dimension_numbers = #tpu.dot_dimension_numbers<[1], [0], [0], [1], [0, 0, 1, 1], [], []>} : vector<128x128xf32>, vector<128x128xf32>, vector<128x128xf32> -> vector<128x128xf32>
    %cst_43 = arith.constant 5.000000e-01 : f32
    %84 = vector.broadcast %cst_43 : f32 to vector<128x128xf32>
    %85 = arith.mulf %84, %83 : vector<128x128xf32>
    %86 = arith.subf %82, %85 : vector<128x128xf32>
    %cst_44 = arith.constant dense<0.000000e+00> : vector<128x128xf32>
    %87 = tpu.matmul %79, %86, %cst_44 {dimension_numbers = #tpu.dot_dimension_numbers<[1], [0], [0], [1], [0, 0, 1, 1], [], []>} : vector<128x128xf32>, vector<128x128xf32>, vector<128x128xf32> -> vector<128x128xf32>
    %cst_45 = arith.constant dense<0.000000e+00> : vector<128x128xf32>
    %88 = tpu.matmul %86, %80, %cst_45 {dimension_numbers = #tpu.dot_dimension_numbers<[1], [0], [0], [1], [0, 0, 1, 1], [], []>} : vector<128x128xf32>, vector<128x128xf32>, vector<128x128xf32> -> vector<128x128xf32>
    %cst_46 = arith.constant 1.500000e+00 : f32
    %89 = vector.broadcast %cst_46 : f32 to vector<128x128xf32>
    %90 = arith.mulf %89, %13 : vector<128x128xf32>
    %cst_47 = arith.constant dense<0.000000e+00> : vector<128x128xf32>
    %91 = tpu.matmul %88, %87, %cst_47 {dimension_numbers = #tpu.dot_dimension_numbers<[1], [0], [0], [1], [0, 0, 1, 1], [], []>} : vector<128x128xf32>, vector<128x128xf32>, vector<128x128xf32> -> vector<128x128xf32>
    %cst_48 = arith.constant 5.000000e-01 : f32
    %92 = vector.broadcast %cst_48 : f32 to vector<128x128xf32>
    %93 = arith.mulf %92, %91 : vector<128x128xf32>
    %94 = arith.subf %90, %93 : vector<128x128xf32>
    %cst_49 = arith.constant dense<0.000000e+00> : vector<128x128xf32>
    %95 = tpu.matmul %87, %94, %cst_49 {dimension_numbers = #tpu.dot_dimension_numbers<[1], [0], [0], [1], [0, 0, 1, 1], [], []>} : vector<128x128xf32>, vector<128x128xf32>, vector<128x128xf32> -> vector<128x128xf32>
    %cst_50 = arith.constant dense<0.000000e+00> : vector<128x128xf32>
    %96 = tpu.matmul %94, %88, %cst_50 {dimension_numbers = #tpu.dot_dimension_numbers<[1], [0], [0], [1], [0, 0, 1, 1], [], []>} : vector<128x128xf32>, vector<128x128xf32>, vector<128x128xf32> -> vector<128x128xf32>
    %cst_51 = arith.constant 1.500000e+00 : f32
    %97 = vector.broadcast %cst_51 : f32 to vector<128x128xf32>
    %98 = arith.mulf %97, %13 : vector<128x128xf32>
    %cst_52 = arith.constant dense<0.000000e+00> : vector<128x128xf32>
    %99 = tpu.matmul %96, %95, %cst_52 {dimension_numbers = #tpu.dot_dimension_numbers<[1], [0], [0], [1], [0, 0, 1, 1], [], []>} : vector<128x128xf32>, vector<128x128xf32>, vector<128x128xf32> -> vector<128x128xf32>
    %cst_53 = arith.constant 5.000000e-01 : f32
    %100 = vector.broadcast %cst_53 : f32 to vector<128x128xf32>
    %101 = arith.mulf %100, %99 : vector<128x128xf32>
    %102 = arith.subf %98, %101 : vector<128x128xf32>
    %cst_54 = arith.constant dense<0.000000e+00> : vector<128x128xf32>
    %103 = tpu.matmul %95, %102, %cst_54 {dimension_numbers = #tpu.dot_dimension_numbers<[1], [0], [0], [1], [0, 0, 1, 1], [], []>} : vector<128x128xf32>, vector<128x128xf32>, vector<128x128xf32> -> vector<128x128xf32>
    %cst_55 = arith.constant dense<0.000000e+00> : vector<128x128xf32>
    %104 = tpu.matmul %102, %96, %cst_55 {dimension_numbers = #tpu.dot_dimension_numbers<[1], [0], [0], [1], [0, 0, 1, 1], [], []>} : vector<128x128xf32>, vector<128x128xf32>, vector<128x128xf32> -> vector<128x128xf32>
    %cst_56 = arith.constant 1.500000e+00 : f32
    %105 = vector.broadcast %cst_56 : f32 to vector<128x128xf32>
    %106 = arith.mulf %105, %13 : vector<128x128xf32>
    %cst_57 = arith.constant dense<0.000000e+00> : vector<128x128xf32>
    %107 = tpu.matmul %104, %103, %cst_57 {dimension_numbers = #tpu.dot_dimension_numbers<[1], [0], [0], [1], [0, 0, 1, 1], [], []>} : vector<128x128xf32>, vector<128x128xf32>, vector<128x128xf32> -> vector<128x128xf32>
    %cst_58 = arith.constant 5.000000e-01 : f32
    %108 = vector.broadcast %cst_58 : f32 to vector<128x128xf32>
    %109 = arith.mulf %108, %107 : vector<128x128xf32>
    %110 = arith.subf %106, %109 : vector<128x128xf32>
    %cst_59 = arith.constant dense<0.000000e+00> : vector<128x128xf32>
    %111 = tpu.matmul %103, %110, %cst_59 {dimension_numbers = #tpu.dot_dimension_numbers<[1], [0], [0], [1], [0, 0, 1, 1], [], []>} : vector<128x128xf32>, vector<128x128xf32>, vector<128x128xf32> -> vector<128x128xf32>
    %cst_60 = arith.constant dense<0.000000e+00> : vector<128x128xf32>
    %112 = tpu.matmul %110, %104, %cst_60 {dimension_numbers = #tpu.dot_dimension_numbers<[1], [0], [0], [1], [0, 0, 1, 1], [], []>} : vector<128x128xf32>, vector<128x128xf32>, vector<128x128xf32> -> vector<128x128xf32>
    %cst_61 = arith.constant 1.500000e+00 : f32
    %113 = vector.broadcast %cst_61 : f32 to vector<128x128xf32>
    %114 = arith.mulf %113, %13 : vector<128x128xf32>
    %cst_62 = arith.constant dense<0.000000e+00> : vector<128x128xf32>
    %115 = tpu.matmul %112, %111, %cst_62 {dimension_numbers = #tpu.dot_dimension_numbers<[1], [0], [0], [1], [0, 0, 1, 1], [], []>} : vector<128x128xf32>, vector<128x128xf32>, vector<128x128xf32> -> vector<128x128xf32>
    %cst_63 = arith.constant 5.000000e-01 : f32
    %116 = vector.broadcast %cst_63 : f32 to vector<128x128xf32>
    %117 = arith.mulf %116, %115 : vector<128x128xf32>
    %118 = arith.subf %114, %117 : vector<128x128xf32>
    %cst_64 = arith.constant dense<0.000000e+00> : vector<128x128xf32>
    %119 = tpu.matmul %111, %118, %cst_64 {dimension_numbers = #tpu.dot_dimension_numbers<[1], [0], [0], [1], [0, 0, 1, 1], [], []>} : vector<128x128xf32>, vector<128x128xf32>, vector<128x128xf32> -> vector<128x128xf32>
    %cst_65 = arith.constant dense<0.000000e+00> : vector<128x128xf32>
    %120 = tpu.matmul %118, %112, %cst_65 {dimension_numbers = #tpu.dot_dimension_numbers<[1], [0], [0], [1], [0, 0, 1, 1], [], []>} : vector<128x128xf32>, vector<128x128xf32>, vector<128x128xf32> -> vector<128x128xf32>
    %cst_66 = arith.constant 1.500000e+00 : f32
    %121 = vector.broadcast %cst_66 : f32 to vector<128x128xf32>
    %122 = arith.mulf %121, %13 : vector<128x128xf32>
    %cst_67 = arith.constant dense<0.000000e+00> : vector<128x128xf32>
    %123 = tpu.matmul %120, %119, %cst_67 {dimension_numbers = #tpu.dot_dimension_numbers<[1], [0], [0], [1], [0, 0, 1, 1], [], []>} : vector<128x128xf32>, vector<128x128xf32>, vector<128x128xf32> -> vector<128x128xf32>
    %cst_68 = arith.constant 5.000000e-01 : f32
    %124 = vector.broadcast %cst_68 : f32 to vector<128x128xf32>
    %125 = arith.mulf %124, %123 : vector<128x128xf32>
    %126 = arith.subf %122, %125 : vector<128x128xf32>
    %cst_69 = arith.constant dense<0.000000e+00> : vector<128x128xf32>
    %127 = tpu.matmul %119, %126, %cst_69 {dimension_numbers = #tpu.dot_dimension_numbers<[1], [0], [0], [1], [0, 0, 1, 1], [], []>} : vector<128x128xf32>, vector<128x128xf32>, vector<128x128xf32> -> vector<128x128xf32>
    %cst_70 = arith.constant dense<0.000000e+00> : vector<128x128xf32>
    %128 = tpu.matmul %126, %120, %cst_70 {dimension_numbers = #tpu.dot_dimension_numbers<[1], [0], [0], [1], [0, 0, 1, 1], [], []>} : vector<128x128xf32>, vector<128x128xf32>, vector<128x128xf32> -> vector<128x128xf32>
    %cst_71 = arith.constant 1.500000e+00 : f32
    %129 = vector.broadcast %cst_71 : f32 to vector<128x128xf32>
    %130 = arith.mulf %129, %13 : vector<128x128xf32>
    %cst_72 = arith.constant dense<0.000000e+00> : vector<128x128xf32>
    %131 = tpu.matmul %128, %127, %cst_72 {dimension_numbers = #tpu.dot_dimension_numbers<[1], [0], [0], [1], [0, 0, 1, 1], [], []>} : vector<128x128xf32>, vector<128x128xf32>, vector<128x128xf32> -> vector<128x128xf32>
    %cst_73 = arith.constant 5.000000e-01 : f32
    %132 = vector.broadcast %cst_73 : f32 to vector<128x128xf32>
    %133 = arith.mulf %132, %131 : vector<128x128xf32>
    %134 = arith.subf %130, %133 : vector<128x128xf32>
    %cst_74 = arith.constant dense<0.000000e+00> : vector<128x128xf32>
    %135 = tpu.matmul %127, %134, %cst_74 {dimension_numbers = #tpu.dot_dimension_numbers<[1], [0], [0], [1], [0, 0, 1, 1], [], []>} : vector<128x128xf32>, vector<128x128xf32>, vector<128x128xf32> -> vector<128x128xf32>
    %cst_75 = arith.constant dense<0.000000e+00> : vector<128x128xf32>
    %136 = tpu.matmul %134, %128, %cst_75 {dimension_numbers = #tpu.dot_dimension_numbers<[1], [0], [0], [1], [0, 0, 1, 1], [], []>} : vector<128x128xf32>, vector<128x128xf32>, vector<128x128xf32> -> vector<128x128xf32>
    %cst_76 = arith.constant 1.500000e+00 : f32
    %137 = vector.broadcast %cst_76 : f32 to vector<128x128xf32>
    %138 = arith.mulf %137, %13 : vector<128x128xf32>
    %cst_77 = arith.constant dense<0.000000e+00> : vector<128x128xf32>
    %139 = tpu.matmul %136, %135, %cst_77 {dimension_numbers = #tpu.dot_dimension_numbers<[1], [0], [0], [1], [0, 0, 1, 1], [], []>} : vector<128x128xf32>, vector<128x128xf32>, vector<128x128xf32> -> vector<128x128xf32>
    %cst_78 = arith.constant 5.000000e-01 : f32
    %140 = vector.broadcast %cst_78 : f32 to vector<128x128xf32>
    %141 = arith.mulf %140, %139 : vector<128x128xf32>
    %142 = arith.subf %138, %141 : vector<128x128xf32>
    %cst_79 = arith.constant dense<0.000000e+00> : vector<128x128xf32>
    %143 = tpu.matmul %135, %142, %cst_79 {dimension_numbers = #tpu.dot_dimension_numbers<[1], [0], [0], [1], [0, 0, 1, 1], [], []>} : vector<128x128xf32>, vector<128x128xf32>, vector<128x128xf32> -> vector<128x128xf32>
    %cst_80 = arith.constant dense<0.000000e+00> : vector<128x128xf32>
    %144 = tpu.matmul %142, %136, %cst_80 {dimension_numbers = #tpu.dot_dimension_numbers<[1], [0], [0], [1], [0, 0, 1, 1], [], []>} : vector<128x128xf32>, vector<128x128xf32>, vector<128x128xf32> -> vector<128x128xf32>
    %cst_81 = arith.constant 1.500000e+00 : f32
    %145 = vector.broadcast %cst_81 : f32 to vector<128x128xf32>
    %146 = arith.mulf %145, %13 : vector<128x128xf32>
    %cst_82 = arith.constant dense<0.000000e+00> : vector<128x128xf32>
    %147 = tpu.matmul %144, %143, %cst_82 {dimension_numbers = #tpu.dot_dimension_numbers<[1], [0], [0], [1], [0, 0, 1, 1], [], []>} : vector<128x128xf32>, vector<128x128xf32>, vector<128x128xf32> -> vector<128x128xf32>
    %cst_83 = arith.constant 5.000000e-01 : f32
    %148 = vector.broadcast %cst_83 : f32 to vector<128x128xf32>
    %149 = arith.mulf %148, %147 : vector<128x128xf32>
    %150 = arith.subf %146, %149 : vector<128x128xf32>
    %cst_84 = arith.constant dense<0.000000e+00> : vector<128x128xf32>
    %151 = tpu.matmul %143, %150, %cst_84 {dimension_numbers = #tpu.dot_dimension_numbers<[1], [0], [0], [1], [0, 0, 1, 1], [], []>} : vector<128x128xf32>, vector<128x128xf32>, vector<128x128xf32> -> vector<128x128xf32>
    %cst_85 = arith.constant dense<0.000000e+00> : vector<128x128xf32>
    %152 = tpu.matmul %150, %144, %cst_85 {dimension_numbers = #tpu.dot_dimension_numbers<[1], [0], [0], [1], [0, 0, 1, 1], [], []>} : vector<128x128xf32>, vector<128x128xf32>, vector<128x128xf32> -> vector<128x128xf32>
    %cst_86 = arith.constant 1.500000e+00 : f32
    %153 = vector.broadcast %cst_86 : f32 to vector<128x128xf32>
    %154 = arith.mulf %153, %13 : vector<128x128xf32>
    %cst_87 = arith.constant dense<0.000000e+00> : vector<128x128xf32>
    %155 = tpu.matmul %152, %151, %cst_87 {dimension_numbers = #tpu.dot_dimension_numbers<[1], [0], [0], [1], [0, 0, 1, 1], [], []>} : vector<128x128xf32>, vector<128x128xf32>, vector<128x128xf32> -> vector<128x128xf32>
    %cst_88 = arith.constant 5.000000e-01 : f32
    %156 = vector.broadcast %cst_88 : f32 to vector<128x128xf32>
    %157 = arith.mulf %156, %155 : vector<128x128xf32>
    %158 = arith.subf %154, %157 : vector<128x128xf32>
    %cst_89 = arith.constant dense<0.000000e+00> : vector<128x128xf32>
    %159 = tpu.matmul %151, %158, %cst_89 {dimension_numbers = #tpu.dot_dimension_numbers<[1], [0], [0], [1], [0, 0, 1, 1], [], []>} : vector<128x128xf32>, vector<128x128xf32>, vector<128x128xf32> -> vector<128x128xf32>
    %cst_90 = arith.constant dense<0.000000e+00> : vector<128x128xf32>
    %160 = tpu.matmul %158, %152, %cst_90 {dimension_numbers = #tpu.dot_dimension_numbers<[1], [0], [0], [1], [0, 0, 1, 1], [], []>} : vector<128x128xf32>, vector<128x128xf32>, vector<128x128xf32> -> vector<128x128xf32>
    %cst_91 = arith.constant 1.500000e+00 : f32
    %161 = vector.broadcast %cst_91 : f32 to vector<128x128xf32>
    %162 = arith.mulf %161, %13 : vector<128x128xf32>
    %cst_92 = arith.constant dense<0.000000e+00> : vector<128x128xf32>
    %163 = tpu.matmul %160, %159, %cst_92 {dimension_numbers = #tpu.dot_dimension_numbers<[1], [0], [0], [1], [0, 0, 1, 1], [], []>} : vector<128x128xf32>, vector<128x128xf32>, vector<128x128xf32> -> vector<128x128xf32>
    %cst_93 = arith.constant 5.000000e-01 : f32
    %164 = vector.broadcast %cst_93 : f32 to vector<128x128xf32>
    %165 = arith.mulf %164, %163 : vector<128x128xf32>
    %166 = arith.subf %162, %165 : vector<128x128xf32>
    %cst_94 = arith.constant dense<0.000000e+00> : vector<128x128xf32>
    %167 = tpu.matmul %159, %166, %cst_94 {dimension_numbers = #tpu.dot_dimension_numbers<[1], [0], [0], [1], [0, 0, 1, 1], [], []>} : vector<128x128xf32>, vector<128x128xf32>, vector<128x128xf32> -> vector<128x128xf32>
    %cst_95 = arith.constant dense<0.000000e+00> : vector<128x128xf32>
    %168 = tpu.matmul %166, %160, %cst_95 {dimension_numbers = #tpu.dot_dimension_numbers<[1], [0], [0], [1], [0, 0, 1, 1], [], []>} : vector<128x128xf32>, vector<128x128xf32>, vector<128x128xf32> -> vector<128x128xf32>
    %cst_96 = arith.constant 1.500000e+00 : f32
    %169 = vector.broadcast %cst_96 : f32 to vector<128x128xf32>
    %170 = arith.mulf %169, %13 : vector<128x128xf32>
    %cst_97 = arith.constant dense<0.000000e+00> : vector<128x128xf32>
    %171 = tpu.matmul %168, %167, %cst_97 {dimension_numbers = #tpu.dot_dimension_numbers<[1], [0], [0], [1], [0, 0, 1, 1], [], []>} : vector<128x128xf32>, vector<128x128xf32>, vector<128x128xf32> -> vector<128x128xf32>
    %cst_98 = arith.constant 5.000000e-01 : f32
    %172 = vector.broadcast %cst_98 : f32 to vector<128x128xf32>
    %173 = arith.mulf %172, %171 : vector<128x128xf32>
    %174 = arith.subf %170, %173 : vector<128x128xf32>
    %cst_99 = arith.constant dense<0.000000e+00> : vector<128x128xf32>
    %175 = tpu.matmul %167, %174, %cst_99 {dimension_numbers = #tpu.dot_dimension_numbers<[1], [0], [0], [1], [0, 0, 1, 1], [], []>} : vector<128x128xf32>, vector<128x128xf32>, vector<128x128xf32> -> vector<128x128xf32>
    %cst_100 = arith.constant dense<0.000000e+00> : vector<128x128xf32>
    %176 = tpu.matmul %174, %168, %cst_100 {dimension_numbers = #tpu.dot_dimension_numbers<[1], [0], [0], [1], [0, 0, 1, 1], [], []>} : vector<128x128xf32>, vector<128x128xf32>, vector<128x128xf32> -> vector<128x128xf32>
    %cst_101 = arith.constant 1.500000e+00 : f32
    %177 = vector.broadcast %cst_101 : f32 to vector<128x128xf32>
    %178 = arith.mulf %177, %13 : vector<128x128xf32>
    %cst_102 = arith.constant dense<0.000000e+00> : vector<128x128xf32>
    %179 = tpu.matmul %176, %175, %cst_102 {dimension_numbers = #tpu.dot_dimension_numbers<[1], [0], [0], [1], [0, 0, 1, 1], [], []>} : vector<128x128xf32>, vector<128x128xf32>, vector<128x128xf32> -> vector<128x128xf32>
    %cst_103 = arith.constant 5.000000e-01 : f32
    %180 = vector.broadcast %cst_103 : f32 to vector<128x128xf32>
    %181 = arith.mulf %180, %179 : vector<128x128xf32>
    %182 = arith.subf %178, %181 : vector<128x128xf32>
    %cst_104 = arith.constant dense<0.000000e+00> : vector<128x128xf32>
    %183 = tpu.matmul %175, %182, %cst_104 {dimension_numbers = #tpu.dot_dimension_numbers<[1], [0], [0], [1], [0, 0, 1, 1], [], []>} : vector<128x128xf32>, vector<128x128xf32>, vector<128x128xf32> -> vector<128x128xf32>
    %cst_105 = arith.constant dense<0.000000e+00> : vector<128x128xf32>
    %184 = tpu.matmul %182, %176, %cst_105 {dimension_numbers = #tpu.dot_dimension_numbers<[1], [0], [0], [1], [0, 0, 1, 1], [], []>} : vector<128x128xf32>, vector<128x128xf32>, vector<128x128xf32> -> vector<128x128xf32>
    %cst_106 = arith.constant 1.500000e+00 : f32
    %185 = vector.broadcast %cst_106 : f32 to vector<128x128xf32>
    %186 = arith.mulf %185, %13 : vector<128x128xf32>
    %cst_107 = arith.constant dense<0.000000e+00> : vector<128x128xf32>
    %187 = tpu.matmul %184, %183, %cst_107 {dimension_numbers = #tpu.dot_dimension_numbers<[1], [0], [0], [1], [0, 0, 1, 1], [], []>} : vector<128x128xf32>, vector<128x128xf32>, vector<128x128xf32> -> vector<128x128xf32>
    %cst_108 = arith.constant 5.000000e-01 : f32
    %188 = vector.broadcast %cst_108 : f32 to vector<128x128xf32>
    %189 = arith.mulf %188, %187 : vector<128x128xf32>
    %190 = arith.subf %186, %189 : vector<128x128xf32>
    %cst_109 = arith.constant dense<0.000000e+00> : vector<128x128xf32>
    %191 = tpu.matmul %183, %190, %cst_109 {dimension_numbers = #tpu.dot_dimension_numbers<[1], [0], [0], [1], [0, 0, 1, 1], [], []>} : vector<128x128xf32>, vector<128x128xf32>, vector<128x128xf32> -> vector<128x128xf32>
    %192 = math.sqrt %29 : f32
    %193 = arith.mulf %191, %13 : vector<128x128xf32>
    %194 = vector.shape_cast %193 : vector<128x128xf32> to vector<1x128x128xf32>
    %cst_110 = arith.constant dense<0.000000e+00> : vector<1xf32>
    %195 = vector.multi_reduction <add>, %194, %cst_110 [1, 2] : vector<1x128x128xf32> to vector<1xf32>
    %196 = vector.shape_cast %195 : vector<1xf32> to vector<1x1x1xf32>
    %197 = vector.extract %196[0, 0, 0] : f32 from vector<1x1x1xf32>
    %198 = arith.mulf %192, %197 : f32
    %cst_111 = arith.constant 0.000000e+00 : f32
    %cst_112 = arith.constant 2.000000e+00 : f32
    %199 = arith.subf %cst_111, %cst_112 : f32
    %200 = arith.mulf %199, %198 : f32
    %c0_113 = arith.constant 0 : index
    %c0_114 = arith.constant 0 : index
    %201 = memref.load %arg2[%c0_113, %c0_114] : memref<1x1xf32, #tpu.memory_space<smem>>
    memref.store %200, %arg2[%c0_113, %c0_114] : memref<1x1xf32, #tpu.memory_space<smem>>
    return
  }
}

</mosaic_0001>

<llo_original>
// kernel: tpu_custom_call.1
$region0: #{tpu_custom_call.1}
  #allocation0 [shape = 'u32[]', space=smem, size = 0x4, offset = 0x4, fixed_abs, tag = 'smem constant byte address 0x4 - core index']
  #allocation1 [shape = 'u32[144,128]{1,0:T(1,128)}', space=vmem, size = 0x12000, scoped, tag = 'internal scratch']
  #allocation2 [shape = 'f32[128,128]{1,0:T(8,128)}', space=vmem, size = 0x10000, scoped, tag = 'scratch operand']
  #allocation3 [shape = 'f32[128,128]{1,0:T(8,128)}', space=vmem, size = 0x10000, scoped, tag = 'scratch operand']
  #allocation4 [shape = 's32[2]{0}', space=sflag, size = 0x8, scoped, tag = 'scratch operand']
  #allocation7 [shape = 's32[]', space=sflag, size = 0x4, offset = 0, fixed_abs, tag = 'sflag constant byte address 0x0 - dummy sync flag']
  #allocation8 [shape = 's32[]', space=sflag, size = 0x4, offset = 0, fixed_abs, tag = 'sflag constant byte address 0x0 - dummy sync flag']
  #allocation9 [shape = 'u32[]', space=smem, size = 0x4, offset = 0x44, fixed_abs, tag = 'smem constant byte address 0x44 - assertion arg 0']
  #allocation10 [shape = 'u32[]', space=smem, size = 0x4, offset = 0x48, fixed_abs, tag = 'smem constant byte address 0x48 - assertion arg 1']
  #allocation11 [shape = 's32[]', space=sflag, size = 0x4, offset = 0, fixed_abs, tag = 'sflag constant byte address 0x0 - dummy sync flag']
  #allocation12 [shape = 's32[]', space=sflag, size = 0x4, offset = 0, fixed_abs, tag = 'sflag constant byte address 0x0 - dummy sync flag']
  %s0 = inlined_call_operand.hbm [shape: f32[128,128], index: 0, kind: input, shape index: {}]
  %s1 = inlined_call_operand.hbm [shape: f32[128,128], index: 1, kind: input, shape index: {}]
  %s2 = inlined_call_operand.hbm [shape: f32[1,1], index: 2, kind: output, shape index: {}]
  %s3 = sld [smem:[#allocation0]]
  $region18: #{tpu_custom_call.1} parent=0
    _
  %s5 = ssub.s32 1, %s3
  %s6 = scalar_select 0, %s5, %s3
  $region1: #{tpu_custom_call.1} parent=0
    #allocation5 [shape = 'u8[512]{0}', space=smem, size = 0x200, scoped, tag = 'output window, operand 0, single buffered']
    #allocation6 [shape = 's32[1]{0}', space=sflag, size = 0x4, scoped, tag = 'scoped memory for tpu_custom_call.1']
    %7 = vsyncpa [#allocation6], 0
    // Predicated region
    $region2: #{tpu_custom_call.1} parent=1 // pred_check
      _
    $region3: #{tpu_custom_call.1} parent=1 // pred_check_branch
      %9 = sbr.rel target = $region5
    $region4: #{tpu_custom_call.1} parent=1 // pred_region
      %10 = sst [smem:[#allocation9]] [#allocation8]
      %11 = sst [smem:[#allocation10]] [#allocation7]
    $region5: #{tpu_custom_call.1} parent=1 // pred_fallthru
      _
    %13 = shalt.err (0)
    %s15 = sshll.u32 [#allocation2], 4
    %s16 = int_to_ptr.vmem [resolvable:$true] %s15
    %18 = dma.hbm_to_vmem [thread:$0]  %s0, 2048, %s16, [#allocation4]
    %s19 = scalar_lea.sflag [#allocation4], 1
    // Predicated region
    $region6: #{tpu_custom_call.1} parent=1 // pred_check
      _
    $region7: #{tpu_custom_call.1} parent=1 // pred_check_branch
      %21 = sbr.rel target = $region9
    $region8: #{tpu_custom_call.1} parent=1 // pred_region
      %22 = sst [smem:[#allocation9]] [#allocation12]
      %23 = sst [smem:[#allocation10]] [#allocation11]
    $region9: #{tpu_custom_call.1} parent=1 // pred_fallthru
      _
    %25 = shalt.err (0)
    %s27 = sshll.u32 [#allocation3], 4
    %s28 = int_to_ptr.vmem [resolvable:$true] %s27
    %30 = dma.hbm_to_vmem [thread:$0]  %s1, 2048, %s28, %s19
    %s31 = smul.u32 128, 1
    %s32 = sshll.u32 %s31, 4
    %33 = dma.done [#allocation4], %s32
    %s34 = sshll.u32 %s31, 4
    %35 = dma.done %s19, %s34
    %v36 = vlaneseq
    %v37 = vshrl.u32 %v36, 7
    %v38 = vadd.s32 %v37, 8
    %v39 = vadd.s32 %v37, 16
    %v40 = vadd.s32 %v37, 24
    %v41 = vadd.s32 %v37, 32
    %v42 = vadd.s32 %v37, 40
    %v43 = vadd.s32 %v37, 48
    %v44 = vadd.s32 %v37, 56
    %v45 = vadd.s32 %v37, 64
    %v46 = vadd.s32 %v37, 72
    %v47 = vadd.s32 %v37, 80
    %v48 = vadd.s32 %v37, 88
    %v49 = vadd.s32 %v37, 96
    %v50 = vadd.s32 %v37, 104
    %v51 = vadd.s32 %v37, 112
    %v52 = vadd.s32 %v37, 120
    %v53 = vlaneseq
    %v54 = vand.u32 %v53, 127
    %vm55 = vcmp.eq.s32.totalorder %v37, %v54
    %vm56 = vcmp.eq.s32.totalorder %v38, %v54
    %vm57 = vcmp.eq.s32.totalorder %v39, %v54
    %vm58 = vcmp.eq.s32.totalorder %v40, %v54
    %vm59 = vcmp.eq.s32.totalorder %v41, %v54
    %vm60 = vcmp.eq.s32.totalorder %v42, %v54
    %vm61 = vcmp.eq.s32.totalorder %v43, %v54
    %vm62 = vcmp.eq.s32.totalorder %v44, %v54
    %vm63 = vcmp.eq.s32.totalorder %v45, %v54
    %vm64 = vcmp.eq.s32.totalorder %v46, %v54
    %vm65 = vcmp.eq.s32.totalorder %v47, %v54
    %vm66 = vcmp.eq.s32.totalorder %v48, %v54
    %vm67 = vcmp.eq.s32.totalorder %v49, %v54
    %vm68 = vcmp.eq.s32.totalorder %v50, %v54
    %vm69 = vcmp.eq.s32.totalorder %v51, %v54
    %vm70 = vcmp.eq.s32.totalorder %v52, %v54
    %v71 = vsel %vm55, 1.0, 0.0
    %v72 = vsel %vm56, 1.0, 0.0
    %v73 = vsel %vm57, 1.0, 0.0
    %v74 = vsel %vm58, 1.0, 0.0
    %v75 = vsel %vm59, 1.0, 0.0
    %v76 = vsel %vm60, 1.0, 0.0
    %v77 = vsel %vm61, 1.0, 0.0
    %v78 = vsel %vm62, 1.0, 0.0
    %v79 = vsel %vm63, 1.0, 0.0
    %v80 = vsel %vm64, 1.0, 0.0
    %v81 = vsel %vm65, 1.0, 0.0
    %v82 = vsel %vm66, 1.0, 0.0
    %v83 = vsel %vm67, 1.0, 0.0
    %v84 = vsel %vm68, 1.0, 0.0
    %v85 = vsel %vm69, 1.0, 0.0
    %v86 = vsel %vm70, 1.0, 0.0
    %v87 = vld [vmem:[#allocation2] sm:$0xff]
    %v88 = vld [vmem:[#allocation2 + $0x8] sm:$0xff]
    %v89 = vld [vmem:[#allocation2 + $0x10] sm:$0xff]
    %v90 = vld [vmem:[#allocation2 + $0x18] sm:$0xff]
    %v91 = vld [vmem:[#allocation2 + $0x20] sm:$0xff]
    %v92 = vld [vmem:[#allocation2 + $0x28] sm:$0xff]
    %v93 = vld [vmem:[#allocation2 + $0x30] sm:$0xff]
    %v94 = vld [vmem:[#allocation2 + $0x38] sm:$0xff]
    %v95 = vld [vmem:[#allocation2 + $0x40] sm:$0xff]
    %v96 = vld [vmem:[#allocation2 + $0x48] sm:$0xff]
    %v97 = vld [vmem:[#allocation2 + $0x50] sm:$0xff]
    %v98 = vld [vmem:[#allocation2 + $0x58] sm:$0xff]
    %v99 = vld [vmem:[#allocation2 + $0x60] sm:$0xff]
    %v100 = vld [vmem:[#allocation2 + $0x68] sm:$0xff]
    %v101 = vld [vmem:[#allocation2 + $0x70] sm:$0xff]
    %v102 = vld [vmem:[#allocation2 + $0x78] sm:$0xff]
    %v103 = vld [vmem:[#allocation3] sm:$0xff]
    %v104 = vld [vmem:[#allocation3 + $0x8] sm:$0xff]
    %v105 = vld [vmem:[#allocation3 + $0x10] sm:$0xff]
    %v106 = vld [vmem:[#allocation3 + $0x18] sm:$0xff]
    %v107 = vld [vmem:[#allocation3 + $0x20] sm:$0xff]
    %v108 = vld [vmem:[#allocation3 + $0x28] sm:$0xff]
    %v109 = vld [vmem:[#allocation3 + $0x30] sm:$0xff]
    %v110 = vld [vmem:[#allocation3 + $0x38] sm:$0xff]
    %v111 = vld [vmem:[#allocation3 + $0x40] sm:$0xff]
    %v112 = vld [vmem:[#allocation3 + $0x48] sm:$0xff]
    %v113 = vld [vmem:[#allocation3 + $0x50] sm:$0xff]
    %v114 = vld [vmem:[#allocation3 + $0x58] sm:$0xff]
    %v115 = vld [vmem:[#allocation3 + $0x60] sm:$0xff]
    %v116 = vld [vmem:[#allocation3 + $0x68] sm:$0xff]
    %v117 = vld [vmem:[#allocation3 + $0x70] sm:$0xff]
    %v118 = vld [vmem:[#allocation3 + $0x78] sm:$0xff]
    %119 = vmatprep.subr.mxu0 0.0
    %120 = vmatpush1.msra.mxu0 %v118
    %121 = vmatprep.subr.mxu0 0.0
    %122 = vmatpush1.msra.mxu0 %v117
    %123 = vmatprep.subr.mxu0 0.0
    %124 = vmatpush1.msra.mxu0 %v116
    %125 = vmatprep.subr.mxu0 0.0
    %126 = vmatpush1.msra.mxu0 %v115
    %127 = vmatprep.subr.mxu0 0.0
    %128 = vmatpush1.msra.mxu0 %v114
    %129 = vmatprep.subr.mxu0 0.0
    %130 = vmatpush1.msra.mxu0 %v113
    %131 = vmatprep.subr.mxu0 0.0
    %132 = vmatpush1.msra.mxu0 %v112
    %133 = vmatprep.subr.mxu0 0.0
    %134 = vmatpush1.msra.mxu0 %v111
    %135 = vmatprep.subr.mxu0 0.0
    %136 = vmatpush1.msra.mxu0 %v110
    %137 = vmatprep.subr.mxu0 0.0
    %138 = vmatpush1.msra.mxu0 %v109
    %139 = vmatprep.subr.mxu0 0.0
    %140 = vmatpush1.msra.mxu0 %v108
    %141 = vmatprep.subr.mxu0 0.0
    %142 = vmatpush1.msra.mxu0 %v107
    %143 = vmatprep.subr.mxu0 0.0
    %144 = vmatpush1.msra.mxu0 %v106
    %145 = vmatprep.subr.mxu0 0.0
    %146 = vmatpush1.msra.mxu0 %v105
    %147 = vmatprep.subr.mxu0 0.0
    %148 = vmatpush1.msra.mxu0 %v104
    %149 = vmatprep.subr.mxu0 0.0
    %150 = vmatpush1.msra.mxu0 %v103
    %151 = vmatprep.subr.mxu0 0.0
    %152 = vmatpush2.msra.mxu0 0.0
    %153 = vmatprep.subr.mxu0 0.0
    %154 = vmatpush2.msra.mxu0 0.0
    %155 = vmatprep.subr.mxu0 0.0
    %156 = vmatpush2.msra.mxu0 0.0
    %157 = vmatprep.subr.mxu0 0.0
    %158 = vmatpush2.msra.mxu0 0.0
    %159 = vmatprep.subr.mxu0 0.0
    %160 = vmatpush2.msra.mxu0 0.0
    %161 = vmatprep.subr.mxu0 0.0
    %162 = vmatpush2.msra.mxu0 0.0
    %163 = vmatprep.subr.mxu0 0.0
    %164 = vmatpush2.msra.mxu0 0.0
    %165 = vmatprep.subr.mxu0 0.0
    %166 = vmatpush2.msra.mxu0 0.0
    %167 = vmatprep.subr.mxu0 0.0
    %168 = vmatpush2.msra.mxu0 0.0
    %169 = vmatprep.subr.mxu0 0.0
    %170 = vmatpush2.msra.mxu0 0.0
    %171 = vmatprep.subr.mxu0 0.0
    %172 = vmatpush2.msra.mxu0 0.0
    %173 = vmatprep.subr.mxu0 0.0
    %174 = vmatpush2.msra.mxu0 0.0
    %175 = vmatprep.subr.mxu0 0.0
    %176 = vmatpush2.msra.mxu0 0.0
    %177 = vmatprep.subr.mxu0 0.0
    %178 = vmatpush2.msra.mxu0 0.0
    %179 = vmatprep.subr.mxu0 0.0
    %180 = vmatpush2.msra.mxu0 0.0
    %181 = vmatprep.subr.mxu0 0.0
    %182 = vmatpush2.msra.mxu0 0.0
    %183 = vmatprep.mubr.f32.mxu0 0.0
    %184 = vmatmul.mubr.f32.gmra.mxu0 %v87
    %v185 = vpop.f32.mrf.mxu0
    %v186 = vadd.f32 0.0, %v185
    %v187 = vpop.f32.mrf.mxu0
    %188 = vmatprep.mubr.f32.mxu0 0.0
    %189 = vmatmul.mubr.f32.gmra.mxu0 %v88
    %v190 = vpop.f32.mrf.mxu0
    %v191 = vadd.f32 0.0, %v190
    %v192 = vpop.f32.mrf.mxu0
    %193 = vmatprep.mubr.f32.mxu0 0.0
    %194 = vmatmul.mubr.f32.gmra.mxu0 %v89
    %v195 = vpop.f32.mrf.mxu0
    %v196 = vadd.f32 0.0, %v195
    %v197 = vpop.f32.mrf.mxu0
    %198 = vmatprep.mubr.f32.mxu0 0.0
    %199 = vmatmul.mubr.f32.gmra.mxu0 %v90
    %v200 = vpop.f32.mrf.mxu0
    %v201 = vadd.f32 0.0, %v200
    %v202 = vpop.f32.mrf.mxu0
    %203 = vmatprep.mubr.f32.mxu0 0.0
    %204 = vmatmul.mubr.f32.gmra.mxu0 %v91
    %v205 = vpop.f32.mrf.mxu0
    %v206 = vadd.f32 0.0, %v205
    %v207 = vpop.f32.mrf.mxu0
    %208 = vmatprep.mubr.f32.mxu0 0.0
    %209 = vmatmul.mubr.f32.gmra.mxu0 %v92
    %v210 = vpop.f32.mrf.mxu0
    %v211 = vadd.f32 0.0, %v210
    %v212 = vpop.f32.mrf.mxu0
    %213 = vmatprep.mubr.f32.mxu0 0.0
    %214 = vmatmul.mubr.f32.gmra.mxu0 %v93
    %v215 = vpop.f32.mrf.mxu0
    %v216 = vadd.f32 0.0, %v215
    %v217 = vpop.f32.mrf.mxu0
    %218 = vmatprep.mubr.f32.mxu0 0.0
    %219 = vmatmul.mubr.f32.gmra.mxu0 %v94
    %v220 = vpop.f32.mrf.mxu0
    %v221 = vadd.f32 0.0, %v220
    %v222 = vpop.f32.mrf.mxu0
    %223 = vmatprep.mubr.f32.mxu0 0.0
    %224 = vmatmul.mubr.f32.gmra.mxu0 %v95
    %v225 = vpop.f32.mrf.mxu0
    %v226 = vadd.f32 0.0, %v225
    %v227 = vpop.f32.mrf.mxu0
    %228 = vmatprep.mubr.f32.mxu0 0.0
    %229 = vmatmul.mubr.f32.gmra.mxu0 %v96
    %v230 = vpop.f32.mrf.mxu0
    %v231 = vadd.f32 0.0, %v230
    %v232 = vpop.f32.mrf.mxu0
    %233 = vmatprep.mubr.f32.mxu0 0.0
    %234 = vmatmul.mubr.f32.gmra.mxu0 %v97
    %v235 = vpop.f32.mrf.mxu0
    %v236 = vadd.f32 0.0, %v235
    %v237 = vpop.f32.mrf.mxu0
    %238 = vmatprep.mubr.f32.mxu0 0.0
    %239 = vmatmul.mubr.f32.gmra.mxu0 %v98
    %v240 = vpop.f32.mrf.mxu0
    %v241 = vadd.f32 0.0, %v240
    %v242 = vpop.f32.mrf.mxu0
    %243 = vmatprep.mubr.f32.mxu0 0.0
    %244 = vmatmul.mubr.f32.gmra.mxu0 %v99
    %v245 = vpop.f32.mrf.mxu0
    %v246 = vadd.f32 0.0, %v245
    %v247 = vpop.f32.mrf.mxu0
    %248 = vmatprep.mubr.f32.mxu0 0.0
    %249 = vmatmul.mubr.f32.gmra.mxu0 %v100
    %v250 = vpop.f32.mrf.mxu0
    %v251 = vadd.f32 0.0, %v250
    %v252 = vpop.f32.mrf.mxu0
    %253 = vmatprep.mubr.f32.mxu0 0.0
    %254 = vmatmul.mubr.f32.gmra.mxu0 %v101
    %v255 = vpop.f32.mrf.mxu0
    %v256 = vadd.f32 0.0, %v255
    %v257 = vpop.f32.mrf.mxu0
    %258 = vmatprep.mubr.f32.mxu0 0.0
    %259 = vmatmul.mubr.f32.gmra.mxu0 %v102
    %v260 = vpop.f32.mrf.mxu0
    %v261 = vadd.f32 0.0, %v260
    %v262 = vpop.f32.mrf.mxu0
    %263 = vdwg.mxu0
    %vm264 = vcmp.lt.s32.totalorder %v37, 64
    %vm265 = vcmp.lt.s32.totalorder %v38, 64
    %vm266 = vcmp.lt.s32.totalorder %v39, 64
    %vm267 = vcmp.lt.s32.totalorder %v40, 64
    %vm268 = vcmp.lt.s32.totalorder %v41, 64
    %vm269 = vcmp.lt.s32.totalorder %v42, 64
    %vm270 = vcmp.lt.s32.totalorder %v43, 64
    %vm271 = vcmp.lt.s32.totalorder %v44, 64
    %vm272 = vcmp.lt.s32.totalorder %v45, 64
    %vm273 = vcmp.lt.s32.totalorder %v46, 64
    %vm274 = vcmp.lt.s32.totalorder %v47, 64
    %vm275 = vcmp.lt.s32.totalorder %v48, 64
    %vm276 = vcmp.lt.s32.totalorder %v49, 64
    %vm277 = vcmp.lt.s32.totalorder %v50, 64
    %vm278 = vcmp.lt.s32.totalorder %v51, 64
    %vm279 = vcmp.lt.s32.totalorder %v52, 64
    %vm280 = vmand %vm55, %vm264
    %vm281 = vmand %vm56, %vm265
    %vm282 = vmand %vm57, %vm266
    %vm283 = vmand %vm58, %vm267
    %vm284 = vmand %vm59, %vm268
    %vm285 = vmand %vm60, %vm269
    %vm286 = vmand %vm61, %vm270
    %vm287 = vmand %vm62, %vm271
    %vm288 = vmand %vm63, %vm272
    %vm289 = vmand %vm64, %vm273
    %vm290 = vmand %vm65, %vm274
    %vm291 = vmand %vm66, %vm275
    %vm292 = vmand %vm67, %vm276
    %vm293 = vmand %vm68, %vm277
    %vm294 = vmand %vm69, %vm278
    %vm295 = vmand %vm70, %vm279
    %v296 = vadd.f32 %v186, 1e-06
    %v297 = vadd.f32 %v191, 1e-06
    %v298 = vadd.f32 %v196, 1e-06
    %v299 = vadd.f32 %v201, 1e-06
    %v300 = vadd.f32 %v206, 1e-06
    %v301 = vadd.f32 %v211, 1e-06
    %v302 = vadd.f32 %v216, 1e-06
    %v303 = vadd.f32 %v221, 1e-06
    %v304 = vadd.f32 %v226, 1e-06
    %v305 = vadd.f32 %v231, 1e-06
    %v306 = vadd.f32 %v236, 1e-06
    %v307 = vadd.f32 %v241, 1e-06
    %v308 = vadd.f32 %v246, 1e-06
    %v309 = vadd.f32 %v251, 1e-06
    %v310 = vadd.f32 %v256, 1e-06
    %v311 = vadd.f32 %v261, 1e-06
    %v312 = vsel %vm280, %v296, %v186
    %v313 = vsel %vm281, %v297, %v191
    %v314 = vsel %vm282, %v298, %v196
    %v315 = vsel %vm283, %v299, %v201
    %v316 = vsel %vm284, %v300, %v206
    %v317 = vsel %vm285, %v301, %v211
    %v318 = vsel %vm286, %v302, %v216
    %v319 = vsel %vm287, %v303, %v221
    %v320 = vsel %vm288, %v304, %v226
    %v321 = vsel %vm289, %v305, %v231
    %v322 = vsel %vm290, %v306, %v236
    %v323 = vsel %vm291, %v307, %v241
    %v324 = vsel %vm292, %v308, %v246
    %v325 = vsel %vm293, %v309, %v251
    %v326 = vsel %vm294, %v310, %v256
    %v327 = vsel %vm295, %v311, %v261
    %v328 = vmul.f32 %v312, %v312
    %v329 = vmul.f32 %v313, %v313
    %v330 = vmul.f32 %v314, %v314
    %v331 = vmul.f32 %v315, %v315
    %v332 = vmul.f32 %v316, %v316
    %v333 = vmul.f32 %v317, %v317
    %v334 = vmul.f32 %v318, %v318
    %v335 = vmul.f32 %v319, %v319
    %v336 = vmul.f32 %v320, %v320
    %v337 = vmul.f32 %v321, %v321
    %v338 = vmul.f32 %v322, %v322
    %v339 = vmul.f32 %v323, %v323
    %v340 = vmul.f32 %v324, %v324
    %v341 = vmul.f32 %v325, %v325
    %v342 = vmul.f32 %v326, %v326
    %v343 = vmul.f32 %v327, %v327
    %v344 = vadd.f32 %v328, %v329
    %v345 = vadd.f32 %v344, %v330
    %v346 = vadd.f32 %v345, %v331
    %v347 = vadd.f32 %v346, %v332
    %v348 = vadd.f32 %v347, %v333
    %v349 = vadd.f32 %v348, %v334
    %v350 = vadd.f32 %v349, %v335
    %v351 = vadd.f32 %v350, %v336
    %v352 = vadd.f32 %v351, %v337
    %v353 = vadd.f32 %v352, %v338
    %v354 = vadd.f32 %v353, %v339
    %v355 = vadd.f32 %v354, %v340
    %v356 = vadd.f32 %v355, %v341
    %v357 = vadd.f32 %v356, %v342
    %v358 = vadd.f32 %v357, %v343
    %359 = vadd.xlane.f32.xlu0 %v358
    %v360 = vpop.xlane.xlu0 %359
    %v361 = vrot.slane %v360, 4
    %v362 = vadd.f32 %v360, %v361
    %v363 = vrot.slane %v362, 2
    %v364 = vadd.f32 %v362, %v363
    %v365 = vrot.slane %v364, 1
    %v366 = vadd.f32 %v364, %v365
    %s367 = vtos %v366
    %v368 = vstv %s367
    %v369 = vrsqrt.pop %v368
    %v370 = vmul.f32 %v368, %v369
    %vm371 = vcmp.eq.f32.partialorder %v368, inf
    %v372 = vsel %vm371, %v368, %v370
    %vm373 = vcmp.eq.f32.partialorder %v368, 0.0
    %v374 = vand.u32 %v368, 2147483648
    %v375 = vsel %vm373, %v374, %v372
    %s376 = vtos %v375
    %s377 = smax.f32 %s376, 1e-30
    %v378 = vstv %s377
    %v379 = vrcp.pop %v378
    %s380 = vtos %v379
    %v381 = vstv %s380
    %v382 = vmul.f32 %v312, %v381
    %v383 = vmul.f32 %v313, %v381
    %v384 = vmul.f32 %v314, %v381
    %v385 = vmul.f32 %v315, %v381
    %v386 = vmul.f32 %v316, %v381
    %v387 = vmul.f32 %v317, %v381
    %v388 = vmul.f32 %v318, %v381
    %v389 = vmul.f32 %v319, %v381
    %v390 = vmul.f32 %v320, %v381
    %v391 = vmul.f32 %v321, %v381
    %v392 = vmul.f32 %v322, %v381
    %v393 = vmul.f32 %v323, %v381
    %v394 = vmul.f32 %v324, %v381
    %v395 = vmul.f32 %v325, %v381
    %v396 = vmul.f32 %v326, %v381
    %v397 = vmul.f32 %v327, %v381
    %v398 = vmul.f32 %v71, 1.5
    %v399 = vmul.f32 %v72, 1.5
    %v400 = vmul.f32 %v73, 1.5
    %v401 = vmul.f32 %v74, 1.5
    %v402 = vmul.f32 %v75, 1.5
    %v403 = vmul.f32 %v76, 1.5
    %v404 = vmul.f32 %v77, 1.5
    %v405 = vmul.f32 %v78, 1.5
    %v406 = vmul.f32 %v79, 1.5
    %v407 = vmul.f32 %v80, 1.5
    %v408 = vmul.f32 %v81, 1.5
    %v409 = vmul.f32 %v82, 1.5
    %v410 = vmul.f32 %v83, 1.5
    %v411 = vmul.f32 %v84, 1.5
    %v412 = vmul.f32 %v85, 1.5
    %v413 = vmul.f32 %v86, 1.5
    %414 = vmatprep.subr.mxu0 0.0
    %415 = vmatpush1.msra.mxu0 %v397
    %416 = vmatprep.subr.mxu0 0.0
    %417 = vmatpush1.msra.mxu0 %v396
    %418 = vmatprep.subr.mxu0 0.0
    %419 = vmatpush1.msra.mxu0 %v395
    %420 = vmatprep.subr.mxu0 0.0
    %421 = vmatpush1.msra.mxu0 %v394
    %422 = vmatprep.subr.mxu0 0.0
    %423 = vmatpush1.msra.mxu0 %v393
    %424 = vmatprep.subr.mxu0 0.0
    %425 = vmatpush1.msra.mxu0 %v392
    %426 = vmatprep.subr.mxu0 0.0
    %427 = vmatpush1.msra.mxu0 %v391
    %428 = vmatprep.subr.mxu0 0.0
    %429 = vmatpush1.msra.mxu0 %v390
    %430 = vmatprep.subr.mxu0 0.0
    %431 = vmatpush1.msra.mxu0 %v389
    %432 = vmatprep.subr.mxu0 0.0
    %433 = vmatpush1.msra.mxu0 %v388
    %434 = vmatprep.subr.mxu0 0.0
    %435 = vmatpush1.msra.mxu0 %v387
    %436 = vmatprep.subr.mxu0 0.0
    %437 = vmatpush1.msra.mxu0 %v386
    %438 = vmatprep.subr.mxu0 0.0
    %439 = vmatpush1.msra.mxu0 %v385
    %440 = vmatprep.subr.mxu0 0.0
    %441 = vmatpush1.msra.mxu0 %v384
    %442 = vmatprep.subr.mxu0 0.0
    %443 = vmatpush1.msra.mxu0 %v383
    %444 = vmatprep.subr.mxu0 0.0
    %445 = vmatpush1.msra.mxu0 %v382
    %446 = vmatprep.subr.mxu0 0.0
    %447 = vmatpush2.msra.mxu0 0.0
    %448 = vmatprep.subr.mxu0 0.0
    %449 = vmatpush2.msra.mxu0 0.0
    %450 = vmatprep.subr.mxu0 0.0
    %451 = vmatpush2.msra.mxu0 0.0
    %452 = vmatprep.subr.mxu0 0.0
    %453 = vmatpush2.msra.mxu0 0.0
    %454 = vmatprep.subr.mxu0 0.0
    %455 = vmatpush2.msra.mxu0 0.0
    %456 = vmatprep.subr.mxu0 0.0
    %457 = vmatpush2.msra.mxu0 0.0
    %458 = vmatprep.subr.mxu0 0.0
    %459 = vmatpush2.msra.mxu0 0.0
    %460 = vmatprep.subr.mxu0 0.0
    %461 = vmatpush2.msra.mxu0 0.0
    %462 = vmatprep.subr.mxu0 0.0
    %463 = vmatpush2.msra.mxu0 0.0
    %464 = vmatprep.subr.mxu0 0.0
    %465 = vmatpush2.msra.mxu0 0.0
    %466 = vmatprep.subr.mxu0 0.0
    %467 = vmatpush2.msra.mxu0 0.0
    %468 = vmatprep.subr.mxu0 0.0
    %469 = vmatpush2.msra.mxu0 0.0
    %470 = vmatprep.subr.mxu0 0.0
    %471 = vmatpush2.msra.mxu0 0.0
    %472 = vmatprep.subr.mxu0 0.0
    %473 = vmatpush2.msra.mxu0 0.0
    %474 = vmatprep.subr.mxu0 0.0
    %475 = vmatpush2.msra.mxu0 0.0
    %476 = vmatprep.subr.mxu0 0.0
    %477 = vmatpush2.msra.mxu0 0.0
    %478 = vmatprep.mubr.f32.mxu0 0.0
    %479 = vmatmul.mubr.f32.gmra.mxu0 %v71
    %v480 = vpop.f32.mrf.mxu0
    %v481 = vadd.f32 0.0, %v480
    %v482 = vpop.f32.mrf.mxu0
    %483 = vmatprep.mubr.f32.mxu0 0.0
    %484 = vmatmul.mubr.f32.gmra.mxu0 %v72
    %v485 = vpop.f32.mrf.mxu0
    %v486 = vadd.f32 0.0, %v485
    %v487 = vpop.f32.mrf.mxu0
    %488 = vmatprep.mubr.f32.mxu0 0.0
    %489 = vmatmul.mubr.f32.gmra.mxu0 %v73
    %v490 = vpop.f32.mrf.mxu0
    %v491 = vadd.f32 0.0, %v490
    %v492 = vpop.f32.mrf.mxu0
    %493 = vmatprep.mubr.f32.mxu0 0.0
    %494 = vmatmul.mubr.f32.gmra.mxu0 %v74
    %v495 = vpop.f32.mrf.mxu0
    %v496 = vadd.f32 0.0, %v495
    %v497 = vpop.f32.mrf.mxu0
    %498 = vmatprep.mubr.f32.mxu0 0.0
    %499 = vmatmul.mubr.f32.gmra.mxu0 %v75
    %v500 = vpop.f32.mrf.mxu0
    %v501 = vadd.f32 0.0, %v500
    %v502 = vpop.f32.mrf.mxu0
    %503 = vmatprep.mubr.f32.mxu0 0.0
    %504 = vmatmul.mubr.f32.gmra.mxu0 %v76
    %v505 = vpop.f32.mrf.mxu0
    %v506 = vadd.f32 0.0, %v505
    %v507 = vpop.f32.mrf.mxu0
    %508 = vmatprep.mubr.f32.mxu0 0.0
    %509 = vmatmul.mubr.f32.gmra.mxu0 %v77
    %v510 = vpop.f32.mrf.mxu0
    %v511 = vadd.f32 0.0, %v510
    %v512 = vpop.f32.mrf.mxu0
    %513 = vmatprep.mubr.f32.mxu0 0.0
    %514 = vmatmul.mubr.f32.gmra.mxu0 %v78
    %v515 = vpop.f32.mrf.mxu0
    %v516 = vadd.f32 0.0, %v515
    %v517 = vpop.f32.mrf.mxu0
    %518 = vmatprep.mubr.f32.mxu0 0.0
    %519 = vmatmul.mubr.f32.gmra.mxu0 %v79
    %v520 = vpop.f32.mrf.mxu0
    %v521 = vadd.f32 0.0, %v520
    %v522 = vpop.f32.mrf.mxu0
    %523 = vmatprep.mubr.f32.mxu0 0.0
    %524 = vmatmul.mubr.f32.gmra.mxu0 %v80
    %v525 = vpop.f32.mrf.mxu0
    %v526 = vadd.f32 0.0, %v525
    %v527 = vpop.f32.mrf.mxu0
    %528 = vmatprep.mubr.f32.mxu0 0.0
    %529 = vmatmul.mubr.f32.gmra.mxu0 %v81
    %v530 = vpop.f32.mrf.mxu0
    %v531 = vadd.f32 0.0, %v530
    %v532 = vpop.f32.mrf.mxu0
    %533 = vmatprep.mubr.f32.mxu0 0.0
    %534 = vmatmul.mubr.f32.gmra.mxu0 %v82
    %v535 = vpop.f32.mrf.mxu0
    %v536 = vadd.f32 0.0, %v535
    %v537 = vpop.f32.mrf.mxu0
    %538 = vmatprep.mubr.f32.mxu0 0.0
    %539 = vmatmul.mubr.f32.gmra.mxu0 %v83
    %v540 = vpop.f32.mrf.mxu0
    %v541 = vadd.f32 0.0, %v540
    %v542 = vpop.f32.mrf.mxu0
    %543 = vmatprep.mubr.f32.mxu0 0.0
    %544 = vmatmul.mubr.f32.gmra.mxu0 %v84
    %v545 = vpop.f32.mrf.mxu0
    %v546 = vadd.f32 0.0, %v545
    %v547 = vpop.f32.mrf.mxu0
    %548 = vmatprep.mubr.f32.mxu0 0.0
    %549 = vmatmul.mubr.f32.gmra.mxu0 %v85
    %v550 = vpop.f32.mrf.mxu0
    %v551 = vadd.f32 0.0, %v550
    %v552 = vpop.f32.mrf.mxu0
    %553 = vmatprep.mubr.f32.mxu0 0.0
    %554 = vmatmul.mubr.f32.gmra.mxu0 %v86
    %v555 = vpop.f32.mrf.mxu0
    %v556 = vadd.f32 0.0, %v555
    %v557 = vpop.f32.mrf.mxu0
    %558 = vdwg.mxu0
    %v559 = vmul.f32 %v481, 0.5
    %v560 = vmul.f32 %v486, 0.5
    %v561 = vmul.f32 %v491, 0.5
    %v562 = vmul.f32 %v496, 0.5
    %v563 = vmul.f32 %v501, 0.5
    %v564 = vmul.f32 %v506, 0.5
    %v565 = vmul.f32 %v511, 0.5
    %v566 = vmul.f32 %v516, 0.5
    %v567 = vmul.f32 %v521, 0.5
    %v568 = vmul.f32 %v526, 0.5
    %v569 = vmul.f32 %v531, 0.5
    %v570 = vmul.f32 %v536, 0.5
    %v571 = vmul.f32 %v541, 0.5
    %v572 = vmul.f32 %v546, 0.5
    %v573 = vmul.f32 %v551, 0.5
    %v574 = vmul.f32 %v556, 0.5
    %v575 = vsub.f32 %v398, %v559
    %v576 = vsub.f32 %v399, %v560
    %v577 = vsub.f32 %v400, %v561
    %v578 = vsub.f32 %v401, %v562
    %v579 = vsub.f32 %v402, %v563
    %v580 = vsub.f32 %v403, %v564
    %v581 = vsub.f32 %v404, %v565
    %v582 = vsub.f32 %v405, %v566
    %v583 = vsub.f32 %v406, %v567
    %v584 = vsub.f32 %v407, %v568
    %v585 = vsub.f32 %v408, %v569
    %v586 = vsub.f32 %v409, %v570
    %v587 = vsub.f32 %v410, %v571
    %v588 = vsub.f32 %v411, %v572
    %v589 = vsub.f32 %v412, %v573
    %v590 = vsub.f32 %v413, %v574
    %591 = vmatprep.subr.mxu0 0.0
    %592 = vmatpush1.msra.mxu0 %v590
    %593 = vmatprep.subr.mxu0 0.0
    %594 = vmatpush1.msra.mxu0 %v589
    %595 = vmatprep.subr.mxu0 0.0
    %596 = vmatpush1.msra.mxu0 %v588
    %597 = vmatprep.subr.mxu0 0.0
    %598 = vmatpush1.msra.mxu0 %v587
    %599 = vmatprep.subr.mxu0 0.0
    %600 = vmatpush1.msra.mxu0 %v586
    %601 = vmatprep.subr.mxu0 0.0
    %602 = vmatpush1.msra.mxu0 %v585
    %603 = vmatprep.subr.mxu0 0.0
    %604 = vmatpush1.msra.mxu0 %v584
    %605 = vmatprep.subr.mxu0 0.0
    %606 = vmatpush1.msra.mxu0 %v583
    %607 = vmatprep.subr.mxu0 0.0
    %608 = vmatpush1.msra.mxu0 %v582
    %609 = vmatprep.subr.mxu0 0.0
    %610 = vmatpush1.msra.mxu0 %v581
    %611 = vmatprep.subr.mxu0 0.0
    %612 = vmatpush1.msra.mxu0 %v580
    %613 = vmatprep.subr.mxu0 0.0
    %614 = vmatpush1.msra.mxu0 %v579
    %615 = vmatprep.subr.mxu0 0.0
    %616 = vmatpush1.msra.mxu0 %v578
    %617 = vmatprep.subr.mxu0 0.0
    %618 = vmatpush1.msra.mxu0 %v577
    %619 = vmatprep.subr.mxu0 0.0
    %620 = vmatpush1.msra.mxu0 %v576
    %621 = vmatprep.subr.mxu0 0.0
    %622 = vmatpush1.msra.mxu0 %v575
    %623 = vmatprep.subr.mxu0 0.0
    %624 = vmatpush2.msra.mxu0 0.0
    %625 = vmatprep.subr.mxu0 0.0
    %626 = vmatpush2.msra.mxu0 0.0
    %627 = vmatprep.subr.mxu0 0.0
    %628 = vmatpush2.msra.mxu0 0.0
    %629 = vmatprep.subr.mxu0 0.0
    %630 = vmatpush2.msra.mxu0 0.0
    %631 = vmatprep.subr.mxu0 0.0
    %632 = vmatpush2.msra.mxu0 0.0
    %633 = vmatprep.subr.mxu0 0.0
    %634 = vmatpush2.msra.mxu0 0.0
    %635 = vmatprep.subr.mxu0 0.0
    %636 = vmatpush2.msra.mxu0 0.0
    %637 = vmatprep.subr.mxu0 0.0
    %638 = vmatpush2.msra.mxu0 0.0
    %639 = vmatprep.subr.mxu0 0.0
    %640 = vmatpush2.msra.mxu0 0.0
    %641 = vmatprep.subr.mxu0 0.0
    %642 = vmatpush2.msra.mxu0 0.0
    %643 = vmatprep.subr.mxu0 0.0
    %644 = vmatpush2.msra.mxu0 0.0
    %645 = vmatprep.subr.mxu0 0.0
    %646 = vmatpush2.msra.mxu0 0.0
    %647 = vmatprep.subr.mxu0 0.0
    %648 = vmatpush2.msra.mxu0 0.0
    %649 = vmatprep.subr.mxu0 0.0
    %650 = vmatpush2.msra.mxu0 0.0
    %651 = vmatprep.subr.mxu0 0.0
    %652 = vmatpush2.msra.mxu0 0.0
    %653 = vmatprep.subr.mxu0 0.0
    %654 = vmatpush2.msra.mxu0 0.0
    %655 = vmatprep.mubr.f32.mxu0 0.0
    %656 = vmatmul.mubr.f32.gmra.mxu0 %v382
    %v657 = vpop.f32.mrf.mxu0
    %v658 = vadd.f32 0.0, %v657
    %v659 = vpop.f32.mrf.mxu0
    %660 = vmatprep.mubr.f32.mxu0 0.0
    %661 = vmatmul.mubr.f32.gmra.mxu0 %v383
    %v662 = vpop.f32.mrf.mxu0
    %v663 = vadd.f32 0.0, %v662
    %v664 = vpop.f32.mrf.mxu0
    %665 = vmatprep.mubr.f32.mxu0 0.0
    %666 = vmatmul.mubr.f32.gmra.mxu0 %v384
    %v667 = vpop.f32.mrf.mxu0
    %v668 = vadd.f32 0.0, %v667
    %v669 = vpop.f32.mrf.mxu0
    %670 = vmatprep.mubr.f32.mxu0 0.0
    %671 = vmatmul.mubr.f32.gmra.mxu0 %v385
    %v672 = vpop.f32.mrf.mxu0
    %v673 = vadd.f32 0.0, %v672
    %v674 = vpop.f32.mrf.mxu0
    %675 = vmatprep.mubr.f32.mxu0 0.0
    %676 = vmatmul.mubr.f32.gmra.mxu0 %v386
    %v677 = vpop.f32.mrf.mxu0
    %v678 = vadd.f32 0.0, %v677
    %v679 = vpop.f32.mrf.mxu0
    %680 = vmatprep.mubr.f32.mxu0 0.0
    %681 = vmatmul.mubr.f32.gmra.mxu0 %v387
    %v682 = vpop.f32.mrf.mxu0
    %v683 = vadd.f32 0.0, %v682
    %v684 = vpop.f32.mrf.mxu0
    %685 = vmatprep.mubr.f32.mxu0 0.0
    %686 = vmatmul.mubr.f32.gmra.mxu0 %v388
    %v687 = vpop.f32.mrf.mxu0
    %v688 = vadd.f32 0.0, %v687
    %v689 = vpop.f32.mrf.mxu0
    %690 = vmatprep.mubr.f32.mxu0 0.0
    %691 = vmatmul.mubr.f32.gmra.mxu0 %v389
    %v692 = vpop.f32.mrf.mxu0
    %v693 = vadd.f32 0.0, %v692
    %v694 = vpop.f32.mrf.mxu0
    %695 = vmatprep.mubr.f32.mxu0 0.0
    %696 = vmatmul.mubr.f32.gmra.mxu0 %v390
    %v697 = vpop.f32.mrf.mxu0
    %v698 = vadd.f32 0.0, %v697
    %v699 = vpop.f32.mrf.mxu0
    %700 = vmatprep.mubr.f32.mxu0 0.0
    %701 = vmatmul.mubr.f32.gmra.mxu0 %v391
    %v702 = vpop.f32.mrf.mxu0
    %v703 = vadd.f32 0.0, %v702
    %v704 = vpop.f32.mrf.mxu0
    %705 = vmatprep.mubr.f32.mxu0 0.0
    %706 = vmatmul.mubr.f32.gmra.mxu0 %v392
    %v707 = vpop.f32.mrf.mxu0
    %v708 = vadd.f32 0.0, %v707
    %v709 = vpop.f32.mrf.mxu0
    %710 = vmatprep.mubr.f32.mxu0 0.0
    %711 = vmatmul.mubr.f32.gmra.mxu0 %v393
    %v712 = vpop.f32.mrf.mxu0
    %v713 = vadd.f32 0.0, %v712
    %v714 = vpop.f32.mrf.mxu0
    %715 = vmatprep.mubr.f32.mxu0 0.0
    %716 = vmatmul.mubr.f32.gmra.mxu0 %v394
    %v717 = vpop.f32.mrf.mxu0
    %v718 = vadd.f32 0.0, %v717
    %v719 = vpop.f32.mrf.mxu0
    %720 = vmatprep.mubr.f32.mxu0 0.0
    %721 = vmatmul.mubr.f32.gmra.mxu0 %v395
    %v722 = vpop.f32.mrf.mxu0
    %v723 = vadd.f32 0.0, %v722
    %v724 = vpop.f32.mrf.mxu0
    %725 = vmatprep.mubr.f32.mxu0 0.0
    %726 = vmatmul.mubr.f32.gmra.mxu0 %v396
    %v727 = vpop.f32.mrf.mxu0
    %v728 = vadd.f32 0.0, %v727
    %v729 = vpop.f32.mrf.mxu0
    %730 = vmatprep.mubr.f32.mxu0 0.0
    %731 = vmatmul.mubr.f32.gmra.mxu0 %v397
    %v732 = vpop.f32.mrf.mxu0
    %v733 = vadd.f32 0.0, %v732
    %v734 = vpop.f32.mrf.mxu0
    %735 = vdwg.mxu0
    %736 = vmatprep.subr.mxu0 0.0
    %737 = vmatpush1.msra.mxu0 %v86
    %738 = vmatprep.subr.mxu0 0.0
    %739 = vmatpush1.msra.mxu0 %v85
    %740 = vmatprep.subr.mxu0 0.0
    %741 = vmatpush1.msra.mxu0 %v84
    %742 = vmatprep.subr.mxu0 0.0
    %743 = vmatpush1.msra.mxu0 %v83
    %744 = vmatprep.subr.mxu0 0.0
    %745 = vmatpush1.msra.mxu0 %v82
    %746 = vmatprep.subr.mxu0 0.0
    %747 = vmatpush1.msra.mxu0 %v81
    %748 = vmatprep.subr.mxu0 0.0
    %749 = vmatpush1.msra.mxu0 %v80
    %750 = vmatprep.subr.mxu0 0.0
    %751 = vmatpush1.msra.mxu0 %v79
    %752 = vmatprep.subr.mxu0 0.0
    %753 = vmatpush1.msra.mxu0 %v78
    %754 = vmatprep.subr.mxu0 0.0
    %755 = vmatpush1.msra.mxu0 %v77
    %756 = vmatprep.subr.mxu0 0.0
    %757 = vmatpush1.msra.mxu0 %v76
    %758 = vmatprep.subr.mxu0 0.0
    %759 = vmatpush1.msra.mxu0 %v75
    %760 = vmatprep.subr.mxu0 0.0
    %761 = vmatpush1.msra.mxu0 %v74
    %762 = vmatprep.subr.mxu0 0.0
    %763 = vmatpush1.msra.mxu0 %v73
    %764 = vmatprep.subr.mxu0 0.0
    %765 = vmatpush1.msra.mxu0 %v72
    %766 = vmatprep.subr.mxu0 0.0
    %767 = vmatpush1.msra.mxu0 %v71
    %768 = vmatprep.subr.mxu0 0.0
    %769 = vmatpush2.msra.mxu0 0.0
    %770 = vmatprep.subr.mxu0 0.0
    %771 = vmatpush2.msra.mxu0 0.0
    %772 = vmatprep.subr.mxu0 0.0
    %773 = vmatpush2.msra.mxu0 0.0
    %774 = vmatprep.subr.mxu0 0.0
    %775 = vmatpush2.msra.mxu0 0.0
    %776 = vmatprep.subr.mxu0 0.0
    %777 = vmatpush2.msra.mxu0 0.0
    %778 = vmatprep.subr.mxu0 0.0
    %779 = vmatpush2.msra.mxu0 0.0
    %780 = vmatprep.subr.mxu0 0.0
    %781 = vmatpush2.msra.mxu0 0.0
    %782 = vmatprep.subr.mxu0 0.0
    %783 = vmatpush2.msra.mxu0 0.0
    %784 = vmatprep.subr.mxu0 0.0
    %785 = vmatpush2.msra.mxu0 0.0
    %786 = vmatprep.subr.mxu0 0.0
    %787 = vmatpush2.msra.mxu0 0.0
    %788 = vmatprep.subr.mxu0 0.0
    %789 = vmatpush2.msra.mxu0 0.0
    %790 = vmatprep.subr.mxu0 0.0
    %791 = vmatpush2.msra.mxu0 0.0
    %792 = vmatprep.subr.mxu0 0.0
    %793 = vmatpush2.msra.mxu0 0.0
    %794 = vmatprep.subr.mxu0 0.0
    %795 = vmatpush2.msra.mxu0 0.0
    %796 = vmatprep.subr.mxu0 0.0
    %797 = vmatpush2.msra.mxu0 0.0
    %798 = vmatprep.subr.mxu0 0.0
    %799 = vmatpush2.msra.mxu0 0.0
    %800 = vmatprep.mubr.f32.mxu0 0.0
    %801 = vmatmul.mubr.f32.gmra.mxu0 %v575
    %v802 = vpop.f32.mrf.mxu0
    %v803 = vadd.f32 0.0, %v802
    %v804 = vpop.f32.mrf.mxu0
    %805 = vmatprep.mubr.f32.mxu0 0.0
    %806 = vmatmul.mubr.f32.gmra.mxu0 %v576
    %v807 = vpop.f32.mrf.mxu0
    %v808 = vadd.f32 0.0, %v807
    %v809 = vpop.f32.mrf.mxu0
    %810 = vmatprep.mubr.f32.mxu0 0.0
    %811 = vmatmul.mubr.f32.gmra.mxu0 %v577
    %v812 = vpop.f32.mrf.mxu0
    %v813 = vadd.f32 0.0, %v812
    %v814 = vpop.f32.mrf.mxu0
    %815 = vmatprep.mubr.f32.mxu0 0.0
    %816 = vmatmul.mubr.f32.gmra.mxu0 %v578
    %v817 = vpop.f32.mrf.mxu0
    %v818 = vadd.f32 0.0, %v817
    %v819 = vpop.f32.mrf.mxu0
    %820 = vmatprep.mubr.f32.mxu0 0.0
    %821 = vmatmul.mubr.f32.gmra.mxu0 %v579
    %v822 = vpop.f32.mrf.mxu0
    %v823 = vadd.f32 0.0, %v822
    %v824 = vpop.f32.mrf.mxu0
    %825 = vmatprep.mubr.f32.mxu0 0.0
    %826 = vmatmul.mubr.f32.gmra.mxu0 %v580
    %v827 = vpop.f32.mrf.mxu0
    %v828 = vadd.f32 0.0, %v827
    %v829 = vpop.f32.mrf.mxu0
    %830 = vmatprep.mubr.f32.mxu0 0.0
    %831 = vmatmul.mubr.f32.gmra.mxu0 %v581
    %v832 = vpop.f32.mrf.mxu0
    %v833 = vadd.f32 0.0, %v832
    %v834 = vpop.f32.mrf.mxu0
    %835 = vmatprep.mubr.f32.mxu0 0.0
    %836 = vmatmul.mubr.f32.gmra.mxu0 %v582
    %v837 = vpop.f32.mrf.mxu0
    %v838 = vadd.f32 0.0, %v837
    %v839 = vpop.f32.mrf.mxu0
    %840 = vmatprep.mubr.f32.mxu0 0.0
    %841 = vmatmul.mubr.f32.gmra.mxu0 %v583
    %v842 = vpop.f32.mrf.mxu0
    %v843 = vadd.f32 0.0, %v842
    %v844 = vpop.f32.mrf.mxu0
    %845 = vmatprep.mubr.f32.mxu0 0.0
    %846 = vmatmul.mubr.f32.gmra.mxu0 %v584
    %v847 = vpop.f32.mrf.mxu0
    %v848 = vadd.f32 0.0, %v847
    %v849 = vpop.f32.mrf.mxu0
    %850 = vmatprep.mubr.f32.mxu0 0.0
    %851 = vmatmul.mubr.f32.gmra.mxu0 %v585
    %v852 = vpop.f32.mrf.mxu0
    %v853 = vadd.f32 0.0, %v852
    %v854 = vpop.f32.mrf.mxu0
    %855 = vmatprep.mubr.f32.mxu0 0.0
    %856 = vmatmul.mubr.f32.gmra.mxu0 %v586
    %v857 = vpop.f32.mrf.mxu0
    %v858 = vadd.f32 0.0, %v857
    %v859 = vpop.f32.mrf.mxu0
    %860 = vmatprep.mubr.f32.mxu0 0.0
    %861 = vmatmul.mubr.f32.gmra.mxu0 %v587
    %v862 = vpop.f32.mrf.mxu0
    %v863 = vadd.f32 0.0, %v862
    %v864 = vpop.f32.mrf.mxu0
    %865 = vmatprep.mubr.f32.mxu0 0.0
    %866 = vmatmul.mubr.f32.gmra.mxu0 %v588
    %v867 = vpop.f32.mrf.mxu0
    %v868 = vadd.f32 0.0, %v867
    %v869 = vpop.f32.mrf.mxu0
    %870 = vmatprep.mubr.f32.mxu0 0.0
    %871 = vmatmul.mubr.f32.gmra.mxu0 %v589
    %v872 = vpop.f32.mrf.mxu0
    %v873 = vadd.f32 0.0, %v872
    %v874 = vpop.f32.mrf.mxu0
    %875 = vmatprep.mubr.f32.mxu0 0.0
    %876 = vmatmul.mubr.f32.gmra.mxu0 %v590
    %v877 = vpop.f32.mrf.mxu0
    %v878 = vadd.f32 0.0, %v877
    %v879 = vpop.f32.mrf.mxu0
    %880 = vdwg.mxu0
    %881 = vmatprep.subr.mxu0 0.0
    %882 = vmatpush1.msra.mxu0 %v733
    %883 = vmatprep.subr.mxu0 0.0
    %884 = vmatpush1.msra.mxu0 %v728
    %885 = vmatprep.subr.mxu0 0.0
    %886 = vmatpush1.msra.mxu0 %v723
    %887 = vmatprep.subr.mxu0 0.0
    %888 = vmatpush1.msra.mxu0 %v718
    %889 = vmatprep.subr.mxu0 0.0
    %890 = vmatpush1.msra.mxu0 %v713
    %891 = vmatprep.subr.mxu0 0.0
    %892 = vmatpush1.msra.mxu0 %v708
    %893 = vmatprep.subr.mxu0 0.0
    %894 = vmatpush1.msra.mxu0 %v703
    %895 = vmatprep.subr.mxu0 0.0
    %896 = vmatpush1.msra.mxu0 %v698
    %897 = vmatprep.subr.mxu0 0.0
    %898 = vmatpush1.msra.mxu0 %v693
    %899 = vmatprep.subr.mxu0 0.0
    %900 = vmatpush1.msra.mxu0 %v688
    %901 = vmatprep.subr.mxu0 0.0
    %902 = vmatpush1.msra.mxu0 %v683
    %903 = vmatprep.subr.mxu0 0.0
    %904 = vmatpush1.msra.mxu0 %v678
    %905 = vmatprep.subr.mxu0 0.0
    %906 = vmatpush1.msra.mxu0 %v673
    %907 = vmatprep.subr.mxu0 0.0
    %908 = vmatpush1.msra.mxu0 %v668
    %909 = vmatprep.subr.mxu0 0.0
    %910 = vmatpush1.msra.mxu0 %v663
    %911 = vmatprep.subr.mxu0 0.0
    %912 = vmatpush1.msra.mxu0 %v658
    %913 = vmatprep.subr.mxu0 0.0
    %914 = vmatpush2.msra.mxu0 0.0
    %915 = vmatprep.subr.mxu0 0.0
    %916 = vmatpush2.msra.mxu0 0.0
    %917 = vmatprep.subr.mxu0 0.0
    %918 = vmatpush2.msra.mxu0 0.0
    %919 = vmatprep.subr.mxu0 0.0
    %920 = vmatpush2.msra.mxu0 0.0
    %921 = vmatprep.subr.mxu0 0.0
    %922 = vmatpush2.msra.mxu0 0.0
    %923 = vmatprep.subr.mxu0 0.0
    %924 = vmatpush2.msra.mxu0 0.0
    %925 = vmatprep.subr.mxu0 0.0
    %926 = vmatpush2.msra.mxu0 0.0
    %927 = vmatprep.subr.mxu0 0.0
    %928 = vmatpush2.msra.mxu0 0.0
    %929 = vmatprep.subr.mxu0 0.0
    %930 = vmatpush2.msra.mxu0 0.0
    %931 = vmatprep.subr.mxu0 0.0
    %932 = vmatpush2.msra.mxu0 0.0
    %933 = vmatprep.subr.mxu0 0.0
    %934 = vmatpush2.msra.mxu0 0.0
    %935 = vmatprep.subr.mxu0 0.0
    %936 = vmatpush2.msra.mxu0 0.0
    %937 = vmatprep.subr.mxu0 0.0
    %938 = vmatpush2.msra.mxu0 0.0
    %939 = vmatprep.subr.mxu0 0.0
    %940 = vmatpush2.msra.mxu0 0.0
    %941 = vmatprep.subr.mxu0 0.0
    %942 = vmatpush2.msra.mxu0 0.0
    %943 = vmatprep.subr.mxu0 0.0
    %944 = vmatpush2.msra.mxu0 0.0
    %945 = vmatprep.mubr.f32.mxu0 0.0
    %946 = vmatmul.mubr.f32.gmra.mxu0 %v803
    %v947 = vpop.f32.mrf.mxu0
    %v948 = vadd.f32 0.0, %v947
    %v949 = vpop.f32.mrf.mxu0
    %950 = vmatprep.mubr.f32.mxu0 0.0
    %951 = vmatmul.mubr.f32.gmra.mxu0 %v808
    %v952 = vpop.f32.mrf.mxu0
    %v953 = vadd.f32 0.0, %v952
    %v954 = vpop.f32.mrf.mxu0
    %955 = vmatprep.mubr.f32.mxu0 0.0
    %956 = vmatmul.mubr.f32.gmra.mxu0 %v813
    %v957 = vpop.f32.mrf.mxu0
    %v958 = vadd.f32 0.0, %v957
    %v959 = vpop.f32.mrf.mxu0
    %960 = vmatprep.mubr.f32.mxu0 0.0
    %961 = vmatmul.mubr.f32.gmra.mxu0 %v818
    %v962 = vpop.f32.mrf.mxu0
    %v963 = vadd.f32 0.0, %v962
    %v964 = vpop.f32.mrf.mxu0
    %965 = vmatprep.mubr.f32.mxu0 0.0
    %966 = vmatmul.mubr.f32.gmra.mxu0 %v823
    %v967 = vpop.f32.mrf.mxu0
    %v968 = vadd.f32 0.0, %v967
    %v969 = vpop.f32.mrf.mxu0
    %970 = vmatprep.mubr.f32.mxu0 0.0
    %971 = vmatmul.mubr.f32.gmra.mxu0 %v828
    %v972 = vpop.f32.mrf.mxu0
    %v973 = vadd.f32 0.0, %v972
    %v974 = vpop.f32.mrf.mxu0
    %975 = vmatprep.mubr.f32.mxu0 0.0
    %976 = vmatmul.mubr.f32.gmra.mxu0 %v833
    %v977 = vpop.f32.mrf.mxu0
    %v978 = vadd.f32 0.0, %v977
    %v979 = vpop.f32.mrf.mxu0
    %980 = vmatprep.mubr.f32.mxu0 0.0
    %981 = vmatmul.mubr.f32.gmra.mxu0 %v838
    %v982 = vpop.f32.mrf.mxu0
    %v983 = vadd.f32 0.0, %v982
    %v984 = vpop.f32.mrf.mxu0
    %985 = vmatprep.mubr.f32.mxu0 0.0
    %986 = vmatmul.mubr.f32.gmra.mxu0 %v843
    %v987 = vpop.f32.mrf.mxu0
    %v988 = vadd.f32 0.0, %v987
    %v989 = vpop.f32.mrf.mxu0
    %990 = vmatprep.mubr.f32.mxu0 0.0
    %991 = vmatmul.mubr.f32.gmra.mxu0 %v848
    %v992 = vpop.f32.mrf.mxu0
    %v993 = vadd.f32 0.0, %v992
    %v994 = vpop.f32.mrf.mxu0
    %995 = vmatprep.mubr.f32.mxu0 0.0
    %996 = vmatmul.mubr.f32.gmra.mxu0 %v853
    %v997 = vpop.f32.mrf.mxu0
    %v998 = vadd.f32 0.0, %v997
    %v999 = vpop.f32.mrf.mxu0
    %1000 = vmatprep.mubr.f32.mxu0 0.0
    %1001 = vmatmul.mubr.f32.gmra.mxu0 %v858
    %v1002 = vpop.f32.mrf.mxu0
    %v1003 = vadd.f32 0.0, %v1002
    %v1004 = vpop.f32.mrf.mxu0
    %1005 = vmatprep.mubr.f32.mxu0 0.0
    %1006 = vmatmul.mubr.f32.gmra.mxu0 %v863
    %v1007 = vpop.f32.mrf.mxu0
    %v1008 = vadd.f32 0.0, %v1007
    %v1009 = vpop.f32.mrf.mxu0
    %1010 = vmatprep.mubr.f32.mxu0 0.0
    %1011 = vmatmul.mubr.f32.gmra.mxu0 %v868
    %v1012 = vpop.f32.mrf.mxu0
    %v1013 = vadd.f32 0.0, %v1012
    %v1014 = vpop.f32.mrf.mxu0
    %1015 = vmatprep.mubr.f32.mxu0 0.0
    %1016 = vmatmul.mubr.f32.gmra.mxu0 %v873
    %v1017 = vpop.f32.mrf.mxu0
    %v1018 = vadd.f32 0.0, %v1017
    %v1019 = vpop.f32.mrf.mxu0
    %1020 = vmatprep.mubr.f32.mxu0 0.0
    %1021 = vmatmul.mubr.f32.gmra.mxu0 %v878
    %v1022 = vpop.f32.mrf.mxu0
    %v1023 = vadd.f32 0.0, %v1022
    %v1024 = vpop.f32.mrf.mxu0
    %1025 = vdwg.mxu0
    %v1026 = vmul.f32 %v948, 0.5
    %v1027 = vmul.f32 %v953, 0.5
    %v1028 = vmul.f32 %v958, 0.5
    %v1029 = vmul.f32 %v963, 0.5
    %v1030 = vmul.f32 %v968, 0.5
    %v1031 = vmul.f32 %v973, 0.5
    %v1032 = vmul.f32 %v978, 0.5
    %v1033 = vmul.f32 %v983, 0.5
    %v1034 = vmul.f32 %v988, 0.5
    %v1035 = vmul.f32 %v993, 0.5
    %v1036 = vmul.f32 %v998, 0.5
    %v1037 = vmul.f32 %v1003, 0.5
    %v1038 = vmul.f32 %v1008, 0.5
    %v1039 = vmul.f32 %v1013, 0.5
    %v1040 = vmul.f32 %v1018, 0.5
    %v1041 = vmul.f32 %v1023, 0.5
    %v1042 = vsub.f32 %v398, %v1026
    %v1043 = vsub.f32 %v399, %v1027
    %v1044 = vsub.f32 %v400, %v1028
    %v1045 = vsub.f32 %v401, %v1029
    %v1046 = vsub.f32 %v402, %v1030
    %v1047 = vsub.f32 %v403, %v1031
    %v1048 = vsub.f32 %v404, %v1032
    %v1049 = vsub.f32 %v405, %v1033
    %v1050 = vsub.f32 %v406, %v1034
    %v1051 = vsub.f32 %v407, %v1035
    %v1052 = vsub.f32 %v408, %v1036
    %v1053 = vsub.f32 %v409, %v1037
    %v1054 = vsub.f32 %v410, %v1038
    %v1055 = vsub.f32 %v411, %v1039
    %v1056 = vsub.f32 %v412, %v1040
    %v1057 = vsub.f32 %v413, %v1041
    %1058 = vmatprep.subr.mxu0 0.0
    %1059 = vmatpush1.msra.mxu0 %v1057
    %1060 = vmatprep.subr.mxu0 0.0
    %1061 = vmatpush1.msra.mxu0 %v1056
    %1062 = vmatprep.subr.mxu0 0.0
    %1063 = vmatpush1.msra.mxu0 %v1055
    %1064 = vmatprep.subr.mxu0 0.0
    %1065 = vmatpush1.msra.mxu0 %v1054
    %1066 = vmatprep.subr.mxu0 0.0
    %1067 = vmatpush1.msra.mxu0 %v1053
    %1068 = vmatprep.subr.mxu0 0.0
    %1069 = vmatpush1.msra.mxu0 %v1052
    %1070 = vmatprep.subr.mxu0 0.0
    %1071 = vmatpush1.msra.mxu0 %v1051
    %1072 = vmatprep.subr.mxu0 0.0
    %1073 = vmatpush1.msra.mxu0 %v1050
    %1074 = vmatprep.subr.mxu0 0.0
    %1075 = vmatpush1.msra.mxu0 %v1049
    %1076 = vmatprep.subr.mxu0 0.0
    %1077 = vmatpush1.msra.mxu0 %v1048
    %1078 = vmatprep.subr.mxu0 0.0
    %1079 = vmatpush1.msra.mxu0 %v1047
    %1080 = vmatprep.subr.mxu0 0.0
    %1081 = vmatpush1.msra.mxu0 %v1046
    %1082 = vmatprep.subr.mxu0 0.0
    %1083 = vmatpush1.msra.mxu0 %v1045
    %1084 = vmatprep.subr.mxu0 0.0
    %1085 = vmatpush1.msra.mxu0 %v1044
    %1086 = vmatprep.subr.mxu0 0.0
    %1087 = vmatpush1.msra.mxu0 %v1043
    %1088 = vmatprep.subr.mxu0 0.0
    %1089 = vmatpush1.msra.mxu0 %v1042
    %1090 = vmatprep.subr.mxu0 0.0
    %1091 = vmatpush2.msra.mxu0 0.0
    %1092 = vmatprep.subr.mxu0 0.0
    %1093 = vmatpush2.msra.mxu0 0.0
    %1094 = vmatprep.subr.mxu0 0.0
    %1095 = vmatpush2.msra.mxu0 0.0
    %1096 = vmatprep.subr.mxu0 0.0
    %1097 = vmatpush2.msra.mxu0 0.0
    %1098 = vmatprep.subr.mxu0 0.0
    %1099 = vmatpush2.msra.mxu0 0.0
    %1100 = vmatprep.subr.mxu0 0.0
    %1101 = vmatpush2.msra.mxu0 0.0
    %1102 = vmatprep.subr.mxu0 0.0
    %1103 = vmatpush2.msra.mxu0 0.0
    %1104 = vmatprep.subr.mxu0 0.0
    %1105 = vmatpush2.msra.mxu0 0.0
    %1106 = vmatprep.subr.mxu0 0.0
    %1107 = vmatpush2.msra.mxu0 0.0
    %1108 = vmatprep.subr.mxu0 0.0
    %1109 = vmatpush2.msra.mxu0 0.0
    %1110 = vmatprep.subr.mxu0 0.0
    %1111 = vmatpush2.msra.mxu0 0.0
    %1112 = vmatprep.subr.mxu0 0.0
    %1113 = vmatpush2.msra.mxu0 0.0
    %1114 = vmatprep.subr.mxu0 0.0
    %1115 = vmatpush2.msra.mxu0 0.0
    %1116 = vmatprep.subr.mxu0 0.0
    %1117 = vmatpush2.msra.mxu0 0.0
    %1118 = vmatprep.subr.mxu0 0.0
    %1119 = vmatpush2.msra.mxu0 0.0
    %1120 = vmatprep.subr.mxu0 0.0
    %1121 = vmatpush2.msra.mxu0 0.0
    %1122 = vmatprep.mubr.f32.mxu0 0.0
    %1123 = vmatmul.mubr.f32.gmra.mxu0 %v658
    %v1124 = vpop.f32.mrf.mxu0
    %v1125 = vadd.f32 0.0, %v1124
    %v1126 = vpop.f32.mrf.mxu0
    %1127 = vmatprep.mubr.f32.mxu0 0.0
    %1128 = vmatmul.mubr.f32.gmra.mxu0 %v663
    %v1129 = vpop.f32.mrf.mxu0
    %v1130 = vadd.f32 0.0, %v1129
    %v1131 = vpop.f32.mrf.mxu0
    %1132 = vmatprep.mubr.f32.mxu0 0.0
    %1133 = vmatmul.mubr.f32.gmra.mxu0 %v668
    %v1134 = vpop.f32.mrf.mxu0
    %v1135 = vadd.f32 0.0, %v1134
    %v1136 = vpop.f32.mrf.mxu0
    %1137 = vmatprep.mubr.f32.mxu0 0.0
    %1138 = vmatmul.mubr.f32.gmra.mxu0 %v673
    %v1139 = vpop.f32.mrf.mxu0
    %v1140 = vadd.f32 0.0, %v1139
    %v1141 = vpop.f32.mrf.mxu0
    %1142 = vmatprep.mubr.f32.mxu0 0.0
    %1143 = vmatmul.mubr.f32.gmra.mxu0 %v678
    %v1144 = vpop.f32.mrf.mxu0
    %v1145 = vadd.f32 0.0, %v1144
    %v1146 = vpop.f32.mrf.mxu0
    %1147 = vmatprep.mubr.f32.mxu0 0.0
    %1148 = vmatmul.mubr.f32.gmra.mxu0 %v683
    %v1149 = vpop.f32.mrf.mxu0
    %v1150 = vadd.f32 0.0, %v1149
    %v1151 = vpop.f32.mrf.mxu0
    %1152 = vmatprep.mubr.f32.mxu0 0.0
    %1153 = vmatmul.mubr.f32.gmra.mxu0 %v688
    %v1154 = vpop.f32.mrf.mxu0
    %v1155 = vadd.f32 0.0, %v1154
    %v1156 = vpop.f32.mrf.mxu0
    %1157 = vmatprep.mubr.f32.mxu0 0.0
    %1158 = vmatmul.mubr.f32.gmra.mxu0 %v693
    %v1159 = vpop.f32.mrf.mxu0
    %v1160 = vadd.f32 0.0, %v1159
    %v1161 = vpop.f32.mrf.mxu0
    %1162 = vmatprep.mubr.f32.mxu0 0.0
    %1163 = vmatmul.mubr.f32.gmra.mxu0 %v698
    %v1164 = vpop.f32.mrf.mxu0
    %v1165 = vadd.f32 0.0, %v1164
    %v1166 = vpop.f32.mrf.mxu0
    %1167 = vmatprep.mubr.f32.mxu0 0.0
    %1168 = vmatmul.mubr.f32.gmra.mxu0 %v703
    %v1169 = vpop.f32.mrf.mxu0
    %v1170 = vadd.f32 0.0, %v1169
    %v1171 = vpop.f32.mrf.mxu0
    %1172 = vmatprep.mubr.f32.mxu0 0.0
    %1173 = vmatmul.mubr.f32.gmra.mxu0 %v708
    %v1174 = vpop.f32.mrf.mxu0
    %v1175 = vadd.f32 0.0, %v1174
    %v1176 = vpop.f32.mrf.mxu0
    %1177 = vmatprep.mubr.f32.mxu0 0.0
    %1178 = vmatmul.mubr.f32.gmra.mxu0 %v713
    %v1179 = vpop.f32.mrf.mxu0
    %v1180 = vadd.f32 0.0, %v1179
    %v1181 = vpop.f32.mrf.mxu0
    %1182 = vmatprep.mubr.f32.mxu0 0.0
    %1183 = vmatmul.mubr.f32.gmra.mxu0 %v718
    %v1184 = vpop.f32.mrf.mxu0
    %v1185 = vadd.f32 0.0, %v1184
    %v1186 = vpop.f32.mrf.mxu0
    %1187 = vmatprep.mubr.f32.mxu0 0.0
    %1188 = vmatmul.mubr.f32.gmra.mxu0 %v723
    %v1189 = vpop.f32.mrf.mxu0
    %v1190 = vadd.f32 0.0, %v1189
    %v1191 = vpop.f32.mrf.mxu0
    %1192 = vmatprep.mubr.f32.mxu0 0.0
    %1193 = vmatmul.mubr.f32.gmra.mxu0 %v728
    %v1194 = vpop.f32.mrf.mxu0
    %v1195 = vadd.f32 0.0, %v1194
    %v1196 = vpop.f32.mrf.mxu0
    %1197 = vmatprep.mubr.f32.mxu0 0.0
    %1198 = vmatmul.mubr.f32.gmra.mxu0 %v733
    %v1199 = vpop.f32.mrf.mxu0
    %v1200 = vadd.f32 0.0, %v1199
    %v1201 = vpop.f32.mrf.mxu0
    %1202 = vdwg.mxu0
    %1203 = vmatprep.subr.mxu0 0.0
    %1204 = vmatpush1.msra.mxu0 %v878
    %1205 = vmatprep.subr.mxu0 0.0
    %1206 = vmatpush1.msra.mxu0 %v873
    %1207 = vmatprep.subr.mxu0 0.0
    %1208 = vmatpush1.msra.mxu0 %v868
    %1209 = vmatprep.subr.mxu0 0.0
    %1210 = vmatpush1.msra.mxu0 %v863
    %1211 = vmatprep.subr.mxu0 0.0
    %1212 = vmatpush1.msra.mxu0 %v858
    %1213 = vmatprep.subr.mxu0 0.0
    %1214 = vmatpush1.msra.mxu0 %v853
    %1215 = vmatprep.subr.mxu0 0.0
    %1216 = vmatpush1.msra.mxu0 %v848
    %1217 = vmatprep.subr.mxu0 0.0
    %1218 = vmatpush1.msra.mxu0 %v843
    %1219 = vmatprep.subr.mxu0 0.0
    %1220 = vmatpush1.msra.mxu0 %v838
    %1221 = vmatprep.subr.mxu0 0.0
    %1222 = vmatpush1.msra.mxu0 %v833
    %1223 = vmatprep.subr.mxu0 0.0
    %1224 = vmatpush1.msra.mxu0 %v828
    %1225 = vmatprep.subr.mxu0 0.0
    %1226 = vmatpush1.msra.mxu0 %v823
    %1227 = vmatprep.subr.mxu0 0.0
    %1228 = vmatpush1.msra.mxu0 %v818
    %1229 = vmatprep.subr.mxu0 0.0
    %1230 = vmatpush1.msra.mxu0 %v813
    %1231 = vmatprep.subr.mxu0 0.0
    %1232 = vmatpush1.msra.mxu0 %v808
    %1233 = vmatprep.subr.mxu0 0.0
    %1234 = vmatpush1.msra.mxu0 %v803
    %1235 = vmatprep.subr.mxu0 0.0
    %1236 = vmatpush2.msra.mxu0 0.0
    %1237 = vmatprep.subr.mxu0 0.0
    %1238 = vmatpush2.msra.mxu0 0.0
    %1239 = vmatprep.subr.mxu0 0.0
    %1240 = vmatpush2.msra.mxu0 0.0
    %1241 = vmatprep.subr.mxu0 0.0
    %1242 = vmatpush2.msra.mxu0 0.0
    %1243 = vmatprep.subr.mxu0 0.0
    %1244 = vmatpush2.msra.mxu0 0.0
    %1245 = vmatprep.subr.mxu0 0.0
    %1246 = vmatpush2.msra.mxu0 0.0
    %1247 = vmatprep.subr.mxu0 0.0
    %1248 = vmatpush2.msra.mxu0 0.0
    %1249 = vmatprep.subr.mxu0 0.0
    %1250 = vmatpush2.msra.mxu0 0.0
    %1251 = vmatprep.subr.mxu0 0.0
    %1252 = vmatpush2.msra.mxu0 0.0
    %1253 = vmatprep.subr.mxu0 0.0
    %1254 = vmatpush2.msra.mxu0 0.0
    %1255 = vmatprep.subr.mxu0 0.0
    %1256 = vmatpush2.msra.mxu0 0.0
    %1257 = vmatprep.subr.mxu0 0.0
    %1258 = vmatpush2.msra.mxu0 0.0
    %1259 = vmatprep.subr.mxu0 0.0
    %1260 = vmatpush2.msra.mxu0 0.0
    %1261 = vmatprep.subr.mxu0 0.0
    %1262 = vmatpush2.msra.mxu0 0.0
    %1263 = vmatprep.subr.mxu0 0.0
    %1264 = vmatpush2.msra.mxu0 0.0
    %1265 = vmatprep.subr.mxu0 0.0
    %1266 = vmatpush2.msra.mxu0 0.0
    %1267 = vmatprep.mubr.f32.mxu0 0.0
    %1268 = vmatmul.mubr.f32.gmra.mxu0 %v1042
    %v1269 = vpop.f32.mrf.mxu0
    %v1270 = vadd.f32 0.0, %v1269
    %v1271 = vpop.f32.mrf.mxu0
    %1272 = vmatprep.mubr.f32.mxu0 0.0
    %1273 = vmatmul.mubr.f32.gmra.mxu0 %v1043
    %v1274 = vpop.f32.mrf.mxu0
    %v1275 = vadd.f32 0.0, %v1274
    %v1276 = vpop.f32.mrf.mxu0
    %1277 = vmatprep.mubr.f32.mxu0 0.0
    %1278 = vmatmul.mubr.f32.gmra.mxu0 %v1044
    %v1279 = vpop.f32.mrf.mxu0
    %v1280 = vadd.f32 0.0, %v1279
    %v1281 = vpop.f32.mrf.mxu0
    %1282 = vmatprep.mubr.f32.mxu0 0.0
    %1283 = vmatmul.mubr.f32.gmra.mxu0 %v1045
    %v1284 = vpop.f32.mrf.mxu0
    %v1285 = vadd.f32 0.0, %v1284
    %v1286 = vpop.f32.mrf.mxu0
    %1287 = vmatprep.mubr.f32.mxu0 0.0
    %1288 = vmatmul.mubr.f32.gmra.mxu0 %v1046
    %v1289 = vpop.f32.mrf.mxu0
    %v1290 = vadd.f32 0.0, %v1289
    %v1291 = vpop.f32.mrf.mxu0
    %1292 = vmatprep.mubr.f32.mxu0 0.0
    %1293 = vmatmul.mubr.f32.gmra.mxu0 %v1047
    %v1294 = vpop.f32.mrf.mxu0
    %v1295 = vadd.f32 0.0, %v1294
    %v1296 = vpop.f32.mrf.mxu0
    %1297 = vmatprep.mubr.f32.mxu0 0.0
    %1298 = vmatmul.mubr.f32.gmra.mxu0 %v1048
    %v1299 = vpop.f32.mrf.mxu0
    %v1300 = vadd.f32 0.0, %v1299
    %v1301 = vpop.f32.mrf.mxu0
    %1302 = vmatprep.mubr.f32.mxu0 0.0
    %1303 = vmatmul.mubr.f32.gmra.mxu0 %v1049
    %v1304 = vpop.f32.mrf.mxu0
    %v1305 = vadd.f32 0.0, %v1304
    %v1306 = vpop.f32.mrf.mxu0
    %1307 = vmatprep.mubr.f32.mxu0 0.0
    %1308 = vmatmul.mubr.f32.gmra.mxu0 %v1050
    %v1309 = vpop.f32.mrf.mxu0
    %v1310 = vadd.f32 0.0, %v1309
    %v1311 = vpop.f32.mrf.mxu0
    %1312 = vmatprep.mubr.f32.mxu0 0.0
    %1313 = vmatmul.mubr.f32.gmra.mxu0 %v1051
    %v1314 = vpop.f32.mrf.mxu0
    %v1315 = vadd.f32 0.0, %v1314
    %v1316 = vpop.f32.mrf.mxu0
    %1317 = vmatprep.mubr.f32.mxu0 0.0
    %1318 = vmatmul.mubr.f32.gmra.mxu0 %v1052
    %v1319 = vpop.f32.mrf.mxu0
    %v1320 = vadd.f32 0.0, %v1319
    %v1321 = vpop.f32.mrf.mxu0
    %1322 = vmatprep.mubr.f32.mxu0 0.0
    %1323 = vmatmul.mubr.f32.gmra.mxu0 %v1053
    %v1324 = vpop.f32.mrf.mxu0
    %v1325 = vadd.f32 0.0, %v1324
    %v1326 = vpop.f32.mrf.mxu0
    %1327 = vmatprep.mubr.f32.mxu0 0.0
    %1328 = vmatmul.mubr.f32.gmra.mxu0 %v1054
    %v1329 = vpop.f32.mrf.mxu0
    %v1330 = vadd.f32 0.0, %v1329
    %v1331 = vpop.f32.mrf.mxu0
    %1332 = vmatprep.mubr.f32.mxu0 0.0
    %1333 = vmatmul.mubr.f32.gmra.mxu0 %v1055
    %v1334 = vpop.f32.mrf.mxu0
    %v1335 = vadd.f32 0.0, %v1334
    %v1336 = vpop.f32.mrf.mxu0
    %1337 = vmatprep.mubr.f32.mxu0 0.0
    %1338 = vmatmul.mubr.f32.gmra.mxu0 %v1056
    %v1339 = vpop.f32.mrf.mxu0
    %v1340 = vadd.f32 0.0, %v1339
    %v1341 = vpop.f32.mrf.mxu0
    %1342 = vmatprep.mubr.f32.mxu0 0.0
    %1343 = vmatmul.mubr.f32.gmra.mxu0 %v1057
    %v1344 = vpop.f32.mrf.mxu0
    %v1345 = vadd.f32 0.0, %v1344
    %v1346 = vpop.f32.mrf.mxu0
    %1347 = vdwg.mxu0
    %1348 = vmatprep.subr.mxu0 0.0
    %1349 = vmatpush1.msra.mxu0 %v1200
    %1350 = vmatprep.subr.mxu0 0.0
    %1351 = vmatpush1.msra.mxu0 %v1195
    %1352 = vmatprep.subr.mxu0 0.0
    %1353 = vmatpush1.msra.mxu0 %v1190
    %1354 = vmatprep.subr.mxu0 0.0
    %1355 = vmatpush1.msra.mxu0 %v1185
    %1356 = vmatprep.subr.mxu0 0.0
    %1357 = vmatpush1.msra.mxu0 %v1180
    %1358 = vmatprep.subr.mxu0 0.0
    %1359 = vmatpush1.msra.mxu0 %v1175
    %1360 = vmatprep.subr.mxu0 0.0
    %1361 = vmatpush1.msra.mxu0 %v1170
    %1362 = vmatprep.subr.mxu0 0.0
    %1363 = vmatpush1.msra.mxu0 %v1165
    %1364 = vmatprep.subr.mxu0 0.0
    %1365 = vmatpush1.msra.mxu0 %v1160
    %1366 = vmatprep.subr.mxu0 0.0
    %1367 = vmatpush1.msra.mxu0 %v1155
    %1368 = vmatprep.subr.mxu0 0.0
    %1369 = vmatpush1.msra.mxu0 %v1150
    %1370 = vmatprep.subr.mxu0 0.0
    %1371 = vmatpush1.msra.mxu0 %v1145
    %1372 = vmatprep.subr.mxu0 0.0
    %1373 = vmatpush1.msra.mxu0 %v1140
    %1374 = vmatprep.subr.mxu0 0.0
    %1375 = vmatpush1.msra.mxu0 %v1135
    %1376 = vmatprep.subr.mxu0 0.0
    %1377 = vmatpush1.msra.mxu0 %v1130
    %1378 = vmatprep.subr.mxu0 0.0
    %1379 = vmatpush1.msra.mxu0 %v1125
    %1380 = vmatprep.subr.mxu0 0.0
    %1381 = vmatpush2.msra.mxu0 0.0
    %1382 = vmatprep.subr.mxu0 0.0
    %1383 = vmatpush2.msra.mxu0 0.0
    %1384 = vmatprep.subr.mxu0 0.0
    %1385 = vmatpush2.msra.mxu0 0.0
    %1386 = vmatprep.subr.mxu0 0.0
    %1387 = vmatpush2.msra.mxu0 0.0
    %1388 = vmatprep.subr.mxu0 0.0
    %1389 = vmatpush2.msra.mxu0 0.0
    %1390 = vmatprep.subr.mxu0 0.0
    %1391 = vmatpush2.msra.mxu0 0.0
    %1392 = vmatprep.subr.mxu0 0.0
    %1393 = vmatpush2.msra.mxu0 0.0
    %1394 = vmatprep.subr.mxu0 0.0
    %1395 = vmatpush2.msra.mxu0 0.0
    %1396 = vmatprep.subr.mxu0 0.0
    %1397 = vmatpush2.msra.mxu0 0.0
    %1398 = vmatprep.subr.mxu0 0.0
    %1399 = vmatpush2.msra.mxu0 0.0
    %1400 = vmatprep.subr.mxu0 0.0
    %1401 = vmatpush2.msra.mxu0 0.0
    %1402 = vmatprep.subr.mxu0 0.0
    %1403 = vmatpush2.msra.mxu0 0.0
    %1404 = vmatprep.subr.mxu0 0.0
    %1405 = vmatpush2.msra.mxu0 0.0
    %1406 = vmatprep.subr.mxu0 0.0
    %1407 = vmatpush2.msra.mxu0 0.0
    %1408 = vmatprep.subr.mxu0 0.0
    %1409 = vmatpush2.msra.mxu0 0.0
    %1410 = vmatprep.subr.mxu0 0.0
    %1411 = vmatpush2.msra.mxu0 0.0
    %1412 = vmatprep.mubr.f32.mxu0 0.0
    %1413 = vmatmul.mubr.f32.gmra.mxu0 %v1270
    %v1414 = vpop.f32.mrf.mxu0
    %v1415 = vadd.f32 0.0, %v1414
    %v1416 = vpop.f32.mrf.mxu0
    %1417 = vmatprep.mubr.f32.mxu0 0.0
    %1418 = vmatmul.mubr.f32.gmra.mxu0 %v1275
    %v1419 = vpop.f32.mrf.mxu0
    %v1420 = vadd.f32 0.0, %v1419
    %v1421 = vpop.f32.mrf.mxu0
    %1422 = vmatprep.mubr.f32.mxu0 0.0
    %1423 = vmatmul.mubr.f32.gmra.mxu0 %v1280
    %v1424 = vpop.f32.mrf.mxu0
    %v1425 = vadd.f32 0.0, %v1424
    %v1426 = vpop.f32.mrf.mxu0
    %1427 = vmatprep.mubr.f32.mxu0 0.0
    %1428 = vmatmul.mubr.f32.gmra.mxu0 %v1285
    %v1429 = vpop.f32.mrf.mxu0
    %v1430 = vadd.f32 0.0, %v1429
    %v1431 = vpop.f32.mrf.mxu0
    %1432 = vmatprep.mubr.f32.mxu0 0.0
    %1433 = vmatmul.mubr.f32.gmra.mxu0 %v1290
    %v1434 = vpop.f32.mrf.mxu0
    %v1435 = vadd.f32 0.0, %v1434
    %v1436 = vpop.f32.mrf.mxu0
    %1437 = vmatprep.mubr.f32.mxu0 0.0
    %1438 = vmatmul.mubr.f32.gmra.mxu0 %v1295
    %v1439 = vpop.f32.mrf.mxu0
    %v1440 = vadd.f32 0.0, %v1439
    %v1441 = vpop.f32.mrf.mxu0
    %1442 = vmatprep.mubr.f32.mxu0 0.0
    %1443 = vmatmul.mubr.f32.gmra.mxu0 %v1300
    %v1444 = vpop.f32.mrf.mxu0
    %v1445 = vadd.f32 0.0, %v1444
    %v1446 = vpop.f32.mrf.mxu0
    %1447 = vmatprep.mubr.f32.mxu0 0.0
    %1448 = vmatmul.mubr.f32.gmra.mxu0 %v1305
    %v1449 = vpop.f32.mrf.mxu0
    %v1450 = vadd.f32 0.0, %v1449
    %v1451 = vpop.f32.mrf.mxu0
    %1452 = vmatprep.mubr.f32.mxu0 0.0
    %1453 = vmatmul.mubr.f32.gmra.mxu0 %v1310
    %v1454 = vpop.f32.mrf.mxu0
    %v1455 = vadd.f32 0.0, %v1454
    %v1456 = vpop.f32.mrf.mxu0
    %1457 = vmatprep.mubr.f32.mxu0 0.0
    %1458 = vmatmul.mubr.f32.gmra.mxu0 %v1315
    %v1459 = vpop.f32.mrf.mxu0
    %v1460 = vadd.f32 0.0, %v1459
    %v1461 = vpop.f32.mrf.mxu0
    %1462 = vmatprep.mubr.f32.mxu0 0.0
    %1463 = vmatmul.mubr.f32.gmra.mxu0 %v1320
    %v1464 = vpop.f32.mrf.mxu0
    %v1465 = vadd.f32 0.0, %v1464
    %v1466 = vpop.f32.mrf.mxu0
    %1467 = vmatprep.mubr.f32.mxu0 0.0
    %1468 = vmatmul.mubr.f32.gmra.mxu0 %v1325
    %v1469 = vpop.f32.mrf.mxu0
    %v1470 = vadd.f32 0.0, %v1469
    %v1471 = vpop.f32.mrf.mxu0
    %1472 = vmatprep.mubr.f32.mxu0 0.0
    %1473 = vmatmul.mubr.f32.gmra.mxu0 %v1330
    %v1474 = vpop.f32.mrf.mxu0
    %v1475 = vadd.f32 0.0, %v1474
    %v1476 = vpop.f32.mrf.mxu0
    %1477 = vmatprep.mubr.f32.mxu0 0.0
    %1478 = vmatmul.mubr.f32.gmra.mxu0 %v1335
    %v1479 = vpop.f32.mrf.mxu0
    %v1480 = vadd.f32 0.0, %v1479
    %v1481 = vpop.f32.mrf.mxu0
    %1482 = vmatprep.mubr.f32.mxu0 0.0
    %1483 = vmatmul.mubr.f32.gmra.mxu0 %v1340
    %v1484 = vpop.f32.mrf.mxu0
    %v1485 = vadd.f32 0.0, %v1484
    %v1486 = vpop.f32.mrf.mxu0
    %1487 = vmatprep.mubr.f32.mxu0 0.0
    %1488 = vmatmul.mubr.f32.gmra.mxu0 %v1345
    %v1489 = vpop.f32.mrf.mxu0
    %v1490 = vadd.f32 0.0, %v1489
    %v1491 = vpop.f32.mrf.mxu0
    %1492 = vdwg.mxu0
    %v1493 = vmul.f32 %v1415, 0.5
    %v1494 = vmul.f32 %v1420, 0.5
    %v1495 = vmul.f32 %v1425, 0.5
    %v1496 = vmul.f32 %v1430, 0.5
    %v1497 = vmul.f32 %v1435, 0.5
    %v1498 = vmul.f32 %v1440, 0.5
    %v1499 = vmul.f32 %v1445, 0.5
    %v1500 = vmul.f32 %v1450, 0.5
    %v1501 = vmul.f32 %v1455, 0.5
    %v1502 = vmul.f32 %v1460, 0.5
    %v1503 = vmul.f32 %v1465, 0.5
    %v1504 = vmul.f32 %v1470, 0.5
    %v1505 = vmul.f32 %v1475, 0.5
    %v1506 = vmul.f32 %v1480, 0.5
    %v1507 = vmul.f32 %v1485, 0.5
    %v1508 = vmul.f32 %v1490, 0.5
    %v1509 = vsub.f32 %v398, %v1493
    %v1510 = vsub.f32 %v399, %v1494
    %v1511 = vsub.f32 %v400, %v1495
    %v1512 = vsub.f32 %v401, %v1496
    %v1513 = vsub.f32 %v402, %v1497
    %v1514 = vsub.f32 %v403, %v1498
    %v1515 = vsub.f32 %v404, %v1499
    %v1516 = vsub.f32 %v405, %v1500
    %v1517 = vsub.f32 %v406, %v1501
    %v1518 = vsub.f32 %v407, %v1502
    %v1519 = vsub.f32 %v408, %v1503
    %v1520 = vsub.f32 %v409, %v1504
    %v1521 = vsub.f32 %v410, %v1505
    %v1522 = vsub.f32 %v411, %v1506
    %v1523 = vsub.f32 %v412, %v1507
    %v1524 = vsub.f32 %v413, %v1508
    %1525 = vmatprep.subr.mxu0 0.0
    %1526 = vmatpush1.msra.mxu0 %v1524
    %1527 = vmatprep.subr.mxu0 0.0
    %1528 = vmatpush1.msra.mxu0 %v1523
    %1529 = vmatprep.subr.mxu0 0.0
    %1530 = vmatpush1.msra.mxu0 %v1522
    %1531 = vmatprep.subr.mxu0 0.0
    %1532 = vmatpush1.msra.mxu0 %v1521
    %1533 = vmatprep.subr.mxu0 0.0
    %1534 = vmatpush1.msra.mxu0 %v1520
    %1535 = vmatprep.subr.mxu0 0.0
    %1536 = vmatpush1.msra.mxu0 %v1519
    %1537 = vmatprep.subr.mxu0 0.0
    %1538 = vmatpush1.msra.mxu0 %v1518
    %1539 = vmatprep.subr.mxu0 0.0
    %1540 = vmatpush1.msra.mxu0 %v1517
    %1541 = vmatprep.subr.mxu0 0.0
    %1542 = vmatpush1.msra.mxu0 %v1516
    %1543 = vmatprep.subr.mxu0 0.0
    %1544 = vmatpush1.msra.mxu0 %v1515
    %1545 = vmatprep.subr.mxu0 0.0
    %1546 = vmatpush1.msra.mxu0 %v1514
    %1547 = vmatprep.subr.mxu0 0.0
    %1548 = vmatpush1.msra.mxu0 %v1513
    %1549 = vmatprep.subr.mxu0 0.0
    %1550 = vmatpush1.msra.mxu0 %v1512
    %1551 = vmatprep.subr.mxu0 0.0
    %1552 = vmatpush1.msra.mxu0 %v1511
    %1553 = vmatprep.subr.mxu0 0.0
    %1554 = vmatpush1.msra.mxu0 %v1510
    %1555 = vmatprep.subr.mxu0 0.0
    %1556 = vmatpush1.msra.mxu0 %v1509
    %1557 = vmatprep.subr.mxu0 0.0
    %1558 = vmatpush2.msra.mxu0 0.0
    %1559 = vmatprep.subr.mxu0 0.0
    %1560 = vmatpush2.msra.mxu0 0.0
    %1561 = vmatprep.subr.mxu0 0.0
    %1562 = vmatpush2.msra.mxu0 0.0
    %1563 = vmatprep.subr.mxu0 0.0
    %1564 = vmatpush2.msra.mxu0 0.0
    %1565 = vmatprep.subr.mxu0 0.0
    %1566 = vmatpush2.msra.mxu0 0.0
    %1567 = vmatprep.subr.mxu0 0.0
    %1568 = vmatpush2.msra.mxu0 0.0
    %1569 = vmatprep.subr.mxu0 0.0
    %1570 = vmatpush2.msra.mxu0 0.0
    %1571 = vmatprep.subr.mxu0 0.0
    %1572 = vmatpush2.msra.mxu0 0.0
    %1573 = vmatprep.subr.mxu0 0.0
    %1574 = vmatpush2.msra.mxu0 0.0
    %1575 = vmatprep.subr.mxu0 0.0
    %1576 = vmatpush2.msra.mxu0 0.0
    %1577 = vmatprep.subr.mxu0 0.0
    %1578 = vmatpush2.msra.mxu0 0.0
    %1579 = vmatprep.subr.mxu0 0.0
    %1580 = vmatpush2.msra.mxu0 0.0
    %1581 = vmatprep.subr.mxu0 0.0
    %1582 = vmatpush2.msra.mxu0 0.0
    %1583 = vmatprep.subr.mxu0 0.0
    %1584 = vmatpush2.msra.mxu0 0.0
    %1585 = vmatprep.subr.mxu0 0.0
    %1586 = vmatpush2.msra.mxu0 0.0
    %1587 = vmatprep.subr.mxu0 0.0
    %1588 = vmatpush2.msra.mxu0 0.0
    %1589 = vmatprep.mubr.f32.mxu0 0.0
    %1590 = vmatmul.mubr.f32.gmra.mxu0 %v1125
    %v1591 = vpop.f32.mrf.mxu0
    %v1592 = vadd.f32 0.0, %v1591
    %v1593 = vpop.f32.mrf.mxu0
    %1594 = vmatprep.mubr.f32.mxu0 0.0
    %1595 = vmatmul.mubr.f32.gmra.mxu0 %v1130
    %v1596 = vpop.f32.mrf.mxu0
    %v1597 = vadd.f32 0.0, %v1596
    %v1598 = vpop.f32.mrf.mxu0
    %1599 = vmatprep.mubr.f32.mxu0 0.0
    %1600 = vmatmul.mubr.f32.gmra.mxu0 %v1135
    %v1601 = vpop.f32.mrf.mxu0
    %v1602 = vadd.f32 0.0, %v1601
    %v1603 = vpop.f32.mrf.mxu0
    %1604 = vmatprep.mubr.f32.mxu0 0.0
    %1605 = vmatmul.mubr.f32.gmra.mxu0 %v1140
    %v1606 = vpop.f32.mrf.mxu0
    %v1607 = vadd.f32 0.0, %v1606
    %v1608 = vpop.f32.mrf.mxu0
    %1609 = vmatprep.mubr.f32.mxu0 0.0
    %1610 = vmatmul.mubr.f32.gmra.mxu0 %v1145
    %v1611 = vpop.f32.mrf.mxu0
    %v1612 = vadd.f32 0.0, %v1611
    %v1613 = vpop.f32.mrf.mxu0
    %1614 = vmatprep.mubr.f32.mxu0 0.0
    %1615 = vmatmul.mubr.f32.gmra.mxu0 %v1150
    %v1616 = vpop.f32.mrf.mxu0
    %v1617 = vadd.f32 0.0, %v1616
    %v1618 = vpop.f32.mrf.mxu0
    %1619 = vmatprep.mubr.f32.mxu0 0.0
    %1620 = vmatmul.mubr.f32.gmra.mxu0 %v1155
    %v1621 = vpop.f32.mrf.mxu0
    %v1622 = vadd.f32 0.0, %v1621
    %v1623 = vpop.f32.mrf.mxu0
    %1624 = vmatprep.mubr.f32.mxu0 0.0
    %1625 = vmatmul.mubr.f32.gmra.mxu0 %v1160
    %v1626 = vpop.f32.mrf.mxu0
    %v1627 = vadd.f32 0.0, %v1626
    %v1628 = vpop.f32.mrf.mxu0
    %1629 = vmatprep.mubr.f32.mxu0 0.0
    %1630 = vmatmul.mubr.f32.gmra.mxu0 %v1165
    %v1631 = vpop.f32.mrf.mxu0
    %v1632 = vadd.f32 0.0, %v1631
    %v1633 = vpop.f32.mrf.mxu0
    %1634 = vmatprep.mubr.f32.mxu0 0.0
    %1635 = vmatmul.mubr.f32.gmra.mxu0 %v1170
    %v1636 = vpop.f32.mrf.mxu0
    %v1637 = vadd.f32 0.0, %v1636
    %v1638 = vpop.f32.mrf.mxu0
    %1639 = vmatprep.mubr.f32.mxu0 0.0
    %1640 = vmatmul.mubr.f32.gmra.mxu0 %v1175
    %v1641 = vpop.f32.mrf.mxu0
    %v1642 = vadd.f32 0.0, %v1641
    %v1643 = vpop.f32.mrf.mxu0
    %1644 = vmatprep.mubr.f32.mxu0 0.0
    %1645 = vmatmul.mubr.f32.gmra.mxu0 %v1180
    %v1646 = vpop.f32.mrf.mxu0
    %v1647 = vadd.f32 0.0, %v1646
    %v1648 = vpop.f32.mrf.mxu0
    %1649 = vmatprep.mubr.f32.mxu0 0.0
    %1650 = vmatmul.mubr.f32.gmra.mxu0 %v1185
    %v1651 = vpop.f32.mrf.mxu0
    %v1652 = vadd.f32 0.0, %v1651
    %v1653 = vpop.f32.mrf.mxu0
    %1654 = vmatprep.mubr.f32.mxu0 0.0
    %1655 = vmatmul.mubr.f32.gmra.mxu0 %v1190
    %v1656 = vpop.f32.mrf.mxu0
    %v1657 = vadd.f32 0.0, %v1656
    %v1658 = vpop.f32.mrf.mxu0
    %1659 = vmatprep.mubr.f32.mxu0 0.0
    %1660 = vmatmul.mubr.f32.gmra.mxu0 %v1195
    %v1661 = vpop.f32.mrf.mxu0
    %v1662 = vadd.f32 0.0, %v1661
    %v1663 = vpop.f32.mrf.mxu0
    %1664 = vmatprep.mubr.f32.mxu0 0.0
    %1665 = vmatmul.mubr.f32.gmra.mxu0 %v1200
    %v1666 = vpop.f32.mrf.mxu0
    %v1667 = vadd.f32 0.0, %v1666
    %v1668 = vpop.f32.mrf.mxu0
    %1669 = vdwg.mxu0
    %1670 = vmatprep.subr.mxu0 0.0
    %1671 = vmatpush1.msra.mxu0 %v1345
    %1672 = vmatprep.subr.mxu0 0.0
    %1673 = vmatpush1.msra.mxu0 %v1340
    %1674 = vmatprep.subr.mxu0 0.0
    %1675 = vmatpush1.msra.mxu0 %v1335
    %1676 = vmatprep.subr.mxu0 0.0
    %1677 = vmatpush1.msra.mxu0 %v1330
    %1678 = vmatprep.subr.mxu0 0.0
    %1679 = vmatpush1.msra.mxu0 %v1325
    %1680 = vmatprep.subr.mxu0 0.0
    %1681 = vmatpush1.msra.mxu0 %v1320
    %1682 = vmatprep.subr.mxu0 0.0
    %1683 = vmatpush1.msra.mxu0 %v1315
    %1684 = vmatprep.subr.mxu0 0.0
    %1685 = vmatpush1.msra.mxu0 %v1310
    %1686 = vmatprep.subr.mxu0 0.0
    %1687 = vmatpush1.msra.mxu0 %v1305
    %1688 = vmatprep.subr.mxu0 0.0
    %1689 = vmatpush1.msra.mxu0 %v1300
    %1690 = vmatprep.subr.mxu0 0.0
    %1691 = vmatpush1.msra.mxu0 %v1295
    %1692 = vmatprep.subr.mxu0 0.0
    %1693 = vmatpush1.msra.mxu0 %v1290
    %1694 = vmatprep.subr.mxu0 0.0
    %1695 = vmatpush1.msra.mxu0 %v1285
    %1696 = vmatprep.subr.mxu0 0.0
    %1697 = vmatpush1.msra.mxu0 %v1280
    %1698 = vmatprep.subr.mxu0 0.0
    %1699 = vmatpush1.msra.mxu0 %v1275
    %1700 = vmatprep.subr.mxu0 0.0
    %1701 = vmatpush1.msra.mxu0 %v1270
    %1702 = vmatprep.subr.mxu0 0.0
    %1703 = vmatpush2.msra.mxu0 0.0
    %1704 = vmatprep.subr.mxu0 0.0
    %1705 = vmatpush2.msra.mxu0 0.0
    %1706 = vmatprep.subr.mxu0 0.0
    %1707 = vmatpush2.msra.mxu0 0.0
    %1708 = vmatprep.subr.mxu0 0.0
    %1709 = vmatpush2.msra.mxu0 0.0
    %1710 = vmatprep.subr.mxu0 0.0
    %1711 = vmatpush2.msra.mxu0 0.0
    %1712 = vmatprep.subr.mxu0 0.0
    %1713 = vmatpush2.msra.mxu0 0.0
    %1714 = vmatprep.subr.mxu0 0.0
    %1715 = vmatpush2.msra.mxu0 0.0
    %1716 = vmatprep.subr.mxu0 0.0
    %1717 = vmatpush2.msra.mxu0 0.0
    %1718 = vmatprep.subr.mxu0 0.0
    %1719 = vmatpush2.msra.mxu0 0.0
    %1720 = vmatprep.subr.mxu0 0.0
    %1721 = vmatpush2.msra.mxu0 0.0
    %1722 = vmatprep.subr.mxu0 0.0
    %1723 = vmatpush2.msra.mxu0 0.0
    %1724 = vmatprep.subr.mxu0 0.0
    %1725 = vmatpush2.msra.mxu0 0.0
    %1726 = vmatprep.subr.mxu0 0.0
    %1727 = vmatpush2.msra.mxu0 0.0
    %1728 = vmatprep.subr.mxu0 0.0
    %1729 = vmatpush2.msra.mxu0 0.0
    %1730 = vmatprep.subr.mxu0 0.0
    %1731 = vmatpush2.msra.mxu0 0.0
    %1732 = vmatprep.subr.mxu0 0.0
    %1733 = vmatpush2.msra.mxu0 0.0
    %1734 = vmatprep.mubr.f32.mxu0 0.0
    %1735 = vmatmul.mubr.f32.gmra.mxu0 %v1509
    %v1736 = vpop.f32.mrf.mxu0
    %v1737 = vadd.f32 0.0, %v1736
    %v1738 = vpop.f32.mrf.mxu0
    %1739 = vmatprep.mubr.f32.mxu0 0.0
    %1740 = vmatmul.mubr.f32.gmra.mxu0 %v1510
    %v1741 = vpop.f32.mrf.mxu0
    %v1742 = vadd.f32 0.0, %v1741
    %v1743 = vpop.f32.mrf.mxu0
    %1744 = vmatprep.mubr.f32.mxu0 0.0
    %1745 = vmatmul.mubr.f32.gmra.mxu0 %v1511
    %v1746 = vpop.f32.mrf.mxu0
    %v1747 = vadd.f32 0.0, %v1746
    %v1748 = vpop.f32.mrf.mxu0
    %1749 = vmatprep.mubr.f32.mxu0 0.0
    %1750 = vmatmul.mubr.f32.gmra.mxu0 %v1512
    %v1751 = vpop.f32.mrf.mxu0
    %v1752 = vadd.f32 0.0, %v1751
    %v1753 = vpop.f32.mrf.mxu0
    %1754 = vmatprep.mubr.f32.mxu0 0.0
    %1755 = vmatmul.mubr.f32.gmra.mxu0 %v1513
    %v1756 = vpop.f32.mrf.mxu0
    %v1757 = vadd.f32 0.0, %v1756
    %v1758 = vpop.f32.mrf.mxu0
    %1759 = vmatprep.mubr.f32.mxu0 0.0
    %1760 = vmatmul.mubr.f32.gmra.mxu0 %v1514
    %v1761 = vpop.f32.mrf.mxu0
    %v1762 = vadd.f32 0.0, %v1761
    %v1763 = vpop.f32.mrf.mxu0
    %1764 = vmatprep.mubr.f32.mxu0 0.0
    %1765 = vmatmul.mubr.f32.gmra.mxu0 %v1515
    %v1766 = vpop.f32.mrf.mxu0
    %v1767 = vadd.f32 0.0, %v1766
    %v1768 = vpop.f32.mrf.mxu0
    %1769 = vmatprep.mubr.f32.mxu0 0.0
    %1770 = vmatmul.mubr.f32.gmra.mxu0 %v1516
    %v1771 = vpop.f32.mrf.mxu0
    %v1772 = vadd.f32 0.0, %v1771
    %v1773 = vpop.f32.mrf.mxu0
    %1774 = vmatprep.mubr.f32.mxu0 0.0
    %1775 = vmatmul.mubr.f32.gmra.mxu0 %v1517
    %v1776 = vpop.f32.mrf.mxu0
    %v1777 = vadd.f32 0.0, %v1776
    %v1778 = vpop.f32.mrf.mxu0
    %1779 = vmatprep.mubr.f32.mxu0 0.0
    %1780 = vmatmul.mubr.f32.gmra.mxu0 %v1518
    %v1781 = vpop.f32.mrf.mxu0
    %v1782 = vadd.f32 0.0, %v1781
    %v1783 = vpop.f32.mrf.mxu0
    %1784 = vmatprep.mubr.f32.mxu0 0.0
    %1785 = vmatmul.mubr.f32.gmra.mxu0 %v1519
    %v1786 = vpop.f32.mrf.mxu0
    %v1787 = vadd.f32 0.0, %v1786
    %v1788 = vpop.f32.mrf.mxu0
    %1789 = vmatprep.mubr.f32.mxu0 0.0
    %1790 = vmatmul.mubr.f32.gmra.mxu0 %v1520
    %v1791 = vpop.f32.mrf.mxu0
    %v1792 = vadd.f32 0.0, %v1791
    %v1793 = vpop.f32.mrf.mxu0
    %1794 = vmatprep.mubr.f32.mxu0 0.0
    %1795 = vmatmul.mubr.f32.gmra.mxu0 %v1521
    %v1796 = vpop.f32.mrf.mxu0
    %v1797 = vadd.f32 0.0, %v1796
    %v1798 = vpop.f32.mrf.mxu0
    %1799 = vmatprep.mubr.f32.mxu0 0.0
    %1800 = vmatmul.mubr.f32.gmra.mxu0 %v1522
    %v1801 = vpop.f32.mrf.mxu0
    %v1802 = vadd.f32 0.0, %v1801
    %v1803 = vpop.f32.mrf.mxu0
    %1804 = vmatprep.mubr.f32.mxu0 0.0
    %1805 = vmatmul.mubr.f32.gmra.mxu0 %v1523
    %v1806 = vpop.f32.mrf.mxu0
    %v1807 = vadd.f32 0.0, %v1806
    %v1808 = vpop.f32.mrf.mxu0
    %1809 = vmatprep.mubr.f32.mxu0 0.0
    %1810 = vmatmul.mubr.f32.gmra.mxu0 %v1524
    %v1811 = vpop.f32.mrf.mxu0
    %v1812 = vadd.f32 0.0, %v1811
    %v1813 = vpop.f32.mrf.mxu0
    %1814 = vdwg.mxu0
    %1815 = vmatprep.subr.mxu0 0.0
    %1816 = vmatpush1.msra.mxu0 %v1667
    %1817 = vmatprep.subr.mxu0 0.0
    %1818 = vmatpush1.msra.mxu0 %v1662
    %1819 = vmatprep.subr.mxu0 0.0
    %1820 = vmatpush1.msra.mxu0 %v1657
    %1821 = vmatprep.subr.mxu0 0.0
    %1822 = vmatpush1.msra.mxu0 %v1652
    %1823 = vmatprep.subr.mxu0 0.0
    %1824 = vmatpush1.msra.mxu0 %v1647
    %1825 = vmatprep.subr.mxu0 0.0
    %1826 = vmatpush1.msra.mxu0 %v1642
    %1827 = vmatprep.subr.mxu0 0.0
    %1828 = vmatpush1.msra.mxu0 %v1637
    %1829 = vmatprep.subr.mxu0 0.0
    %1830 = vmatpush1.msra.mxu0 %v1632
    %1831 = vmatprep.subr.mxu0 0.0
    %1832 = vmatpush1.msra.mxu0 %v1627
    %1833 = vmatprep.subr.mxu0 0.0
    %1834 = vmatpush1.msra.mxu0 %v1622
    %1835 = vmatprep.subr.mxu0 0.0
    %1836 = vmatpush1.msra.mxu0 %v1617
    %1837 = vmatprep.subr.mxu0 0.0
    %1838 = vmatpush1.msra.mxu0 %v1612
    %1839 = vmatprep.subr.mxu0 0.0
    %1840 = vmatpush1.msra.mxu0 %v1607
    %1841 = vmatprep.subr.mxu0 0.0
    %1842 = vmatpush1.msra.mxu0 %v1602
    %1843 = vmatprep.subr.mxu0 0.0
    %1844 = vmatpush1.msra.mxu0 %v1597
    %1845 = vmatprep.subr.mxu0 0.0
    %1846 = vmatpush1.msra.mxu0 %v1592
    %1847 = vmatprep.subr.mxu0 0.0
    %1848 = vmatpush2.msra.mxu0 0.0
    %1849 = vmatprep.subr.mxu0 0.0
    %1850 = vmatpush2.msra.mxu0 0.0
    %1851 = vmatprep.subr.mxu0 0.0
    %1852 = vmatpush2.msra.mxu0 0.0
    %1853 = vmatprep.subr.mxu0 0.0
    %1854 = vmatpush2.msra.mxu0 0.0
    %1855 = vmatprep.subr.mxu0 0.0
    %1856 = vmatpush2.msra.mxu0 0.0
    %1857 = vmatprep.subr.mxu0 0.0
    %1858 = vmatpush2.msra.mxu0 0.0
    %1859 = vmatprep.subr.mxu0 0.0
    %1860 = vmatpush2.msra.mxu0 0.0
    %1861 = vmatprep.subr.mxu0 0.0
    %1862 = vmatpush2.msra.mxu0 0.0
    %1863 = vmatprep.subr.mxu0 0.0
    %1864 = vmatpush2.msra.mxu0 0.0
    %1865 = vmatprep.subr.mxu0 0.0
    %1866 = vmatpush2.msra.mxu0 0.0
    %1867 = vmatprep.subr.mxu0 0.0
    %1868 = vmatpush2.msra.mxu0 0.0
    %1869 = vmatprep.subr.mxu0 0.0
    %1870 = vmatpush2.msra.mxu0 0.0
    %1871 = vmatprep.subr.mxu0 0.0
    %1872 = vmatpush2.msra.mxu0 0.0
    %1873 = vmatprep.subr.mxu0 0.0
    %1874 = vmatpush2.msra.mxu0 0.0
    %1875 = vmatprep.subr.mxu0 0.0
    %1876 = vmatpush2.msra.mxu0 0.0
    %1877 = vmatprep.subr.mxu0 0.0
    %1878 = vmatpush2.msra.mxu0 0.0
    %1879 = vmatprep.mubr.f32.mxu0 0.0
    %1880 = vmatmul.mubr.f32.gmra.mxu0 %v1737
    %v1881 = vpop.f32.mrf.mxu0
    %v1882 = vadd.f32 0.0, %v1881
    %v1883 = vpop.f32.mrf.mxu0
    %1884 = vmatprep.mubr.f32.mxu0 0.0
    %1885 = vmatmul.mubr.f32.gmra.mxu0 %v1742
    %v1886 = vpop.f32.mrf.mxu0
    %v1887 = vadd.f32 0.0, %v1886
    %v1888 = vpop.f32.mrf.mxu0
    %1889 = vmatprep.mubr.f32.mxu0 0.0
    %1890 = vmatmul.mubr.f32.gmra.mxu0 %v1747
    %v1891 = vpop.f32.mrf.mxu0
    %v1892 = vadd.f32 0.0, %v1891
    %v1893 = vpop.f32.mrf.mxu0
    %1894 = vmatprep.mubr.f32.mxu0 0.0
    %1895 = vmatmul.mubr.f32.gmra.mxu0 %v1752
    %v1896 = vpop.f32.mrf.mxu0
    %v1897 = vadd.f32 0.0, %v1896
    %v1898 = vpop.f32.mrf.mxu0
    %1899 = vmatprep.mubr.f32.mxu0 0.0
    %1900 = vmatmul.mubr.f32.gmra.mxu0 %v1757
    %v1901 = vpop.f32.mrf.mxu0
    %v1902 = vadd.f32 0.0, %v1901
    %v1903 = vpop.f32.mrf.mxu0
    %1904 = vmatprep.mubr.f32.mxu0 0.0
    %1905 = vmatmul.mubr.f32.gmra.mxu0 %v1762
    %v1906 = vpop.f32.mrf.mxu0
    %v1907 = vadd.f32 0.0, %v1906
    %v1908 = vpop.f32.mrf.mxu0
    %1909 = vmatprep.mubr.f32.mxu0 0.0
    %1910 = vmatmul.mubr.f32.gmra.mxu0 %v1767
    %v1911 = vpop.f32.mrf.mxu0
    %v1912 = vadd.f32 0.0, %v1911
    %v1913 = vpop.f32.mrf.mxu0
    %1914 = vmatprep.mubr.f32.mxu0 0.0
    %1915 = vmatmul.mubr.f32.gmra.mxu0 %v1772
    %v1916 = vpop.f32.mrf.mxu0
    %v1917 = vadd.f32 0.0, %v1916
    %v1918 = vpop.f32.mrf.mxu0
    %1919 = vmatprep.mubr.f32.mxu0 0.0
    %1920 = vmatmul.mubr.f32.gmra.mxu0 %v1777
    %v1921 = vpop.f32.mrf.mxu0
    %v1922 = vadd.f32 0.0, %v1921
    %v1923 = vpop.f32.mrf.mxu0
    %1924 = vmatprep.mubr.f32.mxu0 0.0
    %1925 = vmatmul.mubr.f32.gmra.mxu0 %v1782
    %v1926 = vpop.f32.mrf.mxu0
    %v1927 = vadd.f32 0.0, %v1926
    %v1928 = vpop.f32.mrf.mxu0
    %1929 = vmatprep.mubr.f32.mxu0 0.0
    %1930 = vmatmul.mubr.f32.gmra.mxu0 %v1787
    %v1931 = vpop.f32.mrf.mxu0
    %v1932 = vadd.f32 0.0, %v1931
    %v1933 = vpop.f32.mrf.mxu0
    %1934 = vmatprep.mubr.f32.mxu0 0.0
    %1935 = vmatmul.mubr.f32.gmra.mxu0 %v1792
    %v1936 = vpop.f32.mrf.mxu0
    %v1937 = vadd.f32 0.0, %v1936
    %v1938 = vpop.f32.mrf.mxu0
    %1939 = vmatprep.mubr.f32.mxu0 0.0
    %1940 = vmatmul.mubr.f32.gmra.mxu0 %v1797
    %v1941 = vpop.f32.mrf.mxu0
    %v1942 = vadd.f32 0.0, %v1941
    %v1943 = vpop.f32.mrf.mxu0
    %1944 = vmatprep.mubr.f32.mxu0 0.0
    %1945 = vmatmul.mubr.f32.gmra.mxu0 %v1802
    %v1946 = vpop.f32.mrf.mxu0
    %v1947 = vadd.f32 0.0, %v1946
    %v1948 = vpop.f32.mrf.mxu0
    %1949 = vmatprep.mubr.f32.mxu0 0.0
    %1950 = vmatmul.mubr.f32.gmra.mxu0 %v1807
    %v1951 = vpop.f32.mrf.mxu0
    %v1952 = vadd.f32 0.0, %v1951
    %v1953 = vpop.f32.mrf.mxu0
    %1954 = vmatprep.mubr.f32.mxu0 0.0
    %1955 = vmatmul.mubr.f32.gmra.mxu0 %v1812
    %v1956 = vpop.f32.mrf.mxu0
    %v1957 = vadd.f32 0.0, %v1956
    %v1958 = vpop.f32.mrf.mxu0
    %1959 = vdwg.mxu0
    %v1960 = vmul.f32 %v1882, 0.5
    %v1961 = vmul.f32 %v1887, 0.5
    %v1962 = vmul.f32 %v1892, 0.5
    %v1963 = vmul.f32 %v1897, 0.5
    %v1964 = vmul.f32 %v1902, 0.5
    %v1965 = vmul.f32 %v1907, 0.5
    %v1966 = vmul.f32 %v1912, 0.5
    %v1967 = vmul.f32 %v1917, 0.5
    %v1968 = vmul.f32 %v1922, 0.5
    %v1969 = vmul.f32 %v1927, 0.5
    %v1970 = vmul.f32 %v1932, 0.5
    %v1971 = vmul.f32 %v1937, 0.5
    %v1972 = vmul.f32 %v1942, 0.5
    %v1973 = vmul.f32 %v1947, 0.5
    %v1974 = vmul.f32 %v1952, 0.5
    %v1975 = vmul.f32 %v1957, 0.5
    %v1976 = vsub.f32 %v398, %v1960
    %v1977 = vsub.f32 %v399, %v1961
    %v1978 = vsub.f32 %v400, %v1962
    %v1979 = vsub.f32 %v401, %v1963
    %v1980 = vsub.f32 %v402, %v1964
    %v1981 = vsub.f32 %v403, %v1965
    %v1982 = vsub.f32 %v404, %v1966
    %v1983 = vsub.f32 %v405, %v1967
    %v1984 = vsub.f32 %v406, %v1968
    %v1985 = vsub.f32 %v407, %v1969
    %v1986 = vsub.f32 %v408, %v1970
    %v1987 = vsub.f32 %v409, %v1971
    %v1988 = vsub.f32 %v410, %v1972
    %v1989 = vsub.f32 %v411, %v1973
    %v1990 = vsub.f32 %v412, %v1974
    %v1991 = vsub.f32 %v413, %v1975
    %1992 = vmatprep.subr.mxu0 0.0
    %1993 = vmatpush1.msra.mxu0 %v1991
    %1994 = vmatprep.subr.mxu0 0.0
    %1995 = vmatpush1.msra.mxu0 %v1990
    %1996 = vmatprep.subr.mxu0 0.0
    %1997 = vmatpush1.msra.mxu0 %v1989
    %1998 = vmatprep.subr.mxu0 0.0
    %1999 = vmatpush1.msra.mxu0 %v1988
    %2000 = vmatprep.subr.mxu0 0.0
    %2001 = vmatpush1.msra.mxu0 %v1987
    %2002 = vmatprep.subr.mxu0 0.0
    %2003 = vmatpush1.msra.mxu0 %v1986
    %2004 = vmatprep.subr.mxu0 0.0
    %2005 = vmatpush1.msra.mxu0 %v1985
    %2006 = vmatprep.subr.mxu0 0.0
    %2007 = vmatpush1.msra.mxu0 %v1984
    %2008 = vmatprep.subr.mxu0 0.0
    %2009 = vmatpush1.msra.mxu0 %v1983
    %2010 = vmatprep.subr.mxu0 0.0
    %2011 = vmatpush1.msra.mxu0 %v1982
    %2012 = vmatprep.subr.mxu0 0.0
    %2013 = vmatpush1.msra.mxu0 %v1981
    %2014 = vmatprep.subr.mxu0 0.0
    %2015 = vmatpush1.msra.mxu0 %v1980
    %2016 = vmatprep.subr.mxu0 0.0
    %2017 = vmatpush1.msra.mxu0 %v1979
    %2018 = vmatprep.subr.mxu0 0.0
    %2019 = vmatpush1.msra.mxu0 %v1978
    %2020 = vmatprep.subr.mxu0 0.0
    %2021 = vmatpush1.msra.mxu0 %v1977
    %2022 = vmatprep.subr.mxu0 0.0
    %2023 = vmatpush1.msra.mxu0 %v1976
    %2024 = vmatprep.subr.mxu0 0.0
    %2025 = vmatpush2.msra.mxu0 0.0
    %2026 = vmatprep.subr.mxu0 0.0
    %2027 = vmatpush2.msra.mxu0 0.0
    %2028 = vmatprep.subr.mxu0 0.0
    %2029 = vmatpush2.msra.mxu0 0.0
    %2030 = vmatprep.subr.mxu0 0.0
    %2031 = vmatpush2.msra.mxu0 0.0
    %2032 = vmatprep.subr.mxu0 0.0
    %2033 = vmatpush2.msra.mxu0 0.0
    %2034 = vmatprep.subr.mxu0 0.0
    %2035 = vmatpush2.msra.mxu0 0.0
    %2036 = vmatprep.subr.mxu0 0.0
    %2037 = vmatpush2.msra.mxu0 0.0
    %2038 = vmatprep.subr.mxu0 0.0
    %2039 = vmatpush2.msra.mxu0 0.0
    %2040 = vmatprep.subr.mxu0 0.0
    %2041 = vmatpush2.msra.mxu0 0.0
    %2042 = vmatprep.subr.mxu0 0.0
    %2043 = vmatpush2.msra.mxu0 0.0
    %2044 = vmatprep.subr.mxu0 0.0
    %2045 = vmatpush2.msra.mxu0 0.0
    %2046 = vmatprep.subr.mxu0 0.0
    %2047 = vmatpush2.msra.mxu0 0.0
    %2048 = vmatprep.subr.mxu0 0.0
    %2049 = vmatpush2.msra.mxu0 0.0
    %2050 = vmatprep.subr.mxu0 0.0
    %2051 = vmatpush2.msra.mxu0 0.0
    %2052 = vmatprep.subr.mxu0 0.0
    %2053 = vmatpush2.msra.mxu0 0.0
    %2054 = vmatprep.subr.mxu0 0.0
    %2055 = vmatpush2.msra.mxu0 0.0
    %2056 = vmatprep.mubr.f32.mxu0 0.0
    %2057 = vmatmul.mubr.f32.gmra.mxu0 %v1592
    %v2058 = vpop.f32.mrf.mxu0
    %v2059 = vadd.f32 0.0, %v2058
    %v2060 = vpop.f32.mrf.mxu0
    %2061 = vmatprep.mubr.f32.mxu0 0.0
    %2062 = vmatmul.mubr.f32.gmra.mxu0 %v1597
    %v2063 = vpop.f32.mrf.mxu0
    %v2064 = vadd.f32 0.0, %v2063
    %v2065 = vpop.f32.mrf.mxu0
    %2066 = vmatprep.mubr.f32.mxu0 0.0
    %2067 = vmatmul.mubr.f32.gmra.mxu0 %v1602
    %v2068 = vpop.f32.mrf.mxu0
    %v2069 = vadd.f32 0.0, %v2068
    %v2070 = vpop.f32.mrf.mxu0
    %2071 = vmatprep.mubr.f32.mxu0 0.0
    %2072 = vmatmul.mubr.f32.gmra.mxu0 %v1607
    %v2073 = vpop.f32.mrf.mxu0
    %v2074 = vadd.f32 0.0, %v2073
    %v2075 = vpop.f32.mrf.mxu0
    %2076 = vmatprep.mubr.f32.mxu0 0.0
    %2077 = vmatmul.mubr.f32.gmra.mxu0 %v1612
    %v2078 = vpop.f32.mrf.mxu0
    %v2079 = vadd.f32 0.0, %v2078
    %v2080 = vpop.f32.mrf.mxu0
    %2081 = vmatprep.mubr.f32.mxu0 0.0
    %2082 = vmatmul.mubr.f32.gmra.mxu0 %v1617
    %v2083 = vpop.f32.mrf.mxu0
    %v2084 = vadd.f32 0.0, %v2083
    %v2085 = vpop.f32.mrf.mxu0
    %2086 = vmatprep.mubr.f32.mxu0 0.0
    %2087 = vmatmul.mubr.f32.gmra.mxu0 %v1622
    %v2088 = vpop.f32.mrf.mxu0
    %v2089 = vadd.f32 0.0, %v2088
    %v2090 = vpop.f32.mrf.mxu0
    %2091 = vmatprep.mubr.f32.mxu0 0.0
    %2092 = vmatmul.mubr.f32.gmra.mxu0 %v1627
    %v2093 = vpop.f32.mrf.mxu0
    %v2094 = vadd.f32 0.0, %v2093
    %v2095 = vpop.f32.mrf.mxu0
    %2096 = vmatprep.mubr.f32.mxu0 0.0
    %2097 = vmatmul.mubr.f32.gmra.mxu0 %v1632
    %v2098 = vpop.f32.mrf.mxu0
    %v2099 = vadd.f32 0.0, %v2098
    %v2100 = vpop.f32.mrf.mxu0
    %2101 = vmatprep.mubr.f32.mxu0 0.0
    %2102 = vmatmul.mubr.f32.gmra.mxu0 %v1637
    %v2103 = vpop.f32.mrf.mxu0
    %v2104 = vadd.f32 0.0, %v2103
    %v2105 = vpop.f32.mrf.mxu0
    %2106 = vmatprep.mubr.f32.mxu0 0.0
    %2107 = vmatmul.mubr.f32.gmra.mxu0 %v1642
    %v2108 = vpop.f32.mrf.mxu0
    %v2109 = vadd.f32 0.0, %v2108
    %v2110 = vpop.f32.mrf.mxu0
    %2111 = vmatprep.mubr.f32.mxu0 0.0
    %2112 = vmatmul.mubr.f32.gmra.mxu0 %v1647
    %v2113 = vpop.f32.mrf.mxu0
    %v2114 = vadd.f32 0.0, %v2113
    %v2115 = vpop.f32.mrf.mxu0
    %2116 = vmatprep.mubr.f32.mxu0 0.0
    %2117 = vmatmul.mubr.f32.gmra.mxu0 %v1652
    %v2118 = vpop.f32.mrf.mxu0
    %v2119 = vadd.f32 0.0, %v2118
    %v2120 = vpop.f32.mrf.mxu0
    %2121 = vmatprep.mubr.f32.mxu0 0.0
    %2122 = vmatmul.mubr.f32.gmra.mxu0 %v1657
    %v2123 = vpop.f32.mrf.mxu0
    %v2124 = vadd.f32 0.0, %v2123
    %v2125 = vpop.f32.mrf.mxu0
    %2126 = vmatprep.mubr.f32.mxu0 0.0
    %2127 = vmatmul.mubr.f32.gmra.mxu0 %v1662
    %v2128 = vpop.f32.mrf.mxu0
    %v2129 = vadd.f32 0.0, %v2128
    %v2130 = vpop.f32.mrf.mxu0
    %2131 = vmatprep.mubr.f32.mxu0 0.0
    %2132 = vmatmul.mubr.f32.gmra.mxu0 %v1667
    %v2133 = vpop.f32.mrf.mxu0
    %v2134 = vadd.f32 0.0, %v2133
    %v2135 = vpop.f32.mrf.mxu0
    %2136 = vdwg.mxu0
    %2137 = vmatprep.subr.mxu0 0.0
    %2138 = vmatpush1.msra.mxu0 %v1812
    %2139 = vmatprep.subr.mxu0 0.0
    %2140 = vmatpush1.msra.mxu0 %v1807
    %2141 = vmatprep.subr.mxu0 0.0
    %2142 = vmatpush1.msra.mxu0 %v1802
    %2143 = vmatprep.subr.mxu0 0.0
    %2144 = vmatpush1.msra.mxu0 %v1797
    %2145 = vmatprep.subr.mxu0 0.0
    %2146 = vmatpush1.msra.mxu0 %v1792
    %2147 = vmatprep.subr.mxu0 0.0
    %2148 = vmatpush1.msra.mxu0 %v1787
    %2149 = vmatprep.subr.mxu0 0.0
    %2150 = vmatpush1.msra.mxu0 %v1782
    %2151 = vmatprep.subr.mxu0 0.0
    %2152 = vmatpush1.msra.mxu0 %v1777
    %2153 = vmatprep.subr.mxu0 0.0
    %2154 = vmatpush1.msra.mxu0 %v1772
    %2155 = vmatprep.subr.mxu0 0.0
    %2156 = vmatpush1.msra.mxu0 %v1767
    %2157 = vmatprep.subr.mxu0 0.0
    %2158 = vmatpush1.msra.mxu0 %v1762
    %2159 = vmatprep.subr.mxu0 0.0
    %2160 = vmatpush1.msra.mxu0 %v1757
    %2161 = vmatprep.subr.mxu0 0.0
    %2162 = vmatpush1.msra.mxu0 %v1752
    %2163 = vmatprep.subr.mxu0 0.0
    %2164 = vmatpush1.msra.mxu0 %v1747
    %2165 = vmatprep.subr.mxu0 0.0
    %2166 = vmatpush1.msra.mxu0 %v1742
    %2167 = vmatprep.subr.mxu0 0.0
    %2168 = vmatpush1.msra.mxu0 %v1737
    %2169 = vmatprep.subr.mxu0 0.0
    %2170 = vmatpush2.msra.mxu0 0.0
    %2171 = vmatprep.subr.mxu0 0.0
    %2172 = vmatpush2.msra.mxu0 0.0
    %2173 = vmatprep.subr.mxu0 0.0
    %2174 = vmatpush2.msra.mxu0 0.0
    %2175 = vmatprep.subr.mxu0 0.0
    %2176 = vmatpush2.msra.mxu0 0.0
    %2177 = vmatprep.subr.mxu0 0.0
    %2178 = vmatpush2.msra.mxu0 0.0
    %2179 = vmatprep.subr.mxu0 0.0
    %2180 = vmatpush2.msra.mxu0 0.0
    %2181 = vmatprep.subr.mxu0 0.0
    %2182 = vmatpush2.msra.mxu0 0.0
    %2183 = vmatprep.subr.mxu0 0.0
    %2184 = vmatpush2.msra.mxu0 0.0
    %2185 = vmatprep.subr.mxu0 0.0
    %2186 = vmatpush2.msra.mxu0 0.0
    %2187 = vmatprep.subr.mxu0 0.0
    %2188 = vmatpush2.msra.mxu0 0.0
    %2189 = vmatprep.subr.mxu0 0.0
    %2190 = vmatpush2.msra.mxu0 0.0
    %2191 = vmatprep.subr.mxu0 0.0
    %2192 = vmatpush2.msra.mxu0 0.0
    %2193 = vmatprep.subr.mxu0 0.0
    %2194 = vmatpush2.msra.mxu0 0.0
    %2195 = vmatprep.subr.mxu0 0.0
    %2196 = vmatpush2.msra.mxu0 0.0
    %2197 = vmatprep.subr.mxu0 0.0
    %2198 = vmatpush2.msra.mxu0 0.0
    %2199 = vmatprep.subr.mxu0 0.0
    %2200 = vmatpush2.msra.mxu0 0.0
    %2201 = vmatprep.mubr.f32.mxu0 0.0
    %2202 = vmatmul.mubr.f32.gmra.mxu0 %v1976
    %v2203 = vpop.f32.mrf.mxu0
    %v2204 = vadd.f32 0.0, %v2203
    %v2205 = vpop.f32.mrf.mxu0
    %2206 = vmatprep.mubr.f32.mxu0 0.0
    %2207 = vmatmul.mubr.f32.gmra.mxu0 %v1977
    %v2208 = vpop.f32.mrf.mxu0
    %v2209 = vadd.f32 0.0, %v2208
    %v2210 = vpop.f32.mrf.mxu0
    %2211 = vmatprep.mubr.f32.mxu0 0.0
    %2212 = vmatmul.mubr.f32.gmra.mxu0 %v1978
    %v2213 = vpop.f32.mrf.mxu0
    %v2214 = vadd.f32 0.0, %v2213
    %v2215 = vpop.f32.mrf.mxu0
    %2216 = vmatprep.mubr.f32.mxu0 0.0
    %2217 = vmatmul.mubr.f32.gmra.mxu0 %v1979
    %v2218 = vpop.f32.mrf.mxu0
    %v2219 = vadd.f32 0.0, %v2218
    %v2220 = vpop.f32.mrf.mxu0
    %2221 = vmatprep.mubr.f32.mxu0 0.0
    %2222 = vmatmul.mubr.f32.gmra.mxu0 %v1980
    %v2223 = vpop.f32.mrf.mxu0
    %v2224 = vadd.f32 0.0, %v2223
    %v2225 = vpop.f32.mrf.mxu0
    %2226 = vmatprep.mubr.f32.mxu0 0.0
    %2227 = vmatmul.mubr.f32.gmra.mxu0 %v1981
    %v2228 = vpop.f32.mrf.mxu0
    %v2229 = vadd.f32 0.0, %v2228
    %v2230 = vpop.f32.mrf.mxu0
    %2231 = vmatprep.mubr.f32.mxu0 0.0
    %2232 = vmatmul.mubr.f32.gmra.mxu0 %v1982
    %v2233 = vpop.f32.mrf.mxu0
    %v2234 = vadd.f32 0.0, %v2233
    %v2235 = vpop.f32.mrf.mxu0
    %2236 = vmatprep.mubr.f32.mxu0 0.0
    %2237 = vmatmul.mubr.f32.gmra.mxu0 %v1983
    %v2238 = vpop.f32.mrf.mxu0
    %v2239 = vadd.f32 0.0, %v2238
    %v2240 = vpop.f32.mrf.mxu0
    %2241 = vmatprep.mubr.f32.mxu0 0.0
    %2242 = vmatmul.mubr.f32.gmra.mxu0 %v1984
    %v2243 = vpop.f32.mrf.mxu0
    %v2244 = vadd.f32 0.0, %v2243
    %v2245 = vpop.f32.mrf.mxu0
    %2246 = vmatprep.mubr.f32.mxu0 0.0
    %2247 = vmatmul.mubr.f32.gmra.mxu0 %v1985
    %v2248 = vpop.f32.mrf.mxu0
    %v2249 = vadd.f32 0.0, %v2248
    %v2250 = vpop.f32.mrf.mxu0
    %2251 = vmatprep.mubr.f32.mxu0 0.0
    %2252 = vmatmul.mubr.f32.gmra.mxu0 %v1986
    %v2253 = vpop.f32.mrf.mxu0
    %v2254 = vadd.f32 0.0, %v2253
    %v2255 = vpop.f32.mrf.mxu0
    %2256 = vmatprep.mubr.f32.mxu0 0.0
    %2257 = vmatmul.mubr.f32.gmra.mxu0 %v1987
    %v2258 = vpop.f32.mrf.mxu0
    %v2259 = vadd.f32 0.0, %v2258
    %v2260 = vpop.f32.mrf.mxu0
    %2261 = vmatprep.mubr.f32.mxu0 0.0
    %2262 = vmatmul.mubr.f32.gmra.mxu0 %v1988
    %v2263 = vpop.f32.mrf.mxu0
    %v2264 = vadd.f32 0.0, %v2263
    %v2265 = vpop.f32.mrf.mxu0
    %2266 = vmatprep.mubr.f32.mxu0 0.0
    %2267 = vmatmul.mubr.f32.gmra.mxu0 %v1989
    %v2268 = vpop.f32.mrf.mxu0
    %v2269 = vadd.f32 0.0, %v2268
    %v2270 = vpop.f32.mrf.mxu0
    %2271 = vmatprep.mubr.f32.mxu0 0.0
    %2272 = vmatmul.mubr.f32.gmra.mxu0 %v1990
    %v2273 = vpop.f32.mrf.mxu0
    %v2274 = vadd.f32 0.0, %v2273
    %v2275 = vpop.f32.mrf.mxu0
    %2276 = vmatprep.mubr.f32.mxu0 0.0
    %2277 = vmatmul.mubr.f32.gmra.mxu0 %v1991
    %v2278 = vpop.f32.mrf.mxu0
    %v2279 = vadd.f32 0.0, %v2278
    %v2280 = vpop.f32.mrf.mxu0
    %2281 = vdwg.mxu0
    %2282 = vmatprep.subr.mxu0 0.0
    %2283 = vmatpush1.msra.mxu0 %v2134
    %2284 = vmatprep.subr.mxu0 0.0
    %2285 = vmatpush1.msra.mxu0 %v2129
    %2286 = vmatprep.subr.mxu0 0.0
    %2287 = vmatpush1.msra.mxu0 %v2124
    %2288 = vmatprep.subr.mxu0 0.0
    %2289 = vmatpush1.msra.mxu0 %v2119
    %2290 = vmatprep.subr.mxu0 0.0
    %2291 = vmatpush1.msra.mxu0 %v2114
    %2292 = vmatprep.subr.mxu0 0.0
    %2293 = vmatpush1.msra.mxu0 %v2109
    %2294 = vmatprep.subr.mxu0 0.0
    %2295 = vmatpush1.msra.mxu0 %v2104
    %2296 = vmatprep.subr.mxu0 0.0
    %2297 = vmatpush1.msra.mxu0 %v2099
    %2298 = vmatprep.subr.mxu0 0.0
    %2299 = vmatpush1.msra.mxu0 %v2094
    %2300 = vmatprep.subr.mxu0 0.0
    %2301 = vmatpush1.msra.mxu0 %v2089
    %2302 = vmatprep.subr.mxu0 0.0
    %2303 = vmatpush1.msra.mxu0 %v2084
    %2304 = vmatprep.subr.mxu0 0.0
    %2305 = vmatpush1.msra.mxu0 %v2079
    %2306 = vmatprep.subr.mxu0 0.0
    %2307 = vmatpush1.msra.mxu0 %v2074
    %2308 = vmatprep.subr.mxu0 0.0
    %2309 = vmatpush1.msra.mxu0 %v2069
    %2310 = vmatprep.subr.mxu0 0.0
    %2311 = vmatpush1.msra.mxu0 %v2064
    %2312 = vmatprep.subr.mxu0 0.0
    %2313 = vmatpush1.msra.mxu0 %v2059
    %2314 = vmatprep.subr.mxu0 0.0
    %2315 = vmatpush2.msra.mxu0 0.0
    %2316 = vmatprep.subr.mxu0 0.0
    %2317 = vmatpush2.msra.mxu0 0.0
    %2318 = vmatprep.subr.mxu0 0.0
    %2319 = vmatpush2.msra.mxu0 0.0
    %2320 = vmatprep.subr.mxu0 0.0
    %2321 = vmatpush2.msra.mxu0 0.0
    %2322 = vmatprep.subr.mxu0 0.0
    %2323 = vmatpush2.msra.mxu0 0.0
    %2324 = vmatprep.subr.mxu0 0.0
    %2325 = vmatpush2.msra.mxu0 0.0
    %2326 = vmatprep.subr.mxu0 0.0
    %2327 = vmatpush2.msra.mxu0 0.0
    %2328 = vmatprep.subr.mxu0 0.0
    %2329 = vmatpush2.msra.mxu0 0.0
    %2330 = vmatprep.subr.mxu0 0.0
    %2331 = vmatpush2.msra.mxu0 0.0
    %2332 = vmatprep.subr.mxu0 0.0
    %2333 = vmatpush2.msra.mxu0 0.0
    %2334 = vmatprep.subr.mxu0 0.0
    %2335 = vmatpush2.msra.mxu0 0.0
    %2336 = vmatprep.subr.mxu0 0.0
    %2337 = vmatpush2.msra.mxu0 0.0
    %2338 = vmatprep.subr.mxu0 0.0
    %2339 = vmatpush2.msra.mxu0 0.0
    %2340 = vmatprep.subr.mxu0 0.0
    %2341 = vmatpush2.msra.mxu0 0.0
    %2342 = vmatprep.subr.mxu0 0.0
    %2343 = vmatpush2.msra.mxu0 0.0
    %2344 = vmatprep.subr.mxu0 0.0
    %2345 = vmatpush2.msra.mxu0 0.0
    %2346 = vmatprep.mubr.f32.mxu0 0.0
    %2347 = vmatmul.mubr.f32.gmra.mxu0 %v2204
    %v2348 = vpop.f32.mrf.mxu0
    %v2349 = vadd.f32 0.0, %v2348
    %v2350 = vpop.f32.mrf.mxu0
    %2351 = vmatprep.mubr.f32.mxu0 0.0
    %2352 = vmatmul.mubr.f32.gmra.mxu0 %v2209
    %v2353 = vpop.f32.mrf.mxu0
    %v2354 = vadd.f32 0.0, %v2353
    %v2355 = vpop.f32.mrf.mxu0
    %2356 = vmatprep.mubr.f32.mxu0 0.0
    %2357 = vmatmul.mubr.f32.gmra.mxu0 %v2214
    %v2358 = vpop.f32.mrf.mxu0
    %v2359 = vadd.f32 0.0, %v2358
    %v2360 = vpop.f32.mrf.mxu0
    %2361 = vmatprep.mubr.f32.mxu0 0.0
    %2362 = vmatmul.mubr.f32.gmra.mxu0 %v2219
    %v2363 = vpop.f32.mrf.mxu0
    %v2364 = vadd.f32 0.0, %v2363
    %v2365 = vpop.f32.mrf.mxu0
    %2366 = vmatprep.mubr.f32.mxu0 0.0
    %2367 = vmatmul.mubr.f32.gmra.mxu0 %v2224
    %v2368 = vpop.f32.mrf.mxu0
    %v2369 = vadd.f32 0.0, %v2368
    %v2370 = vpop.f32.mrf.mxu0
    %2371 = vmatprep.mubr.f32.mxu0 0.0
    %2372 = vmatmul.mubr.f32.gmra.mxu0 %v2229
    %v2373 = vpop.f32.mrf.mxu0
    %v2374 = vadd.f32 0.0, %v2373
    %v2375 = vpop.f32.mrf.mxu0
    %2376 = vmatprep.mubr.f32.mxu0 0.0
    %2377 = vmatmul.mubr.f32.gmra.mxu0 %v2234
    %v2378 = vpop.f32.mrf.mxu0
    %v2379 = vadd.f32 0.0, %v2378
    %v2380 = vpop.f32.mrf.mxu0
    %2381 = vmatprep.mubr.f32.mxu0 0.0
    %2382 = vmatmul.mubr.f32.gmra.mxu0 %v2239
    %v2383 = vpop.f32.mrf.mxu0
    %v2384 = vadd.f32 0.0, %v2383
    %v2385 = vpop.f32.mrf.mxu0
    %2386 = vmatprep.mubr.f32.mxu0 0.0
    %2387 = vmatmul.mubr.f32.gmra.mxu0 %v2244
    %v2388 = vpop.f32.mrf.mxu0
    %v2389 = vadd.f32 0.0, %v2388
    %v2390 = vpop.f32.mrf.mxu0
    %2391 = vmatprep.mubr.f32.mxu0 0.0
    %2392 = vmatmul.mubr.f32.gmra.mxu0 %v2249
    %v2393 = vpop.f32.mrf.mxu0
    %v2394 = vadd.f32 0.0, %v2393
    %v2395 = vpop.f32.mrf.mxu0
    %2396 = vmatprep.mubr.f32.mxu0 0.0
    %2397 = vmatmul.mubr.f32.gmra.mxu0 %v2254
    %v2398 = vpop.f32.mrf.mxu0
    %v2399 = vadd.f32 0.0, %v2398
    %v2400 = vpop.f32.mrf.mxu0
    %2401 = vmatprep.mubr.f32.mxu0 0.0
    %2402 = vmatmul.mubr.f32.gmra.mxu0 %v2259
    %v2403 = vpop.f32.mrf.mxu0
    %v2404 = vadd.f32 0.0, %v2403
    %v2405 = vpop.f32.mrf.mxu0
    %2406 = vmatprep.mubr.f32.mxu0 0.0
    %2407 = vmatmul.mubr.f32.gmra.mxu0 %v2264
    %v2408 = vpop.f32.mrf.mxu0
    %v2409 = vadd.f32 0.0, %v2408
    %v2410 = vpop.f32.mrf.mxu0
    %2411 = vmatprep.mubr.f32.mxu0 0.0
    %2412 = vmatmul.mubr.f32.gmra.mxu0 %v2269
    %v2413 = vpop.f32.mrf.mxu0
    %v2414 = vadd.f32 0.0, %v2413
    %v2415 = vpop.f32.mrf.mxu0
    %2416 = vmatprep.mubr.f32.mxu0 0.0
    %2417 = vmatmul.mubr.f32.gmra.mxu0 %v2274
    %v2418 = vpop.f32.mrf.mxu0
    %v2419 = vadd.f32 0.0, %v2418
    %v2420 = vpop.f32.mrf.mxu0
    %2421 = vmatprep.mubr.f32.mxu0 0.0
    %2422 = vmatmul.mubr.f32.gmra.mxu0 %v2279
    %v2423 = vpop.f32.mrf.mxu0
    %v2424 = vadd.f32 0.0, %v2423
    %v2425 = vpop.f32.mrf.mxu0
    %2426 = vdwg.mxu0
    %v2427 = vmul.f32 %v2349, 0.5
    %v2428 = vmul.f32 %v2354, 0.5
    %v2429 = vmul.f32 %v2359, 0.5
    %v2430 = vmul.f32 %v2364, 0.5
    %v2431 = vmul.f32 %v2369, 0.5
    %v2432 = vmul.f32 %v2374, 0.5
    %v2433 = vmul.f32 %v2379, 0.5
    %v2434 = vmul.f32 %v2384, 0.5
    %v2435 = vmul.f32 %v2389, 0.5
    %v2436 = vmul.f32 %v2394, 0.5
    %v2437 = vmul.f32 %v2399, 0.5
    %v2438 = vmul.f32 %v2404, 0.5
    %v2439 = vmul.f32 %v2409, 0.5
    %v2440 = vmul.f32 %v2414, 0.5
    %v2441 = vmul.f32 %v2419, 0.5
    %v2442 = vmul.f32 %v2424, 0.5
    %v2443 = vsub.f32 %v398, %v2427
    %v2444 = vsub.f32 %v399, %v2428
    %v2445 = vsub.f32 %v400, %v2429
    %v2446 = vsub.f32 %v401, %v2430
    %v2447 = vsub.f32 %v402, %v2431
    %v2448 = vsub.f32 %v403, %v2432
    %v2449 = vsub.f32 %v404, %v2433
    %v2450 = vsub.f32 %v405, %v2434
    %v2451 = vsub.f32 %v406, %v2435
    %v2452 = vsub.f32 %v407, %v2436
    %v2453 = vsub.f32 %v408, %v2437
    %v2454 = vsub.f32 %v409, %v2438
    %v2455 = vsub.f32 %v410, %v2439
    %v2456 = vsub.f32 %v411, %v2440
    %v2457 = vsub.f32 %v412, %v2441
    %v2458 = vsub.f32 %v413, %v2442
    %2459 = vmatprep.subr.mxu0 0.0
    %2460 = vmatpush1.msra.mxu0 %v2458
    %2461 = vmatprep.subr.mxu0 0.0
    %2462 = vmatpush1.msra.mxu0 %v2457
    %2463 = vmatprep.subr.mxu0 0.0
    %2464 = vmatpush1.msra.mxu0 %v2456
    %2465 = vmatprep.subr.mxu0 0.0
    %2466 = vmatpush1.msra.mxu0 %v2455
    %2467 = vmatprep.subr.mxu0 0.0
    %2468 = vmatpush1.msra.mxu0 %v2454
    %2469 = vmatprep.subr.mxu0 0.0
    %2470 = vmatpush1.msra.mxu0 %v2453
    %2471 = vmatprep.subr.mxu0 0.0
    %2472 = vmatpush1.msra.mxu0 %v2452
    %2473 = vmatprep.subr.mxu0 0.0
    %2474 = vmatpush1.msra.mxu0 %v2451
    %2475 = vmatprep.subr.mxu0 0.0
    %2476 = vmatpush1.msra.mxu0 %v2450
    %2477 = vmatprep.subr.mxu0 0.0
    %2478 = vmatpush1.msra.mxu0 %v2449
    %2479 = vmatprep.subr.mxu0 0.0
    %2480 = vmatpush1.msra.mxu0 %v2448
    %2481 = vmatprep.subr.mxu0 0.0
    %2482 = vmatpush1.msra.mxu0 %v2447
    %2483 = vmatprep.subr.mxu0 0.0
    %2484 = vmatpush1.msra.mxu0 %v2446
    %2485 = vmatprep.subr.mxu0 0.0
    %2486 = vmatpush1.msra.mxu0 %v2445
    %2487 = vmatprep.subr.mxu0 0.0
    %2488 = vmatpush1.msra.mxu0 %v2444
    %2489 = vmatprep.subr.mxu0 0.0
    %2490 = vmatpush1.msra.mxu0 %v2443
    %2491 = vmatprep.subr.mxu0 0.0
    %2492 = vmatpush2.msra.mxu0 0.0
    %2493 = vmatprep.subr.mxu0 0.0
    %2494 = vmatpush2.msra.mxu0 0.0
    %2495 = vmatprep.subr.mxu0 0.0
    %2496 = vmatpush2.msra.mxu0 0.0
    %2497 = vmatprep.subr.mxu0 0.0
    %2498 = vmatpush2.msra.mxu0 0.0
    %2499 = vmatprep.subr.mxu0 0.0
    %2500 = vmatpush2.msra.mxu0 0.0
    %2501 = vmatprep.subr.mxu0 0.0
    %2502 = vmatpush2.msra.mxu0 0.0
    %2503 = vmatprep.subr.mxu0 0.0
    %2504 = vmatpush2.msra.mxu0 0.0
    %2505 = vmatprep.subr.mxu0 0.0
    %2506 = vmatpush2.msra.mxu0 0.0
    %2507 = vmatprep.subr.mxu0 0.0
    %2508 = vmatpush2.msra.mxu0 0.0
    %2509 = vmatprep.subr.mxu0 0.0
    %2510 = vmatpush2.msra.mxu0 0.0
    %2511 = vmatprep.subr.mxu0 0.0
    %2512 = vmatpush2.msra.mxu0 0.0
    %2513 = vmatprep.subr.mxu0 0.0
    %2514 = vmatpush2.msra.mxu0 0.0
    %2515 = vmatprep.subr.mxu0 0.0
    %2516 = vmatpush2.msra.mxu0 0.0
    %2517 = vmatprep.subr.mxu0 0.0
    %2518 = vmatpush2.msra.mxu0 0.0
    %2519 = vmatprep.subr.mxu0 0.0
    %2520 = vmatpush2.msra.mxu0 0.0
    %2521 = vmatprep.subr.mxu0 0.0
    %2522 = vmatpush2.msra.mxu0 0.0
    %2523 = vmatprep.mubr.f32.mxu0 0.0
    %2524 = vmatmul.mubr.f32.gmra.mxu0 %v2059
    %v2525 = vpop.f32.mrf.mxu0
    %v2526 = vadd.f32 0.0, %v2525
    %v2527 = vpop.f32.mrf.mxu0
    %2528 = vmatprep.mubr.f32.mxu0 0.0
    %2529 = vmatmul.mubr.f32.gmra.mxu0 %v2064
    %v2530 = vpop.f32.mrf.mxu0
    %v2531 = vadd.f32 0.0, %v2530
    %v2532 = vpop.f32.mrf.mxu0
    %2533 = vmatprep.mubr.f32.mxu0 0.0
    %2534 = vmatmul.mubr.f32.gmra.mxu0 %v2069
    %v2535 = vpop.f32.mrf.mxu0
    %v2536 = vadd.f32 0.0, %v2535
    %v2537 = vpop.f32.mrf.mxu0
    %2538 = vmatprep.mubr.f32.mxu0 0.0
    %2539 = vmatmul.mubr.f32.gmra.mxu0 %v2074
    %v2540 = vpop.f32.mrf.mxu0
    %v2541 = vadd.f32 0.0, %v2540
    %v2542 = vpop.f32.mrf.mxu0
    %2543 = vmatprep.mubr.f32.mxu0 0.0
    %2544 = vmatmul.mubr.f32.gmra.mxu0 %v2079
    %v2545 = vpop.f32.mrf.mxu0
    %v2546 = vadd.f32 0.0, %v2545
    %v2547 = vpop.f32.mrf.mxu0
    %2548 = vmatprep.mubr.f32.mxu0 0.0
    %2549 = vmatmul.mubr.f32.gmra.mxu0 %v2084
    %v2550 = vpop.f32.mrf.mxu0
    %v2551 = vadd.f32 0.0, %v2550
    %v2552 = vpop.f32.mrf.mxu0
    %2553 = vmatprep.mubr.f32.mxu0 0.0
    %2554 = vmatmul.mubr.f32.gmra.mxu0 %v2089
    %v2555 = vpop.f32.mrf.mxu0
    %v2556 = vadd.f32 0.0, %v2555
    %v2557 = vpop.f32.mrf.mxu0
    %2558 = vmatprep.mubr.f32.mxu0 0.0
    %2559 = vmatmul.mubr.f32.gmra.mxu0 %v2094
    %v2560 = vpop.f32.mrf.mxu0
    %v2561 = vadd.f32 0.0, %v2560
    %v2562 = vpop.f32.mrf.mxu0
    %2563 = vmatprep.mubr.f32.mxu0 0.0
    %2564 = vmatmul.mubr.f32.gmra.mxu0 %v2099
    %v2565 = vpop.f32.mrf.mxu0
    %v2566 = vadd.f32 0.0, %v2565
    %v2567 = vpop.f32.mrf.mxu0
    %2568 = vmatprep.mubr.f32.mxu0 0.0
    %2569 = vmatmul.mubr.f32.gmra.mxu0 %v2104
    %v2570 = vpop.f32.mrf.mxu0
    %v2571 = vadd.f32 0.0, %v2570
    %v2572 = vpop.f32.mrf.mxu0
    %2573 = vmatprep.mubr.f32.mxu0 0.0
    %2574 = vmatmul.mubr.f32.gmra.mxu0 %v2109
    %v2575 = vpop.f32.mrf.mxu0
    %v2576 = vadd.f32 0.0, %v2575
    %v2577 = vpop.f32.mrf.mxu0
    %2578 = vmatprep.mubr.f32.mxu0 0.0
    %2579 = vmatmul.mubr.f32.gmra.mxu0 %v2114
    %v2580 = vpop.f32.mrf.mxu0
    %v2581 = vadd.f32 0.0, %v2580
    %v2582 = vpop.f32.mrf.mxu0
    %2583 = vmatprep.mubr.f32.mxu0 0.0
    %2584 = vmatmul.mubr.f32.gmra.mxu0 %v2119
    %v2585 = vpop.f32.mrf.mxu0
    %v2586 = vadd.f32 0.0, %v2585
    %v2587 = vpop.f32.mrf.mxu0
    %2588 = vmatprep.mubr.f32.mxu0 0.0
    %2589 = vmatmul.mubr.f32.gmra.mxu0 %v2124
    %v2590 = vpop.f32.mrf.mxu0
    %v2591 = vadd.f32 0.0, %v2590
    %v2592 = vpop.f32.mrf.mxu0
    %2593 = vmatprep.mubr.f32.mxu0 0.0
    %2594 = vmatmul.mubr.f32.gmra.mxu0 %v2129
    %v2595 = vpop.f32.mrf.mxu0
    %v2596 = vadd.f32 0.0, %v2595
    %v2597 = vpop.f32.mrf.mxu0
    %2598 = vmatprep.mubr.f32.mxu0 0.0
    %2599 = vmatmul.mubr.f32.gmra.mxu0 %v2134
    %v2600 = vpop.f32.mrf.mxu0
    %v2601 = vadd.f32 0.0, %v2600
    %v2602 = vpop.f32.mrf.mxu0
    %2603 = vdwg.mxu0
    %2604 = vmatprep.subr.mxu0 0.0
    %2605 = vmatpush1.msra.mxu0 %v2279
    %2606 = vmatprep.subr.mxu0 0.0
    %2607 = vmatpush1.msra.mxu0 %v2274
    %2608 = vmatprep.subr.mxu0 0.0
    %2609 = vmatpush1.msra.mxu0 %v2269
    %2610 = vmatprep.subr.mxu0 0.0
    %2611 = vmatpush1.msra.mxu0 %v2264
    %2612 = vmatprep.subr.mxu0 0.0
    %2613 = vmatpush1.msra.mxu0 %v2259
    %2614 = vmatprep.subr.mxu0 0.0
    %2615 = vmatpush1.msra.mxu0 %v2254
    %2616 = vmatprep.subr.mxu0 0.0
    %2617 = vmatpush1.msra.mxu0 %v2249
    %2618 = vmatprep.subr.mxu0 0.0
    %2619 = vmatpush1.msra.mxu0 %v2244
    %2620 = vmatprep.subr.mxu0 0.0
    %2621 = vmatpush1.msra.mxu0 %v2239
    %2622 = vmatprep.subr.mxu0 0.0
    %2623 = vmatpush1.msra.mxu0 %v2234
    %2624 = vmatprep.subr.mxu0 0.0
    %2625 = vmatpush1.msra.mxu0 %v2229
    %2626 = vmatprep.subr.mxu0 0.0
    %2627 = vmatpush1.msra.mxu0 %v2224
    %2628 = vmatprep.subr.mxu0 0.0
    %2629 = vmatpush1.msra.mxu0 %v2219
    %2630 = vmatprep.subr.mxu0 0.0
    %2631 = vmatpush1.msra.mxu0 %v2214
    %2632 = vmatprep.subr.mxu0 0.0
    %2633 = vmatpush1.msra.mxu0 %v2209
    %2634 = vmatprep.subr.mxu0 0.0
    %2635 = vmatpush1.msra.mxu0 %v2204
    %2636 = vmatprep.subr.mxu0 0.0
    %2637 = vmatpush2.msra.mxu0 0.0
    %2638 = vmatprep.subr.mxu0 0.0
    %2639 = vmatpush2.msra.mxu0 0.0
    %2640 = vmatprep.subr.mxu0 0.0
    %2641 = vmatpush2.msra.mxu0 0.0
    %2642 = vmatprep.subr.mxu0 0.0
    %2643 = vmatpush2.msra.mxu0 0.0
    %2644 = vmatprep.subr.mxu0 0.0
    %2645 = vmatpush2.msra.mxu0 0.0
    %2646 = vmatprep.subr.mxu0 0.0
    %2647 = vmatpush2.msra.mxu0 0.0
    %2648 = vmatprep.subr.mxu0 0.0
    %2649 = vmatpush2.msra.mxu0 0.0
    %2650 = vmatprep.subr.mxu0 0.0
    %2651 = vmatpush2.msra.mxu0 0.0
    %2652 = vmatprep.subr.mxu0 0.0
    %2653 = vmatpush2.msra.mxu0 0.0
    %2654 = vmatprep.subr.mxu0 0.0
    %2655 = vmatpush2.msra.mxu0 0.0
    %2656 = vmatprep.subr.mxu0 0.0
    %2657 = vmatpush2.msra.mxu0 0.0
    %2658 = vmatprep.subr.mxu0 0.0
    %2659 = vmatpush2.msra.mxu0 0.0
    %2660 = vmatprep.subr.mxu0 0.0
    %2661 = vmatpush2.msra.mxu0 0.0
    %2662 = vmatprep.subr.mxu0 0.0
    %2663 = vmatpush2.msra.mxu0 0.0
    %2664 = vmatprep.subr.mxu0 0.0
    %2665 = vmatpush2.msra.mxu0 0.0
    %2666 = vmatprep.subr.mxu0 0.0
    %2667 = vmatpush2.msra.mxu0 0.0
    %2668 = vmatprep.mubr.f32.mxu0 0.0
    %2669 = vmatmul.mubr.f32.gmra.mxu0 %v2443
    %v2670 = vpop.f32.mrf.mxu0
    %v2671 = vadd.f32 0.0, %v2670
    %v2672 = vpop.f32.mrf.mxu0
    %2673 = vmatprep.mubr.f32.mxu0 0.0
    %2674 = vmatmul.mubr.f32.gmra.mxu0 %v2444
    %v2675 = vpop.f32.mrf.mxu0
    %v2676 = vadd.f32 0.0, %v2675
    %v2677 = vpop.f32.mrf.mxu0
    %2678 = vmatprep.mubr.f32.mxu0 0.0
    %2679 = vmatmul.mubr.f32.gmra.mxu0 %v2445
    %v2680 = vpop.f32.mrf.mxu0
    %v2681 = vadd.f32 0.0, %v2680
    %v2682 = vpop.f32.mrf.mxu0
    %2683 = vmatprep.mubr.f32.mxu0 0.0
    %2684 = vmatmul.mubr.f32.gmra.mxu0 %v2446
    %v2685 = vpop.f32.mrf.mxu0
    %v2686 = vadd.f32 0.0, %v2685
    %v2687 = vpop.f32.mrf.mxu0
    %2688 = vmatprep.mubr.f32.mxu0 0.0
    %2689 = vmatmul.mubr.f32.gmra.mxu0 %v2447
    %v2690 = vpop.f32.mrf.mxu0
    %v2691 = vadd.f32 0.0, %v2690
    %v2692 = vpop.f32.mrf.mxu0
    %2693 = vmatprep.mubr.f32.mxu0 0.0
    %2694 = vmatmul.mubr.f32.gmra.mxu0 %v2448
    %v2695 = vpop.f32.mrf.mxu0
    %v2696 = vadd.f32 0.0, %v2695
    %v2697 = vpop.f32.mrf.mxu0
    %2698 = vmatprep.mubr.f32.mxu0 0.0
    %2699 = vmatmul.mubr.f32.gmra.mxu0 %v2449
    %v2700 = vpop.f32.mrf.mxu0
    %v2701 = vadd.f32 0.0, %v2700
    %v2702 = vpop.f32.mrf.mxu0
    %2703 = vmatprep.mubr.f32.mxu0 0.0
    %2704 = vmatmul.mubr.f32.gmra.mxu0 %v2450
    %v2705 = vpop.f32.mrf.mxu0
    %v2706 = vadd.f32 0.0, %v2705
    %v2707 = vpop.f32.mrf.mxu0
    %2708 = vmatprep.mubr.f32.mxu0 0.0
    %2709 = vmatmul.mubr.f32.gmra.mxu0 %v2451
    %v2710 = vpop.f32.mrf.mxu0
    %v2711 = vadd.f32 0.0, %v2710
    %v2712 = vpop.f32.mrf.mxu0
    %2713 = vmatprep.mubr.f32.mxu0 0.0
    %2714 = vmatmul.mubr.f32.gmra.mxu0 %v2452
    %v2715 = vpop.f32.mrf.mxu0
    %v2716 = vadd.f32 0.0, %v2715
    %v2717 = vpop.f32.mrf.mxu0
    %2718 = vmatprep.mubr.f32.mxu0 0.0
    %2719 = vmatmul.mubr.f32.gmra.mxu0 %v2453
    %v2720 = vpop.f32.mrf.mxu0
    %v2721 = vadd.f32 0.0, %v2720
    %v2722 = vpop.f32.mrf.mxu0
    %2723 = vmatprep.mubr.f32.mxu0 0.0
    %2724 = vmatmul.mubr.f32.gmra.mxu0 %v2454
    %v2725 = vpop.f32.mrf.mxu0
    %v2726 = vadd.f32 0.0, %v2725
    %v2727 = vpop.f32.mrf.mxu0
    %2728 = vmatprep.mubr.f32.mxu0 0.0
    %2729 = vmatmul.mubr.f32.gmra.mxu0 %v2455
    %v2730 = vpop.f32.mrf.mxu0
    %v2731 = vadd.f32 0.0, %v2730
    %v2732 = vpop.f32.mrf.mxu0
    %2733 = vmatprep.mubr.f32.mxu0 0.0
    %2734 = vmatmul.mubr.f32.gmra.mxu0 %v2456
    %v2735 = vpop.f32.mrf.mxu0
    %v2736 = vadd.f32 0.0, %v2735
    %v2737 = vpop.f32.mrf.mxu0
    %2738 = vmatprep.mubr.f32.mxu0 0.0
    %2739 = vmatmul.mubr.f32.gmra.mxu0 %v2457
    %v2740 = vpop.f32.mrf.mxu0
    %v2741 = vadd.f32 0.0, %v2740
    %v2742 = vpop.f32.mrf.mxu0
    %2743 = vmatprep.mubr.f32.mxu0 0.0
    %2744 = vmatmul.mubr.f32.gmra.mxu0 %v2458
    %v2745 = vpop.f32.mrf.mxu0
    %v2746 = vadd.f32 0.0, %v2745
    %v2747 = vpop.f32.mrf.mxu0
    %2748 = vdwg.mxu0
    %2749 = vmatprep.subr.mxu0 0.0
    %2750 = vmatpush1.msra.mxu0 %v2601
    %2751 = vmatprep.subr.mxu0 0.0
    %2752 = vmatpush1.msra.mxu0 %v2596
    %2753 = vmatprep.subr.mxu0 0.0
    %2754 = vmatpush1.msra.mxu0 %v2591
    %2755 = vmatprep.subr.mxu0 0.0
    %2756 = vmatpush1.msra.mxu0 %v2586
    %2757 = vmatprep.subr.mxu0 0.0
    %2758 = vmatpush1.msra.mxu0 %v2581
    %2759 = vmatprep.subr.mxu0 0.0
    %2760 = vmatpush1.msra.mxu0 %v2576
    %2761 = vmatprep.subr.mxu0 0.0
    %2762 = vmatpush1.msra.mxu0 %v2571
    %2763 = vmatprep.subr.mxu0 0.0
    %2764 = vmatpush1.msra.mxu0 %v2566
    %2765 = vmatprep.subr.mxu0 0.0
    %2766 = vmatpush1.msra.mxu0 %v2561
    %2767 = vmatprep.subr.mxu0 0.0
    %2768 = vmatpush1.msra.mxu0 %v2556
    %2769 = vmatprep.subr.mxu0 0.0
    %2770 = vmatpush1.msra.mxu0 %v2551
    %2771 = vmatprep.subr.mxu0 0.0
    %2772 = vmatpush1.msra.mxu0 %v2546
    %2773 = vmatprep.subr.mxu0 0.0
    %2774 = vmatpush1.msra.mxu0 %v2541
    %2775 = vmatprep.subr.mxu0 0.0
    %2776 = vmatpush1.msra.mxu0 %v2536
    %2777 = vmatprep.subr.mxu0 0.0
    %2778 = vmatpush1.msra.mxu0 %v2531
    %2779 = vmatprep.subr.mxu0 0.0
    %2780 = vmatpush1.msra.mxu0 %v2526
    %2781 = vmatprep.subr.mxu0 0.0
    %2782 = vmatpush2.msra.mxu0 0.0
    %2783 = vmatprep.subr.mxu0 0.0
    %2784 = vmatpush2.msra.mxu0 0.0
    %2785 = vmatprep.subr.mxu0 0.0
    %2786 = vmatpush2.msra.mxu0 0.0
    %2787 = vmatprep.subr.mxu0 0.0
    %2788 = vmatpush2.msra.mxu0 0.0
    %2789 = vmatprep.subr.mxu0 0.0
    %2790 = vmatpush2.msra.mxu0 0.0
    %2791 = vmatprep.subr.mxu0 0.0
    %2792 = vmatpush2.msra.mxu0 0.0
    %2793 = vmatprep.subr.mxu0 0.0
    %2794 = vmatpush2.msra.mxu0 0.0
    %2795 = vmatprep.subr.mxu0 0.0
    %2796 = vmatpush2.msra.mxu0 0.0
    %2797 = vmatprep.subr.mxu0 0.0
    %2798 = vmatpush2.msra.mxu0 0.0
    %2799 = vmatprep.subr.mxu0 0.0
    %2800 = vmatpush2.msra.mxu0 0.0
    %2801 = vmatprep.subr.mxu0 0.0
    %2802 = vmatpush2.msra.mxu0 0.0
    %2803 = vmatprep.subr.mxu0 0.0
    %2804 = vmatpush2.msra.mxu0 0.0
    %2805 = vmatprep.subr.mxu0 0.0
    %2806 = vmatpush2.msra.mxu0 0.0
    %2807 = vmatprep.subr.mxu0 0.0
    %2808 = vmatpush2.msra.mxu0 0.0
    %2809 = vmatprep.subr.mxu0 0.0
    %2810 = vmatpush2.msra.mxu0 0.0
    %2811 = vmatprep.subr.mxu0 0.0
    %2812 = vmatpush2.msra.mxu0 0.0
    %2813 = vmatprep.mubr.f32.mxu0 0.0
    %2814 = vmatmul.mubr.f32.gmra.mxu0 %v2671
    %v2815 = vpop.f32.mrf.mxu0
    %v2816 = vadd.f32 0.0, %v2815
    %v2817 = vpop.f32.mrf.mxu0
    %2818 = vmatprep.mubr.f32.mxu0 0.0
    %2819 = vmatmul.mubr.f32.gmra.mxu0 %v2676
    %v2820 = vpop.f32.mrf.mxu0
    %v2821 = vadd.f32 0.0, %v2820
    %v2822 = vpop.f32.mrf.mxu0
    %2823 = vmatprep.mubr.f32.mxu0 0.0
    %2824 = vmatmul.mubr.f32.gmra.mxu0 %v2681
    %v2825 = vpop.f32.mrf.mxu0
    %v2826 = vadd.f32 0.0, %v2825
    %v2827 = vpop.f32.mrf.mxu0
    %2828 = vmatprep.mubr.f32.mxu0 0.0
    %2829 = vmatmul.mubr.f32.gmra.mxu0 %v2686
    %v2830 = vpop.f32.mrf.mxu0
    %v2831 = vadd.f32 0.0, %v2830
    %v2832 = vpop.f32.mrf.mxu0
    %2833 = vmatprep.mubr.f32.mxu0 0.0
    %2834 = vmatmul.mubr.f32.gmra.mxu0 %v2691
    %v2835 = vpop.f32.mrf.mxu0
    %v2836 = vadd.f32 0.0, %v2835
    %v2837 = vpop.f32.mrf.mxu0
    %2838 = vmatprep.mubr.f32.mxu0 0.0
    %2839 = vmatmul.mubr.f32.gmra.mxu0 %v2696
    %v2840 = vpop.f32.mrf.mxu0
    %v2841 = vadd.f32 0.0, %v2840
    %v2842 = vpop.f32.mrf.mxu0
    %2843 = vmatprep.mubr.f32.mxu0 0.0
    %2844 = vmatmul.mubr.f32.gmra.mxu0 %v2701
    %v2845 = vpop.f32.mrf.mxu0
    %v2846 = vadd.f32 0.0, %v2845
    %v2847 = vpop.f32.mrf.mxu0
    %2848 = vmatprep.mubr.f32.mxu0 0.0
    %2849 = vmatmul.mubr.f32.gmra.mxu0 %v2706
    %v2850 = vpop.f32.mrf.mxu0
    %v2851 = vadd.f32 0.0, %v2850
    %v2852 = vpop.f32.mrf.mxu0
    %2853 = vmatprep.mubr.f32.mxu0 0.0
    %2854 = vmatmul.mubr.f32.gmra.mxu0 %v2711
    %v2855 = vpop.f32.mrf.mxu0
    %v2856 = vadd.f32 0.0, %v2855
    %v2857 = vpop.f32.mrf.mxu0
    %2858 = vmatprep.mubr.f32.mxu0 0.0
    %2859 = vmatmul.mubr.f32.gmra.mxu0 %v2716
    %v2860 = vpop.f32.mrf.mxu0
    %v2861 = vadd.f32 0.0, %v2860
    %v2862 = vpop.f32.mrf.mxu0
    %2863 = vmatprep.mubr.f32.mxu0 0.0
    %2864 = vmatmul.mubr.f32.gmra.mxu0 %v2721
    %v2865 = vpop.f32.mrf.mxu0
    %v2866 = vadd.f32 0.0, %v2865
    %v2867 = vpop.f32.mrf.mxu0
    %2868 = vmatprep.mubr.f32.mxu0 0.0
    %2869 = vmatmul.mubr.f32.gmra.mxu0 %v2726
    %v2870 = vpop.f32.mrf.mxu0
    %v2871 = vadd.f32 0.0, %v2870
    %v2872 = vpop.f32.mrf.mxu0
    %2873 = vmatprep.mubr.f32.mxu0 0.0
    %2874 = vmatmul.mubr.f32.gmra.mxu0 %v2731
    %v2875 = vpop.f32.mrf.mxu0
    %v2876 = vadd.f32 0.0, %v2875
    %v2877 = vpop.f32.mrf.mxu0
    %2878 = vmatprep.mubr.f32.mxu0 0.0
    %2879 = vmatmul.mubr.f32.gmra.mxu0 %v2736
    %v2880 = vpop.f32.mrf.mxu0
    %v2881 = vadd.f32 0.0, %v2880
    %v2882 = vpop.f32.mrf.mxu0
    %2883 = vmatprep.mubr.f32.mxu0 0.0
    %2884 = vmatmul.mubr.f32.gmra.mxu0 %v2741
    %v2885 = vpop.f32.mrf.mxu0
    %v2886 = vadd.f32 0.0, %v2885
    %v2887 = vpop.f32.mrf.mxu0
    %2888 = vmatprep.mubr.f32.mxu0 0.0
    %2889 = vmatmul.mubr.f32.gmra.mxu0 %v2746
    %v2890 = vpop.f32.mrf.mxu0
    %v2891 = vadd.f32 0.0, %v2890
    %v2892 = vpop.f32.mrf.mxu0
    %2893 = vdwg.mxu0
    %v2894 = vmul.f32 %v2816, 0.5
    %v2895 = vmul.f32 %v2821, 0.5
    %v2896 = vmul.f32 %v2826, 0.5
    %v2897 = vmul.f32 %v2831, 0.5
    %v2898 = vmul.f32 %v2836, 0.5
    %v2899 = vmul.f32 %v2841, 0.5
    %v2900 = vmul.f32 %v2846, 0.5
    %v2901 = vmul.f32 %v2851, 0.5
    %v2902 = vmul.f32 %v2856, 0.5
    %v2903 = vmul.f32 %v2861, 0.5
    %v2904 = vmul.f32 %v2866, 0.5
    %v2905 = vmul.f32 %v2871, 0.5
    %v2906 = vmul.f32 %v2876, 0.5
    %v2907 = vmul.f32 %v2881, 0.5
    %v2908 = vmul.f32 %v2886, 0.5
    %v2909 = vmul.f32 %v2891, 0.5
    %v2910 = vsub.f32 %v398, %v2894
    %v2911 = vsub.f32 %v399, %v2895
    %v2912 = vsub.f32 %v400, %v2896
    %v2913 = vsub.f32 %v401, %v2897
    %v2914 = vsub.f32 %v402, %v2898
    %v2915 = vsub.f32 %v403, %v2899
    %v2916 = vsub.f32 %v404, %v2900
    %v2917 = vsub.f32 %v405, %v2901
    %v2918 = vsub.f32 %v406, %v2902
    %v2919 = vsub.f32 %v407, %v2903
    %v2920 = vsub.f32 %v408, %v2904
    %v2921 = vsub.f32 %v409, %v2905
    %v2922 = vsub.f32 %v410, %v2906
    %v2923 = vsub.f32 %v411, %v2907
    %v2924 = vsub.f32 %v412, %v2908
    %v2925 = vsub.f32 %v413, %v2909
    %2926 = vmatprep.subr.mxu0 0.0
    %2927 = vmatpush1.msra.mxu0 %v2925
    %2928 = vmatprep.subr.mxu0 0.0
    %2929 = vmatpush1.msra.mxu0 %v2924
    %2930 = vmatprep.subr.mxu0 0.0
    %2931 = vmatpush1.msra.mxu0 %v2923
    %2932 = vmatprep.subr.mxu0 0.0
    %2933 = vmatpush1.msra.mxu0 %v2922
    %2934 = vmatprep.subr.mxu0 0.0
    %2935 = vmatpush1.msra.mxu0 %v2921
    %2936 = vmatprep.subr.mxu0 0.0
    %2937 = vmatpush1.msra.mxu0 %v2920
    %2938 = vmatprep.subr.mxu0 0.0
    %2939 = vmatpush1.msra.mxu0 %v2919
    %2940 = vmatprep.subr.mxu0 0.0
    %2941 = vmatpush1.msra.mxu0 %v2918
    %2942 = vmatprep.subr.mxu0 0.0
    %2943 = vmatpush1.msra.mxu0 %v2917
    %2944 = vmatprep.subr.mxu0 0.0
    %2945 = vmatpush1.msra.mxu0 %v2916
    %2946 = vmatprep.subr.mxu0 0.0
    %2947 = vmatpush1.msra.mxu0 %v2915
    %2948 = vmatprep.subr.mxu0 0.0
    %2949 = vmatpush1.msra.mxu0 %v2914
    %2950 = vmatprep.subr.mxu0 0.0
    %2951 = vmatpush1.msra.mxu0 %v2913
    %2952 = vmatprep.subr.mxu0 0.0
    %2953 = vmatpush1.msra.mxu0 %v2912
    %2954 = vmatprep.subr.mxu0 0.0
    %2955 = vmatpush1.msra.mxu0 %v2911
    %2956 = vmatprep.subr.mxu0 0.0
    %2957 = vmatpush1.msra.mxu0 %v2910
    %2958 = vmatprep.subr.mxu0 0.0
    %2959 = vmatpush2.msra.mxu0 0.0
    %2960 = vmatprep.subr.mxu0 0.0
    %2961 = vmatpush2.msra.mxu0 0.0
    %2962 = vmatprep.subr.mxu0 0.0
    %2963 = vmatpush2.msra.mxu0 0.0
    %2964 = vmatprep.subr.mxu0 0.0
    %2965 = vmatpush2.msra.mxu0 0.0
    %2966 = vmatprep.subr.mxu0 0.0
    %2967 = vmatpush2.msra.mxu0 0.0
    %2968 = vmatprep.subr.mxu0 0.0
    %2969 = vmatpush2.msra.mxu0 0.0
    %2970 = vmatprep.subr.mxu0 0.0
    %2971 = vmatpush2.msra.mxu0 0.0
    %2972 = vmatprep.subr.mxu0 0.0
    %2973 = vmatpush2.msra.mxu0 0.0
    %2974 = vmatprep.subr.mxu0 0.0
    %2975 = vmatpush2.msra.mxu0 0.0
    %2976 = vmatprep.subr.mxu0 0.0
    %2977 = vmatpush2.msra.mxu0 0.0
    %2978 = vmatprep.subr.mxu0 0.0
    %2979 = vmatpush2.msra.mxu0 0.0
    %2980 = vmatprep.subr.mxu0 0.0
    %2981 = vmatpush2.msra.mxu0 0.0
    %2982 = vmatprep.subr.mxu0 0.0
    %2983 = vmatpush2.msra.mxu0 0.0
    %2984 = vmatprep.subr.mxu0 0.0
    %2985 = vmatpush2.msra.mxu0 0.0
    %2986 = vmatprep.subr.mxu0 0.0
    %2987 = vmatpush2.msra.mxu0 0.0
    %2988 = vmatprep.subr.mxu0 0.0
    %2989 = vmatpush2.msra.mxu0 0.0
    %2990 = vmatprep.mubr.f32.mxu0 0.0
    %2991 = vmatmul.mubr.f32.gmra.mxu0 %v2526
    %v2992 = vpop.f32.mrf.mxu0
    %v2993 = vadd.f32 0.0, %v2992
    %v2994 = vpop.f32.mrf.mxu0
    %2995 = vmatprep.mubr.f32.mxu0 0.0
    %2996 = vmatmul.mubr.f32.gmra.mxu0 %v2531
    %v2997 = vpop.f32.mrf.mxu0
    %v2998 = vadd.f32 0.0, %v2997
    %v2999 = vpop.f32.mrf.mxu0
    %3000 = vmatprep.mubr.f32.mxu0 0.0
    %3001 = vmatmul.mubr.f32.gmra.mxu0 %v2536
    %v3002 = vpop.f32.mrf.mxu0
    %v3003 = vadd.f32 0.0, %v3002
    %v3004 = vpop.f32.mrf.mxu0
    %3005 = vmatprep.mubr.f32.mxu0 0.0
    %3006 = vmatmul.mubr.f32.gmra.mxu0 %v2541
    %v3007 = vpop.f32.mrf.mxu0
    %v3008 = vadd.f32 0.0, %v3007
    %v3009 = vpop.f32.mrf.mxu0
    %3010 = vmatprep.mubr.f32.mxu0 0.0
    %3011 = vmatmul.mubr.f32.gmra.mxu0 %v2546
    %v3012 = vpop.f32.mrf.mxu0
    %v3013 = vadd.f32 0.0, %v3012
    %v3014 = vpop.f32.mrf.mxu0
    %3015 = vmatprep.mubr.f32.mxu0 0.0
    %3016 = vmatmul.mubr.f32.gmra.mxu0 %v2551
    %v3017 = vpop.f32.mrf.mxu0
    %v3018 = vadd.f32 0.0, %v3017
    %v3019 = vpop.f32.mrf.mxu0
    %3020 = vmatprep.mubr.f32.mxu0 0.0
    %3021 = vmatmul.mubr.f32.gmra.mxu0 %v2556
    %v3022 = vpop.f32.mrf.mxu0
    %v3023 = vadd.f32 0.0, %v3022
    %v3024 = vpop.f32.mrf.mxu0
    %3025 = vmatprep.mubr.f32.mxu0 0.0
    %3026 = vmatmul.mubr.f32.gmra.mxu0 %v2561
    %v3027 = vpop.f32.mrf.mxu0
    %v3028 = vadd.f32 0.0, %v3027
    %v3029 = vpop.f32.mrf.mxu0
    %3030 = vmatprep.mubr.f32.mxu0 0.0
    %3031 = vmatmul.mubr.f32.gmra.mxu0 %v2566
    %v3032 = vpop.f32.mrf.mxu0
    %v3033 = vadd.f32 0.0, %v3032
    %v3034 = vpop.f32.mrf.mxu0
    %3035 = vmatprep.mubr.f32.mxu0 0.0
    %3036 = vmatmul.mubr.f32.gmra.mxu0 %v2571
    %v3037 = vpop.f32.mrf.mxu0
    %v3038 = vadd.f32 0.0, %v3037
    %v3039 = vpop.f32.mrf.mxu0
    %3040 = vmatprep.mubr.f32.mxu0 0.0
    %3041 = vmatmul.mubr.f32.gmra.mxu0 %v2576
    %v3042 = vpop.f32.mrf.mxu0
    %v3043 = vadd.f32 0.0, %v3042
    %v3044 = vpop.f32.mrf.mxu0
    %3045 = vmatprep.mubr.f32.mxu0 0.0
    %3046 = vmatmul.mubr.f32.gmra.mxu0 %v2581
    %v3047 = vpop.f32.mrf.mxu0
    %v3048 = vadd.f32 0.0, %v3047
    %v3049 = vpop.f32.mrf.mxu0
    %3050 = vmatprep.mubr.f32.mxu0 0.0
    %3051 = vmatmul.mubr.f32.gmra.mxu0 %v2586
    %v3052 = vpop.f32.mrf.mxu0
    %v3053 = vadd.f32 0.0, %v3052
    %v3054 = vpop.f32.mrf.mxu0
    %3055 = vmatprep.mubr.f32.mxu0 0.0
    %3056 = vmatmul.mubr.f32.gmra.mxu0 %v2591
    %v3057 = vpop.f32.mrf.mxu0
    %v3058 = vadd.f32 0.0, %v3057
    %v3059 = vpop.f32.mrf.mxu0
    %3060 = vmatprep.mubr.f32.mxu0 0.0
    %3061 = vmatmul.mubr.f32.gmra.mxu0 %v2596
    %v3062 = vpop.f32.mrf.mxu0
    %v3063 = vadd.f32 0.0, %v3062
    %v3064 = vpop.f32.mrf.mxu0
    %3065 = vmatprep.mubr.f32.mxu0 0.0
    %3066 = vmatmul.mubr.f32.gmra.mxu0 %v2601
    %v3067 = vpop.f32.mrf.mxu0
    %v3068 = vadd.f32 0.0, %v3067
    %v3069 = vpop.f32.mrf.mxu0
    %3070 = vdwg.mxu0
    %3071 = vmatprep.subr.mxu0 0.0
    %3072 = vmatpush1.msra.mxu0 %v2746
    %3073 = vmatprep.subr.mxu0 0.0
    %3074 = vmatpush1.msra.mxu0 %v2741
    %3075 = vmatprep.subr.mxu0 0.0
    %3076 = vmatpush1.msra.mxu0 %v2736
    %3077 = vmatprep.subr.mxu0 0.0
    %3078 = vmatpush1.msra.mxu0 %v2731
    %3079 = vmatprep.subr.mxu0 0.0
    %3080 = vmatpush1.msra.mxu0 %v2726
    %3081 = vmatprep.subr.mxu0 0.0
    %3082 = vmatpush1.msra.mxu0 %v2721
    %3083 = vmatprep.subr.mxu0 0.0
    %3084 = vmatpush1.msra.mxu0 %v2716
    %3085 = vmatprep.subr.mxu0 0.0
    %3086 = vmatpush1.msra.mxu0 %v2711
    %3087 = vmatprep.subr.mxu0 0.0
    %3088 = vmatpush1.msra.mxu0 %v2706
    %3089 = vmatprep.subr.mxu0 0.0
    %3090 = vmatpush1.msra.mxu0 %v2701
    %3091 = vmatprep.subr.mxu0 0.0
    %3092 = vmatpush1.msra.mxu0 %v2696
    %3093 = vmatprep.subr.mxu0 0.0
    %3094 = vmatpush1.msra.mxu0 %v2691
    %3095 = vmatprep.subr.mxu0 0.0
    %3096 = vmatpush1.msra.mxu0 %v2686
    %3097 = vmatprep.subr.mxu0 0.0
    %3098 = vmatpush1.msra.mxu0 %v2681
    %3099 = vmatprep.subr.mxu0 0.0
    %3100 = vmatpush1.msra.mxu0 %v2676
    %3101 = vmatprep.subr.mxu0 0.0
    %3102 = vmatpush1.msra.mxu0 %v2671
    %3103 = vmatprep.subr.mxu0 0.0
    %3104 = vmatpush2.msra.mxu0 0.0
    %3105 = vmatprep.subr.mxu0 0.0
    %3106 = vmatpush2.msra.mxu0 0.0
    %3107 = vmatprep.subr.mxu0 0.0
    %3108 = vmatpush2.msra.mxu0 0.0
    %3109 = vmatprep.subr.mxu0 0.0
    %3110 = vmatpush2.msra.mxu0 0.0
    %3111 = vmatprep.subr.mxu0 0.0
    %3112 = vmatpush2.msra.mxu0 0.0
    %3113 = vmatprep.subr.mxu0 0.0
    %3114 = vmatpush2.msra.mxu0 0.0
    %3115 = vmatprep.subr.mxu0 0.0
    %3116 = vmatpush2.msra.mxu0 0.0
    %3117 = vmatprep.subr.mxu0 0.0
    %3118 = vmatpush2.msra.mxu0 0.0
    %3119 = vmatprep.subr.mxu0 0.0
    %3120 = vmatpush2.msra.mxu0 0.0
    %3121 = vmatprep.subr.mxu0 0.0
    %3122 = vmatpush2.msra.mxu0 0.0
    %3123 = vmatprep.subr.mxu0 0.0
    %3124 = vmatpush2.msra.mxu0 0.0
    %3125 = vmatprep.subr.mxu0 0.0
    %3126 = vmatpush2.msra.mxu0 0.0
    %3127 = vmatprep.subr.mxu0 0.0
    %3128 = vmatpush2.msra.mxu0 0.0
    %3129 = vmatprep.subr.mxu0 0.0
    %3130 = vmatpush2.msra.mxu0 0.0
    %3131 = vmatprep.subr.mxu0 0.0
    %3132 = vmatpush2.msra.mxu0 0.0
    %3133 = vmatprep.subr.mxu0 0.0
    %3134 = vmatpush2.msra.mxu0 0.0
    %3135 = vmatprep.mubr.f32.mxu0 0.0
    %3136 = vmatmul.mubr.f32.gmra.mxu0 %v2910
    %v3137 = vpop.f32.mrf.mxu0
    %v3138 = vadd.f32 0.0, %v3137
    %v3139 = vpop.f32.mrf.mxu0
    %3140 = vmatprep.mubr.f32.mxu0 0.0
    %3141 = vmatmul.mubr.f32.gmra.mxu0 %v2911
    %v3142 = vpop.f32.mrf.mxu0
    %v3143 = vadd.f32 0.0, %v3142
    %v3144 = vpop.f32.mrf.mxu0
    %3145 = vmatprep.mubr.f32.mxu0 0.0
    %3146 = vmatmul.mubr.f32.gmra.mxu0 %v2912
    %v3147 = vpop.f32.mrf.mxu0
    %v3148 = vadd.f32 0.0, %v3147
    %v3149 = vpop.f32.mrf.mxu0
    %3150 = vmatprep.mubr.f32.mxu0 0.0
    %3151 = vmatmul.mubr.f32.gmra.mxu0 %v2913
    %v3152 = vpop.f32.mrf.mxu0
    %v3153 = vadd.f32 0.0, %v3152
    %v3154 = vpop.f32.mrf.mxu0
    %3155 = vmatprep.mubr.f32.mxu0 0.0
    %3156 = vmatmul.mubr.f32.gmra.mxu0 %v2914
    %v3157 = vpop.f32.mrf.mxu0
    %v3158 = vadd.f32 0.0, %v3157
    %v3159 = vpop.f32.mrf.mxu0
    %3160 = vmatprep.mubr.f32.mxu0 0.0
    %3161 = vmatmul.mubr.f32.gmra.mxu0 %v2915
    %v3162 = vpop.f32.mrf.mxu0
    %v3163 = vadd.f32 0.0, %v3162
    %v3164 = vpop.f32.mrf.mxu0
    %3165 = vmatprep.mubr.f32.mxu0 0.0
    %3166 = vmatmul.mubr.f32.gmra.mxu0 %v2916
    %v3167 = vpop.f32.mrf.mxu0
    %v3168 = vadd.f32 0.0, %v3167
    %v3169 = vpop.f32.mrf.mxu0
    %3170 = vmatprep.mubr.f32.mxu0 0.0
    %3171 = vmatmul.mubr.f32.gmra.mxu0 %v2917
    %v3172 = vpop.f32.mrf.mxu0
    %v3173 = vadd.f32 0.0, %v3172
    %v3174 = vpop.f32.mrf.mxu0
    %3175 = vmatprep.mubr.f32.mxu0 0.0
    %3176 = vmatmul.mubr.f32.gmra.mxu0 %v2918
    %v3177 = vpop.f32.mrf.mxu0
    %v3178 = vadd.f32 0.0, %v3177
    %v3179 = vpop.f32.mrf.mxu0
    %3180 = vmatprep.mubr.f32.mxu0 0.0
    %3181 = vmatmul.mubr.f32.gmra.mxu0 %v2919
    %v3182 = vpop.f32.mrf.mxu0
    %v3183 = vadd.f32 0.0, %v3182
    %v3184 = vpop.f32.mrf.mxu0
    %3185 = vmatprep.mubr.f32.mxu0 0.0
    %3186 = vmatmul.mubr.f32.gmra.mxu0 %v2920
    %v3187 = vpop.f32.mrf.mxu0
    %v3188 = vadd.f32 0.0, %v3187
    %v3189 = vpop.f32.mrf.mxu0
    %3190 = vmatprep.mubr.f32.mxu0 0.0
    %3191 = vmatmul.mubr.f32.gmra.mxu0 %v2921
    %v3192 = vpop.f32.mrf.mxu0
    %v3193 = vadd.f32 0.0, %v3192
    %v3194 = vpop.f32.mrf.mxu0
    %3195 = vmatprep.mubr.f32.mxu0 0.0
    %3196 = vmatmul.mubr.f32.gmra.mxu0 %v2922
    %v3197 = vpop.f32.mrf.mxu0
    %v3198 = vadd.f32 0.0, %v3197
    %v3199 = vpop.f32.mrf.mxu0
    %3200 = vmatprep.mubr.f32.mxu0 0.0
    %3201 = vmatmul.mubr.f32.gmra.mxu0 %v2923
    %v3202 = vpop.f32.mrf.mxu0
    %v3203 = vadd.f32 0.0, %v3202
    %v3204 = vpop.f32.mrf.mxu0
    %3205 = vmatprep.mubr.f32.mxu0 0.0
    %3206 = vmatmul.mubr.f32.gmra.mxu0 %v2924
    %v3207 = vpop.f32.mrf.mxu0
    %v3208 = vadd.f32 0.0, %v3207
    %v3209 = vpop.f32.mrf.mxu0
    %3210 = vmatprep.mubr.f32.mxu0 0.0
    %3211 = vmatmul.mubr.f32.gmra.mxu0 %v2925
    %v3212 = vpop.f32.mrf.mxu0
    %v3213 = vadd.f32 0.0, %v3212
    %v3214 = vpop.f32.mrf.mxu0
    %3215 = vdwg.mxu0
    %3216 = vmatprep.subr.mxu0 0.0
    %3217 = vmatpush1.msra.mxu0 %v3068
    %3218 = vmatprep.subr.mxu0 0.0
    %3219 = vmatpush1.msra.mxu0 %v3063
    %3220 = vmatprep.subr.mxu0 0.0
    %3221 = vmatpush1.msra.mxu0 %v3058
    %3222 = vmatprep.subr.mxu0 0.0
    %3223 = vmatpush1.msra.mxu0 %v3053
    %3224 = vmatprep.subr.mxu0 0.0
    %3225 = vmatpush1.msra.mxu0 %v3048
    %3226 = vmatprep.subr.mxu0 0.0
    %3227 = vmatpush1.msra.mxu0 %v3043
    %3228 = vmatprep.subr.mxu0 0.0
    %3229 = vmatpush1.msra.mxu0 %v3038
    %3230 = vmatprep.subr.mxu0 0.0
    %3231 = vmatpush1.msra.mxu0 %v3033
    %3232 = vmatprep.subr.mxu0 0.0
    %3233 = vmatpush1.msra.mxu0 %v3028
    %3234 = vmatprep.subr.mxu0 0.0
    %3235 = vmatpush1.msra.mxu0 %v3023
    %3236 = vmatprep.subr.mxu0 0.0
    %3237 = vmatpush1.msra.mxu0 %v3018
    %3238 = vmatprep.subr.mxu0 0.0
    %3239 = vmatpush1.msra.mxu0 %v3013
    %3240 = vmatprep.subr.mxu0 0.0
    %3241 = vmatpush1.msra.mxu0 %v3008
    %3242 = vmatprep.subr.mxu0 0.0
    %3243 = vmatpush1.msra.mxu0 %v3003
    %3244 = vmatprep.subr.mxu0 0.0
    %3245 = vmatpush1.msra.mxu0 %v2998
    %3246 = vmatprep.subr.mxu0 0.0
    %3247 = vmatpush1.msra.mxu0 %v2993
    %3248 = vmatprep.subr.mxu0 0.0
    %3249 = vmatpush2.msra.mxu0 0.0
    %3250 = vmatprep.subr.mxu0 0.0
    %3251 = vmatpush2.msra.mxu0 0.0
    %3252 = vmatprep.subr.mxu0 0.0
    %3253 = vmatpush2.msra.mxu0 0.0
    %3254 = vmatprep.subr.mxu0 0.0
    %3255 = vmatpush2.msra.mxu0 0.0
    %3256 = vmatprep.subr.mxu0 0.0
    %3257 = vmatpush2.msra.mxu0 0.0
    %3258 = vmatprep.subr.mxu0 0.0
    %3259 = vmatpush2.msra.mxu0 0.0
    %3260 = vmatprep.subr.mxu0 0.0
    %3261 = vmatpush2.msra.mxu0 0.0
    %3262 = vmatprep.subr.mxu0 0.0
    %3263 = vmatpush2.msra.mxu0 0.0
    %3264 = vmatprep.subr.mxu0 0.0
    %3265 = vmatpush2.msra.mxu0 0.0
    %3266 = vmatprep.subr.mxu0 0.0
    %3267 = vmatpush2.msra.mxu0 0.0
    %3268 = vmatprep.subr.mxu0 0.0
    %3269 = vmatpush2.msra.mxu0 0.0
    %3270 = vmatprep.subr.mxu0 0.0
    %3271 = vmatpush2.msra.mxu0 0.0
    %3272 = vmatprep.subr.mxu0 0.0
    %3273 = vmatpush2.msra.mxu0 0.0
    %3274 = vmatprep.subr.mxu0 0.0
    %3275 = vmatpush2.msra.mxu0 0.0
    %3276 = vmatprep.subr.mxu0 0.0
    %3277 = vmatpush2.msra.mxu0 0.0
    %3278 = vmatprep.subr.mxu0 0.0
    %3279 = vmatpush2.msra.mxu0 0.0
    %3280 = vmatprep.mubr.f32.mxu0 0.0
    %3281 = vmatmul.mubr.f32.gmra.mxu0 %v3138
    %v3282 = vpop.f32.mrf.mxu0
    %v3283 = vadd.f32 0.0, %v3282
    %v3284 = vpop.f32.mrf.mxu0
    %3285 = vmatprep.mubr.f32.mxu0 0.0
    %3286 = vmatmul.mubr.f32.gmra.mxu0 %v3143
    %v3287 = vpop.f32.mrf.mxu0
    %v3288 = vadd.f32 0.0, %v3287
    %v3289 = vpop.f32.mrf.mxu0
    %3290 = vmatprep.mubr.f32.mxu0 0.0
    %3291 = vmatmul.mubr.f32.gmra.mxu0 %v3148
    %v3292 = vpop.f32.mrf.mxu0
    %v3293 = vadd.f32 0.0, %v3292
    %v3294 = vpop.f32.mrf.mxu0
    %3295 = vmatprep.mubr.f32.mxu0 0.0
    %3296 = vmatmul.mubr.f32.gmra.mxu0 %v3153
    %v3297 = vpop.f32.mrf.mxu0
    %v3298 = vadd.f32 0.0, %v3297
    %v3299 = vpop.f32.mrf.mxu0
    %3300 = vmatprep.mubr.f32.mxu0 0.0
    %3301 = vmatmul.mubr.f32.gmra.mxu0 %v3158
    %v3302 = vpop.f32.mrf.mxu0
    %v3303 = vadd.f32 0.0, %v3302
    %v3304 = vpop.f32.mrf.mxu0
    %3305 = vmatprep.mubr.f32.mxu0 0.0
    %3306 = vmatmul.mubr.f32.gmra.mxu0 %v3163
    %v3307 = vpop.f32.mrf.mxu0
    %v3308 = vadd.f32 0.0, %v3307
    %v3309 = vpop.f32.mrf.mxu0
    %3310 = vmatprep.mubr.f32.mxu0 0.0
    %3311 = vmatmul.mubr.f32.gmra.mxu0 %v3168
    %v3312 = vpop.f32.mrf.mxu0
    %v3313 = vadd.f32 0.0, %v3312
    %v3314 = vpop.f32.mrf.mxu0
    %3315 = vmatprep.mubr.f32.mxu0 0.0
    %3316 = vmatmul.mubr.f32.gmra.mxu0 %v3173
    %v3317 = vpop.f32.mrf.mxu0
    %v3318 = vadd.f32 0.0, %v3317
    %v3319 = vpop.f32.mrf.mxu0
    %3320 = vmatprep.mubr.f32.mxu0 0.0
    %3321 = vmatmul.mubr.f32.gmra.mxu0 %v3178
    %v3322 = vpop.f32.mrf.mxu0
    %v3323 = vadd.f32 0.0, %v3322
    %v3324 = vpop.f32.mrf.mxu0
    %3325 = vmatprep.mubr.f32.mxu0 0.0
    %3326 = vmatmul.mubr.f32.gmra.mxu0 %v3183
    %v3327 = vpop.f32.mrf.mxu0
    %v3328 = vadd.f32 0.0, %v3327
    %v3329 = vpop.f32.mrf.mxu0
    %3330 = vmatprep.mubr.f32.mxu0 0.0
    %3331 = vmatmul.mubr.f32.gmra.mxu0 %v3188
    %v3332 = vpop.f32.mrf.mxu0
    %v3333 = vadd.f32 0.0, %v3332
    %v3334 = vpop.f32.mrf.mxu0
    %3335 = vmatprep.mubr.f32.mxu0 0.0
    %3336 = vmatmul.mubr.f32.gmra.mxu0 %v3193
    %v3337 = vpop.f32.mrf.mxu0
    %v3338 = vadd.f32 0.0, %v3337
    %v3339 = vpop.f32.mrf.mxu0
    %3340 = vmatprep.mubr.f32.mxu0 0.0
    %3341 = vmatmul.mubr.f32.gmra.mxu0 %v3198
    %v3342 = vpop.f32.mrf.mxu0
    %v3343 = vadd.f32 0.0, %v3342
    %v3344 = vpop.f32.mrf.mxu0
    %3345 = vmatprep.mubr.f32.mxu0 0.0
    %3346 = vmatmul.mubr.f32.gmra.mxu0 %v3203
    %v3347 = vpop.f32.mrf.mxu0
    %v3348 = vadd.f32 0.0, %v3347
    %v3349 = vpop.f32.mrf.mxu0
    %3350 = vmatprep.mubr.f32.mxu0 0.0
    %3351 = vmatmul.mubr.f32.gmra.mxu0 %v3208
    %v3352 = vpop.f32.mrf.mxu0
    %v3353 = vadd.f32 0.0, %v3352
    %v3354 = vpop.f32.mrf.mxu0
    %3355 = vmatprep.mubr.f32.mxu0 0.0
    %3356 = vmatmul.mubr.f32.gmra.mxu0 %v3213
    %v3357 = vpop.f32.mrf.mxu0
    %v3358 = vadd.f32 0.0, %v3357
    %v3359 = vpop.f32.mrf.mxu0
    %3360 = vdwg.mxu0
    %v3361 = vmul.f32 %v3283, 0.5
    %v3362 = vmul.f32 %v3288, 0.5
    %v3363 = vmul.f32 %v3293, 0.5
    %v3364 = vmul.f32 %v3298, 0.5
    %v3365 = vmul.f32 %v3303, 0.5
    %v3366 = vmul.f32 %v3308, 0.5
    %v3367 = vmul.f32 %v3313, 0.5
    %v3368 = vmul.f32 %v3318, 0.5
    %v3369 = vmul.f32 %v3323, 0.5
    %v3370 = vmul.f32 %v3328, 0.5
    %v3371 = vmul.f32 %v3333, 0.5
    %v3372 = vmul.f32 %v3338, 0.5
    %v3373 = vmul.f32 %v3343, 0.5
    %v3374 = vmul.f32 %v3348, 0.5
    %v3375 = vmul.f32 %v3353, 0.5
    %v3376 = vmul.f32 %v3358, 0.5
    %v3377 = vsub.f32 %v398, %v3361
    %v3378 = vsub.f32 %v399, %v3362
    %v3379 = vsub.f32 %v400, %v3363
    %v3380 = vsub.f32 %v401, %v3364
    %v3381 = vsub.f32 %v402, %v3365
    %v3382 = vsub.f32 %v403, %v3366
    %v3383 = vsub.f32 %v404, %v3367
    %v3384 = vsub.f32 %v405, %v3368
    %v3385 = vsub.f32 %v406, %v3369
    %v3386 = vsub.f32 %v407, %v3370
    %v3387 = vsub.f32 %v408, %v3371
    %v3388 = vsub.f32 %v409, %v3372
    %v3389 = vsub.f32 %v410, %v3373
    %v3390 = vsub.f32 %v411, %v3374
    %v3391 = vsub.f32 %v412, %v3375
    %v3392 = vsub.f32 %v413, %v3376
    %3393 = vmatprep.subr.mxu0 0.0
    %3394 = vmatpush1.msra.mxu0 %v3392
    %3395 = vmatprep.subr.mxu0 0.0
    %3396 = vmatpush1.msra.mxu0 %v3391
    %3397 = vmatprep.subr.mxu0 0.0
    %3398 = vmatpush1.msra.mxu0 %v3390
    %3399 = vmatprep.subr.mxu0 0.0
    %3400 = vmatpush1.msra.mxu0 %v3389
    %3401 = vmatprep.subr.mxu0 0.0
    %3402 = vmatpush1.msra.mxu0 %v3388
    %3403 = vmatprep.subr.mxu0 0.0
    %3404 = vmatpush1.msra.mxu0 %v3387
    %3405 = vmatprep.subr.mxu0 0.0
    %3406 = vmatpush1.msra.mxu0 %v3386
    %3407 = vmatprep.subr.mxu0 0.0
    %3408 = vmatpush1.msra.mxu0 %v3385
    %3409 = vmatprep.subr.mxu0 0.0
    %3410 = vmatpush1.msra.mxu0 %v3384
    %3411 = vmatprep.subr.mxu0 0.0
    %3412 = vmatpush1.msra.mxu0 %v3383
    %3413 = vmatprep.subr.mxu0 0.0
    %3414 = vmatpush1.msra.mxu0 %v3382
    %3415 = vmatprep.subr.mxu0 0.0
    %3416 = vmatpush1.msra.mxu0 %v3381
    %3417 = vmatprep.subr.mxu0 0.0
    %3418 = vmatpush1.msra.mxu0 %v3380
    %3419 = vmatprep.subr.mxu0 0.0
    %3420 = vmatpush1.msra.mxu0 %v3379
    %3421 = vmatprep.subr.mxu0 0.0
    %3422 = vmatpush1.msra.mxu0 %v3378
    %3423 = vmatprep.subr.mxu0 0.0
    %3424 = vmatpush1.msra.mxu0 %v3377
    %3425 = vmatprep.subr.mxu0 0.0
    %3426 = vmatpush2.msra.mxu0 0.0
    %3427 = vmatprep.subr.mxu0 0.0
    %3428 = vmatpush2.msra.mxu0 0.0
    %3429 = vmatprep.subr.mxu0 0.0
    %3430 = vmatpush2.msra.mxu0 0.0
    %3431 = vmatprep.subr.mxu0 0.0
    %3432 = vmatpush2.msra.mxu0 0.0
    %3433 = vmatprep.subr.mxu0 0.0
    %3434 = vmatpush2.msra.mxu0 0.0
    %3435 = vmatprep.subr.mxu0 0.0
    %3436 = vmatpush2.msra.mxu0 0.0
    %3437 = vmatprep.subr.mxu0 0.0
    %3438 = vmatpush2.msra.mxu0 0.0
    %3439 = vmatprep.subr.mxu0 0.0
    %3440 = vmatpush2.msra.mxu0 0.0
    %3441 = vmatprep.subr.mxu0 0.0
    %3442 = vmatpush2.msra.mxu0 0.0
    %3443 = vmatprep.subr.mxu0 0.0
    %3444 = vmatpush2.msra.mxu0 0.0
    %3445 = vmatprep.subr.mxu0 0.0
    %3446 = vmatpush2.msra.mxu0 0.0
    %3447 = vmatprep.subr.mxu0 0.0
    %3448 = vmatpush2.msra.mxu0 0.0
    %3449 = vmatprep.subr.mxu0 0.0
    %3450 = vmatpush2.msra.mxu0 0.0
    %3451 = vmatprep.subr.mxu0 0.0
    %3452 = vmatpush2.msra.mxu0 0.0
    %3453 = vmatprep.subr.mxu0 0.0
    %3454 = vmatpush2.msra.mxu0 0.0
    %3455 = vmatprep.subr.mxu0 0.0
    %3456 = vmatpush2.msra.mxu0 0.0
    %3457 = vmatprep.mubr.f32.mxu0 0.0
    %3458 = vmatmul.mubr.f32.gmra.mxu0 %v2993
    %v3459 = vpop.f32.mrf.mxu0
    %v3460 = vadd.f32 0.0, %v3459
    %v3461 = vpop.f32.mrf.mxu0
    %3462 = vmatprep.mubr.f32.mxu0 0.0
    %3463 = vmatmul.mubr.f32.gmra.mxu0 %v2998
    %v3464 = vpop.f32.mrf.mxu0
    %v3465 = vadd.f32 0.0, %v3464
    %v3466 = vpop.f32.mrf.mxu0
    %3467 = vmatprep.mubr.f32.mxu0 0.0
    %3468 = vmatmul.mubr.f32.gmra.mxu0 %v3003
    %v3469 = vpop.f32.mrf.mxu0
    %v3470 = vadd.f32 0.0, %v3469
    %v3471 = vpop.f32.mrf.mxu0
    %3472 = vmatprep.mubr.f32.mxu0 0.0
    %3473 = vmatmul.mubr.f32.gmra.mxu0 %v3008
    %v3474 = vpop.f32.mrf.mxu0
    %v3475 = vadd.f32 0.0, %v3474
    %v3476 = vpop.f32.mrf.mxu0
    %3477 = vmatprep.mubr.f32.mxu0 0.0
    %3478 = vmatmul.mubr.f32.gmra.mxu0 %v3013
    %v3479 = vpop.f32.mrf.mxu0
    %v3480 = vadd.f32 0.0, %v3479
    %v3481 = vpop.f32.mrf.mxu0
    %3482 = vmatprep.mubr.f32.mxu0 0.0
    %3483 = vmatmul.mubr.f32.gmra.mxu0 %v3018
    %v3484 = vpop.f32.mrf.mxu0
    %v3485 = vadd.f32 0.0, %v3484
    %v3486 = vpop.f32.mrf.mxu0
    %3487 = vmatprep.mubr.f32.mxu0 0.0
    %3488 = vmatmul.mubr.f32.gmra.mxu0 %v3023
    %v3489 = vpop.f32.mrf.mxu0
    %v3490 = vadd.f32 0.0, %v3489
    %v3491 = vpop.f32.mrf.mxu0
    %3492 = vmatprep.mubr.f32.mxu0 0.0
    %3493 = vmatmul.mubr.f32.gmra.mxu0 %v3028
    %v3494 = vpop.f32.mrf.mxu0
    %v3495 = vadd.f32 0.0, %v3494
    %v3496 = vpop.f32.mrf.mxu0
    %3497 = vmatprep.mubr.f32.mxu0 0.0
    %3498 = vmatmul.mubr.f32.gmra.mxu0 %v3033
    %v3499 = vpop.f32.mrf.mxu0
    %v3500 = vadd.f32 0.0, %v3499
    %v3501 = vpop.f32.mrf.mxu0
    %3502 = vmatprep.mubr.f32.mxu0 0.0
    %3503 = vmatmul.mubr.f32.gmra.mxu0 %v3038
    %v3504 = vpop.f32.mrf.mxu0
    %v3505 = vadd.f32 0.0, %v3504
    %v3506 = vpop.f32.mrf.mxu0
    %3507 = vmatprep.mubr.f32.mxu0 0.0
    %3508 = vmatmul.mubr.f32.gmra.mxu0 %v3043
    %v3509 = vpop.f32.mrf.mxu0
    %v3510 = vadd.f32 0.0, %v3509
    %v3511 = vpop.f32.mrf.mxu0
    %3512 = vmatprep.mubr.f32.mxu0 0.0
    %3513 = vmatmul.mubr.f32.gmra.mxu0 %v3048
    %v3514 = vpop.f32.mrf.mxu0
    %v3515 = vadd.f32 0.0, %v3514
    %v3516 = vpop.f32.mrf.mxu0
    %3517 = vmatprep.mubr.f32.mxu0 0.0
    %3518 = vmatmul.mubr.f32.gmra.mxu0 %v3053
    %v3519 = vpop.f32.mrf.mxu0
    %v3520 = vadd.f32 0.0, %v3519
    %v3521 = vpop.f32.mrf.mxu0
    %3522 = vmatprep.mubr.f32.mxu0 0.0
    %3523 = vmatmul.mubr.f32.gmra.mxu0 %v3058
    %v3524 = vpop.f32.mrf.mxu0
    %v3525 = vadd.f32 0.0, %v3524
    %v3526 = vpop.f32.mrf.mxu0
    %3527 = vmatprep.mubr.f32.mxu0 0.0
    %3528 = vmatmul.mubr.f32.gmra.mxu0 %v3063
    %v3529 = vpop.f32.mrf.mxu0
    %v3530 = vadd.f32 0.0, %v3529
    %v3531 = vpop.f32.mrf.mxu0
    %3532 = vmatprep.mubr.f32.mxu0 0.0
    %3533 = vmatmul.mubr.f32.gmra.mxu0 %v3068
    %v3534 = vpop.f32.mrf.mxu0
    %v3535 = vadd.f32 0.0, %v3534
    %v3536 = vpop.f32.mrf.mxu0
    %3537 = vdwg.mxu0
    %3538 = vmatprep.subr.mxu0 0.0
    %3539 = vmatpush1.msra.mxu0 %v3213
    %3540 = vmatprep.subr.mxu0 0.0
    %3541 = vmatpush1.msra.mxu0 %v3208
    %3542 = vmatprep.subr.mxu0 0.0
    %3543 = vmatpush1.msra.mxu0 %v3203
    %3544 = vmatprep.subr.mxu0 0.0
    %3545 = vmatpush1.msra.mxu0 %v3198
    %3546 = vmatprep.subr.mxu0 0.0
    %3547 = vmatpush1.msra.mxu0 %v3193
    %3548 = vmatprep.subr.mxu0 0.0
    %3549 = vmatpush1.msra.mxu0 %v3188
    %3550 = vmatprep.subr.mxu0 0.0
    %3551 = vmatpush1.msra.mxu0 %v3183
    %3552 = vmatprep.subr.mxu0 0.0
    %3553 = vmatpush1.msra.mxu0 %v3178
    %3554 = vmatprep.subr.mxu0 0.0
    %3555 = vmatpush1.msra.mxu0 %v3173
    %3556 = vmatprep.subr.mxu0 0.0
    %3557 = vmatpush1.msra.mxu0 %v3168
    %3558 = vmatprep.subr.mxu0 0.0
    %3559 = vmatpush1.msra.mxu0 %v3163
    %3560 = vmatprep.subr.mxu0 0.0
    %3561 = vmatpush1.msra.mxu0 %v3158
    %3562 = vmatprep.subr.mxu0 0.0
    %3563 = vmatpush1.msra.mxu0 %v3153
    %3564 = vmatprep.subr.mxu0 0.0
    %3565 = vmatpush1.msra.mxu0 %v3148
    %3566 = vmatprep.subr.mxu0 0.0
    %3567 = vmatpush1.msra.mxu0 %v3143
    %3568 = vmatprep.subr.mxu0 0.0
    %3569 = vmatpush1.msra.mxu0 %v3138
    %3570 = vmatprep.subr.mxu0 0.0
    %3571 = vmatpush2.msra.mxu0 0.0
    %3572 = vmatprep.subr.mxu0 0.0
    %3573 = vmatpush2.msra.mxu0 0.0
    %3574 = vmatprep.subr.mxu0 0.0
    %3575 = vmatpush2.msra.mxu0 0.0
    %3576 = vmatprep.subr.mxu0 0.0
    %3577 = vmatpush2.msra.mxu0 0.0
    %3578 = vmatprep.subr.mxu0 0.0
    %3579 = vmatpush2.msra.mxu0 0.0
    %3580 = vmatprep.subr.mxu0 0.0
    %3581 = vmatpush2.msra.mxu0 0.0
    %3582 = vmatprep.subr.mxu0 0.0
    %3583 = vmatpush2.msra.mxu0 0.0
    %3584 = vmatprep.subr.mxu0 0.0
    %3585 = vmatpush2.msra.mxu0 0.0
    %3586 = vmatprep.subr.mxu0 0.0
    %3587 = vmatpush2.msra.mxu0 0.0
    %3588 = vmatprep.subr.mxu0 0.0
    %3589 = vmatpush2.msra.mxu0 0.0
    %3590 = vmatprep.subr.mxu0 0.0
    %3591 = vmatpush2.msra.mxu0 0.0
    %3592 = vmatprep.subr.mxu0 0.0
    %3593 = vmatpush2.msra.mxu0 0.0
    %3594 = vmatprep.subr.mxu0 0.0
    %3595 = vmatpush2.msra.mxu0 0.0
    %3596 = vmatprep.subr.mxu0 0.0
    %3597 = vmatpush2.msra.mxu0 0.0
    %3598 = vmatprep.subr.mxu0 0.0
    %3599 = vmatpush2.msra.mxu0 0.0
    %3600 = vmatprep.subr.mxu0 0.0
    %3601 = vmatpush2.msra.mxu0 0.0
    %3602 = vmatprep.mubr.f32.mxu0 0.0
    %3603 = vmatmul.mubr.f32.gmra.mxu0 %v3377
    %v3604 = vpop.f32.mrf.mxu0
    %v3605 = vadd.f32 0.0, %v3604
    %v3606 = vpop.f32.mrf.mxu0
    %3607 = vmatprep.mubr.f32.mxu0 0.0
    %3608 = vmatmul.mubr.f32.gmra.mxu0 %v3378
    %v3609 = vpop.f32.mrf.mxu0
    %v3610 = vadd.f32 0.0, %v3609
    %v3611 = vpop.f32.mrf.mxu0
    %3612 = vmatprep.mubr.f32.mxu0 0.0
    %3613 = vmatmul.mubr.f32.gmra.mxu0 %v3379
    %v3614 = vpop.f32.mrf.mxu0
    %v3615 = vadd.f32 0.0, %v3614
    %v3616 = vpop.f32.mrf.mxu0
    %3617 = vmatprep.mubr.f32.mxu0 0.0
    %3618 = vmatmul.mubr.f32.gmra.mxu0 %v3380
    %v3619 = vpop.f32.mrf.mxu0
    %v3620 = vadd.f32 0.0, %v3619
    %v3621 = vpop.f32.mrf.mxu0
    %3622 = vmatprep.mubr.f32.mxu0 0.0
    %3623 = vmatmul.mubr.f32.gmra.mxu0 %v3381
    %v3624 = vpop.f32.mrf.mxu0
    %v3625 = vadd.f32 0.0, %v3624
    %v3626 = vpop.f32.mrf.mxu0
    %3627 = vmatprep.mubr.f32.mxu0 0.0
    %3628 = vmatmul.mubr.f32.gmra.mxu0 %v3382
    %v3629 = vpop.f32.mrf.mxu0
    %v3630 = vadd.f32 0.0, %v3629
    %v3631 = vpop.f32.mrf.mxu0
    %3632 = vmatprep.mubr.f32.mxu0 0.0
    %3633 = vmatmul.mubr.f32.gmra.mxu0 %v3383
    %v3634 = vpop.f32.mrf.mxu0
    %v3635 = vadd.f32 0.0, %v3634
    %v3636 = vpop.f32.mrf.mxu0
    %3637 = vmatprep.mubr.f32.mxu0 0.0
    %3638 = vmatmul.mubr.f32.gmra.mxu0 %v3384
    %v3639 = vpop.f32.mrf.mxu0
    %v3640 = vadd.f32 0.0, %v3639
    %v3641 = vpop.f32.mrf.mxu0
    %3642 = vmatprep.mubr.f32.mxu0 0.0
    %3643 = vmatmul.mubr.f32.gmra.mxu0 %v3385
    %v3644 = vpop.f32.mrf.mxu0
    %v3645 = vadd.f32 0.0, %v3644
    %v3646 = vpop.f32.mrf.mxu0
    %3647 = vmatprep.mubr.f32.mxu0 0.0
    %3648 = vmatmul.mubr.f32.gmra.mxu0 %v3386
    %v3649 = vpop.f32.mrf.mxu0
    %v3650 = vadd.f32 0.0, %v3649
    %v3651 = vpop.f32.mrf.mxu0
    %3652 = vmatprep.mubr.f32.mxu0 0.0
    %3653 = vmatmul.mubr.f32.gmra.mxu0 %v3387
    %v3654 = vpop.f32.mrf.mxu0
    %v3655 = vadd.f32 0.0, %v3654
    %v3656 = vpop.f32.mrf.mxu0
    %3657 = vmatprep.mubr.f32.mxu0 0.0
    %3658 = vmatmul.mubr.f32.gmra.mxu0 %v3388
    %v3659 = vpop.f32.mrf.mxu0
    %v3660 = vadd.f32 0.0, %v3659
    %v3661 = vpop.f32.mrf.mxu0
    %3662 = vmatprep.mubr.f32.mxu0 0.0
    %3663 = vmatmul.mubr.f32.gmra.mxu0 %v3389
    %v3664 = vpop.f32.mrf.mxu0
    %v3665 = vadd.f32 0.0, %v3664
    %v3666 = vpop.f32.mrf.mxu0
    %3667 = vmatprep.mubr.f32.mxu0 0.0
    %3668 = vmatmul.mubr.f32.gmra.mxu0 %v3390
    %v3669 = vpop.f32.mrf.mxu0
    %v3670 = vadd.f32 0.0, %v3669
    %v3671 = vpop.f32.mrf.mxu0
    %3672 = vmatprep.mubr.f32.mxu0 0.0
    %3673 = vmatmul.mubr.f32.gmra.mxu0 %v3391
    %v3674 = vpop.f32.mrf.mxu0
    %v3675 = vadd.f32 0.0, %v3674
    %v3676 = vpop.f32.mrf.mxu0
    %3677 = vmatprep.mubr.f32.mxu0 0.0
    %3678 = vmatmul.mubr.f32.gmra.mxu0 %v3392
    %v3679 = vpop.f32.mrf.mxu0
    %v3680 = vadd.f32 0.0, %v3679
    %v3681 = vpop.f32.mrf.mxu0
    %3682 = vdwg.mxu0
    %3683 = vmatprep.subr.mxu0 0.0
    %3684 = vmatpush1.msra.mxu0 %v3535
    %3685 = vmatprep.subr.mxu0 0.0
    %3686 = vmatpush1.msra.mxu0 %v3530
    %3687 = vmatprep.subr.mxu0 0.0
    %3688 = vmatpush1.msra.mxu0 %v3525
    %3689 = vmatprep.subr.mxu0 0.0
    %3690 = vmatpush1.msra.mxu0 %v3520
    %3691 = vmatprep.subr.mxu0 0.0
    %3692 = vmatpush1.msra.mxu0 %v3515
    %3693 = vmatprep.subr.mxu0 0.0
    %3694 = vmatpush1.msra.mxu0 %v3510
    %3695 = vmatprep.subr.mxu0 0.0
    %3696 = vmatpush1.msra.mxu0 %v3505
    %3697 = vmatprep.subr.mxu0 0.0
    %3698 = vmatpush1.msra.mxu0 %v3500
    %3699 = vmatprep.subr.mxu0 0.0
    %3700 = vmatpush1.msra.mxu0 %v3495
    %3701 = vmatprep.subr.mxu0 0.0
    %3702 = vmatpush1.msra.mxu0 %v3490
    %3703 = vmatprep.subr.mxu0 0.0
    %3704 = vmatpush1.msra.mxu0 %v3485
    %3705 = vmatprep.subr.mxu0 0.0
    %3706 = vmatpush1.msra.mxu0 %v3480
    %3707 = vmatprep.subr.mxu0 0.0
    %3708 = vmatpush1.msra.mxu0 %v3475
    %3709 = vmatprep.subr.mxu0 0.0
    %3710 = vmatpush1.msra.mxu0 %v3470
    %3711 = vmatprep.subr.mxu0 0.0
    %3712 = vmatpush1.msra.mxu0 %v3465
    %3713 = vmatprep.subr.mxu0 0.0
    %3714 = vmatpush1.msra.mxu0 %v3460
    %3715 = vmatprep.subr.mxu0 0.0
    %3716 = vmatpush2.msra.mxu0 0.0
    %3717 = vmatprep.subr.mxu0 0.0
    %3718 = vmatpush2.msra.mxu0 0.0
    %3719 = vmatprep.subr.mxu0 0.0
    %3720 = vmatpush2.msra.mxu0 0.0
    %3721 = vmatprep.subr.mxu0 0.0
    %3722 = vmatpush2.msra.mxu0 0.0
    %3723 = vmatprep.subr.mxu0 0.0
    %3724 = vmatpush2.msra.mxu0 0.0
    %3725 = vmatprep.subr.mxu0 0.0
    %3726 = vmatpush2.msra.mxu0 0.0
    %3727 = vmatprep.subr.mxu0 0.0
    %3728 = vmatpush2.msra.mxu0 0.0
    %3729 = vmatprep.subr.mxu0 0.0
    %3730 = vmatpush2.msra.mxu0 0.0
    %3731 = vmatprep.subr.mxu0 0.0
    %3732 = vmatpush2.msra.mxu0 0.0
    %3733 = vmatprep.subr.mxu0 0.0
    %3734 = vmatpush2.msra.mxu0 0.0
    %3735 = vmatprep.subr.mxu0 0.0
    %3736 = vmatpush2.msra.mxu0 0.0
    %3737 = vmatprep.subr.mxu0 0.0
    %3738 = vmatpush2.msra.mxu0 0.0
    %3739 = vmatprep.subr.mxu0 0.0
    %3740 = vmatpush2.msra.mxu0 0.0
    %3741 = vmatprep.subr.mxu0 0.0
    %3742 = vmatpush2.msra.mxu0 0.0
    %3743 = vmatprep.subr.mxu0 0.0
    %3744 = vmatpush2.msra.mxu0 0.0
    %3745 = vmatprep.subr.mxu0 0.0
    %3746 = vmatpush2.msra.mxu0 0.0
    %3747 = vmatprep.mubr.f32.mxu0 0.0
    %3748 = vmatmul.mubr.f32.gmra.mxu0 %v3605
    %v3749 = vpop.f32.mrf.mxu0
    %v3750 = vadd.f32 0.0, %v3749
    %v3751 = vpop.f32.mrf.mxu0
    %3752 = vmatprep.mubr.f32.mxu0 0.0
    %3753 = vmatmul.mubr.f32.gmra.mxu0 %v3610
    %v3754 = vpop.f32.mrf.mxu0
    %v3755 = vadd.f32 0.0, %v3754
    %v3756 = vpop.f32.mrf.mxu0
    %3757 = vmatprep.mubr.f32.mxu0 0.0
    %3758 = vmatmul.mubr.f32.gmra.mxu0 %v3615
    %v3759 = vpop.f32.mrf.mxu0
    %v3760 = vadd.f32 0.0, %v3759
    %v3761 = vpop.f32.mrf.mxu0
    %3762 = vmatprep.mubr.f32.mxu0 0.0
    %3763 = vmatmul.mubr.f32.gmra.mxu0 %v3620
    %v3764 = vpop.f32.mrf.mxu0
    %v3765 = vadd.f32 0.0, %v3764
    %v3766 = vpop.f32.mrf.mxu0
    %3767 = vmatprep.mubr.f32.mxu0 0.0
    %3768 = vmatmul.mubr.f32.gmra.mxu0 %v3625
    %v3769 = vpop.f32.mrf.mxu0
    %v3770 = vadd.f32 0.0, %v3769
    %v3771 = vpop.f32.mrf.mxu0
    %3772 = vmatprep.mubr.f32.mxu0 0.0
    %3773 = vmatmul.mubr.f32.gmra.mxu0 %v3630
    %v3774 = vpop.f32.mrf.mxu0
    %v3775 = vadd.f32 0.0, %v3774
    %v3776 = vpop.f32.mrf.mxu0
    %3777 = vmatprep.mubr.f32.mxu0 0.0
    %3778 = vmatmul.mubr.f32.gmra.mxu0 %v3635
    %v3779 = vpop.f32.mrf.mxu0
    %v3780 = vadd.f32 0.0, %v3779
    %v3781 = vpop.f32.mrf.mxu0
    %3782 = vmatprep.mubr.f32.mxu0 0.0
    %3783 = vmatmul.mubr.f32.gmra.mxu0 %v3640
    %v3784 = vpop.f32.mrf.mxu0
    %v3785 = vadd.f32 0.0, %v3784
    %v3786 = vpop.f32.mrf.mxu0
    %3787 = vmatprep.mubr.f32.mxu0 0.0
    %3788 = vmatmul.mubr.f32.gmra.mxu0 %v3645
    %v3789 = vpop.f32.mrf.mxu0
    %v3790 = vadd.f32 0.0, %v3789
    %v3791 = vpop.f32.mrf.mxu0
    %3792 = vmatprep.mubr.f32.mxu0 0.0
    %3793 = vmatmul.mubr.f32.gmra.mxu0 %v3650
    %v3794 = vpop.f32.mrf.mxu0
    %v3795 = vadd.f32 0.0, %v3794
    %v3796 = vpop.f32.mrf.mxu0
    %3797 = vmatprep.mubr.f32.mxu0 0.0
    %3798 = vmatmul.mubr.f32.gmra.mxu0 %v3655
    %v3799 = vpop.f32.mrf.mxu0
    %v3800 = vadd.f32 0.0, %v3799
    %v3801 = vpop.f32.mrf.mxu0
    %3802 = vmatprep.mubr.f32.mxu0 0.0
    %3803 = vmatmul.mubr.f32.gmra.mxu0 %v3660
    %v3804 = vpop.f32.mrf.mxu0
    %v3805 = vadd.f32 0.0, %v3804
    %v3806 = vpop.f32.mrf.mxu0
    %3807 = vmatprep.mubr.f32.mxu0 0.0
    %3808 = vmatmul.mubr.f32.gmra.mxu0 %v3665
    %v3809 = vpop.f32.mrf.mxu0
    %v3810 = vadd.f32 0.0, %v3809
    %v3811 = vpop.f32.mrf.mxu0
    %3812 = vmatprep.mubr.f32.mxu0 0.0
    %3813 = vmatmul.mubr.f32.gmra.mxu0 %v3670
    %v3814 = vpop.f32.mrf.mxu0
    %v3815 = vadd.f32 0.0, %v3814
    %v3816 = vpop.f32.mrf.mxu0
    %3817 = vmatprep.mubr.f32.mxu0 0.0
    %3818 = vmatmul.mubr.f32.gmra.mxu0 %v3675
    %v3819 = vpop.f32.mrf.mxu0
    %v3820 = vadd.f32 0.0, %v3819
    %v3821 = vpop.f32.mrf.mxu0
    %3822 = vmatprep.mubr.f32.mxu0 0.0
    %3823 = vmatmul.mubr.f32.gmra.mxu0 %v3680
    %v3824 = vpop.f32.mrf.mxu0
    %v3825 = vadd.f32 0.0, %v3824
    %v3826 = vpop.f32.mrf.mxu0
    %3827 = vdwg.mxu0
    %v3828 = vmul.f32 %v3750, 0.5
    %v3829 = vmul.f32 %v3755, 0.5
    %v3830 = vmul.f32 %v3760, 0.5
    %v3831 = vmul.f32 %v3765, 0.5
    %v3832 = vmul.f32 %v3770, 0.5
    %v3833 = vmul.f32 %v3775, 0.5
    %v3834 = vmul.f32 %v3780, 0.5
    %v3835 = vmul.f32 %v3785, 0.5
    %v3836 = vmul.f32 %v3790, 0.5
    %v3837 = vmul.f32 %v3795, 0.5
    %v3838 = vmul.f32 %v3800, 0.5
    %v3839 = vmul.f32 %v3805, 0.5
    %v3840 = vmul.f32 %v3810, 0.5
    %v3841 = vmul.f32 %v3815, 0.5
    %v3842 = vmul.f32 %v3820, 0.5
    %v3843 = vmul.f32 %v3825, 0.5
    %v3844 = vsub.f32 %v398, %v3828
    %v3845 = vsub.f32 %v399, %v3829
    %v3846 = vsub.f32 %v400, %v3830
    %v3847 = vsub.f32 %v401, %v3831
    %v3848 = vsub.f32 %v402, %v3832
    %v3849 = vsub.f32 %v403, %v3833
    %v3850 = vsub.f32 %v404, %v3834
    %v3851 = vsub.f32 %v405, %v3835
    %v3852 = vsub.f32 %v406, %v3836
    %v3853 = vsub.f32 %v407, %v3837
    %v3854 = vsub.f32 %v408, %v3838
    %v3855 = vsub.f32 %v409, %v3839
    %v3856 = vsub.f32 %v410, %v3840
    %v3857 = vsub.f32 %v411, %v3841
    %v3858 = vsub.f32 %v412, %v3842
    %v3859 = vsub.f32 %v413, %v3843
    %3860 = vmatprep.subr.mxu0 0.0
    %3861 = vmatpush1.msra.mxu0 %v3859
    %3862 = vmatprep.subr.mxu0 0.0
    %3863 = vmatpush1.msra.mxu0 %v3858
    %3864 = vmatprep.subr.mxu0 0.0
    %3865 = vmatpush1.msra.mxu0 %v3857
    %3866 = vmatprep.subr.mxu0 0.0
    %3867 = vmatpush1.msra.mxu0 %v3856
    %3868 = vmatprep.subr.mxu0 0.0
    %3869 = vmatpush1.msra.mxu0 %v3855
    %3870 = vmatprep.subr.mxu0 0.0
    %3871 = vmatpush1.msra.mxu0 %v3854
    %3872 = vmatprep.subr.mxu0 0.0
    %3873 = vmatpush1.msra.mxu0 %v3853
    %3874 = vmatprep.subr.mxu0 0.0
    %3875 = vmatpush1.msra.mxu0 %v3852
    %3876 = vmatprep.subr.mxu0 0.0
    %3877 = vmatpush1.msra.mxu0 %v3851
    %3878 = vmatprep.subr.mxu0 0.0
    %3879 = vmatpush1.msra.mxu0 %v3850
    %3880 = vmatprep.subr.mxu0 0.0
    %3881 = vmatpush1.msra.mxu0 %v3849
    %3882 = vmatprep.subr.mxu0 0.0
    %3883 = vmatpush1.msra.mxu0 %v3848
    %3884 = vmatprep.subr.mxu0 0.0
    %3885 = vmatpush1.msra.mxu0 %v3847
    %3886 = vmatprep.subr.mxu0 0.0
    %3887 = vmatpush1.msra.mxu0 %v3846
    %3888 = vmatprep.subr.mxu0 0.0
    %3889 = vmatpush1.msra.mxu0 %v3845
    %3890 = vmatprep.subr.mxu0 0.0
    %3891 = vmatpush1.msra.mxu0 %v3844
    %3892 = vmatprep.subr.mxu0 0.0
    %3893 = vmatpush2.msra.mxu0 0.0
    %3894 = vmatprep.subr.mxu0 0.0
    %3895 = vmatpush2.msra.mxu0 0.0
    %3896 = vmatprep.subr.mxu0 0.0
    %3897 = vmatpush2.msra.mxu0 0.0
    %3898 = vmatprep.subr.mxu0 0.0
    %3899 = vmatpush2.msra.mxu0 0.0
    %3900 = vmatprep.subr.mxu0 0.0
    %3901 = vmatpush2.msra.mxu0 0.0
    %3902 = vmatprep.subr.mxu0 0.0
    %3903 = vmatpush2.msra.mxu0 0.0
    %3904 = vmatprep.subr.mxu0 0.0
    %3905 = vmatpush2.msra.mxu0 0.0
    %3906 = vmatprep.subr.mxu0 0.0
    %3907 = vmatpush2.msra.mxu0 0.0
    %3908 = vmatprep.subr.mxu0 0.0
    %3909 = vmatpush2.msra.mxu0 0.0
    %3910 = vmatprep.subr.mxu0 0.0
    %3911 = vmatpush2.msra.mxu0 0.0
    %3912 = vmatprep.subr.mxu0 0.0
    %3913 = vmatpush2.msra.mxu0 0.0
    %3914 = vmatprep.subr.mxu0 0.0
    %3915 = vmatpush2.msra.mxu0 0.0
    %3916 = vmatprep.subr.mxu0 0.0
    %3917 = vmatpush2.msra.mxu0 0.0
    %3918 = vmatprep.subr.mxu0 0.0
    %3919 = vmatpush2.msra.mxu0 0.0
    %3920 = vmatprep.subr.mxu0 0.0
    %3921 = vmatpush2.msra.mxu0 0.0
    %3922 = vmatprep.subr.mxu0 0.0
    %3923 = vmatpush2.msra.mxu0 0.0
    %3924 = vmatprep.mubr.f32.mxu0 0.0
    %3925 = vmatmul.mubr.f32.gmra.mxu0 %v3460
    %v3926 = vpop.f32.mrf.mxu0
    %v3927 = vadd.f32 0.0, %v3926
    %v3928 = vpop.f32.mrf.mxu0
    %3929 = vmatprep.mubr.f32.mxu0 0.0
    %3930 = vmatmul.mubr.f32.gmra.mxu0 %v3465
    %v3931 = vpop.f32.mrf.mxu0
    %v3932 = vadd.f32 0.0, %v3931
    %v3933 = vpop.f32.mrf.mxu0
    %3934 = vmatprep.mubr.f32.mxu0 0.0
    %3935 = vmatmul.mubr.f32.gmra.mxu0 %v3470
    %v3936 = vpop.f32.mrf.mxu0
    %v3937 = vadd.f32 0.0, %v3936
    %v3938 = vpop.f32.mrf.mxu0
    %3939 = vmatprep.mubr.f32.mxu0 0.0
    %3940 = vmatmul.mubr.f32.gmra.mxu0 %v3475
    %v3941 = vpop.f32.mrf.mxu0
    %v3942 = vadd.f32 0.0, %v3941
    %v3943 = vpop.f32.mrf.mxu0
    %3944 = vmatprep.mubr.f32.mxu0 0.0
    %3945 = vmatmul.mubr.f32.gmra.mxu0 %v3480
    %v3946 = vpop.f32.mrf.mxu0
    %v3947 = vadd.f32 0.0, %v3946
    %v3948 = vpop.f32.mrf.mxu0
    %3949 = vmatprep.mubr.f32.mxu0 0.0
    %3950 = vmatmul.mubr.f32.gmra.mxu0 %v3485
    %v3951 = vpop.f32.mrf.mxu0
    %v3952 = vadd.f32 0.0, %v3951
    %v3953 = vpop.f32.mrf.mxu0
    %3954 = vmatprep.mubr.f32.mxu0 0.0
    %3955 = vmatmul.mubr.f32.gmra.mxu0 %v3490
    %v3956 = vpop.f32.mrf.mxu0
    %v3957 = vadd.f32 0.0, %v3956
    %v3958 = vpop.f32.mrf.mxu0
    %3959 = vmatprep.mubr.f32.mxu0 0.0
    %3960 = vmatmul.mubr.f32.gmra.mxu0 %v3495
    %v3961 = vpop.f32.mrf.mxu0
    %v3962 = vadd.f32 0.0, %v3961
    %v3963 = vpop.f32.mrf.mxu0
    %3964 = vmatprep.mubr.f32.mxu0 0.0
    %3965 = vmatmul.mubr.f32.gmra.mxu0 %v3500
    %v3966 = vpop.f32.mrf.mxu0
    %v3967 = vadd.f32 0.0, %v3966
    %v3968 = vpop.f32.mrf.mxu0
    %3969 = vmatprep.mubr.f32.mxu0 0.0
    %3970 = vmatmul.mubr.f32.gmra.mxu0 %v3505
    %v3971 = vpop.f32.mrf.mxu0
    %v3972 = vadd.f32 0.0, %v3971
    %v3973 = vpop.f32.mrf.mxu0
    %3974 = vmatprep.mubr.f32.mxu0 0.0
    %3975 = vmatmul.mubr.f32.gmra.mxu0 %v3510
    %v3976 = vpop.f32.mrf.mxu0
    %v3977 = vadd.f32 0.0, %v3976
    %v3978 = vpop.f32.mrf.mxu0
    %3979 = vmatprep.mubr.f32.mxu0 0.0
    %3980 = vmatmul.mubr.f32.gmra.mxu0 %v3515
    %v3981 = vpop.f32.mrf.mxu0
    %v3982 = vadd.f32 0.0, %v3981
    %v3983 = vpop.f32.mrf.mxu0
    %3984 = vmatprep.mubr.f32.mxu0 0.0
    %3985 = vmatmul.mubr.f32.gmra.mxu0 %v3520
    %v3986 = vpop.f32.mrf.mxu0
    %v3987 = vadd.f32 0.0, %v3986
    %v3988 = vpop.f32.mrf.mxu0
    %3989 = vmatprep.mubr.f32.mxu0 0.0
    %3990 = vmatmul.mubr.f32.gmra.mxu0 %v3525
    %v3991 = vpop.f32.mrf.mxu0
    %v3992 = vadd.f32 0.0, %v3991
    %v3993 = vpop.f32.mrf.mxu0
    %3994 = vmatprep.mubr.f32.mxu0 0.0
    %3995 = vmatmul.mubr.f32.gmra.mxu0 %v3530
    %v3996 = vpop.f32.mrf.mxu0
    %v3997 = vadd.f32 0.0, %v3996
    %v3998 = vpop.f32.mrf.mxu0
    %3999 = vmatprep.mubr.f32.mxu0 0.0
    %4000 = vmatmul.mubr.f32.gmra.mxu0 %v3535
    %v4001 = vpop.f32.mrf.mxu0
    %v4002 = vadd.f32 0.0, %v4001
    %v4003 = vpop.f32.mrf.mxu0
    %4004 = vdwg.mxu0
    %4005 = vmatprep.subr.mxu0 0.0
    %4006 = vmatpush1.msra.mxu0 %v3680
    %4007 = vmatprep.subr.mxu0 0.0
    %4008 = vmatpush1.msra.mxu0 %v3675
    %4009 = vmatprep.subr.mxu0 0.0
    %4010 = vmatpush1.msra.mxu0 %v3670
    %4011 = vmatprep.subr.mxu0 0.0
    %4012 = vmatpush1.msra.mxu0 %v3665
    %4013 = vmatprep.subr.mxu0 0.0
    %4014 = vmatpush1.msra.mxu0 %v3660
    %4015 = vmatprep.subr.mxu0 0.0
    %4016 = vmatpush1.msra.mxu0 %v3655
    %4017 = vmatprep.subr.mxu0 0.0
    %4018 = vmatpush1.msra.mxu0 %v3650
    %4019 = vmatprep.subr.mxu0 0.0
    %4020 = vmatpush1.msra.mxu0 %v3645
    %4021 = vmatprep.subr.mxu0 0.0
    %4022 = vmatpush1.msra.mxu0 %v3640
    %4023 = vmatprep.subr.mxu0 0.0
    %4024 = vmatpush1.msra.mxu0 %v3635
    %4025 = vmatprep.subr.mxu0 0.0
    %4026 = vmatpush1.msra.mxu0 %v3630
    %4027 = vmatprep.subr.mxu0 0.0
    %4028 = vmatpush1.msra.mxu0 %v3625
    %4029 = vmatprep.subr.mxu0 0.0
    %4030 = vmatpush1.msra.mxu0 %v3620
    %4031 = vmatprep.subr.mxu0 0.0
    %4032 = vmatpush1.msra.mxu0 %v3615
    %4033 = vmatprep.subr.mxu0 0.0
    %4034 = vmatpush1.msra.mxu0 %v3610
    %4035 = vmatprep.subr.mxu0 0.0
    %4036 = vmatpush1.msra.mxu0 %v3605
    %4037 = vmatprep.subr.mxu0 0.0
    %4038 = vmatpush2.msra.mxu0 0.0
    %4039 = vmatprep.subr.mxu0 0.0
    %4040 = vmatpush2.msra.mxu0 0.0
    %4041 = vmatprep.subr.mxu0 0.0
    %4042 = vmatpush2.msra.mxu0 0.0
    %4043 = vmatprep.subr.mxu0 0.0
    %4044 = vmatpush2.msra.mxu0 0.0
    %4045 = vmatprep.subr.mxu0 0.0
    %4046 = vmatpush2.msra.mxu0 0.0
    %4047 = vmatprep.subr.mxu0 0.0
    %4048 = vmatpush2.msra.mxu0 0.0
    %4049 = vmatprep.subr.mxu0 0.0
    %4050 = vmatpush2.msra.mxu0 0.0
    %4051 = vmatprep.subr.mxu0 0.0
    %4052 = vmatpush2.msra.mxu0 0.0
    %4053 = vmatprep.subr.mxu0 0.0
    %4054 = vmatpush2.msra.mxu0 0.0
    %4055 = vmatprep.subr.mxu0 0.0
    %4056 = vmatpush2.msra.mxu0 0.0
    %4057 = vmatprep.subr.mxu0 0.0
    %4058 = vmatpush2.msra.mxu0 0.0
    %4059 = vmatprep.subr.mxu0 0.0
    %4060 = vmatpush2.msra.mxu0 0.0
    %4061 = vmatprep.subr.mxu0 0.0
    %4062 = vmatpush2.msra.mxu0 0.0
    %4063 = vmatprep.subr.mxu0 0.0
    %4064 = vmatpush2.msra.mxu0 0.0
    %4065 = vmatprep.subr.mxu0 0.0
    %4066 = vmatpush2.msra.mxu0 0.0
    %4067 = vmatprep.subr.mxu0 0.0
    %4068 = vmatpush2.msra.mxu0 0.0
    %4069 = vmatprep.mubr.f32.mxu0 0.0
    %4070 = vmatmul.mubr.f32.gmra.mxu0 %v3844
    %v4071 = vpop.f32.mrf.mxu0
    %v4072 = vadd.f32 0.0, %v4071
    %v4073 = vpop.f32.mrf.mxu0
    %4074 = vmatprep.mubr.f32.mxu0 0.0
    %4075 = vmatmul.mubr.f32.gmra.mxu0 %v3845
    %v4076 = vpop.f32.mrf.mxu0
    %v4077 = vadd.f32 0.0, %v4076
    %v4078 = vpop.f32.mrf.mxu0
    %4079 = vmatprep.mubr.f32.mxu0 0.0
    %4080 = vmatmul.mubr.f32.gmra.mxu0 %v3846
    %v4081 = vpop.f32.mrf.mxu0
    %v4082 = vadd.f32 0.0, %v4081
    %v4083 = vpop.f32.mrf.mxu0
    %4084 = vmatprep.mubr.f32.mxu0 0.0
    %4085 = vmatmul.mubr.f32.gmra.mxu0 %v3847
    %v4086 = vpop.f32.mrf.mxu0
    %v4087 = vadd.f32 0.0, %v4086
    %v4088 = vpop.f32.mrf.mxu0
    %4089 = vmatprep.mubr.f32.mxu0 0.0
    %4090 = vmatmul.mubr.f32.gmra.mxu0 %v3848
    %v4091 = vpop.f32.mrf.mxu0
    %v4092 = vadd.f32 0.0, %v4091
    %v4093 = vpop.f32.mrf.mxu0
    %4094 = vmatprep.mubr.f32.mxu0 0.0
    %4095 = vmatmul.mubr.f32.gmra.mxu0 %v3849
    %v4096 = vpop.f32.mrf.mxu0
    %v4097 = vadd.f32 0.0, %v4096
    %v4098 = vpop.f32.mrf.mxu0
    %4099 = vmatprep.mubr.f32.mxu0 0.0
    %4100 = vmatmul.mubr.f32.gmra.mxu0 %v3850
    %v4101 = vpop.f32.mrf.mxu0
    %v4102 = vadd.f32 0.0, %v4101
    %v4103 = vpop.f32.mrf.mxu0
    %4104 = vmatprep.mubr.f32.mxu0 0.0
    %4105 = vmatmul.mubr.f32.gmra.mxu0 %v3851
    %v4106 = vpop.f32.mrf.mxu0
    %v4107 = vadd.f32 0.0, %v4106
    %v4108 = vpop.f32.mrf.mxu0
    %4109 = vmatprep.mubr.f32.mxu0 0.0
    %4110 = vmatmul.mubr.f32.gmra.mxu0 %v3852
    %v4111 = vpop.f32.mrf.mxu0
    %v4112 = vadd.f32 0.0, %v4111
    %v4113 = vpop.f32.mrf.mxu0
    %4114 = vmatprep.mubr.f32.mxu0 0.0
    %4115 = vmatmul.mubr.f32.gmra.mxu0 %v3853
    %v4116 = vpop.f32.mrf.mxu0
    %v4117 = vadd.f32 0.0, %v4116
    %v4118 = vpop.f32.mrf.mxu0
    %4119 = vmatprep.mubr.f32.mxu0 0.0
    %4120 = vmatmul.mubr.f32.gmra.mxu0 %v3854
    %v4121 = vpop.f32.mrf.mxu0
    %v4122 = vadd.f32 0.0, %v4121
    %v4123 = vpop.f32.mrf.mxu0
    %4124 = vmatprep.mubr.f32.mxu0 0.0
    %4125 = vmatmul.mubr.f32.gmra.mxu0 %v3855
    %v4126 = vpop.f32.mrf.mxu0
    %v4127 = vadd.f32 0.0, %v4126
    %v4128 = vpop.f32.mrf.mxu0
    %4129 = vmatprep.mubr.f32.mxu0 0.0
    %4130 = vmatmul.mubr.f32.gmra.mxu0 %v3856
    %v4131 = vpop.f32.mrf.mxu0
    %v4132 = vadd.f32 0.0, %v4131
    %v4133 = vpop.f32.mrf.mxu0
    %4134 = vmatprep.mubr.f32.mxu0 0.0
    %4135 = vmatmul.mubr.f32.gmra.mxu0 %v3857
    %v4136 = vpop.f32.mrf.mxu0
    %v4137 = vadd.f32 0.0, %v4136
    %v4138 = vpop.f32.mrf.mxu0
    %4139 = vmatprep.mubr.f32.mxu0 0.0
    %4140 = vmatmul.mubr.f32.gmra.mxu0 %v3858
    %v4141 = vpop.f32.mrf.mxu0
    %v4142 = vadd.f32 0.0, %v4141
    %v4143 = vpop.f32.mrf.mxu0
    %4144 = vmatprep.mubr.f32.mxu0 0.0
    %4145 = vmatmul.mubr.f32.gmra.mxu0 %v3859
    %v4146 = vpop.f32.mrf.mxu0
    %v4147 = vadd.f32 0.0, %v4146
    %v4148 = vpop.f32.mrf.mxu0
    %4149 = vdwg.mxu0
    %4150 = vmatprep.subr.mxu0 0.0
    %4151 = vmatpush1.msra.mxu0 %v4002
    %4152 = vmatprep.subr.mxu0 0.0
    %4153 = vmatpush1.msra.mxu0 %v3997
    %4154 = vmatprep.subr.mxu0 0.0
    %4155 = vmatpush1.msra.mxu0 %v3992
    %4156 = vmatprep.subr.mxu0 0.0
    %4157 = vmatpush1.msra.mxu0 %v3987
    %4158 = vmatprep.subr.mxu0 0.0
    %4159 = vmatpush1.msra.mxu0 %v3982
    %4160 = vmatprep.subr.mxu0 0.0
    %4161 = vmatpush1.msra.mxu0 %v3977
    %4162 = vmatprep.subr.mxu0 0.0
    %4163 = vmatpush1.msra.mxu0 %v3972
    %4164 = vmatprep.subr.mxu0 0.0
    %4165 = vmatpush1.msra.mxu0 %v3967
    %4166 = vmatprep.subr.mxu0 0.0
    %4167 = vmatpush1.msra.mxu0 %v3962
    %4168 = vmatprep.subr.mxu0 0.0
    %4169 = vmatpush1.msra.mxu0 %v3957
    %4170 = vmatprep.subr.mxu0 0.0
    %4171 = vmatpush1.msra.mxu0 %v3952
    %4172 = vmatprep.subr.mxu0 0.0
    %4173 = vmatpush1.msra.mxu0 %v3947
    %4174 = vmatprep.subr.mxu0 0.0
    %4175 = vmatpush1.msra.mxu0 %v3942
    %4176 = vmatprep.subr.mxu0 0.0
    %4177 = vmatpush1.msra.mxu0 %v3937
    %4178 = vmatprep.subr.mxu0 0.0
    %4179 = vmatpush1.msra.mxu0 %v3932
    %4180 = vmatprep.subr.mxu0 0.0
    %4181 = vmatpush1.msra.mxu0 %v3927
    %4182 = vmatprep.subr.mxu0 0.0
    %4183 = vmatpush2.msra.mxu0 0.0
    %4184 = vmatprep.subr.mxu0 0.0
    %4185 = vmatpush2.msra.mxu0 0.0
    %4186 = vmatprep.subr.mxu0 0.0
    %4187 = vmatpush2.msra.mxu0 0.0
    %4188 = vmatprep.subr.mxu0 0.0
    %4189 = vmatpush2.msra.mxu0 0.0
    %4190 = vmatprep.subr.mxu0 0.0
    %4191 = vmatpush2.msra.mxu0 0.0
    %4192 = vmatprep.subr.mxu0 0.0
    %4193 = vmatpush2.msra.mxu0 0.0
    %4194 = vmatprep.subr.mxu0 0.0
    %4195 = vmatpush2.msra.mxu0 0.0
    %4196 = vmatprep.subr.mxu0 0.0
    %4197 = vmatpush2.msra.mxu0 0.0
    %4198 = vmatprep.subr.mxu0 0.0
    %4199 = vmatpush2.msra.mxu0 0.0
    %4200 = vmatprep.subr.mxu0 0.0
    %4201 = vmatpush2.msra.mxu0 0.0
    %4202 = vmatprep.subr.mxu0 0.0
    %4203 = vmatpush2.msra.mxu0 0.0
    %4204 = vmatprep.subr.mxu0 0.0
    %4205 = vmatpush2.msra.mxu0 0.0
    %4206 = vmatprep.subr.mxu0 0.0
    %4207 = vmatpush2.msra.mxu0 0.0
    %4208 = vmatprep.subr.mxu0 0.0
    %4209 = vmatpush2.msra.mxu0 0.0
    %4210 = vmatprep.subr.mxu0 0.0
    %4211 = vmatpush2.msra.mxu0 0.0
    %4212 = vmatprep.subr.mxu0 0.0
    %4213 = vmatpush2.msra.mxu0 0.0
    %4214 = vmatprep.mubr.f32.mxu0 0.0
    %4215 = vmatmul.mubr.f32.gmra.mxu0 %v4072
    %v4216 = vpop.f32.mrf.mxu0
    %v4217 = vadd.f32 0.0, %v4216
    %v4218 = vpop.f32.mrf.mxu0
    %4219 = vmatprep.mubr.f32.mxu0 0.0
    %4220 = vmatmul.mubr.f32.gmra.mxu0 %v4077
    %v4221 = vpop.f32.mrf.mxu0
    %v4222 = vadd.f32 0.0, %v4221
    %v4223 = vpop.f32.mrf.mxu0
    %4224 = vmatprep.mubr.f32.mxu0 0.0
    %4225 = vmatmul.mubr.f32.gmra.mxu0 %v4082
    %v4226 = vpop.f32.mrf.mxu0
    %v4227 = vadd.f32 0.0, %v4226
    %v4228 = vpop.f32.mrf.mxu0
    %4229 = vmatprep.mubr.f32.mxu0 0.0
    %4230 = vmatmul.mubr.f32.gmra.mxu0 %v4087
    %v4231 = vpop.f32.mrf.mxu0
    %v4232 = vadd.f32 0.0, %v4231
    %v4233 = vpop.f32.mrf.mxu0
    %4234 = vmatprep.mubr.f32.mxu0 0.0
    %4235 = vmatmul.mubr.f32.gmra.mxu0 %v4092
    %v4236 = vpop.f32.mrf.mxu0
    %v4237 = vadd.f32 0.0, %v4236
    %v4238 = vpop.f32.mrf.mxu0
    %4239 = vmatprep.mubr.f32.mxu0 0.0
    %4240 = vmatmul.mubr.f32.gmra.mxu0 %v4097
    %v4241 = vpop.f32.mrf.mxu0
    %v4242 = vadd.f32 0.0, %v4241
    %v4243 = vpop.f32.mrf.mxu0
    %4244 = vmatprep.mubr.f32.mxu0 0.0
    %4245 = vmatmul.mubr.f32.gmra.mxu0 %v4102
    %v4246 = vpop.f32.mrf.mxu0
    %v4247 = vadd.f32 0.0, %v4246
    %v4248 = vpop.f32.mrf.mxu0
    %4249 = vmatprep.mubr.f32.mxu0 0.0
    %4250 = vmatmul.mubr.f32.gmra.mxu0 %v4107
    %v4251 = vpop.f32.mrf.mxu0
    %v4252 = vadd.f32 0.0, %v4251
    %v4253 = vpop.f32.mrf.mxu0
    %4254 = vmatprep.mubr.f32.mxu0 0.0
    %4255 = vmatmul.mubr.f32.gmra.mxu0 %v4112
    %v4256 = vpop.f32.mrf.mxu0
    %v4257 = vadd.f32 0.0, %v4256
    %v4258 = vpop.f32.mrf.mxu0
    %4259 = vmatprep.mubr.f32.mxu0 0.0
    %4260 = vmatmul.mubr.f32.gmra.mxu0 %v4117
    %v4261 = vpop.f32.mrf.mxu0
    %v4262 = vadd.f32 0.0, %v4261
    %v4263 = vpop.f32.mrf.mxu0
    %4264 = vmatprep.mubr.f32.mxu0 0.0
    %4265 = vmatmul.mubr.f32.gmra.mxu0 %v4122
    %v4266 = vpop.f32.mrf.mxu0
    %v4267 = vadd.f32 0.0, %v4266
    %v4268 = vpop.f32.mrf.mxu0
    %4269 = vmatprep.mubr.f32.mxu0 0.0
    %4270 = vmatmul.mubr.f32.gmra.mxu0 %v4127
    %v4271 = vpop.f32.mrf.mxu0
    %v4272 = vadd.f32 0.0, %v4271
    %v4273 = vpop.f32.mrf.mxu0
    %4274 = vmatprep.mubr.f32.mxu0 0.0
    %4275 = vmatmul.mubr.f32.gmra.mxu0 %v4132
    %v4276 = vpop.f32.mrf.mxu0
    %v4277 = vadd.f32 0.0, %v4276
    %v4278 = vpop.f32.mrf.mxu0
    %4279 = vmatprep.mubr.f32.mxu0 0.0
    %4280 = vmatmul.mubr.f32.gmra.mxu0 %v4137
    %v4281 = vpop.f32.mrf.mxu0
    %v4282 = vadd.f32 0.0, %v4281
    %v4283 = vpop.f32.mrf.mxu0
    %4284 = vmatprep.mubr.f32.mxu0 0.0
    %4285 = vmatmul.mubr.f32.gmra.mxu0 %v4142
    %v4286 = vpop.f32.mrf.mxu0
    %v4287 = vadd.f32 0.0, %v4286
    %v4288 = vpop.f32.mrf.mxu0
    %4289 = vmatprep.mubr.f32.mxu0 0.0
    %4290 = vmatmul.mubr.f32.gmra.mxu0 %v4147
    %v4291 = vpop.f32.mrf.mxu0
    %v4292 = vadd.f32 0.0, %v4291
    %v4293 = vpop.f32.mrf.mxu0
    %4294 = vdwg.mxu0
    %v4295 = vmul.f32 %v4217, 0.5
    %v4296 = vmul.f32 %v4222, 0.5
    %v4297 = vmul.f32 %v4227, 0.5
    %v4298 = vmul.f32 %v4232, 0.5
    %v4299 = vmul.f32 %v4237, 0.5
    %v4300 = vmul.f32 %v4242, 0.5
    %v4301 = vmul.f32 %v4247, 0.5
    %v4302 = vmul.f32 %v4252, 0.5
    %v4303 = vmul.f32 %v4257, 0.5
    %v4304 = vmul.f32 %v4262, 0.5
    %v4305 = vmul.f32 %v4267, 0.5
    %v4306 = vmul.f32 %v4272, 0.5
    %v4307 = vmul.f32 %v4277, 0.5
    %v4308 = vmul.f32 %v4282, 0.5
    %v4309 = vmul.f32 %v4287, 0.5
    %v4310 = vmul.f32 %v4292, 0.5
    %v4311 = vsub.f32 %v398, %v4295
    %v4312 = vsub.f32 %v399, %v4296
    %v4313 = vsub.f32 %v400, %v4297
    %v4314 = vsub.f32 %v401, %v4298
    %v4315 = vsub.f32 %v402, %v4299
    %v4316 = vsub.f32 %v403, %v4300
    %v4317 = vsub.f32 %v404, %v4301
    %v4318 = vsub.f32 %v405, %v4302
    %v4319 = vsub.f32 %v406, %v4303
    %v4320 = vsub.f32 %v407, %v4304
    %v4321 = vsub.f32 %v408, %v4305
    %v4322 = vsub.f32 %v409, %v4306
    %v4323 = vsub.f32 %v410, %v4307
    %v4324 = vsub.f32 %v411, %v4308
    %v4325 = vsub.f32 %v412, %v4309
    %v4326 = vsub.f32 %v413, %v4310
    %4327 = vmatprep.subr.mxu0 0.0
    %4328 = vmatpush1.msra.mxu0 %v4326
    %4329 = vmatprep.subr.mxu0 0.0
    %4330 = vmatpush1.msra.mxu0 %v4325
    %4331 = vmatprep.subr.mxu0 0.0
    %4332 = vmatpush1.msra.mxu0 %v4324
    %4333 = vmatprep.subr.mxu0 0.0
    %4334 = vmatpush1.msra.mxu0 %v4323
    %4335 = vmatprep.subr.mxu0 0.0
    %4336 = vmatpush1.msra.mxu0 %v4322
    %4337 = vmatprep.subr.mxu0 0.0
    %4338 = vmatpush1.msra.mxu0 %v4321
    %4339 = vmatprep.subr.mxu0 0.0
    %4340 = vmatpush1.msra.mxu0 %v4320
    %4341 = vmatprep.subr.mxu0 0.0
    %4342 = vmatpush1.msra.mxu0 %v4319
    %4343 = vmatprep.subr.mxu0 0.0
    %4344 = vmatpush1.msra.mxu0 %v4318
    %4345 = vmatprep.subr.mxu0 0.0
    %4346 = vmatpush1.msra.mxu0 %v4317
    %4347 = vmatprep.subr.mxu0 0.0
    %4348 = vmatpush1.msra.mxu0 %v4316
    %4349 = vmatprep.subr.mxu0 0.0
    %4350 = vmatpush1.msra.mxu0 %v4315
    %4351 = vmatprep.subr.mxu0 0.0
    %4352 = vmatpush1.msra.mxu0 %v4314
    %4353 = vmatprep.subr.mxu0 0.0
    %4354 = vmatpush1.msra.mxu0 %v4313
    %4355 = vmatprep.subr.mxu0 0.0
    %4356 = vmatpush1.msra.mxu0 %v4312
    %4357 = vmatprep.subr.mxu0 0.0
    %4358 = vmatpush1.msra.mxu0 %v4311
    %4359 = vmatprep.subr.mxu0 0.0
    %4360 = vmatpush2.msra.mxu0 0.0
    %4361 = vmatprep.subr.mxu0 0.0
    %4362 = vmatpush2.msra.mxu0 0.0
    %4363 = vmatprep.subr.mxu0 0.0
    %4364 = vmatpush2.msra.mxu0 0.0
    %4365 = vmatprep.subr.mxu0 0.0
    %4366 = vmatpush2.msra.mxu0 0.0
    %4367 = vmatprep.subr.mxu0 0.0
    %4368 = vmatpush2.msra.mxu0 0.0
    %4369 = vmatprep.subr.mxu0 0.0
    %4370 = vmatpush2.msra.mxu0 0.0
    %4371 = vmatprep.subr.mxu0 0.0
    %4372 = vmatpush2.msra.mxu0 0.0
    %4373 = vmatprep.subr.mxu0 0.0
    %4374 = vmatpush2.msra.mxu0 0.0
    %4375 = vmatprep.subr.mxu0 0.0
    %4376 = vmatpush2.msra.mxu0 0.0
    %4377 = vmatprep.subr.mxu0 0.0
    %4378 = vmatpush2.msra.mxu0 0.0
    %4379 = vmatprep.subr.mxu0 0.0
    %4380 = vmatpush2.msra.mxu0 0.0
    %4381 = vmatprep.subr.mxu0 0.0
    %4382 = vmatpush2.msra.mxu0 0.0
    %4383 = vmatprep.subr.mxu0 0.0
    %4384 = vmatpush2.msra.mxu0 0.0
    %4385 = vmatprep.subr.mxu0 0.0
    %4386 = vmatpush2.msra.mxu0 0.0
    %4387 = vmatprep.subr.mxu0 0.0
    %4388 = vmatpush2.msra.mxu0 0.0
    %4389 = vmatprep.subr.mxu0 0.0
    %4390 = vmatpush2.msra.mxu0 0.0
    %4391 = vmatprep.mubr.f32.mxu0 0.0
    %4392 = vmatmul.mubr.f32.gmra.mxu0 %v3927
    %v4393 = vpop.f32.mrf.mxu0
    %v4394 = vadd.f32 0.0, %v4393
    %v4395 = vpop.f32.mrf.mxu0
    %4396 = vmatprep.mubr.f32.mxu0 0.0
    %4397 = vmatmul.mubr.f32.gmra.mxu0 %v3932
    %v4398 = vpop.f32.mrf.mxu0
    %v4399 = vadd.f32 0.0, %v4398
    %v4400 = vpop.f32.mrf.mxu0
    %4401 = vmatprep.mubr.f32.mxu0 0.0
    %4402 = vmatmul.mubr.f32.gmra.mxu0 %v3937
    %v4403 = vpop.f32.mrf.mxu0
    %v4404 = vadd.f32 0.0, %v4403
    %v4405 = vpop.f32.mrf.mxu0
    %4406 = vmatprep.mubr.f32.mxu0 0.0
    %4407 = vmatmul.mubr.f32.gmra.mxu0 %v3942
    %v4408 = vpop.f32.mrf.mxu0
    %v4409 = vadd.f32 0.0, %v4408
    %v4410 = vpop.f32.mrf.mxu0
    %4411 = vmatprep.mubr.f32.mxu0 0.0
    %4412 = vmatmul.mubr.f32.gmra.mxu0 %v3947
    %v4413 = vpop.f32.mrf.mxu0
    %v4414 = vadd.f32 0.0, %v4413
    %v4415 = vpop.f32.mrf.mxu0
    %4416 = vmatprep.mubr.f32.mxu0 0.0
    %4417 = vmatmul.mubr.f32.gmra.mxu0 %v3952
    %v4418 = vpop.f32.mrf.mxu0
    %v4419 = vadd.f32 0.0, %v4418
    %v4420 = vpop.f32.mrf.mxu0
    %4421 = vmatprep.mubr.f32.mxu0 0.0
    %4422 = vmatmul.mubr.f32.gmra.mxu0 %v3957
    %v4423 = vpop.f32.mrf.mxu0
    %v4424 = vadd.f32 0.0, %v4423
    %v4425 = vpop.f32.mrf.mxu0
    %4426 = vmatprep.mubr.f32.mxu0 0.0
    %4427 = vmatmul.mubr.f32.gmra.mxu0 %v3962
    %v4428 = vpop.f32.mrf.mxu0
    %v4429 = vadd.f32 0.0, %v4428
    %v4430 = vpop.f32.mrf.mxu0
    %4431 = vmatprep.mubr.f32.mxu0 0.0
    %4432 = vmatmul.mubr.f32.gmra.mxu0 %v3967
    %v4433 = vpop.f32.mrf.mxu0
    %v4434 = vadd.f32 0.0, %v4433
    %v4435 = vpop.f32.mrf.mxu0
    %4436 = vmatprep.mubr.f32.mxu0 0.0
    %4437 = vmatmul.mubr.f32.gmra.mxu0 %v3972
    %v4438 = vpop.f32.mrf.mxu0
    %v4439 = vadd.f32 0.0, %v4438
    %v4440 = vpop.f32.mrf.mxu0
    %4441 = vmatprep.mubr.f32.mxu0 0.0
    %4442 = vmatmul.mubr.f32.gmra.mxu0 %v3977
    %v4443 = vpop.f32.mrf.mxu0
    %v4444 = vadd.f32 0.0, %v4443
    %v4445 = vpop.f32.mrf.mxu0
    %4446 = vmatprep.mubr.f32.mxu0 0.0
    %4447 = vmatmul.mubr.f32.gmra.mxu0 %v3982
    %v4448 = vpop.f32.mrf.mxu0
    %v4449 = vadd.f32 0.0, %v4448
    %v4450 = vpop.f32.mrf.mxu0
    %4451 = vmatprep.mubr.f32.mxu0 0.0
    %4452 = vmatmul.mubr.f32.gmra.mxu0 %v3987
    %v4453 = vpop.f32.mrf.mxu0
    %v4454 = vadd.f32 0.0, %v4453
    %v4455 = vpop.f32.mrf.mxu0
    %4456 = vmatprep.mubr.f32.mxu0 0.0
    %4457 = vmatmul.mubr.f32.gmra.mxu0 %v3992
    %v4458 = vpop.f32.mrf.mxu0
    %v4459 = vadd.f32 0.0, %v4458
    %v4460 = vpop.f32.mrf.mxu0
    %4461 = vmatprep.mubr.f32.mxu0 0.0
    %4462 = vmatmul.mubr.f32.gmra.mxu0 %v3997
    %v4463 = vpop.f32.mrf.mxu0
    %v4464 = vadd.f32 0.0, %v4463
    %v4465 = vpop.f32.mrf.mxu0
    %4466 = vmatprep.mubr.f32.mxu0 0.0
    %4467 = vmatmul.mubr.f32.gmra.mxu0 %v4002
    %v4468 = vpop.f32.mrf.mxu0
    %v4469 = vadd.f32 0.0, %v4468
    %v4470 = vpop.f32.mrf.mxu0
    %4471 = vdwg.mxu0
    %4472 = vmatprep.subr.mxu0 0.0
    %4473 = vmatpush1.msra.mxu0 %v4147
    %4474 = vmatprep.subr.mxu0 0.0
    %4475 = vmatpush1.msra.mxu0 %v4142
    %4476 = vmatprep.subr.mxu0 0.0
    %4477 = vmatpush1.msra.mxu0 %v4137
    %4478 = vmatprep.subr.mxu0 0.0
    %4479 = vmatpush1.msra.mxu0 %v4132
    %4480 = vmatprep.subr.mxu0 0.0
    %4481 = vmatpush1.msra.mxu0 %v4127
    %4482 = vmatprep.subr.mxu0 0.0
    %4483 = vmatpush1.msra.mxu0 %v4122
    %4484 = vmatprep.subr.mxu0 0.0
    %4485 = vmatpush1.msra.mxu0 %v4117
    %4486 = vmatprep.subr.mxu0 0.0
    %4487 = vmatpush1.msra.mxu0 %v4112
    %4488 = vmatprep.subr.mxu0 0.0
    %4489 = vmatpush1.msra.mxu0 %v4107
    %4490 = vmatprep.subr.mxu0 0.0
    %4491 = vmatpush1.msra.mxu0 %v4102
    %4492 = vmatprep.subr.mxu0 0.0
    %4493 = vmatpush1.msra.mxu0 %v4097
    %4494 = vmatprep.subr.mxu0 0.0
    %4495 = vmatpush1.msra.mxu0 %v4092
    %4496 = vmatprep.subr.mxu0 0.0
    %4497 = vmatpush1.msra.mxu0 %v4087
    %4498 = vmatprep.subr.mxu0 0.0
    %4499 = vmatpush1.msra.mxu0 %v4082
    %4500 = vmatprep.subr.mxu0 0.0
    %4501 = vmatpush1.msra.mxu0 %v4077
    %4502 = vmatprep.subr.mxu0 0.0
    %4503 = vmatpush1.msra.mxu0 %v4072
    %4504 = vmatprep.subr.mxu0 0.0
    %4505 = vmatpush2.msra.mxu0 0.0
    %4506 = vmatprep.subr.mxu0 0.0
    %4507 = vmatpush2.msra.mxu0 0.0
    %4508 = vmatprep.subr.mxu0 0.0
    %4509 = vmatpush2.msra.mxu0 0.0
    %4510 = vmatprep.subr.mxu0 0.0
    %4511 = vmatpush2.msra.mxu0 0.0
    %4512 = vmatprep.subr.mxu0 0.0
    %4513 = vmatpush2.msra.mxu0 0.0
    %4514 = vmatprep.subr.mxu0 0.0
    %4515 = vmatpush2.msra.mxu0 0.0
    %4516 = vmatprep.subr.mxu0 0.0
    %4517 = vmatpush2.msra.mxu0 0.0
    %4518 = vmatprep.subr.mxu0 0.0
    %4519 = vmatpush2.msra.mxu0 0.0
    %4520 = vmatprep.subr.mxu0 0.0
    %4521 = vmatpush2.msra.mxu0 0.0
    %4522 = vmatprep.subr.mxu0 0.0
    %4523 = vmatpush2.msra.mxu0 0.0
    %4524 = vmatprep.subr.mxu0 0.0
    %4525 = vmatpush2.msra.mxu0 0.0
    %4526 = vmatprep.subr.mxu0 0.0
    %4527 = vmatpush2.msra.mxu0 0.0
    %4528 = vmatprep.subr.mxu0 0.0
    %4529 = vmatpush2.msra.mxu0 0.0
    %4530 = vmatprep.subr.mxu0 0.0
    %4531 = vmatpush2.msra.mxu0 0.0
    %4532 = vmatprep.subr.mxu0 0.0
    %4533 = vmatpush2.msra.mxu0 0.0
    %4534 = vmatprep.subr.mxu0 0.0
    %4535 = vmatpush2.msra.mxu0 0.0
    %4536 = vmatprep.mubr.f32.mxu0 0.0
    %4537 = vmatmul.mubr.f32.gmra.mxu0 %v4311
    %v4538 = vpop.f32.mrf.mxu0
    %v4539 = vadd.f32 0.0, %v4538
    %v4540 = vpop.f32.mrf.mxu0
    %4541 = vmatprep.mubr.f32.mxu0 0.0
    %4542 = vmatmul.mubr.f32.gmra.mxu0 %v4312
    %v4543 = vpop.f32.mrf.mxu0
    %v4544 = vadd.f32 0.0, %v4543
    %v4545 = vpop.f32.mrf.mxu0
    %4546 = vmatprep.mubr.f32.mxu0 0.0
    %4547 = vmatmul.mubr.f32.gmra.mxu0 %v4313
    %v4548 = vpop.f32.mrf.mxu0
    %v4549 = vadd.f32 0.0, %v4548
    %v4550 = vpop.f32.mrf.mxu0
    %4551 = vmatprep.mubr.f32.mxu0 0.0
    %4552 = vmatmul.mubr.f32.gmra.mxu0 %v4314
    %v4553 = vpop.f32.mrf.mxu0
    %v4554 = vadd.f32 0.0, %v4553
    %v4555 = vpop.f32.mrf.mxu0
    %4556 = vmatprep.mubr.f32.mxu0 0.0
    %4557 = vmatmul.mubr.f32.gmra.mxu0 %v4315
    %v4558 = vpop.f32.mrf.mxu0
    %v4559 = vadd.f32 0.0, %v4558
    %v4560 = vpop.f32.mrf.mxu0
    %4561 = vmatprep.mubr.f32.mxu0 0.0
    %4562 = vmatmul.mubr.f32.gmra.mxu0 %v4316
    %v4563 = vpop.f32.mrf.mxu0
    %v4564 = vadd.f32 0.0, %v4563
    %v4565 = vpop.f32.mrf.mxu0
    %4566 = vmatprep.mubr.f32.mxu0 0.0
    %4567 = vmatmul.mubr.f32.gmra.mxu0 %v4317
    %v4568 = vpop.f32.mrf.mxu0
    %v4569 = vadd.f32 0.0, %v4568
    %v4570 = vpop.f32.mrf.mxu0
    %4571 = vmatprep.mubr.f32.mxu0 0.0
    %4572 = vmatmul.mubr.f32.gmra.mxu0 %v4318
    %v4573 = vpop.f32.mrf.mxu0
    %v4574 = vadd.f32 0.0, %v4573
    %v4575 = vpop.f32.mrf.mxu0
    %4576 = vmatprep.mubr.f32.mxu0 0.0
    %4577 = vmatmul.mubr.f32.gmra.mxu0 %v4319
    %v4578 = vpop.f32.mrf.mxu0
    %v4579 = vadd.f32 0.0, %v4578
    %v4580 = vpop.f32.mrf.mxu0
    %4581 = vmatprep.mubr.f32.mxu0 0.0
    %4582 = vmatmul.mubr.f32.gmra.mxu0 %v4320
    %v4583 = vpop.f32.mrf.mxu0
    %v4584 = vadd.f32 0.0, %v4583
    %v4585 = vpop.f32.mrf.mxu0
    %4586 = vmatprep.mubr.f32.mxu0 0.0
    %4587 = vmatmul.mubr.f32.gmra.mxu0 %v4321
    %v4588 = vpop.f32.mrf.mxu0
    %v4589 = vadd.f32 0.0, %v4588
    %v4590 = vpop.f32.mrf.mxu0
    %4591 = vmatprep.mubr.f32.mxu0 0.0
    %4592 = vmatmul.mubr.f32.gmra.mxu0 %v4322
    %v4593 = vpop.f32.mrf.mxu0
    %v4594 = vadd.f32 0.0, %v4593
    %v4595 = vpop.f32.mrf.mxu0
    %4596 = vmatprep.mubr.f32.mxu0 0.0
    %4597 = vmatmul.mubr.f32.gmra.mxu0 %v4323
    %v4598 = vpop.f32.mrf.mxu0
    %v4599 = vadd.f32 0.0, %v4598
    %v4600 = vpop.f32.mrf.mxu0
    %4601 = vmatprep.mubr.f32.mxu0 0.0
    %4602 = vmatmul.mubr.f32.gmra.mxu0 %v4324
    %v4603 = vpop.f32.mrf.mxu0
    %v4604 = vadd.f32 0.0, %v4603
    %v4605 = vpop.f32.mrf.mxu0
    %4606 = vmatprep.mubr.f32.mxu0 0.0
    %4607 = vmatmul.mubr.f32.gmra.mxu0 %v4325
    %v4608 = vpop.f32.mrf.mxu0
    %v4609 = vadd.f32 0.0, %v4608
    %v4610 = vpop.f32.mrf.mxu0
    %4611 = vmatprep.mubr.f32.mxu0 0.0
    %4612 = vmatmul.mubr.f32.gmra.mxu0 %v4326
    %v4613 = vpop.f32.mrf.mxu0
    %v4614 = vadd.f32 0.0, %v4613
    %v4615 = vpop.f32.mrf.mxu0
    %4616 = vdwg.mxu0
    %4617 = vmatprep.subr.mxu0 0.0
    %4618 = vmatpush1.msra.mxu0 %v4469
    %4619 = vmatprep.subr.mxu0 0.0
    %4620 = vmatpush1.msra.mxu0 %v4464
    %4621 = vmatprep.subr.mxu0 0.0
    %4622 = vmatpush1.msra.mxu0 %v4459
    %4623 = vmatprep.subr.mxu0 0.0
    %4624 = vmatpush1.msra.mxu0 %v4454
    %4625 = vmatprep.subr.mxu0 0.0
    %4626 = vmatpush1.msra.mxu0 %v4449
    %4627 = vmatprep.subr.mxu0 0.0
    %4628 = vmatpush1.msra.mxu0 %v4444
    %4629 = vmatprep.subr.mxu0 0.0
    %4630 = vmatpush1.msra.mxu0 %v4439
    %4631 = vmatprep.subr.mxu0 0.0
    %4632 = vmatpush1.msra.mxu0 %v4434
    %4633 = vmatprep.subr.mxu0 0.0
    %4634 = vmatpush1.msra.mxu0 %v4429
    %4635 = vmatprep.subr.mxu0 0.0
    %4636 = vmatpush1.msra.mxu0 %v4424
    %4637 = vmatprep.subr.mxu0 0.0
    %4638 = vmatpush1.msra.mxu0 %v4419
    %4639 = vmatprep.subr.mxu0 0.0
    %4640 = vmatpush1.msra.mxu0 %v4414
    %4641 = vmatprep.subr.mxu0 0.0
    %4642 = vmatpush1.msra.mxu0 %v4409
    %4643 = vmatprep.subr.mxu0 0.0
    %4644 = vmatpush1.msra.mxu0 %v4404
    %4645 = vmatprep.subr.mxu0 0.0
    %4646 = vmatpush1.msra.mxu0 %v4399
    %4647 = vmatprep.subr.mxu0 0.0
    %4648 = vmatpush1.msra.mxu0 %v4394
    %4649 = vmatprep.subr.mxu0 0.0
    %4650 = vmatpush2.msra.mxu0 0.0
    %4651 = vmatprep.subr.mxu0 0.0
    %4652 = vmatpush2.msra.mxu0 0.0
    %4653 = vmatprep.subr.mxu0 0.0
    %4654 = vmatpush2.msra.mxu0 0.0
    %4655 = vmatprep.subr.mxu0 0.0
    %4656 = vmatpush2.msra.mxu0 0.0
    %4657 = vmatprep.subr.mxu0 0.0
    %4658 = vmatpush2.msra.mxu0 0.0
    %4659 = vmatprep.subr.mxu0 0.0
    %4660 = vmatpush2.msra.mxu0 0.0
    %4661 = vmatprep.subr.mxu0 0.0
    %4662 = vmatpush2.msra.mxu0 0.0
    %4663 = vmatprep.subr.mxu0 0.0
    %4664 = vmatpush2.msra.mxu0 0.0
    %4665 = vmatprep.subr.mxu0 0.0
    %4666 = vmatpush2.msra.mxu0 0.0
    %4667 = vmatprep.subr.mxu0 0.0
    %4668 = vmatpush2.msra.mxu0 0.0
    %4669 = vmatprep.subr.mxu0 0.0
    %4670 = vmatpush2.msra.mxu0 0.0
    %4671 = vmatprep.subr.mxu0 0.0
    %4672 = vmatpush2.msra.mxu0 0.0
    %4673 = vmatprep.subr.mxu0 0.0
    %4674 = vmatpush2.msra.mxu0 0.0
    %4675 = vmatprep.subr.mxu0 0.0
    %4676 = vmatpush2.msra.mxu0 0.0
    %4677 = vmatprep.subr.mxu0 0.0
    %4678 = vmatpush2.msra.mxu0 0.0
    %4679 = vmatprep.subr.mxu0 0.0
    %4680 = vmatpush2.msra.mxu0 0.0
    %4681 = vmatprep.mubr.f32.mxu0 0.0
    %4682 = vmatmul.mubr.f32.gmra.mxu0 %v4539
    %v4683 = vpop.f32.mrf.mxu0
    %v4684 = vadd.f32 0.0, %v4683
    %v4685 = vpop.f32.mrf.mxu0
    %4686 = vmatprep.mubr.f32.mxu0 0.0
    %4687 = vmatmul.mubr.f32.gmra.mxu0 %v4544
    %v4688 = vpop.f32.mrf.mxu0
    %v4689 = vadd.f32 0.0, %v4688
    %v4690 = vpop.f32.mrf.mxu0
    %4691 = vmatprep.mubr.f32.mxu0 0.0
    %4692 = vmatmul.mubr.f32.gmra.mxu0 %v4549
    %v4693 = vpop.f32.mrf.mxu0
    %v4694 = vadd.f32 0.0, %v4693
    %v4695 = vpop.f32.mrf.mxu0
    %4696 = vmatprep.mubr.f32.mxu0 0.0
    %4697 = vmatmul.mubr.f32.gmra.mxu0 %v4554
    %v4698 = vpop.f32.mrf.mxu0
    %v4699 = vadd.f32 0.0, %v4698
    %v4700 = vpop.f32.mrf.mxu0
    %4701 = vmatprep.mubr.f32.mxu0 0.0
    %4702 = vmatmul.mubr.f32.gmra.mxu0 %v4559
    %v4703 = vpop.f32.mrf.mxu0
    %v4704 = vadd.f32 0.0, %v4703
    %v4705 = vpop.f32.mrf.mxu0
    %4706 = vmatprep.mubr.f32.mxu0 0.0
    %4707 = vmatmul.mubr.f32.gmra.mxu0 %v4564
    %v4708 = vpop.f32.mrf.mxu0
    %v4709 = vadd.f32 0.0, %v4708
    %v4710 = vpop.f32.mrf.mxu0
    %4711 = vmatprep.mubr.f32.mxu0 0.0
    %4712 = vmatmul.mubr.f32.gmra.mxu0 %v4569
    %v4713 = vpop.f32.mrf.mxu0
    %v4714 = vadd.f32 0.0, %v4713
    %v4715 = vpop.f32.mrf.mxu0
    %4716 = vmatprep.mubr.f32.mxu0 0.0
    %4717 = vmatmul.mubr.f32.gmra.mxu0 %v4574
    %v4718 = vpop.f32.mrf.mxu0
    %v4719 = vadd.f32 0.0, %v4718
    %v4720 = vpop.f32.mrf.mxu0
    %4721 = vmatprep.mubr.f32.mxu0 0.0
    %4722 = vmatmul.mubr.f32.gmra.mxu0 %v4579
    %v4723 = vpop.f32.mrf.mxu0
    %v4724 = vadd.f32 0.0, %v4723
    %v4725 = vpop.f32.mrf.mxu0
    %4726 = vmatprep.mubr.f32.mxu0 0.0
    %4727 = vmatmul.mubr.f32.gmra.mxu0 %v4584
    %v4728 = vpop.f32.mrf.mxu0
    %v4729 = vadd.f32 0.0, %v4728
    %v4730 = vpop.f32.mrf.mxu0
    %4731 = vmatprep.mubr.f32.mxu0 0.0
    %4732 = vmatmul.mubr.f32.gmra.mxu0 %v4589
    %v4733 = vpop.f32.mrf.mxu0
    %v4734 = vadd.f32 0.0, %v4733
    %v4735 = vpop.f32.mrf.mxu0
    %4736 = vmatprep.mubr.f32.mxu0 0.0
    %4737 = vmatmul.mubr.f32.gmra.mxu0 %v4594
    %v4738 = vpop.f32.mrf.mxu0
    %v4739 = vadd.f32 0.0, %v4738
    %v4740 = vpop.f32.mrf.mxu0
    %4741 = vmatprep.mubr.f32.mxu0 0.0
    %4742 = vmatmul.mubr.f32.gmra.mxu0 %v4599
    %v4743 = vpop.f32.mrf.mxu0
    %v4744 = vadd.f32 0.0, %v4743
    %v4745 = vpop.f32.mrf.mxu0
    %4746 = vmatprep.mubr.f32.mxu0 0.0
    %4747 = vmatmul.mubr.f32.gmra.mxu0 %v4604
    %v4748 = vpop.f32.mrf.mxu0
    %v4749 = vadd.f32 0.0, %v4748
    %v4750 = vpop.f32.mrf.mxu0
    %4751 = vmatprep.mubr.f32.mxu0 0.0
    %4752 = vmatmul.mubr.f32.gmra.mxu0 %v4609
    %v4753 = vpop.f32.mrf.mxu0
    %v4754 = vadd.f32 0.0, %v4753
    %v4755 = vpop.f32.mrf.mxu0
    %4756 = vmatprep.mubr.f32.mxu0 0.0
    %4757 = vmatmul.mubr.f32.gmra.mxu0 %v4614
    %v4758 = vpop.f32.mrf.mxu0
    %v4759 = vadd.f32 0.0, %v4758
    %v4760 = vpop.f32.mrf.mxu0
    %4761 = vdwg.mxu0
    %v4762 = vmul.f32 %v4684, 0.5
    %v4763 = vmul.f32 %v4689, 0.5
    %v4764 = vmul.f32 %v4694, 0.5
    %v4765 = vmul.f32 %v4699, 0.5
    %v4766 = vmul.f32 %v4704, 0.5
    %v4767 = vmul.f32 %v4709, 0.5
    %v4768 = vmul.f32 %v4714, 0.5
    %v4769 = vmul.f32 %v4719, 0.5
    %v4770 = vmul.f32 %v4724, 0.5
    %v4771 = vmul.f32 %v4729, 0.5
    %v4772 = vmul.f32 %v4734, 0.5
    %v4773 = vmul.f32 %v4739, 0.5
    %v4774 = vmul.f32 %v4744, 0.5
    %v4775 = vmul.f32 %v4749, 0.5
    %v4776 = vmul.f32 %v4754, 0.5
    %v4777 = vmul.f32 %v4759, 0.5
    %v4778 = vsub.f32 %v398, %v4762
    %v4779 = vsub.f32 %v399, %v4763
    %v4780 = vsub.f32 %v400, %v4764
    %v4781 = vsub.f32 %v401, %v4765
    %v4782 = vsub.f32 %v402, %v4766
    %v4783 = vsub.f32 %v403, %v4767
    %v4784 = vsub.f32 %v404, %v4768
    %v4785 = vsub.f32 %v405, %v4769
    %v4786 = vsub.f32 %v406, %v4770
    %v4787 = vsub.f32 %v407, %v4771
    %v4788 = vsub.f32 %v408, %v4772
    %v4789 = vsub.f32 %v409, %v4773
    %v4790 = vsub.f32 %v410, %v4774
    %v4791 = vsub.f32 %v411, %v4775
    %v4792 = vsub.f32 %v412, %v4776
    %v4793 = vsub.f32 %v413, %v4777
    %4794 = vmatprep.subr.mxu0 0.0
    %4795 = vmatpush1.msra.mxu0 %v4793
    %4796 = vmatprep.subr.mxu0 0.0
    %4797 = vmatpush1.msra.mxu0 %v4792
    %4798 = vmatprep.subr.mxu0 0.0
    %4799 = vmatpush1.msra.mxu0 %v4791
    %4800 = vmatprep.subr.mxu0 0.0
    %4801 = vmatpush1.msra.mxu0 %v4790
    %4802 = vmatprep.subr.mxu0 0.0
    %4803 = vmatpush1.msra.mxu0 %v4789
    %4804 = vmatprep.subr.mxu0 0.0
    %4805 = vmatpush1.msra.mxu0 %v4788
    %4806 = vmatprep.subr.mxu0 0.0
    %4807 = vmatpush1.msra.mxu0 %v4787
    %4808 = vmatprep.subr.mxu0 0.0
    %4809 = vmatpush1.msra.mxu0 %v4786
    %4810 = vmatprep.subr.mxu0 0.0
    %4811 = vmatpush1.msra.mxu0 %v4785
    %4812 = vmatprep.subr.mxu0 0.0
    %4813 = vmatpush1.msra.mxu0 %v4784
    %4814 = vmatprep.subr.mxu0 0.0
    %4815 = vmatpush1.msra.mxu0 %v4783
    %4816 = vmatprep.subr.mxu0 0.0
    %4817 = vmatpush1.msra.mxu0 %v4782
    %4818 = vmatprep.subr.mxu0 0.0
    %4819 = vmatpush1.msra.mxu0 %v4781
    %4820 = vmatprep.subr.mxu0 0.0
    %4821 = vmatpush1.msra.mxu0 %v4780
    %4822 = vmatprep.subr.mxu0 0.0
    %4823 = vmatpush1.msra.mxu0 %v4779
    %4824 = vmatprep.subr.mxu0 0.0
    %4825 = vmatpush1.msra.mxu0 %v4778
    %4826 = vmatprep.subr.mxu0 0.0
    %4827 = vmatpush2.msra.mxu0 0.0
    %4828 = vmatprep.subr.mxu0 0.0
    %4829 = vmatpush2.msra.mxu0 0.0
    %4830 = vmatprep.subr.mxu0 0.0
    %4831 = vmatpush2.msra.mxu0 0.0
    %4832 = vmatprep.subr.mxu0 0.0
    %4833 = vmatpush2.msra.mxu0 0.0
    %4834 = vmatprep.subr.mxu0 0.0
    %4835 = vmatpush2.msra.mxu0 0.0
    %4836 = vmatprep.subr.mxu0 0.0
    %4837 = vmatpush2.msra.mxu0 0.0
    %4838 = vmatprep.subr.mxu0 0.0
    %4839 = vmatpush2.msra.mxu0 0.0
    %4840 = vmatprep.subr.mxu0 0.0
    %4841 = vmatpush2.msra.mxu0 0.0
    %4842 = vmatprep.subr.mxu0 0.0
    %4843 = vmatpush2.msra.mxu0 0.0
    %4844 = vmatprep.subr.mxu0 0.0
    %4845 = vmatpush2.msra.mxu0 0.0
    %4846 = vmatprep.subr.mxu0 0.0
    %4847 = vmatpush2.msra.mxu0 0.0
    %4848 = vmatprep.subr.mxu0 0.0
    %4849 = vmatpush2.msra.mxu0 0.0
    %4850 = vmatprep.subr.mxu0 0.0
    %4851 = vmatpush2.msra.mxu0 0.0
    %4852 = vmatprep.subr.mxu0 0.0
    %4853 = vmatpush2.msra.mxu0 0.0
    %4854 = vmatprep.subr.mxu0 0.0
    %4855 = vmatpush2.msra.mxu0 0.0
    %4856 = vmatprep.subr.mxu0 0.0
    %4857 = vmatpush2.msra.mxu0 0.0
    %4858 = vmatprep.mubr.f32.mxu0 0.0
    %4859 = vmatmul.mubr.f32.gmra.mxu0 %v4394
    %v4860 = vpop.f32.mrf.mxu0
    %v4861 = vadd.f32 0.0, %v4860
    %v4862 = vpop.f32.mrf.mxu0
    %4863 = vmatprep.mubr.f32.mxu0 0.0
    %4864 = vmatmul.mubr.f32.gmra.mxu0 %v4399
    %v4865 = vpop.f32.mrf.mxu0
    %v4866 = vadd.f32 0.0, %v4865
    %v4867 = vpop.f32.mrf.mxu0
    %4868 = vmatprep.mubr.f32.mxu0 0.0
    %4869 = vmatmul.mubr.f32.gmra.mxu0 %v4404
    %v4870 = vpop.f32.mrf.mxu0
    %v4871 = vadd.f32 0.0, %v4870
    %v4872 = vpop.f32.mrf.mxu0
    %4873 = vmatprep.mubr.f32.mxu0 0.0
    %4874 = vmatmul.mubr.f32.gmra.mxu0 %v4409
    %v4875 = vpop.f32.mrf.mxu0
    %v4876 = vadd.f32 0.0, %v4875
    %v4877 = vpop.f32.mrf.mxu0
    %4878 = vmatprep.mubr.f32.mxu0 0.0
    %4879 = vmatmul.mubr.f32.gmra.mxu0 %v4414
    %v4880 = vpop.f32.mrf.mxu0
    %v4881 = vadd.f32 0.0, %v4880
    %v4882 = vpop.f32.mrf.mxu0
    %4883 = vmatprep.mubr.f32.mxu0 0.0
    %4884 = vmatmul.mubr.f32.gmra.mxu0 %v4419
    %v4885 = vpop.f32.mrf.mxu0
    %v4886 = vadd.f32 0.0, %v4885
    %v4887 = vpop.f32.mrf.mxu0
    %4888 = vmatprep.mubr.f32.mxu0 0.0
    %4889 = vmatmul.mubr.f32.gmra.mxu0 %v4424
    %v4890 = vpop.f32.mrf.mxu0
    %v4891 = vadd.f32 0.0, %v4890
    %v4892 = vpop.f32.mrf.mxu0
    %4893 = vmatprep.mubr.f32.mxu0 0.0
    %4894 = vmatmul.mubr.f32.gmra.mxu0 %v4429
    %v4895 = vpop.f32.mrf.mxu0
    %v4896 = vadd.f32 0.0, %v4895
    %v4897 = vpop.f32.mrf.mxu0
    %4898 = vmatprep.mubr.f32.mxu0 0.0
    %4899 = vmatmul.mubr.f32.gmra.mxu0 %v4434
    %v4900 = vpop.f32.mrf.mxu0
    %v4901 = vadd.f32 0.0, %v4900
    %v4902 = vpop.f32.mrf.mxu0
    %4903 = vmatprep.mubr.f32.mxu0 0.0
    %4904 = vmatmul.mubr.f32.gmra.mxu0 %v4439
    %v4905 = vpop.f32.mrf.mxu0
    %v4906 = vadd.f32 0.0, %v4905
    %v4907 = vpop.f32.mrf.mxu0
    %4908 = vmatprep.mubr.f32.mxu0 0.0
    %4909 = vmatmul.mubr.f32.gmra.mxu0 %v4444
    %v4910 = vpop.f32.mrf.mxu0
    %v4911 = vadd.f32 0.0, %v4910
    %v4912 = vpop.f32.mrf.mxu0
    %4913 = vmatprep.mubr.f32.mxu0 0.0
    %4914 = vmatmul.mubr.f32.gmra.mxu0 %v4449
    %v4915 = vpop.f32.mrf.mxu0
    %v4916 = vadd.f32 0.0, %v4915
    %v4917 = vpop.f32.mrf.mxu0
    %4918 = vmatprep.mubr.f32.mxu0 0.0
    %4919 = vmatmul.mubr.f32.gmra.mxu0 %v4454
    %v4920 = vpop.f32.mrf.mxu0
    %v4921 = vadd.f32 0.0, %v4920
    %v4922 = vpop.f32.mrf.mxu0
    %4923 = vmatprep.mubr.f32.mxu0 0.0
    %4924 = vmatmul.mubr.f32.gmra.mxu0 %v4459
    %v4925 = vpop.f32.mrf.mxu0
    %v4926 = vadd.f32 0.0, %v4925
    %v4927 = vpop.f32.mrf.mxu0
    %4928 = vmatprep.mubr.f32.mxu0 0.0
    %4929 = vmatmul.mubr.f32.gmra.mxu0 %v4464
    %v4930 = vpop.f32.mrf.mxu0
    %v4931 = vadd.f32 0.0, %v4930
    %v4932 = vpop.f32.mrf.mxu0
    %4933 = vmatprep.mubr.f32.mxu0 0.0
    %4934 = vmatmul.mubr.f32.gmra.mxu0 %v4469
    %v4935 = vpop.f32.mrf.mxu0
    %v4936 = vadd.f32 0.0, %v4935
    %v4937 = vpop.f32.mrf.mxu0
    %4938 = vdwg.mxu0
    %4939 = vmatprep.subr.mxu0 0.0
    %4940 = vmatpush1.msra.mxu0 %v4614
    %4941 = vmatprep.subr.mxu0 0.0
    %4942 = vmatpush1.msra.mxu0 %v4609
    %4943 = vmatprep.subr.mxu0 0.0
    %4944 = vmatpush1.msra.mxu0 %v4604
    %4945 = vmatprep.subr.mxu0 0.0
    %4946 = vmatpush1.msra.mxu0 %v4599
    %4947 = vmatprep.subr.mxu0 0.0
    %4948 = vmatpush1.msra.mxu0 %v4594
    %4949 = vmatprep.subr.mxu0 0.0
    %4950 = vmatpush1.msra.mxu0 %v4589
    %4951 = vmatprep.subr.mxu0 0.0
    %4952 = vmatpush1.msra.mxu0 %v4584
    %4953 = vmatprep.subr.mxu0 0.0
    %4954 = vmatpush1.msra.mxu0 %v4579
    %4955 = vmatprep.subr.mxu0 0.0
    %4956 = vmatpush1.msra.mxu0 %v4574
    %4957 = vmatprep.subr.mxu0 0.0
    %4958 = vmatpush1.msra.mxu0 %v4569
    %4959 = vmatprep.subr.mxu0 0.0
    %4960 = vmatpush1.msra.mxu0 %v4564
    %4961 = vmatprep.subr.mxu0 0.0
    %4962 = vmatpush1.msra.mxu0 %v4559
    %4963 = vmatprep.subr.mxu0 0.0
    %4964 = vmatpush1.msra.mxu0 %v4554
    %4965 = vmatprep.subr.mxu0 0.0
    %4966 = vmatpush1.msra.mxu0 %v4549
    %4967 = vmatprep.subr.mxu0 0.0
    %4968 = vmatpush1.msra.mxu0 %v4544
    %4969 = vmatprep.subr.mxu0 0.0
    %4970 = vmatpush1.msra.mxu0 %v4539
    %4971 = vmatprep.subr.mxu0 0.0
    %4972 = vmatpush2.msra.mxu0 0.0
    %4973 = vmatprep.subr.mxu0 0.0
    %4974 = vmatpush2.msra.mxu0 0.0
    %4975 = vmatprep.subr.mxu0 0.0
    %4976 = vmatpush2.msra.mxu0 0.0
    %4977 = vmatprep.subr.mxu0 0.0
    %4978 = vmatpush2.msra.mxu0 0.0
    %4979 = vmatprep.subr.mxu0 0.0
    %4980 = vmatpush2.msra.mxu0 0.0
    %4981 = vmatprep.subr.mxu0 0.0
    %4982 = vmatpush2.msra.mxu0 0.0
    %4983 = vmatprep.subr.mxu0 0.0
    %4984 = vmatpush2.msra.mxu0 0.0
    %4985 = vmatprep.subr.mxu0 0.0
    %4986 = vmatpush2.msra.mxu0 0.0
    %4987 = vmatprep.subr.mxu0 0.0
    %4988 = vmatpush2.msra.mxu0 0.0
    %4989 = vmatprep.subr.mxu0 0.0
    %4990 = vmatpush2.msra.mxu0 0.0
    %4991 = vmatprep.subr.mxu0 0.0
    %4992 = vmatpush2.msra.mxu0 0.0
    %4993 = vmatprep.subr.mxu0 0.0
    %4994 = vmatpush2.msra.mxu0 0.0
    %4995 = vmatprep.subr.mxu0 0.0
    %4996 = vmatpush2.msra.mxu0 0.0
    %4997 = vmatprep.subr.mxu0 0.0
    %4998 = vmatpush2.msra.mxu0 0.0
    %4999 = vmatprep.subr.mxu0 0.0
    %5000 = vmatpush2.msra.mxu0 0.0
    %5001 = vmatprep.subr.mxu0 0.0
    %5002 = vmatpush2.msra.mxu0 0.0
    %5003 = vmatprep.mubr.f32.mxu0 0.0
    %5004 = vmatmul.mubr.f32.gmra.mxu0 %v4778
    %v5005 = vpop.f32.mrf.mxu0
    %v5006 = vadd.f32 0.0, %v5005
    %v5007 = vpop.f32.mrf.mxu0
    %5008 = vmatprep.mubr.f32.mxu0 0.0
    %5009 = vmatmul.mubr.f32.gmra.mxu0 %v4779
    %v5010 = vpop.f32.mrf.mxu0
    %v5011 = vadd.f32 0.0, %v5010
    %v5012 = vpop.f32.mrf.mxu0
    %5013 = vmatprep.mubr.f32.mxu0 0.0
    %5014 = vmatmul.mubr.f32.gmra.mxu0 %v4780
    %v5015 = vpop.f32.mrf.mxu0
    %v5016 = vadd.f32 0.0, %v5015
    %v5017 = vpop.f32.mrf.mxu0
    %5018 = vmatprep.mubr.f32.mxu0 0.0
    %5019 = vmatmul.mubr.f32.gmra.mxu0 %v4781
    %v5020 = vpop.f32.mrf.mxu0
    %v5021 = vadd.f32 0.0, %v5020
    %v5022 = vpop.f32.mrf.mxu0
    %5023 = vmatprep.mubr.f32.mxu0 0.0
    %5024 = vmatmul.mubr.f32.gmra.mxu0 %v4782
    %v5025 = vpop.f32.mrf.mxu0
    %v5026 = vadd.f32 0.0, %v5025
    %v5027 = vpop.f32.mrf.mxu0
    %5028 = vmatprep.mubr.f32.mxu0 0.0
    %5029 = vmatmul.mubr.f32.gmra.mxu0 %v4783
    %v5030 = vpop.f32.mrf.mxu0
    %v5031 = vadd.f32 0.0, %v5030
    %v5032 = vpop.f32.mrf.mxu0
    %5033 = vmatprep.mubr.f32.mxu0 0.0
    %5034 = vmatmul.mubr.f32.gmra.mxu0 %v4784
    %v5035 = vpop.f32.mrf.mxu0
    %v5036 = vadd.f32 0.0, %v5035
    %v5037 = vpop.f32.mrf.mxu0
    %5038 = vmatprep.mubr.f32.mxu0 0.0
    %5039 = vmatmul.mubr.f32.gmra.mxu0 %v4785
    %v5040 = vpop.f32.mrf.mxu0
    %v5041 = vadd.f32 0.0, %v5040
    %v5042 = vpop.f32.mrf.mxu0
    %5043 = vmatprep.mubr.f32.mxu0 0.0
    %5044 = vmatmul.mubr.f32.gmra.mxu0 %v4786
    %v5045 = vpop.f32.mrf.mxu0
    %v5046 = vadd.f32 0.0, %v5045
    %v5047 = vpop.f32.mrf.mxu0
    %5048 = vmatprep.mubr.f32.mxu0 0.0
    %5049 = vmatmul.mubr.f32.gmra.mxu0 %v4787
    %v5050 = vpop.f32.mrf.mxu0
    %v5051 = vadd.f32 0.0, %v5050
    %v5052 = vpop.f32.mrf.mxu0
    %5053 = vmatprep.mubr.f32.mxu0 0.0
    %5054 = vmatmul.mubr.f32.gmra.mxu0 %v4788
    %v5055 = vpop.f32.mrf.mxu0
    %v5056 = vadd.f32 0.0, %v5055
    %v5057 = vpop.f32.mrf.mxu0
    %5058 = vmatprep.mubr.f32.mxu0 0.0
    %5059 = vmatmul.mubr.f32.gmra.mxu0 %v4789
    %v5060 = vpop.f32.mrf.mxu0
    %v5061 = vadd.f32 0.0, %v5060
    %v5062 = vpop.f32.mrf.mxu0
    %5063 = vmatprep.mubr.f32.mxu0 0.0
    %5064 = vmatmul.mubr.f32.gmra.mxu0 %v4790
    %v5065 = vpop.f32.mrf.mxu0
    %v5066 = vadd.f32 0.0, %v5065
    %v5067 = vpop.f32.mrf.mxu0
    %5068 = vmatprep.mubr.f32.mxu0 0.0
    %5069 = vmatmul.mubr.f32.gmra.mxu0 %v4791
    %v5070 = vpop.f32.mrf.mxu0
    %v5071 = vadd.f32 0.0, %v5070
    %v5072 = vpop.f32.mrf.mxu0
    %5073 = vmatprep.mubr.f32.mxu0 0.0
    %5074 = vmatmul.mubr.f32.gmra.mxu0 %v4792
    %v5075 = vpop.f32.mrf.mxu0
    %v5076 = vadd.f32 0.0, %v5075
    %v5077 = vpop.f32.mrf.mxu0
    %5078 = vmatprep.mubr.f32.mxu0 0.0
    %5079 = vmatmul.mubr.f32.gmra.mxu0 %v4793
    %v5080 = vpop.f32.mrf.mxu0
    %v5081 = vadd.f32 0.0, %v5080
    %v5082 = vpop.f32.mrf.mxu0
    %5083 = vdwg.mxu0
    %5084 = vmatprep.subr.mxu0 0.0
    %5085 = vmatpush1.msra.mxu0 %v4936
    %5086 = vmatprep.subr.mxu0 0.0
    %5087 = vmatpush1.msra.mxu0 %v4931
    %5088 = vmatprep.subr.mxu0 0.0
    %5089 = vmatpush1.msra.mxu0 %v4926
    %5090 = vmatprep.subr.mxu0 0.0
    %5091 = vmatpush1.msra.mxu0 %v4921
    %5092 = vmatprep.subr.mxu0 0.0
    %5093 = vmatpush1.msra.mxu0 %v4916
    %5094 = vmatprep.subr.mxu0 0.0
    %5095 = vmatpush1.msra.mxu0 %v4911
    %5096 = vmatprep.subr.mxu0 0.0
    %5097 = vmatpush1.msra.mxu0 %v4906
    %5098 = vmatprep.subr.mxu0 0.0
    %5099 = vmatpush1.msra.mxu0 %v4901
    %5100 = vmatprep.subr.mxu0 0.0
    %5101 = vmatpush1.msra.mxu0 %v4896
    %5102 = vmatprep.subr.mxu0 0.0
    %5103 = vmatpush1.msra.mxu0 %v4891
    %5104 = vmatprep.subr.mxu0 0.0
    %5105 = vmatpush1.msra.mxu0 %v4886
    %5106 = vmatprep.subr.mxu0 0.0
    %5107 = vmatpush1.msra.mxu0 %v4881
    %5108 = vmatprep.subr.mxu0 0.0
    %5109 = vmatpush1.msra.mxu0 %v4876
    %5110 = vmatprep.subr.mxu0 0.0
    %5111 = vmatpush1.msra.mxu0 %v4871
    %5112 = vmatprep.subr.mxu0 0.0
    %5113 = vmatpush1.msra.mxu0 %v4866
    %5114 = vmatprep.subr.mxu0 0.0
    %5115 = vmatpush1.msra.mxu0 %v4861
    %5116 = vmatprep.subr.mxu0 0.0
    %5117 = vmatpush2.msra.mxu0 0.0
    %5118 = vmatprep.subr.mxu0 0.0
    %5119 = vmatpush2.msra.mxu0 0.0
    %5120 = vmatprep.subr.mxu0 0.0
    %5121 = vmatpush2.msra.mxu0 0.0
    %5122 = vmatprep.subr.mxu0 0.0
    %5123 = vmatpush2.msra.mxu0 0.0
    %5124 = vmatprep.subr.mxu0 0.0
    %5125 = vmatpush2.msra.mxu0 0.0
    %5126 = vmatprep.subr.mxu0 0.0
    %5127 = vmatpush2.msra.mxu0 0.0
    %5128 = vmatprep.subr.mxu0 0.0
    %5129 = vmatpush2.msra.mxu0 0.0
    %5130 = vmatprep.subr.mxu0 0.0
    %5131 = vmatpush2.msra.mxu0 0.0
    %5132 = vmatprep.subr.mxu0 0.0
    %5133 = vmatpush2.msra.mxu0 0.0
    %5134 = vmatprep.subr.mxu0 0.0
    %5135 = vmatpush2.msra.mxu0 0.0
    %5136 = vmatprep.subr.mxu0 0.0
    %5137 = vmatpush2.msra.mxu0 0.0
    %5138 = vmatprep.subr.mxu0 0.0
    %5139 = vmatpush2.msra.mxu0 0.0
    %5140 = vmatprep.subr.mxu0 0.0
    %5141 = vmatpush2.msra.mxu0 0.0
    %5142 = vmatprep.subr.mxu0 0.0
    %5143 = vmatpush2.msra.mxu0 0.0
    %5144 = vmatprep.subr.mxu0 0.0
    %5145 = vmatpush2.msra.mxu0 0.0
    %5146 = vmatprep.subr.mxu0 0.0
    %5147 = vmatpush2.msra.mxu0 0.0
    %5148 = vmatprep.mubr.f32.mxu0 0.0
    %5149 = vmatmul.mubr.f32.gmra.mxu0 %v5006
    %v5150 = vpop.f32.mrf.mxu0
    %v5151 = vadd.f32 0.0, %v5150
    %v5152 = vpop.f32.mrf.mxu0
    %5153 = vmatprep.mubr.f32.mxu0 0.0
    %5154 = vmatmul.mubr.f32.gmra.mxu0 %v5011
    %v5155 = vpop.f32.mrf.mxu0
    %v5156 = vadd.f32 0.0, %v5155
    %v5157 = vpop.f32.mrf.mxu0
    %5158 = vmatprep.mubr.f32.mxu0 0.0
    %5159 = vmatmul.mubr.f32.gmra.mxu0 %v5016
    %v5160 = vpop.f32.mrf.mxu0
    %v5161 = vadd.f32 0.0, %v5160
    %v5162 = vpop.f32.mrf.mxu0
    %5163 = vmatprep.mubr.f32.mxu0 0.0
    %5164 = vmatmul.mubr.f32.gmra.mxu0 %v5021
    %v5165 = vpop.f32.mrf.mxu0
    %v5166 = vadd.f32 0.0, %v5165
    %v5167 = vpop.f32.mrf.mxu0
    %5168 = vmatprep.mubr.f32.mxu0 0.0
    %5169 = vmatmul.mubr.f32.gmra.mxu0 %v5026
    %v5170 = vpop.f32.mrf.mxu0
    %v5171 = vadd.f32 0.0, %v5170
    %v5172 = vpop.f32.mrf.mxu0
    %5173 = vmatprep.mubr.f32.mxu0 0.0
    %5174 = vmatmul.mubr.f32.gmra.mxu0 %v5031
    %v5175 = vpop.f32.mrf.mxu0
    %v5176 = vadd.f32 0.0, %v5175
    %v5177 = vpop.f32.mrf.mxu0
    %5178 = vmatprep.mubr.f32.mxu0 0.0
    %5179 = vmatmul.mubr.f32.gmra.mxu0 %v5036
    %v5180 = vpop.f32.mrf.mxu0
    %v5181 = vadd.f32 0.0, %v5180
    %v5182 = vpop.f32.mrf.mxu0
    %5183 = vmatprep.mubr.f32.mxu0 0.0
    %5184 = vmatmul.mubr.f32.gmra.mxu0 %v5041
    %v5185 = vpop.f32.mrf.mxu0
    %v5186 = vadd.f32 0.0, %v5185
    %v5187 = vpop.f32.mrf.mxu0
    %5188 = vmatprep.mubr.f32.mxu0 0.0
    %5189 = vmatmul.mubr.f32.gmra.mxu0 %v5046
    %v5190 = vpop.f32.mrf.mxu0
    %v5191 = vadd.f32 0.0, %v5190
    %v5192 = vpop.f32.mrf.mxu0
    %5193 = vmatprep.mubr.f32.mxu0 0.0
    %5194 = vmatmul.mubr.f32.gmra.mxu0 %v5051
    %v5195 = vpop.f32.mrf.mxu0
    %v5196 = vadd.f32 0.0, %v5195
    %v5197 = vpop.f32.mrf.mxu0
    %5198 = vmatprep.mubr.f32.mxu0 0.0
    %5199 = vmatmul.mubr.f32.gmra.mxu0 %v5056
    %v5200 = vpop.f32.mrf.mxu0
    %v5201 = vadd.f32 0.0, %v5200
    %v5202 = vpop.f32.mrf.mxu0
    %5203 = vmatprep.mubr.f32.mxu0 0.0
    %5204 = vmatmul.mubr.f32.gmra.mxu0 %v5061
    %v5205 = vpop.f32.mrf.mxu0
    %v5206 = vadd.f32 0.0, %v5205
    %v5207 = vpop.f32.mrf.mxu0
    %5208 = vmatprep.mubr.f32.mxu0 0.0
    %5209 = vmatmul.mubr.f32.gmra.mxu0 %v5066
    %v5210 = vpop.f32.mrf.mxu0
    %v5211 = vadd.f32 0.0, %v5210
    %v5212 = vpop.f32.mrf.mxu0
    %5213 = vmatprep.mubr.f32.mxu0 0.0
    %5214 = vmatmul.mubr.f32.gmra.mxu0 %v5071
    %v5215 = vpop.f32.mrf.mxu0
    %v5216 = vadd.f32 0.0, %v5215
    %v5217 = vpop.f32.mrf.mxu0
    %5218 = vmatprep.mubr.f32.mxu0 0.0
    %5219 = vmatmul.mubr.f32.gmra.mxu0 %v5076
    %v5220 = vpop.f32.mrf.mxu0
    %v5221 = vadd.f32 0.0, %v5220
    %v5222 = vpop.f32.mrf.mxu0
    %5223 = vmatprep.mubr.f32.mxu0 0.0
    %5224 = vmatmul.mubr.f32.gmra.mxu0 %v5081
    %v5225 = vpop.f32.mrf.mxu0
    %v5226 = vadd.f32 0.0, %v5225
    %v5227 = vpop.f32.mrf.mxu0
    %5228 = vdwg.mxu0
    %v5229 = vmul.f32 %v5151, 0.5
    %v5230 = vmul.f32 %v5156, 0.5
    %v5231 = vmul.f32 %v5161, 0.5
    %v5232 = vmul.f32 %v5166, 0.5
    %v5233 = vmul.f32 %v5171, 0.5
    %v5234 = vmul.f32 %v5176, 0.5
    %v5235 = vmul.f32 %v5181, 0.5
    %v5236 = vmul.f32 %v5186, 0.5
    %v5237 = vmul.f32 %v5191, 0.5
    %v5238 = vmul.f32 %v5196, 0.5
    %v5239 = vmul.f32 %v5201, 0.5
    %v5240 = vmul.f32 %v5206, 0.5
    %v5241 = vmul.f32 %v5211, 0.5
    %v5242 = vmul.f32 %v5216, 0.5
    %v5243 = vmul.f32 %v5221, 0.5
    %v5244 = vmul.f32 %v5226, 0.5
    %v5245 = vsub.f32 %v398, %v5229
    %v5246 = vsub.f32 %v399, %v5230
    %v5247 = vsub.f32 %v400, %v5231
    %v5248 = vsub.f32 %v401, %v5232
    %v5249 = vsub.f32 %v402, %v5233
    %v5250 = vsub.f32 %v403, %v5234
    %v5251 = vsub.f32 %v404, %v5235
    %v5252 = vsub.f32 %v405, %v5236
    %v5253 = vsub.f32 %v406, %v5237
    %v5254 = vsub.f32 %v407, %v5238
    %v5255 = vsub.f32 %v408, %v5239
    %v5256 = vsub.f32 %v409, %v5240
    %v5257 = vsub.f32 %v410, %v5241
    %v5258 = vsub.f32 %v411, %v5242
    %v5259 = vsub.f32 %v412, %v5243
    %v5260 = vsub.f32 %v413, %v5244
    %5261 = vmatprep.subr.mxu0 0.0
    %5262 = vmatpush1.msra.mxu0 %v5260
    %5263 = vmatprep.subr.mxu0 0.0
    %5264 = vmatpush1.msra.mxu0 %v5259
    %5265 = vmatprep.subr.mxu0 0.0
    %5266 = vmatpush1.msra.mxu0 %v5258
    %5267 = vmatprep.subr.mxu0 0.0
    %5268 = vmatpush1.msra.mxu0 %v5257
    %5269 = vmatprep.subr.mxu0 0.0
    %5270 = vmatpush1.msra.mxu0 %v5256
    %5271 = vmatprep.subr.mxu0 0.0
    %5272 = vmatpush1.msra.mxu0 %v5255
    %5273 = vmatprep.subr.mxu0 0.0
    %5274 = vmatpush1.msra.mxu0 %v5254
    %5275 = vmatprep.subr.mxu0 0.0
    %5276 = vmatpush1.msra.mxu0 %v5253
    %5277 = vmatprep.subr.mxu0 0.0
    %5278 = vmatpush1.msra.mxu0 %v5252
    %5279 = vmatprep.subr.mxu0 0.0
    %5280 = vmatpush1.msra.mxu0 %v5251
    %5281 = vmatprep.subr.mxu0 0.0
    %5282 = vmatpush1.msra.mxu0 %v5250
    %5283 = vmatprep.subr.mxu0 0.0
    %5284 = vmatpush1.msra.mxu0 %v5249
    %5285 = vmatprep.subr.mxu0 0.0
    %5286 = vmatpush1.msra.mxu0 %v5248
    %5287 = vmatprep.subr.mxu0 0.0
    %5288 = vmatpush1.msra.mxu0 %v5247
    %5289 = vmatprep.subr.mxu0 0.0
    %5290 = vmatpush1.msra.mxu0 %v5246
    %5291 = vmatprep.subr.mxu0 0.0
    %5292 = vmatpush1.msra.mxu0 %v5245
    %5293 = vmatprep.subr.mxu0 0.0
    %5294 = vmatpush2.msra.mxu0 0.0
    %5295 = vmatprep.subr.mxu0 0.0
    %5296 = vmatpush2.msra.mxu0 0.0
    %5297 = vmatprep.subr.mxu0 0.0
    %5298 = vmatpush2.msra.mxu0 0.0
    %5299 = vmatprep.subr.mxu0 0.0
    %5300 = vmatpush2.msra.mxu0 0.0
    %5301 = vmatprep.subr.mxu0 0.0
    %5302 = vmatpush2.msra.mxu0 0.0
    %5303 = vmatprep.subr.mxu0 0.0
    %5304 = vmatpush2.msra.mxu0 0.0
    %5305 = vmatprep.subr.mxu0 0.0
    %5306 = vmatpush2.msra.mxu0 0.0
    %5307 = vmatprep.subr.mxu0 0.0
    %5308 = vmatpush2.msra.mxu0 0.0
    %5309 = vmatprep.subr.mxu0 0.0
    %5310 = vmatpush2.msra.mxu0 0.0
    %5311 = vmatprep.subr.mxu0 0.0
    %5312 = vmatpush2.msra.mxu0 0.0
    %5313 = vmatprep.subr.mxu0 0.0
    %5314 = vmatpush2.msra.mxu0 0.0
    %5315 = vmatprep.subr.mxu0 0.0
    %5316 = vmatpush2.msra.mxu0 0.0
    %5317 = vmatprep.subr.mxu0 0.0
    %5318 = vmatpush2.msra.mxu0 0.0
    %5319 = vmatprep.subr.mxu0 0.0
    %5320 = vmatpush2.msra.mxu0 0.0
    %5321 = vmatprep.subr.mxu0 0.0
    %5322 = vmatpush2.msra.mxu0 0.0
    %5323 = vmatprep.subr.mxu0 0.0
    %5324 = vmatpush2.msra.mxu0 0.0
    %5325 = vmatprep.mubr.f32.mxu0 0.0
    %5326 = vmatmul.mubr.f32.gmra.mxu0 %v4861
    %v5327 = vpop.f32.mrf.mxu0
    %v5328 = vadd.f32 0.0, %v5327
    %v5329 = vpop.f32.mrf.mxu0
    %5330 = vmatprep.mubr.f32.mxu0 0.0
    %5331 = vmatmul.mubr.f32.gmra.mxu0 %v4866
    %v5332 = vpop.f32.mrf.mxu0
    %v5333 = vadd.f32 0.0, %v5332
    %v5334 = vpop.f32.mrf.mxu0
    %5335 = vmatprep.mubr.f32.mxu0 0.0
    %5336 = vmatmul.mubr.f32.gmra.mxu0 %v4871
    %v5337 = vpop.f32.mrf.mxu0
    %v5338 = vadd.f32 0.0, %v5337
    %v5339 = vpop.f32.mrf.mxu0
    %5340 = vmatprep.mubr.f32.mxu0 0.0
    %5341 = vmatmul.mubr.f32.gmra.mxu0 %v4876
    %v5342 = vpop.f32.mrf.mxu0
    %v5343 = vadd.f32 0.0, %v5342
    %v5344 = vpop.f32.mrf.mxu0
    %5345 = vmatprep.mubr.f32.mxu0 0.0
    %5346 = vmatmul.mubr.f32.gmra.mxu0 %v4881
    %v5347 = vpop.f32.mrf.mxu0
    %v5348 = vadd.f32 0.0, %v5347
    %v5349 = vpop.f32.mrf.mxu0
    %5350 = vmatprep.mubr.f32.mxu0 0.0
    %5351 = vmatmul.mubr.f32.gmra.mxu0 %v4886
    %v5352 = vpop.f32.mrf.mxu0
    %v5353 = vadd.f32 0.0, %v5352
    %v5354 = vpop.f32.mrf.mxu0
    %5355 = vmatprep.mubr.f32.mxu0 0.0
    %5356 = vmatmul.mubr.f32.gmra.mxu0 %v4891
    %v5357 = vpop.f32.mrf.mxu0
    %v5358 = vadd.f32 0.0, %v5357
    %v5359 = vpop.f32.mrf.mxu0
    %5360 = vmatprep.mubr.f32.mxu0 0.0
    %5361 = vmatmul.mubr.f32.gmra.mxu0 %v4896
    %v5362 = vpop.f32.mrf.mxu0
    %v5363 = vadd.f32 0.0, %v5362
    %v5364 = vpop.f32.mrf.mxu0
    %5365 = vmatprep.mubr.f32.mxu0 0.0
    %5366 = vmatmul.mubr.f32.gmra.mxu0 %v4901
    %v5367 = vpop.f32.mrf.mxu0
    %v5368 = vadd.f32 0.0, %v5367
    %v5369 = vpop.f32.mrf.mxu0
    %5370 = vmatprep.mubr.f32.mxu0 0.0
    %5371 = vmatmul.mubr.f32.gmra.mxu0 %v4906
    %v5372 = vpop.f32.mrf.mxu0
    %v5373 = vadd.f32 0.0, %v5372
    %v5374 = vpop.f32.mrf.mxu0
    %5375 = vmatprep.mubr.f32.mxu0 0.0
    %5376 = vmatmul.mubr.f32.gmra.mxu0 %v4911
    %v5377 = vpop.f32.mrf.mxu0
    %v5378 = vadd.f32 0.0, %v5377
    %v5379 = vpop.f32.mrf.mxu0
    %5380 = vmatprep.mubr.f32.mxu0 0.0
    %5381 = vmatmul.mubr.f32.gmra.mxu0 %v4916
    %v5382 = vpop.f32.mrf.mxu0
    %v5383 = vadd.f32 0.0, %v5382
    %v5384 = vpop.f32.mrf.mxu0
    %5385 = vmatprep.mubr.f32.mxu0 0.0
    %5386 = vmatmul.mubr.f32.gmra.mxu0 %v4921
    %v5387 = vpop.f32.mrf.mxu0
    %v5388 = vadd.f32 0.0, %v5387
    %v5389 = vpop.f32.mrf.mxu0
    %5390 = vmatprep.mubr.f32.mxu0 0.0
    %5391 = vmatmul.mubr.f32.gmra.mxu0 %v4926
    %v5392 = vpop.f32.mrf.mxu0
    %v5393 = vadd.f32 0.0, %v5392
    %v5394 = vpop.f32.mrf.mxu0
    %5395 = vmatprep.mubr.f32.mxu0 0.0
    %5396 = vmatmul.mubr.f32.gmra.mxu0 %v4931
    %v5397 = vpop.f32.mrf.mxu0
    %v5398 = vadd.f32 0.0, %v5397
    %v5399 = vpop.f32.mrf.mxu0
    %5400 = vmatprep.mubr.f32.mxu0 0.0
    %5401 = vmatmul.mubr.f32.gmra.mxu0 %v4936
    %v5402 = vpop.f32.mrf.mxu0
    %v5403 = vadd.f32 0.0, %v5402
    %v5404 = vpop.f32.mrf.mxu0
    %5405 = vdwg.mxu0
    %5406 = vmatprep.subr.mxu0 0.0
    %5407 = vmatpush1.msra.mxu0 %v5081
    %5408 = vmatprep.subr.mxu0 0.0
    %5409 = vmatpush1.msra.mxu0 %v5076
    %5410 = vmatprep.subr.mxu0 0.0
    %5411 = vmatpush1.msra.mxu0 %v5071
    %5412 = vmatprep.subr.mxu0 0.0
    %5413 = vmatpush1.msra.mxu0 %v5066
    %5414 = vmatprep.subr.mxu0 0.0
    %5415 = vmatpush1.msra.mxu0 %v5061
    %5416 = vmatprep.subr.mxu0 0.0
    %5417 = vmatpush1.msra.mxu0 %v5056
    %5418 = vmatprep.subr.mxu0 0.0
    %5419 = vmatpush1.msra.mxu0 %v5051
    %5420 = vmatprep.subr.mxu0 0.0
    %5421 = vmatpush1.msra.mxu0 %v5046
    %5422 = vmatprep.subr.mxu0 0.0
    %5423 = vmatpush1.msra.mxu0 %v5041
    %5424 = vmatprep.subr.mxu0 0.0
    %5425 = vmatpush1.msra.mxu0 %v5036
    %5426 = vmatprep.subr.mxu0 0.0
    %5427 = vmatpush1.msra.mxu0 %v5031
    %5428 = vmatprep.subr.mxu0 0.0
    %5429 = vmatpush1.msra.mxu0 %v5026
    %5430 = vmatprep.subr.mxu0 0.0
    %5431 = vmatpush1.msra.mxu0 %v5021
    %5432 = vmatprep.subr.mxu0 0.0
    %5433 = vmatpush1.msra.mxu0 %v5016
    %5434 = vmatprep.subr.mxu0 0.0
    %5435 = vmatpush1.msra.mxu0 %v5011
    %5436 = vmatprep.subr.mxu0 0.0
    %5437 = vmatpush1.msra.mxu0 %v5006
    %5438 = vmatprep.subr.mxu0 0.0
    %5439 = vmatpush2.msra.mxu0 0.0
    %5440 = vmatprep.subr.mxu0 0.0
    %5441 = vmatpush2.msra.mxu0 0.0
    %5442 = vmatprep.subr.mxu0 0.0
    %5443 = vmatpush2.msra.mxu0 0.0
    %5444 = vmatprep.subr.mxu0 0.0
    %5445 = vmatpush2.msra.mxu0 0.0
    %5446 = vmatprep.subr.mxu0 0.0
    %5447 = vmatpush2.msra.mxu0 0.0
    %5448 = vmatprep.subr.mxu0 0.0
    %5449 = vmatpush2.msra.mxu0 0.0
    %5450 = vmatprep.subr.mxu0 0.0
    %5451 = vmatpush2.msra.mxu0 0.0
    %5452 = vmatprep.subr.mxu0 0.0
    %5453 = vmatpush2.msra.mxu0 0.0
    %5454 = vmatprep.subr.mxu0 0.0
    %5455 = vmatpush2.msra.mxu0 0.0
    %5456 = vmatprep.subr.mxu0 0.0
    %5457 = vmatpush2.msra.mxu0 0.0
    %5458 = vmatprep.subr.mxu0 0.0
    %5459 = vmatpush2.msra.mxu0 0.0
    %5460 = vmatprep.subr.mxu0 0.0
    %5461 = vmatpush2.msra.mxu0 0.0
    %5462 = vmatprep.subr.mxu0 0.0
    %5463 = vmatpush2.msra.mxu0 0.0
    %5464 = vmatprep.subr.mxu0 0.0
    %5465 = vmatpush2.msra.mxu0 0.0
    %5466 = vmatprep.subr.mxu0 0.0
    %5467 = vmatpush2.msra.mxu0 0.0
    %5468 = vmatprep.subr.mxu0 0.0
    %5469 = vmatpush2.msra.mxu0 0.0
    %5470 = vmatprep.mubr.f32.mxu0 0.0
    %5471 = vmatmul.mubr.f32.gmra.mxu0 %v5245
    %v5472 = vpop.f32.mrf.mxu0
    %v5473 = vadd.f32 0.0, %v5472
    %v5474 = vpop.f32.mrf.mxu0
    %5475 = vmatprep.mubr.f32.mxu0 0.0
    %5476 = vmatmul.mubr.f32.gmra.mxu0 %v5246
    %v5477 = vpop.f32.mrf.mxu0
    %v5478 = vadd.f32 0.0, %v5477
    %v5479 = vpop.f32.mrf.mxu0
    %5480 = vmatprep.mubr.f32.mxu0 0.0
    %5481 = vmatmul.mubr.f32.gmra.mxu0 %v5247
    %v5482 = vpop.f32.mrf.mxu0
    %v5483 = vadd.f32 0.0, %v5482
    %v5484 = vpop.f32.mrf.mxu0
    %5485 = vmatprep.mubr.f32.mxu0 0.0
    %5486 = vmatmul.mubr.f32.gmra.mxu0 %v5248
    %v5487 = vpop.f32.mrf.mxu0
    %v5488 = vadd.f32 0.0, %v5487
    %v5489 = vpop.f32.mrf.mxu0
    %5490 = vmatprep.mubr.f32.mxu0 0.0
    %5491 = vmatmul.mubr.f32.gmra.mxu0 %v5249
    %v5492 = vpop.f32.mrf.mxu0
    %v5493 = vadd.f32 0.0, %v5492
    %v5494 = vpop.f32.mrf.mxu0
    %5495 = vmatprep.mubr.f32.mxu0 0.0
    %5496 = vmatmul.mubr.f32.gmra.mxu0 %v5250
    %v5497 = vpop.f32.mrf.mxu0
    %v5498 = vadd.f32 0.0, %v5497
    %v5499 = vpop.f32.mrf.mxu0
    %5500 = vmatprep.mubr.f32.mxu0 0.0
    %5501 = vmatmul.mubr.f32.gmra.mxu0 %v5251
    %v5502 = vpop.f32.mrf.mxu0
    %v5503 = vadd.f32 0.0, %v5502
    %v5504 = vpop.f32.mrf.mxu0
    %5505 = vmatprep.mubr.f32.mxu0 0.0
    %5506 = vmatmul.mubr.f32.gmra.mxu0 %v5252
    %v5507 = vpop.f32.mrf.mxu0
    %v5508 = vadd.f32 0.0, %v5507
    %v5509 = vpop.f32.mrf.mxu0
    %5510 = vmatprep.mubr.f32.mxu0 0.0
    %5511 = vmatmul.mubr.f32.gmra.mxu0 %v5253
    %v5512 = vpop.f32.mrf.mxu0
    %v5513 = vadd.f32 0.0, %v5512
    %v5514 = vpop.f32.mrf.mxu0
    %5515 = vmatprep.mubr.f32.mxu0 0.0
    %5516 = vmatmul.mubr.f32.gmra.mxu0 %v5254
    %v5517 = vpop.f32.mrf.mxu0
    %v5518 = vadd.f32 0.0, %v5517
    %v5519 = vpop.f32.mrf.mxu0
    %5520 = vmatprep.mubr.f32.mxu0 0.0
    %5521 = vmatmul.mubr.f32.gmra.mxu0 %v5255
    %v5522 = vpop.f32.mrf.mxu0
    %v5523 = vadd.f32 0.0, %v5522
    %v5524 = vpop.f32.mrf.mxu0
    %5525 = vmatprep.mubr.f32.mxu0 0.0
    %5526 = vmatmul.mubr.f32.gmra.mxu0 %v5256
    %v5527 = vpop.f32.mrf.mxu0
    %v5528 = vadd.f32 0.0, %v5527
    %v5529 = vpop.f32.mrf.mxu0
    %5530 = vmatprep.mubr.f32.mxu0 0.0
    %5531 = vmatmul.mubr.f32.gmra.mxu0 %v5257
    %v5532 = vpop.f32.mrf.mxu0
    %v5533 = vadd.f32 0.0, %v5532
    %v5534 = vpop.f32.mrf.mxu0
    %5535 = vmatprep.mubr.f32.mxu0 0.0
    %5536 = vmatmul.mubr.f32.gmra.mxu0 %v5258
    %v5537 = vpop.f32.mrf.mxu0
    %v5538 = vadd.f32 0.0, %v5537
    %v5539 = vpop.f32.mrf.mxu0
    %5540 = vmatprep.mubr.f32.mxu0 0.0
    %5541 = vmatmul.mubr.f32.gmra.mxu0 %v5259
    %v5542 = vpop.f32.mrf.mxu0
    %v5543 = vadd.f32 0.0, %v5542
    %v5544 = vpop.f32.mrf.mxu0
    %5545 = vmatprep.mubr.f32.mxu0 0.0
    %5546 = vmatmul.mubr.f32.gmra.mxu0 %v5260
    %v5547 = vpop.f32.mrf.mxu0
    %v5548 = vadd.f32 0.0, %v5547
    %v5549 = vpop.f32.mrf.mxu0
    %5550 = vdwg.mxu0
    %5551 = vmatprep.subr.mxu0 0.0
    %5552 = vmatpush1.msra.mxu0 %v5403
    %5553 = vmatprep.subr.mxu0 0.0
    %5554 = vmatpush1.msra.mxu0 %v5398
    %5555 = vmatprep.subr.mxu0 0.0
    %5556 = vmatpush1.msra.mxu0 %v5393
    %5557 = vmatprep.subr.mxu0 0.0
    %5558 = vmatpush1.msra.mxu0 %v5388
    %5559 = vmatprep.subr.mxu0 0.0
    %5560 = vmatpush1.msra.mxu0 %v5383
    %5561 = vmatprep.subr.mxu0 0.0
    %5562 = vmatpush1.msra.mxu0 %v5378
    %5563 = vmatprep.subr.mxu0 0.0
    %5564 = vmatpush1.msra.mxu0 %v5373
    %5565 = vmatprep.subr.mxu0 0.0
    %5566 = vmatpush1.msra.mxu0 %v5368
    %5567 = vmatprep.subr.mxu0 0.0
    %5568 = vmatpush1.msra.mxu0 %v5363
    %5569 = vmatprep.subr.mxu0 0.0
    %5570 = vmatpush1.msra.mxu0 %v5358
    %5571 = vmatprep.subr.mxu0 0.0
    %5572 = vmatpush1.msra.mxu0 %v5353
    %5573 = vmatprep.subr.mxu0 0.0
    %5574 = vmatpush1.msra.mxu0 %v5348
    %5575 = vmatprep.subr.mxu0 0.0
    %5576 = vmatpush1.msra.mxu0 %v5343
    %5577 = vmatprep.subr.mxu0 0.0
    %5578 = vmatpush1.msra.mxu0 %v5338
    %5579 = vmatprep.subr.mxu0 0.0
    %5580 = vmatpush1.msra.mxu0 %v5333
    %5581 = vmatprep.subr.mxu0 0.0
    %5582 = vmatpush1.msra.mxu0 %v5328
    %5583 = vmatprep.subr.mxu0 0.0
    %5584 = vmatpush2.msra.mxu0 0.0
    %5585 = vmatprep.subr.mxu0 0.0
    %5586 = vmatpush2.msra.mxu0 0.0
    %5587 = vmatprep.subr.mxu0 0.0
    %5588 = vmatpush2.msra.mxu0 0.0
    %5589 = vmatprep.subr.mxu0 0.0
    %5590 = vmatpush2.msra.mxu0 0.0
    %5591 = vmatprep.subr.mxu0 0.0
    %5592 = vmatpush2.msra.mxu0 0.0
    %5593 = vmatprep.subr.mxu0 0.0
    %5594 = vmatpush2.msra.mxu0 0.0
    %5595 = vmatprep.subr.mxu0 0.0
    %5596 = vmatpush2.msra.mxu0 0.0
    %5597 = vmatprep.subr.mxu0 0.0
    %5598 = vmatpush2.msra.mxu0 0.0
    %5599 = vmatprep.subr.mxu0 0.0
    %5600 = vmatpush2.msra.mxu0 0.0
    %5601 = vmatprep.subr.mxu0 0.0
    %5602 = vmatpush2.msra.mxu0 0.0
    %5603 = vmatprep.subr.mxu0 0.0
    %5604 = vmatpush2.msra.mxu0 0.0
    %5605 = vmatprep.subr.mxu0 0.0
    %5606 = vmatpush2.msra.mxu0 0.0
    %5607 = vmatprep.subr.mxu0 0.0
    %5608 = vmatpush2.msra.mxu0 0.0
    %5609 = vmatprep.subr.mxu0 0.0
    %5610 = vmatpush2.msra.mxu0 0.0
    %5611 = vmatprep.subr.mxu0 0.0
    %5612 = vmatpush2.msra.mxu0 0.0
    %5613 = vmatprep.subr.mxu0 0.0
    %5614 = vmatpush2.msra.mxu0 0.0
    %5615 = vmatprep.mubr.f32.mxu0 0.0
    %5616 = vmatmul.mubr.f32.gmra.mxu0 %v5473
    %v5617 = vpop.f32.mrf.mxu0
    %v5618 = vadd.f32 0.0, %v5617
    %v5619 = vpop.f32.mrf.mxu0
    %5620 = vmatprep.mubr.f32.mxu0 0.0
    %5621 = vmatmul.mubr.f32.gmra.mxu0 %v5478
    %v5622 = vpop.f32.mrf.mxu0
    %v5623 = vadd.f32 0.0, %v5622
    %v5624 = vpop.f32.mrf.mxu0
    %5625 = vmatprep.mubr.f32.mxu0 0.0
    %5626 = vmatmul.mubr.f32.gmra.mxu0 %v5483
    %v5627 = vpop.f32.mrf.mxu0
    %v5628 = vadd.f32 0.0, %v5627
    %v5629 = vpop.f32.mrf.mxu0
    %5630 = vmatprep.mubr.f32.mxu0 0.0
    %5631 = vmatmul.mubr.f32.gmra.mxu0 %v5488
    %v5632 = vpop.f32.mrf.mxu0
    %v5633 = vadd.f32 0.0, %v5632
    %v5634 = vpop.f32.mrf.mxu0
    %5635 = vmatprep.mubr.f32.mxu0 0.0
    %5636 = vmatmul.mubr.f32.gmra.mxu0 %v5493
    %v5637 = vpop.f32.mrf.mxu0
    %v5638 = vadd.f32 0.0, %v5637
    %v5639 = vpop.f32.mrf.mxu0
    %5640 = vmatprep.mubr.f32.mxu0 0.0
    %5641 = vmatmul.mubr.f32.gmra.mxu0 %v5498
    %v5642 = vpop.f32.mrf.mxu0
    %v5643 = vadd.f32 0.0, %v5642
    %v5644 = vpop.f32.mrf.mxu0
    %5645 = vmatprep.mubr.f32.mxu0 0.0
    %5646 = vmatmul.mubr.f32.gmra.mxu0 %v5503
    %v5647 = vpop.f32.mrf.mxu0
    %v5648 = vadd.f32 0.0, %v5647
    %v5649 = vpop.f32.mrf.mxu0
    %5650 = vmatprep.mubr.f32.mxu0 0.0
    %5651 = vmatmul.mubr.f32.gmra.mxu0 %v5508
    %v5652 = vpop.f32.mrf.mxu0
    %v5653 = vadd.f32 0.0, %v5652
    %v5654 = vpop.f32.mrf.mxu0
    %5655 = vmatprep.mubr.f32.mxu0 0.0
    %5656 = vmatmul.mubr.f32.gmra.mxu0 %v5513
    %v5657 = vpop.f32.mrf.mxu0
    %v5658 = vadd.f32 0.0, %v5657
    %v5659 = vpop.f32.mrf.mxu0
    %5660 = vmatprep.mubr.f32.mxu0 0.0
    %5661 = vmatmul.mubr.f32.gmra.mxu0 %v5518
    %v5662 = vpop.f32.mrf.mxu0
    %v5663 = vadd.f32 0.0, %v5662
    %v5664 = vpop.f32.mrf.mxu0
    %5665 = vmatprep.mubr.f32.mxu0 0.0
    %5666 = vmatmul.mubr.f32.gmra.mxu0 %v5523
    %v5667 = vpop.f32.mrf.mxu0
    %v5668 = vadd.f32 0.0, %v5667
    %v5669 = vpop.f32.mrf.mxu0
    %5670 = vmatprep.mubr.f32.mxu0 0.0
    %5671 = vmatmul.mubr.f32.gmra.mxu0 %v5528
    %v5672 = vpop.f32.mrf.mxu0
    %v5673 = vadd.f32 0.0, %v5672
    %v5674 = vpop.f32.mrf.mxu0
    %5675 = vmatprep.mubr.f32.mxu0 0.0
    %5676 = vmatmul.mubr.f32.gmra.mxu0 %v5533
    %v5677 = vpop.f32.mrf.mxu0
    %v5678 = vadd.f32 0.0, %v5677
    %v5679 = vpop.f32.mrf.mxu0
    %5680 = vmatprep.mubr.f32.mxu0 0.0
    %5681 = vmatmul.mubr.f32.gmra.mxu0 %v5538
    %v5682 = vpop.f32.mrf.mxu0
    %v5683 = vadd.f32 0.0, %v5682
    %v5684 = vpop.f32.mrf.mxu0
    %5685 = vmatprep.mubr.f32.mxu0 0.0
    %5686 = vmatmul.mubr.f32.gmra.mxu0 %v5543
    %v5687 = vpop.f32.mrf.mxu0
    %v5688 = vadd.f32 0.0, %v5687
    %v5689 = vpop.f32.mrf.mxu0
    %5690 = vmatprep.mubr.f32.mxu0 0.0
    %5691 = vmatmul.mubr.f32.gmra.mxu0 %v5548
    %v5692 = vpop.f32.mrf.mxu0
    %v5693 = vadd.f32 0.0, %v5692
    %v5694 = vpop.f32.mrf.mxu0
    %5695 = vdwg.mxu0
    %v5696 = vmul.f32 %v5618, 0.5
    %v5697 = vmul.f32 %v5623, 0.5
    %v5698 = vmul.f32 %v5628, 0.5
    %v5699 = vmul.f32 %v5633, 0.5
    %v5700 = vmul.f32 %v5638, 0.5
    %v5701 = vmul.f32 %v5643, 0.5
    %v5702 = vmul.f32 %v5648, 0.5
    %v5703 = vmul.f32 %v5653, 0.5
    %v5704 = vmul.f32 %v5658, 0.5
    %v5705 = vmul.f32 %v5663, 0.5
    %v5706 = vmul.f32 %v5668, 0.5
    %v5707 = vmul.f32 %v5673, 0.5
    %v5708 = vmul.f32 %v5678, 0.5
    %v5709 = vmul.f32 %v5683, 0.5
    %v5710 = vmul.f32 %v5688, 0.5
    %v5711 = vmul.f32 %v5693, 0.5
    %v5712 = vsub.f32 %v398, %v5696
    %v5713 = vsub.f32 %v399, %v5697
    %v5714 = vsub.f32 %v400, %v5698
    %v5715 = vsub.f32 %v401, %v5699
    %v5716 = vsub.f32 %v402, %v5700
    %v5717 = vsub.f32 %v403, %v5701
    %v5718 = vsub.f32 %v404, %v5702
    %v5719 = vsub.f32 %v405, %v5703
    %v5720 = vsub.f32 %v406, %v5704
    %v5721 = vsub.f32 %v407, %v5705
    %v5722 = vsub.f32 %v408, %v5706
    %v5723 = vsub.f32 %v409, %v5707
    %v5724 = vsub.f32 %v410, %v5708
    %v5725 = vsub.f32 %v411, %v5709
    %v5726 = vsub.f32 %v412, %v5710
    %v5727 = vsub.f32 %v413, %v5711
    %5728 = vmatprep.subr.mxu0 0.0
    %5729 = vmatpush1.msra.mxu0 %v5727
    %5730 = vmatprep.subr.mxu0 0.0
    %5731 = vmatpush1.msra.mxu0 %v5726
    %5732 = vmatprep.subr.mxu0 0.0
    %5733 = vmatpush1.msra.mxu0 %v5725
    %5734 = vmatprep.subr.mxu0 0.0
    %5735 = vmatpush1.msra.mxu0 %v5724
    %5736 = vmatprep.subr.mxu0 0.0
    %5737 = vmatpush1.msra.mxu0 %v5723
    %5738 = vmatprep.subr.mxu0 0.0
    %5739 = vmatpush1.msra.mxu0 %v5722
    %5740 = vmatprep.subr.mxu0 0.0
    %5741 = vmatpush1.msra.mxu0 %v5721
    %5742 = vmatprep.subr.mxu0 0.0
    %5743 = vmatpush1.msra.mxu0 %v5720
    %5744 = vmatprep.subr.mxu0 0.0
    %5745 = vmatpush1.msra.mxu0 %v5719
    %5746 = vmatprep.subr.mxu0 0.0
    %5747 = vmatpush1.msra.mxu0 %v5718
    %5748 = vmatprep.subr.mxu0 0.0
    %5749 = vmatpush1.msra.mxu0 %v5717
    %5750 = vmatprep.subr.mxu0 0.0
    %5751 = vmatpush1.msra.mxu0 %v5716
    %5752 = vmatprep.subr.mxu0 0.0
    %5753 = vmatpush1.msra.mxu0 %v5715
    %5754 = vmatprep.subr.mxu0 0.0
    %5755 = vmatpush1.msra.mxu0 %v5714
    %5756 = vmatprep.subr.mxu0 0.0
    %5757 = vmatpush1.msra.mxu0 %v5713
    %5758 = vmatprep.subr.mxu0 0.0
    %5759 = vmatpush1.msra.mxu0 %v5712
    %5760 = vmatprep.subr.mxu0 0.0
    %5761 = vmatpush2.msra.mxu0 0.0
    %5762 = vmatprep.subr.mxu0 0.0
    %5763 = vmatpush2.msra.mxu0 0.0
    %5764 = vmatprep.subr.mxu0 0.0
    %5765 = vmatpush2.msra.mxu0 0.0
    %5766 = vmatprep.subr.mxu0 0.0
    %5767 = vmatpush2.msra.mxu0 0.0
    %5768 = vmatprep.subr.mxu0 0.0
    %5769 = vmatpush2.msra.mxu0 0.0
    %5770 = vmatprep.subr.mxu0 0.0
    %5771 = vmatpush2.msra.mxu0 0.0
    %5772 = vmatprep.subr.mxu0 0.0
    %5773 = vmatpush2.msra.mxu0 0.0
    %5774 = vmatprep.subr.mxu0 0.0
    %5775 = vmatpush2.msra.mxu0 0.0
    %5776 = vmatprep.subr.mxu0 0.0
    %5777 = vmatpush2.msra.mxu0 0.0
    %5778 = vmatprep.subr.mxu0 0.0
    %5779 = vmatpush2.msra.mxu0 0.0
    %5780 = vmatprep.subr.mxu0 0.0
    %5781 = vmatpush2.msra.mxu0 0.0
    %5782 = vmatprep.subr.mxu0 0.0
    %5783 = vmatpush2.msra.mxu0 0.0
    %5784 = vmatprep.subr.mxu0 0.0
    %5785 = vmatpush2.msra.mxu0 0.0
    %5786 = vmatprep.subr.mxu0 0.0
    %5787 = vmatpush2.msra.mxu0 0.0
    %5788 = vmatprep.subr.mxu0 0.0
    %5789 = vmatpush2.msra.mxu0 0.0
    %5790 = vmatprep.subr.mxu0 0.0
    %5791 = vmatpush2.msra.mxu0 0.0
    %5792 = vmatprep.mubr.f32.mxu0 0.0
    %5793 = vmatmul.mubr.f32.gmra.mxu0 %v5328
    %v5794 = vpop.f32.mrf.mxu0
    %v5795 = vadd.f32 0.0, %v5794
    %v5796 = vpop.f32.mrf.mxu0
    %5797 = vmatprep.mubr.f32.mxu0 0.0
    %5798 = vmatmul.mubr.f32.gmra.mxu0 %v5333
    %v5799 = vpop.f32.mrf.mxu0
    %v5800 = vadd.f32 0.0, %v5799
    %v5801 = vpop.f32.mrf.mxu0
    %5802 = vmatprep.mubr.f32.mxu0 0.0
    %5803 = vmatmul.mubr.f32.gmra.mxu0 %v5338
    %v5804 = vpop.f32.mrf.mxu0
    %v5805 = vadd.f32 0.0, %v5804
    %v5806 = vpop.f32.mrf.mxu0
    %5807 = vmatprep.mubr.f32.mxu0 0.0
    %5808 = vmatmul.mubr.f32.gmra.mxu0 %v5343
    %v5809 = vpop.f32.mrf.mxu0
    %v5810 = vadd.f32 0.0, %v5809
    %v5811 = vpop.f32.mrf.mxu0
    %5812 = vmatprep.mubr.f32.mxu0 0.0
    %5813 = vmatmul.mubr.f32.gmra.mxu0 %v5348
    %v5814 = vpop.f32.mrf.mxu0
    %v5815 = vadd.f32 0.0, %v5814
    %v5816 = vpop.f32.mrf.mxu0
    %5817 = vmatprep.mubr.f32.mxu0 0.0
    %5818 = vmatmul.mubr.f32.gmra.mxu0 %v5353
    %v5819 = vpop.f32.mrf.mxu0
    %v5820 = vadd.f32 0.0, %v5819
    %v5821 = vpop.f32.mrf.mxu0
    %5822 = vmatprep.mubr.f32.mxu0 0.0
    %5823 = vmatmul.mubr.f32.gmra.mxu0 %v5358
    %v5824 = vpop.f32.mrf.mxu0
    %v5825 = vadd.f32 0.0, %v5824
    %v5826 = vpop.f32.mrf.mxu0
    %5827 = vmatprep.mubr.f32.mxu0 0.0
    %5828 = vmatmul.mubr.f32.gmra.mxu0 %v5363
    %v5829 = vpop.f32.mrf.mxu0
    %v5830 = vadd.f32 0.0, %v5829
    %v5831 = vpop.f32.mrf.mxu0
    %5832 = vmatprep.mubr.f32.mxu0 0.0
    %5833 = vmatmul.mubr.f32.gmra.mxu0 %v5368
    %v5834 = vpop.f32.mrf.mxu0
    %v5835 = vadd.f32 0.0, %v5834
    %v5836 = vpop.f32.mrf.mxu0
    %5837 = vmatprep.mubr.f32.mxu0 0.0
    %5838 = vmatmul.mubr.f32.gmra.mxu0 %v5373
    %v5839 = vpop.f32.mrf.mxu0
    %v5840 = vadd.f32 0.0, %v5839
    %v5841 = vpop.f32.mrf.mxu0
    %5842 = vmatprep.mubr.f32.mxu0 0.0
    %5843 = vmatmul.mubr.f32.gmra.mxu0 %v5378
    %v5844 = vpop.f32.mrf.mxu0
    %v5845 = vadd.f32 0.0, %v5844
    %v5846 = vpop.f32.mrf.mxu0
    %5847 = vmatprep.mubr.f32.mxu0 0.0
    %5848 = vmatmul.mubr.f32.gmra.mxu0 %v5383
    %v5849 = vpop.f32.mrf.mxu0
    %v5850 = vadd.f32 0.0, %v5849
    %v5851 = vpop.f32.mrf.mxu0
    %5852 = vmatprep.mubr.f32.mxu0 0.0
    %5853 = vmatmul.mubr.f32.gmra.mxu0 %v5388
    %v5854 = vpop.f32.mrf.mxu0
    %v5855 = vadd.f32 0.0, %v5854
    %v5856 = vpop.f32.mrf.mxu0
    %5857 = vmatprep.mubr.f32.mxu0 0.0
    %5858 = vmatmul.mubr.f32.gmra.mxu0 %v5393
    %v5859 = vpop.f32.mrf.mxu0
    %v5860 = vadd.f32 0.0, %v5859
    %v5861 = vpop.f32.mrf.mxu0
    %5862 = vmatprep.mubr.f32.mxu0 0.0
    %5863 = vmatmul.mubr.f32.gmra.mxu0 %v5398
    %v5864 = vpop.f32.mrf.mxu0
    %v5865 = vadd.f32 0.0, %v5864
    %v5866 = vpop.f32.mrf.mxu0
    %5867 = vmatprep.mubr.f32.mxu0 0.0
    %5868 = vmatmul.mubr.f32.gmra.mxu0 %v5403
    %v5869 = vpop.f32.mrf.mxu0
    %v5870 = vadd.f32 0.0, %v5869
    %v5871 = vpop.f32.mrf.mxu0
    %5872 = vdwg.mxu0
    %5873 = vmatprep.subr.mxu0 0.0
    %5874 = vmatpush1.msra.mxu0 %v5548
    %5875 = vmatprep.subr.mxu0 0.0
    %5876 = vmatpush1.msra.mxu0 %v5543
    %5877 = vmatprep.subr.mxu0 0.0
    %5878 = vmatpush1.msra.mxu0 %v5538
    %5879 = vmatprep.subr.mxu0 0.0
    %5880 = vmatpush1.msra.mxu0 %v5533
    %5881 = vmatprep.subr.mxu0 0.0
    %5882 = vmatpush1.msra.mxu0 %v5528
    %5883 = vmatprep.subr.mxu0 0.0
    %5884 = vmatpush1.msra.mxu0 %v5523
    %5885 = vmatprep.subr.mxu0 0.0
    %5886 = vmatpush1.msra.mxu0 %v5518
    %5887 = vmatprep.subr.mxu0 0.0
    %5888 = vmatpush1.msra.mxu0 %v5513
    %5889 = vmatprep.subr.mxu0 0.0
    %5890 = vmatpush1.msra.mxu0 %v5508
    %5891 = vmatprep.subr.mxu0 0.0
    %5892 = vmatpush1.msra.mxu0 %v5503
    %5893 = vmatprep.subr.mxu0 0.0
    %5894 = vmatpush1.msra.mxu0 %v5498
    %5895 = vmatprep.subr.mxu0 0.0
    %5896 = vmatpush1.msra.mxu0 %v5493
    %5897 = vmatprep.subr.mxu0 0.0
    %5898 = vmatpush1.msra.mxu0 %v5488
    %5899 = vmatprep.subr.mxu0 0.0
    %5900 = vmatpush1.msra.mxu0 %v5483
    %5901 = vmatprep.subr.mxu0 0.0
    %5902 = vmatpush1.msra.mxu0 %v5478
    %5903 = vmatprep.subr.mxu0 0.0
    %5904 = vmatpush1.msra.mxu0 %v5473
    %5905 = vmatprep.subr.mxu0 0.0
    %5906 = vmatpush2.msra.mxu0 0.0
    %5907 = vmatprep.subr.mxu0 0.0
    %5908 = vmatpush2.msra.mxu0 0.0
    %5909 = vmatprep.subr.mxu0 0.0
    %5910 = vmatpush2.msra.mxu0 0.0
    %5911 = vmatprep.subr.mxu0 0.0
    %5912 = vmatpush2.msra.mxu0 0.0
    %5913 = vmatprep.subr.mxu0 0.0
    %5914 = vmatpush2.msra.mxu0 0.0
    %5915 = vmatprep.subr.mxu0 0.0
    %5916 = vmatpush2.msra.mxu0 0.0
    %5917 = vmatprep.subr.mxu0 0.0
    %5918 = vmatpush2.msra.mxu0 0.0
    %5919 = vmatprep.subr.mxu0 0.0
    %5920 = vmatpush2.msra.mxu0 0.0
    %5921 = vmatprep.subr.mxu0 0.0
    %5922 = vmatpush2.msra.mxu0 0.0
    %5923 = vmatprep.subr.mxu0 0.0
    %5924 = vmatpush2.msra.mxu0 0.0
    %5925 = vmatprep.subr.mxu0 0.0
    %5926 = vmatpush2.msra.mxu0 0.0
    %5927 = vmatprep.subr.mxu0 0.0
    %5928 = vmatpush2.msra.mxu0 0.0
    %5929 = vmatprep.subr.mxu0 0.0
    %5930 = vmatpush2.msra.mxu0 0.0
    %5931 = vmatprep.subr.mxu0 0.0
    %5932 = vmatpush2.msra.mxu0 0.0
    %5933 = vmatprep.subr.mxu0 0.0
    %5934 = vmatpush2.msra.mxu0 0.0
    %5935 = vmatprep.subr.mxu0 0.0
    %5936 = vmatpush2.msra.mxu0 0.0
    %5937 = vmatprep.mubr.f32.mxu0 0.0
    %5938 = vmatmul.mubr.f32.gmra.mxu0 %v5712
    %v5939 = vpop.f32.mrf.mxu0
    %v5940 = vadd.f32 0.0, %v5939
    %v5941 = vpop.f32.mrf.mxu0
    %5942 = vmatprep.mubr.f32.mxu0 0.0
    %5943 = vmatmul.mubr.f32.gmra.mxu0 %v5713
    %v5944 = vpop.f32.mrf.mxu0
    %v5945 = vadd.f32 0.0, %v5944
    %v5946 = vpop.f32.mrf.mxu0
    %5947 = vmatprep.mubr.f32.mxu0 0.0
    %5948 = vmatmul.mubr.f32.gmra.mxu0 %v5714
    %v5949 = vpop.f32.mrf.mxu0
    %v5950 = vadd.f32 0.0, %v5949
    %v5951 = vpop.f32.mrf.mxu0
    %5952 = vmatprep.mubr.f32.mxu0 0.0
    %5953 = vmatmul.mubr.f32.gmra.mxu0 %v5715
    %v5954 = vpop.f32.mrf.mxu0
    %v5955 = vadd.f32 0.0, %v5954
    %v5956 = vpop.f32.mrf.mxu0
    %5957 = vmatprep.mubr.f32.mxu0 0.0
    %5958 = vmatmul.mubr.f32.gmra.mxu0 %v5716
    %v5959 = vpop.f32.mrf.mxu0
    %v5960 = vadd.f32 0.0, %v5959
    %v5961 = vpop.f32.mrf.mxu0
    %5962 = vmatprep.mubr.f32.mxu0 0.0
    %5963 = vmatmul.mubr.f32.gmra.mxu0 %v5717
    %v5964 = vpop.f32.mrf.mxu0
    %v5965 = vadd.f32 0.0, %v5964
    %v5966 = vpop.f32.mrf.mxu0
    %5967 = vmatprep.mubr.f32.mxu0 0.0
    %5968 = vmatmul.mubr.f32.gmra.mxu0 %v5718
    %v5969 = vpop.f32.mrf.mxu0
    %v5970 = vadd.f32 0.0, %v5969
    %v5971 = vpop.f32.mrf.mxu0
    %5972 = vmatprep.mubr.f32.mxu0 0.0
    %5973 = vmatmul.mubr.f32.gmra.mxu0 %v5719
    %v5974 = vpop.f32.mrf.mxu0
    %v5975 = vadd.f32 0.0, %v5974
    %v5976 = vpop.f32.mrf.mxu0
    %5977 = vmatprep.mubr.f32.mxu0 0.0
    %5978 = vmatmul.mubr.f32.gmra.mxu0 %v5720
    %v5979 = vpop.f32.mrf.mxu0
    %v5980 = vadd.f32 0.0, %v5979
    %v5981 = vpop.f32.mrf.mxu0
    %5982 = vmatprep.mubr.f32.mxu0 0.0
    %5983 = vmatmul.mubr.f32.gmra.mxu0 %v5721
    %v5984 = vpop.f32.mrf.mxu0
    %v5985 = vadd.f32 0.0, %v5984
    %v5986 = vpop.f32.mrf.mxu0
    %5987 = vmatprep.mubr.f32.mxu0 0.0
    %5988 = vmatmul.mubr.f32.gmra.mxu0 %v5722
    %v5989 = vpop.f32.mrf.mxu0
    %v5990 = vadd.f32 0.0, %v5989
    %v5991 = vpop.f32.mrf.mxu0
    %5992 = vmatprep.mubr.f32.mxu0 0.0
    %5993 = vmatmul.mubr.f32.gmra.mxu0 %v5723
    %v5994 = vpop.f32.mrf.mxu0
    %v5995 = vadd.f32 0.0, %v5994
    %v5996 = vpop.f32.mrf.mxu0
    %5997 = vmatprep.mubr.f32.mxu0 0.0
    %5998 = vmatmul.mubr.f32.gmra.mxu0 %v5724
    %v5999 = vpop.f32.mrf.mxu0
    %v6000 = vadd.f32 0.0, %v5999
    %v6001 = vpop.f32.mrf.mxu0
    %6002 = vmatprep.mubr.f32.mxu0 0.0
    %6003 = vmatmul.mubr.f32.gmra.mxu0 %v5725
    %v6004 = vpop.f32.mrf.mxu0
    %v6005 = vadd.f32 0.0, %v6004
    %v6006 = vpop.f32.mrf.mxu0
    %6007 = vmatprep.mubr.f32.mxu0 0.0
    %6008 = vmatmul.mubr.f32.gmra.mxu0 %v5726
    %v6009 = vpop.f32.mrf.mxu0
    %v6010 = vadd.f32 0.0, %v6009
    %v6011 = vpop.f32.mrf.mxu0
    %6012 = vmatprep.mubr.f32.mxu0 0.0
    %6013 = vmatmul.mubr.f32.gmra.mxu0 %v5727
    %v6014 = vpop.f32.mrf.mxu0
    %v6015 = vadd.f32 0.0, %v6014
    %v6016 = vpop.f32.mrf.mxu0
    %6017 = vdwg.mxu0
    %6018 = vmatprep.subr.mxu0 0.0
    %6019 = vmatpush1.msra.mxu0 %v5870
    %6020 = vmatprep.subr.mxu0 0.0
    %6021 = vmatpush1.msra.mxu0 %v5865
    %6022 = vmatprep.subr.mxu0 0.0
    %6023 = vmatpush1.msra.mxu0 %v5860
    %6024 = vmatprep.subr.mxu0 0.0
    %6025 = vmatpush1.msra.mxu0 %v5855
    %6026 = vmatprep.subr.mxu0 0.0
    %6027 = vmatpush1.msra.mxu0 %v5850
    %6028 = vmatprep.subr.mxu0 0.0
    %6029 = vmatpush1.msra.mxu0 %v5845
    %6030 = vmatprep.subr.mxu0 0.0
    %6031 = vmatpush1.msra.mxu0 %v5840
    %6032 = vmatprep.subr.mxu0 0.0
    %6033 = vmatpush1.msra.mxu0 %v5835
    %6034 = vmatprep.subr.mxu0 0.0
    %6035 = vmatpush1.msra.mxu0 %v5830
    %6036 = vmatprep.subr.mxu0 0.0
    %6037 = vmatpush1.msra.mxu0 %v5825
    %6038 = vmatprep.subr.mxu0 0.0
    %6039 = vmatpush1.msra.mxu0 %v5820
    %6040 = vmatprep.subr.mxu0 0.0
    %6041 = vmatpush1.msra.mxu0 %v5815
    %6042 = vmatprep.subr.mxu0 0.0
    %6043 = vmatpush1.msra.mxu0 %v5810
    %6044 = vmatprep.subr.mxu0 0.0
    %6045 = vmatpush1.msra.mxu0 %v5805
    %6046 = vmatprep.subr.mxu0 0.0
    %6047 = vmatpush1.msra.mxu0 %v5800
    %6048 = vmatprep.subr.mxu0 0.0
    %6049 = vmatpush1.msra.mxu0 %v5795
    %6050 = vmatprep.subr.mxu0 0.0
    %6051 = vmatpush2.msra.mxu0 0.0
    %6052 = vmatprep.subr.mxu0 0.0
    %6053 = vmatpush2.msra.mxu0 0.0
    %6054 = vmatprep.subr.mxu0 0.0
    %6055 = vmatpush2.msra.mxu0 0.0
    %6056 = vmatprep.subr.mxu0 0.0
    %6057 = vmatpush2.msra.mxu0 0.0
    %6058 = vmatprep.subr.mxu0 0.0
    %6059 = vmatpush2.msra.mxu0 0.0
    %6060 = vmatprep.subr.mxu0 0.0
    %6061 = vmatpush2.msra.mxu0 0.0
    %6062 = vmatprep.subr.mxu0 0.0
    %6063 = vmatpush2.msra.mxu0 0.0
    %6064 = vmatprep.subr.mxu0 0.0
    %6065 = vmatpush2.msra.mxu0 0.0
    %6066 = vmatprep.subr.mxu0 0.0
    %6067 = vmatpush2.msra.mxu0 0.0
    %6068 = vmatprep.subr.mxu0 0.0
    %6069 = vmatpush2.msra.mxu0 0.0
    %6070 = vmatprep.subr.mxu0 0.0
    %6071 = vmatpush2.msra.mxu0 0.0
    %6072 = vmatprep.subr.mxu0 0.0
    %6073 = vmatpush2.msra.mxu0 0.0
    %6074 = vmatprep.subr.mxu0 0.0
    %6075 = vmatpush2.msra.mxu0 0.0
    %6076 = vmatprep.subr.mxu0 0.0
    %6077 = vmatpush2.msra.mxu0 0.0
    %6078 = vmatprep.subr.mxu0 0.0
    %6079 = vmatpush2.msra.mxu0 0.0
    %6080 = vmatprep.subr.mxu0 0.0
    %6081 = vmatpush2.msra.mxu0 0.0
    %6082 = vmatprep.mubr.f32.mxu0 0.0
    %6083 = vmatmul.mubr.f32.gmra.mxu0 %v5940
    %v6084 = vpop.f32.mrf.mxu0
    %v6085 = vadd.f32 0.0, %v6084
    %v6086 = vpop.f32.mrf.mxu0
    %6087 = vmatprep.mubr.f32.mxu0 0.0
    %6088 = vmatmul.mubr.f32.gmra.mxu0 %v5945
    %v6089 = vpop.f32.mrf.mxu0
    %v6090 = vadd.f32 0.0, %v6089
    %v6091 = vpop.f32.mrf.mxu0
    %6092 = vmatprep.mubr.f32.mxu0 0.0
    %6093 = vmatmul.mubr.f32.gmra.mxu0 %v5950
    %v6094 = vpop.f32.mrf.mxu0
    %v6095 = vadd.f32 0.0, %v6094
    %v6096 = vpop.f32.mrf.mxu0
    %6097 = vmatprep.mubr.f32.mxu0 0.0
    %6098 = vmatmul.mubr.f32.gmra.mxu0 %v5955
    %v6099 = vpop.f32.mrf.mxu0
    %v6100 = vadd.f32 0.0, %v6099
    %v6101 = vpop.f32.mrf.mxu0
    %6102 = vmatprep.mubr.f32.mxu0 0.0
    %6103 = vmatmul.mubr.f32.gmra.mxu0 %v5960
    %v6104 = vpop.f32.mrf.mxu0
    %v6105 = vadd.f32 0.0, %v6104
    %v6106 = vpop.f32.mrf.mxu0
    %6107 = vmatprep.mubr.f32.mxu0 0.0
    %6108 = vmatmul.mubr.f32.gmra.mxu0 %v5965
    %v6109 = vpop.f32.mrf.mxu0
    %v6110 = vadd.f32 0.0, %v6109
    %v6111 = vpop.f32.mrf.mxu0
    %6112 = vmatprep.mubr.f32.mxu0 0.0
    %6113 = vmatmul.mubr.f32.gmra.mxu0 %v5970
    %v6114 = vpop.f32.mrf.mxu0
    %v6115 = vadd.f32 0.0, %v6114
    %v6116 = vpop.f32.mrf.mxu0
    %6117 = vmatprep.mubr.f32.mxu0 0.0
    %6118 = vmatmul.mubr.f32.gmra.mxu0 %v5975
    %v6119 = vpop.f32.mrf.mxu0
    %v6120 = vadd.f32 0.0, %v6119
    %v6121 = vpop.f32.mrf.mxu0
    %6122 = vmatprep.mubr.f32.mxu0 0.0
    %6123 = vmatmul.mubr.f32.gmra.mxu0 %v5980
    %v6124 = vpop.f32.mrf.mxu0
    %v6125 = vadd.f32 0.0, %v6124
    %v6126 = vpop.f32.mrf.mxu0
    %6127 = vmatprep.mubr.f32.mxu0 0.0
    %6128 = vmatmul.mubr.f32.gmra.mxu0 %v5985
    %v6129 = vpop.f32.mrf.mxu0
    %v6130 = vadd.f32 0.0, %v6129
    %v6131 = vpop.f32.mrf.mxu0
    %6132 = vmatprep.mubr.f32.mxu0 0.0
    %6133 = vmatmul.mubr.f32.gmra.mxu0 %v5990
    %v6134 = vpop.f32.mrf.mxu0
    %v6135 = vadd.f32 0.0, %v6134
    %v6136 = vpop.f32.mrf.mxu0
    %6137 = vmatprep.mubr.f32.mxu0 0.0
    %6138 = vmatmul.mubr.f32.gmra.mxu0 %v5995
    %v6139 = vpop.f32.mrf.mxu0
    %v6140 = vadd.f32 0.0, %v6139
    %v6141 = vpop.f32.mrf.mxu0
    %6142 = vmatprep.mubr.f32.mxu0 0.0
    %6143 = vmatmul.mubr.f32.gmra.mxu0 %v6000
    %v6144 = vpop.f32.mrf.mxu0
    %v6145 = vadd.f32 0.0, %v6144
    %v6146 = vpop.f32.mrf.mxu0
    %6147 = vmatprep.mubr.f32.mxu0 0.0
    %6148 = vmatmul.mubr.f32.gmra.mxu0 %v6005
    %v6149 = vpop.f32.mrf.mxu0
    %v6150 = vadd.f32 0.0, %v6149
    %v6151 = vpop.f32.mrf.mxu0
    %6152 = vmatprep.mubr.f32.mxu0 0.0
    %6153 = vmatmul.mubr.f32.gmra.mxu0 %v6010
    %v6154 = vpop.f32.mrf.mxu0
    %v6155 = vadd.f32 0.0, %v6154
    %v6156 = vpop.f32.mrf.mxu0
    %6157 = vmatprep.mubr.f32.mxu0 0.0
    %6158 = vmatmul.mubr.f32.gmra.mxu0 %v6015
    %v6159 = vpop.f32.mrf.mxu0
    %v6160 = vadd.f32 0.0, %v6159
    %v6161 = vpop.f32.mrf.mxu0
    %6162 = vdwg.mxu0
    %v6163 = vmul.f32 %v6085, 0.5
    %v6164 = vmul.f32 %v6090, 0.5
    %v6165 = vmul.f32 %v6095, 0.5
    %v6166 = vmul.f32 %v6100, 0.5
    %v6167 = vmul.f32 %v6105, 0.5
    %v6168 = vmul.f32 %v6110, 0.5
    %v6169 = vmul.f32 %v6115, 0.5
    %v6170 = vmul.f32 %v6120, 0.5
    %v6171 = vmul.f32 %v6125, 0.5
    %v6172 = vmul.f32 %v6130, 0.5
    %v6173 = vmul.f32 %v6135, 0.5
    %v6174 = vmul.f32 %v6140, 0.5
    %v6175 = vmul.f32 %v6145, 0.5
    %v6176 = vmul.f32 %v6150, 0.5
    %v6177 = vmul.f32 %v6155, 0.5
    %v6178 = vmul.f32 %v6160, 0.5
    %v6179 = vsub.f32 %v398, %v6163
    %v6180 = vsub.f32 %v399, %v6164
    %v6181 = vsub.f32 %v400, %v6165
    %v6182 = vsub.f32 %v401, %v6166
    %v6183 = vsub.f32 %v402, %v6167
    %v6184 = vsub.f32 %v403, %v6168
    %v6185 = vsub.f32 %v404, %v6169
    %v6186 = vsub.f32 %v405, %v6170
    %v6187 = vsub.f32 %v406, %v6171
    %v6188 = vsub.f32 %v407, %v6172
    %v6189 = vsub.f32 %v408, %v6173
    %v6190 = vsub.f32 %v409, %v6174
    %v6191 = vsub.f32 %v410, %v6175
    %v6192 = vsub.f32 %v411, %v6176
    %v6193 = vsub.f32 %v412, %v6177
    %v6194 = vsub.f32 %v413, %v6178
    %6195 = vmatprep.subr.mxu0 0.0
    %6196 = vmatpush1.msra.mxu0 %v6194
    %6197 = vmatprep.subr.mxu0 0.0
    %6198 = vmatpush1.msra.mxu0 %v6193
    %6199 = vmatprep.subr.mxu0 0.0
    %6200 = vmatpush1.msra.mxu0 %v6192
    %6201 = vmatprep.subr.mxu0 0.0
    %6202 = vmatpush1.msra.mxu0 %v6191
    %6203 = vmatprep.subr.mxu0 0.0
    %6204 = vmatpush1.msra.mxu0 %v6190
    %6205 = vmatprep.subr.mxu0 0.0
    %6206 = vmatpush1.msra.mxu0 %v6189
    %6207 = vmatprep.subr.mxu0 0.0
    %6208 = vmatpush1.msra.mxu0 %v6188
    %6209 = vmatprep.subr.mxu0 0.0
    %6210 = vmatpush1.msra.mxu0 %v6187
    %6211 = vmatprep.subr.mxu0 0.0
    %6212 = vmatpush1.msra.mxu0 %v6186
    %6213 = vmatprep.subr.mxu0 0.0
    %6214 = vmatpush1.msra.mxu0 %v6185
    %6215 = vmatprep.subr.mxu0 0.0
    %6216 = vmatpush1.msra.mxu0 %v6184
    %6217 = vmatprep.subr.mxu0 0.0
    %6218 = vmatpush1.msra.mxu0 %v6183
    %6219 = vmatprep.subr.mxu0 0.0
    %6220 = vmatpush1.msra.mxu0 %v6182
    %6221 = vmatprep.subr.mxu0 0.0
    %6222 = vmatpush1.msra.mxu0 %v6181
    %6223 = vmatprep.subr.mxu0 0.0
    %6224 = vmatpush1.msra.mxu0 %v6180
    %6225 = vmatprep.subr.mxu0 0.0
    %6226 = vmatpush1.msra.mxu0 %v6179
    %6227 = vmatprep.subr.mxu0 0.0
    %6228 = vmatpush2.msra.mxu0 0.0
    %6229 = vmatprep.subr.mxu0 0.0
    %6230 = vmatpush2.msra.mxu0 0.0
    %6231 = vmatprep.subr.mxu0 0.0
    %6232 = vmatpush2.msra.mxu0 0.0
    %6233 = vmatprep.subr.mxu0 0.0
    %6234 = vmatpush2.msra.mxu0 0.0
    %6235 = vmatprep.subr.mxu0 0.0
    %6236 = vmatpush2.msra.mxu0 0.0
    %6237 = vmatprep.subr.mxu0 0.0
    %6238 = vmatpush2.msra.mxu0 0.0
    %6239 = vmatprep.subr.mxu0 0.0
    %6240 = vmatpush2.msra.mxu0 0.0
    %6241 = vmatprep.subr.mxu0 0.0
    %6242 = vmatpush2.msra.mxu0 0.0
    %6243 = vmatprep.subr.mxu0 0.0
    %6244 = vmatpush2.msra.mxu0 0.0
    %6245 = vmatprep.subr.mxu0 0.0
    %6246 = vmatpush2.msra.mxu0 0.0
    %6247 = vmatprep.subr.mxu0 0.0
    %6248 = vmatpush2.msra.mxu0 0.0
    %6249 = vmatprep.subr.mxu0 0.0
    %6250 = vmatpush2.msra.mxu0 0.0
    %6251 = vmatprep.subr.mxu0 0.0
    %6252 = vmatpush2.msra.mxu0 0.0
    %6253 = vmatprep.subr.mxu0 0.0
    %6254 = vmatpush2.msra.mxu0 0.0
    %6255 = vmatprep.subr.mxu0 0.0
    %6256 = vmatpush2.msra.mxu0 0.0
    %6257 = vmatprep.subr.mxu0 0.0
    %6258 = vmatpush2.msra.mxu0 0.0
    %6259 = vmatprep.mubr.f32.mxu0 0.0
    %6260 = vmatmul.mubr.f32.gmra.mxu0 %v5795
    %v6261 = vpop.f32.mrf.mxu0
    %v6262 = vadd.f32 0.0, %v6261
    %v6263 = vpop.f32.mrf.mxu0
    %6264 = vmatprep.mubr.f32.mxu0 0.0
    %6265 = vmatmul.mubr.f32.gmra.mxu0 %v5800
    %v6266 = vpop.f32.mrf.mxu0
    %v6267 = vadd.f32 0.0, %v6266
    %v6268 = vpop.f32.mrf.mxu0
    %6269 = vmatprep.mubr.f32.mxu0 0.0
    %6270 = vmatmul.mubr.f32.gmra.mxu0 %v5805
    %v6271 = vpop.f32.mrf.mxu0
    %v6272 = vadd.f32 0.0, %v6271
    %v6273 = vpop.f32.mrf.mxu0
    %6274 = vmatprep.mubr.f32.mxu0 0.0
    %6275 = vmatmul.mubr.f32.gmra.mxu0 %v5810
    %v6276 = vpop.f32.mrf.mxu0
    %v6277 = vadd.f32 0.0, %v6276
    %v6278 = vpop.f32.mrf.mxu0
    %6279 = vmatprep.mubr.f32.mxu0 0.0
    %6280 = vmatmul.mubr.f32.gmra.mxu0 %v5815
    %v6281 = vpop.f32.mrf.mxu0
    %v6282 = vadd.f32 0.0, %v6281
    %v6283 = vpop.f32.mrf.mxu0
    %6284 = vmatprep.mubr.f32.mxu0 0.0
    %6285 = vmatmul.mubr.f32.gmra.mxu0 %v5820
    %v6286 = vpop.f32.mrf.mxu0
    %v6287 = vadd.f32 0.0, %v6286
    %v6288 = vpop.f32.mrf.mxu0
    %6289 = vmatprep.mubr.f32.mxu0 0.0
    %6290 = vmatmul.mubr.f32.gmra.mxu0 %v5825
    %v6291 = vpop.f32.mrf.mxu0
    %v6292 = vadd.f32 0.0, %v6291
    %v6293 = vpop.f32.mrf.mxu0
    %6294 = vmatprep.mubr.f32.mxu0 0.0
    %6295 = vmatmul.mubr.f32.gmra.mxu0 %v5830
    %v6296 = vpop.f32.mrf.mxu0
    %v6297 = vadd.f32 0.0, %v6296
    %v6298 = vpop.f32.mrf.mxu0
    %6299 = vmatprep.mubr.f32.mxu0 0.0
    %6300 = vmatmul.mubr.f32.gmra.mxu0 %v5835
    %v6301 = vpop.f32.mrf.mxu0
    %v6302 = vadd.f32 0.0, %v6301
    %v6303 = vpop.f32.mrf.mxu0
    %6304 = vmatprep.mubr.f32.mxu0 0.0
    %6305 = vmatmul.mubr.f32.gmra.mxu0 %v5840
    %v6306 = vpop.f32.mrf.mxu0
    %v6307 = vadd.f32 0.0, %v6306
    %v6308 = vpop.f32.mrf.mxu0
    %6309 = vmatprep.mubr.f32.mxu0 0.0
    %6310 = vmatmul.mubr.f32.gmra.mxu0 %v5845
    %v6311 = vpop.f32.mrf.mxu0
    %v6312 = vadd.f32 0.0, %v6311
    %v6313 = vpop.f32.mrf.mxu0
    %6314 = vmatprep.mubr.f32.mxu0 0.0
    %6315 = vmatmul.mubr.f32.gmra.mxu0 %v5850
    %v6316 = vpop.f32.mrf.mxu0
    %v6317 = vadd.f32 0.0, %v6316
    %v6318 = vpop.f32.mrf.mxu0
    %6319 = vmatprep.mubr.f32.mxu0 0.0
    %6320 = vmatmul.mubr.f32.gmra.mxu0 %v5855
    %v6321 = vpop.f32.mrf.mxu0
    %v6322 = vadd.f32 0.0, %v6321
    %v6323 = vpop.f32.mrf.mxu0
    %6324 = vmatprep.mubr.f32.mxu0 0.0
    %6325 = vmatmul.mubr.f32.gmra.mxu0 %v5860
    %v6326 = vpop.f32.mrf.mxu0
    %v6327 = vadd.f32 0.0, %v6326
    %v6328 = vpop.f32.mrf.mxu0
    %6329 = vmatprep.mubr.f32.mxu0 0.0
    %6330 = vmatmul.mubr.f32.gmra.mxu0 %v5865
    %v6331 = vpop.f32.mrf.mxu0
    %v6332 = vadd.f32 0.0, %v6331
    %v6333 = vpop.f32.mrf.mxu0
    %6334 = vmatprep.mubr.f32.mxu0 0.0
    %6335 = vmatmul.mubr.f32.gmra.mxu0 %v5870
    %v6336 = vpop.f32.mrf.mxu0
    %v6337 = vadd.f32 0.0, %v6336
    %v6338 = vpop.f32.mrf.mxu0
    %6339 = vdwg.mxu0
    %6340 = vmatprep.subr.mxu0 0.0
    %6341 = vmatpush1.msra.mxu0 %v6015
    %6342 = vmatprep.subr.mxu0 0.0
    %6343 = vmatpush1.msra.mxu0 %v6010
    %6344 = vmatprep.subr.mxu0 0.0
    %6345 = vmatpush1.msra.mxu0 %v6005
    %6346 = vmatprep.subr.mxu0 0.0
    %6347 = vmatpush1.msra.mxu0 %v6000
    %6348 = vmatprep.subr.mxu0 0.0
    %6349 = vmatpush1.msra.mxu0 %v5995
    %6350 = vmatprep.subr.mxu0 0.0
    %6351 = vmatpush1.msra.mxu0 %v5990
    %6352 = vmatprep.subr.mxu0 0.0
    %6353 = vmatpush1.msra.mxu0 %v5985
    %6354 = vmatprep.subr.mxu0 0.0
    %6355 = vmatpush1.msra.mxu0 %v5980
    %6356 = vmatprep.subr.mxu0 0.0
    %6357 = vmatpush1.msra.mxu0 %v5975
    %6358 = vmatprep.subr.mxu0 0.0
    %6359 = vmatpush1.msra.mxu0 %v5970
    %6360 = vmatprep.subr.mxu0 0.0
    %6361 = vmatpush1.msra.mxu0 %v5965
    %6362 = vmatprep.subr.mxu0 0.0
    %6363 = vmatpush1.msra.mxu0 %v5960
    %6364 = vmatprep.subr.mxu0 0.0
    %6365 = vmatpush1.msra.mxu0 %v5955
    %6366 = vmatprep.subr.mxu0 0.0
    %6367 = vmatpush1.msra.mxu0 %v5950
    %6368 = vmatprep.subr.mxu0 0.0
    %6369 = vmatpush1.msra.mxu0 %v5945
    %6370 = vmatprep.subr.mxu0 0.0
    %6371 = vmatpush1.msra.mxu0 %v5940
    %6372 = vmatprep.subr.mxu0 0.0
    %6373 = vmatpush2.msra.mxu0 0.0
    %6374 = vmatprep.subr.mxu0 0.0
    %6375 = vmatpush2.msra.mxu0 0.0
    %6376 = vmatprep.subr.mxu0 0.0
    %6377 = vmatpush2.msra.mxu0 0.0
    %6378 = vmatprep.subr.mxu0 0.0
    %6379 = vmatpush2.msra.mxu0 0.0
    %6380 = vmatprep.subr.mxu0 0.0
    %6381 = vmatpush2.msra.mxu0 0.0
    %6382 = vmatprep.subr.mxu0 0.0
    %6383 = vmatpush2.msra.mxu0 0.0
    %6384 = vmatprep.subr.mxu0 0.0
    %6385 = vmatpush2.msra.mxu0 0.0
    %6386 = vmatprep.subr.mxu0 0.0
    %6387 = vmatpush2.msra.mxu0 0.0
    %6388 = vmatprep.subr.mxu0 0.0
    %6389 = vmatpush2.msra.mxu0 0.0
    %6390 = vmatprep.subr.mxu0 0.0
    %6391 = vmatpush2.msra.mxu0 0.0
    %6392 = vmatprep.subr.mxu0 0.0
    %6393 = vmatpush2.msra.mxu0 0.0
    %6394 = vmatprep.subr.mxu0 0.0
    %6395 = vmatpush2.msra.mxu0 0.0
    %6396 = vmatprep.subr.mxu0 0.0
    %6397 = vmatpush2.msra.mxu0 0.0
    %6398 = vmatprep.subr.mxu0 0.0
    %6399 = vmatpush2.msra.mxu0 0.0
    %6400 = vmatprep.subr.mxu0 0.0
    %6401 = vmatpush2.msra.mxu0 0.0
    %6402 = vmatprep.subr.mxu0 0.0
    %6403 = vmatpush2.msra.mxu0 0.0
    %6404 = vmatprep.mubr.f32.mxu0 0.0
    %6405 = vmatmul.mubr.f32.gmra.mxu0 %v6179
    %v6406 = vpop.f32.mrf.mxu0
    %v6407 = vadd.f32 0.0, %v6406
    %v6408 = vpop.f32.mrf.mxu0
    %6409 = vmatprep.mubr.f32.mxu0 0.0
    %6410 = vmatmul.mubr.f32.gmra.mxu0 %v6180
    %v6411 = vpop.f32.mrf.mxu0
    %v6412 = vadd.f32 0.0, %v6411
    %v6413 = vpop.f32.mrf.mxu0
    %6414 = vmatprep.mubr.f32.mxu0 0.0
    %6415 = vmatmul.mubr.f32.gmra.mxu0 %v6181
    %v6416 = vpop.f32.mrf.mxu0
    %v6417 = vadd.f32 0.0, %v6416
    %v6418 = vpop.f32.mrf.mxu0
    %6419 = vmatprep.mubr.f32.mxu0 0.0
    %6420 = vmatmul.mubr.f32.gmra.mxu0 %v6182
    %v6421 = vpop.f32.mrf.mxu0
    %v6422 = vadd.f32 0.0, %v6421
    %v6423 = vpop.f32.mrf.mxu0
    %6424 = vmatprep.mubr.f32.mxu0 0.0
    %6425 = vmatmul.mubr.f32.gmra.mxu0 %v6183
    %v6426 = vpop.f32.mrf.mxu0
    %v6427 = vadd.f32 0.0, %v6426
    %v6428 = vpop.f32.mrf.mxu0
    %6429 = vmatprep.mubr.f32.mxu0 0.0
    %6430 = vmatmul.mubr.f32.gmra.mxu0 %v6184
    %v6431 = vpop.f32.mrf.mxu0
    %v6432 = vadd.f32 0.0, %v6431
    %v6433 = vpop.f32.mrf.mxu0
    %6434 = vmatprep.mubr.f32.mxu0 0.0
    %6435 = vmatmul.mubr.f32.gmra.mxu0 %v6185
    %v6436 = vpop.f32.mrf.mxu0
    %v6437 = vadd.f32 0.0, %v6436
    %v6438 = vpop.f32.mrf.mxu0
    %6439 = vmatprep.mubr.f32.mxu0 0.0
    %6440 = vmatmul.mubr.f32.gmra.mxu0 %v6186
    %v6441 = vpop.f32.mrf.mxu0
    %v6442 = vadd.f32 0.0, %v6441
    %v6443 = vpop.f32.mrf.mxu0
    %6444 = vmatprep.mubr.f32.mxu0 0.0
    %6445 = vmatmul.mubr.f32.gmra.mxu0 %v6187
    %v6446 = vpop.f32.mrf.mxu0
    %v6447 = vadd.f32 0.0, %v6446
    %v6448 = vpop.f32.mrf.mxu0
    %6449 = vmatprep.mubr.f32.mxu0 0.0
    %6450 = vmatmul.mubr.f32.gmra.mxu0 %v6188
    %v6451 = vpop.f32.mrf.mxu0
    %v6452 = vadd.f32 0.0, %v6451
    %v6453 = vpop.f32.mrf.mxu0
    %6454 = vmatprep.mubr.f32.mxu0 0.0
    %6455 = vmatmul.mubr.f32.gmra.mxu0 %v6189
    %v6456 = vpop.f32.mrf.mxu0
    %v6457 = vadd.f32 0.0, %v6456
    %v6458 = vpop.f32.mrf.mxu0
    %6459 = vmatprep.mubr.f32.mxu0 0.0
    %6460 = vmatmul.mubr.f32.gmra.mxu0 %v6190
    %v6461 = vpop.f32.mrf.mxu0
    %v6462 = vadd.f32 0.0, %v6461
    %v6463 = vpop.f32.mrf.mxu0
    %6464 = vmatprep.mubr.f32.mxu0 0.0
    %6465 = vmatmul.mubr.f32.gmra.mxu0 %v6191
    %v6466 = vpop.f32.mrf.mxu0
    %v6467 = vadd.f32 0.0, %v6466
    %v6468 = vpop.f32.mrf.mxu0
    %6469 = vmatprep.mubr.f32.mxu0 0.0
    %6470 = vmatmul.mubr.f32.gmra.mxu0 %v6192
    %v6471 = vpop.f32.mrf.mxu0
    %v6472 = vadd.f32 0.0, %v6471
    %v6473 = vpop.f32.mrf.mxu0
    %6474 = vmatprep.mubr.f32.mxu0 0.0
    %6475 = vmatmul.mubr.f32.gmra.mxu0 %v6193
    %v6476 = vpop.f32.mrf.mxu0
    %v6477 = vadd.f32 0.0, %v6476
    %v6478 = vpop.f32.mrf.mxu0
    %6479 = vmatprep.mubr.f32.mxu0 0.0
    %6480 = vmatmul.mubr.f32.gmra.mxu0 %v6194
    %v6481 = vpop.f32.mrf.mxu0
    %v6482 = vadd.f32 0.0, %v6481
    %v6483 = vpop.f32.mrf.mxu0
    %6484 = vdwg.mxu0
    %6485 = vmatprep.subr.mxu0 0.0
    %6486 = vmatpush1.msra.mxu0 %v6337
    %6487 = vmatprep.subr.mxu0 0.0
    %6488 = vmatpush1.msra.mxu0 %v6332
    %6489 = vmatprep.subr.mxu0 0.0
    %6490 = vmatpush1.msra.mxu0 %v6327
    %6491 = vmatprep.subr.mxu0 0.0
    %6492 = vmatpush1.msra.mxu0 %v6322
    %6493 = vmatprep.subr.mxu0 0.0
    %6494 = vmatpush1.msra.mxu0 %v6317
    %6495 = vmatprep.subr.mxu0 0.0
    %6496 = vmatpush1.msra.mxu0 %v6312
    %6497 = vmatprep.subr.mxu0 0.0
    %6498 = vmatpush1.msra.mxu0 %v6307
    %6499 = vmatprep.subr.mxu0 0.0
    %6500 = vmatpush1.msra.mxu0 %v6302
    %6501 = vmatprep.subr.mxu0 0.0
    %6502 = vmatpush1.msra.mxu0 %v6297
    %6503 = vmatprep.subr.mxu0 0.0
    %6504 = vmatpush1.msra.mxu0 %v6292
    %6505 = vmatprep.subr.mxu0 0.0
    %6506 = vmatpush1.msra.mxu0 %v6287
    %6507 = vmatprep.subr.mxu0 0.0
    %6508 = vmatpush1.msra.mxu0 %v6282
    %6509 = vmatprep.subr.mxu0 0.0
    %6510 = vmatpush1.msra.mxu0 %v6277
    %6511 = vmatprep.subr.mxu0 0.0
    %6512 = vmatpush1.msra.mxu0 %v6272
    %6513 = vmatprep.subr.mxu0 0.0
    %6514 = vmatpush1.msra.mxu0 %v6267
    %6515 = vmatprep.subr.mxu0 0.0
    %6516 = vmatpush1.msra.mxu0 %v6262
    %6517 = vmatprep.subr.mxu0 0.0
    %6518 = vmatpush2.msra.mxu0 0.0
    %6519 = vmatprep.subr.mxu0 0.0
    %6520 = vmatpush2.msra.mxu0 0.0
    %6521 = vmatprep.subr.mxu0 0.0
    %6522 = vmatpush2.msra.mxu0 0.0
    %6523 = vmatprep.subr.mxu0 0.0
    %6524 = vmatpush2.msra.mxu0 0.0
    %6525 = vmatprep.subr.mxu0 0.0
    %6526 = vmatpush2.msra.mxu0 0.0
    %6527 = vmatprep.subr.mxu0 0.0
    %6528 = vmatpush2.msra.mxu0 0.0
    %6529 = vmatprep.subr.mxu0 0.0
    %6530 = vmatpush2.msra.mxu0 0.0
    %6531 = vmatprep.subr.mxu0 0.0
    %6532 = vmatpush2.msra.mxu0 0.0
    %6533 = vmatprep.subr.mxu0 0.0
    %6534 = vmatpush2.msra.mxu0 0.0
    %6535 = vmatprep.subr.mxu0 0.0
    %6536 = vmatpush2.msra.mxu0 0.0
    %6537 = vmatprep.subr.mxu0 0.0
    %6538 = vmatpush2.msra.mxu0 0.0
    %6539 = vmatprep.subr.mxu0 0.0
    %6540 = vmatpush2.msra.mxu0 0.0
    %6541 = vmatprep.subr.mxu0 0.0
    %6542 = vmatpush2.msra.mxu0 0.0
    %6543 = vmatprep.subr.mxu0 0.0
    %6544 = vmatpush2.msra.mxu0 0.0
    %6545 = vmatprep.subr.mxu0 0.0
    %6546 = vmatpush2.msra.mxu0 0.0
    %6547 = vmatprep.subr.mxu0 0.0
    %6548 = vmatpush2.msra.mxu0 0.0
    %6549 = vmatprep.mubr.f32.mxu0 0.0
    %6550 = vmatmul.mubr.f32.gmra.mxu0 %v6407
    %v6551 = vpop.f32.mrf.mxu0
    %v6552 = vadd.f32 0.0, %v6551
    %v6553 = vpop.f32.mrf.mxu0
    %6554 = vmatprep.mubr.f32.mxu0 0.0
    %6555 = vmatmul.mubr.f32.gmra.mxu0 %v6412
    %v6556 = vpop.f32.mrf.mxu0
    %v6557 = vadd.f32 0.0, %v6556
    %v6558 = vpop.f32.mrf.mxu0
    %6559 = vmatprep.mubr.f32.mxu0 0.0
    %6560 = vmatmul.mubr.f32.gmra.mxu0 %v6417
    %v6561 = vpop.f32.mrf.mxu0
    %v6562 = vadd.f32 0.0, %v6561
    %v6563 = vpop.f32.mrf.mxu0
    %6564 = vmatprep.mubr.f32.mxu0 0.0
    %6565 = vmatmul.mubr.f32.gmra.mxu0 %v6422
    %v6566 = vpop.f32.mrf.mxu0
    %v6567 = vadd.f32 0.0, %v6566
    %v6568 = vpop.f32.mrf.mxu0
    %6569 = vmatprep.mubr.f32.mxu0 0.0
    %6570 = vmatmul.mubr.f32.gmra.mxu0 %v6427
    %v6571 = vpop.f32.mrf.mxu0
    %v6572 = vadd.f32 0.0, %v6571
    %v6573 = vpop.f32.mrf.mxu0
    %6574 = vmatprep.mubr.f32.mxu0 0.0
    %6575 = vmatmul.mubr.f32.gmra.mxu0 %v6432
    %v6576 = vpop.f32.mrf.mxu0
    %v6577 = vadd.f32 0.0, %v6576
    %v6578 = vpop.f32.mrf.mxu0
    %6579 = vmatprep.mubr.f32.mxu0 0.0
    %6580 = vmatmul.mubr.f32.gmra.mxu0 %v6437
    %v6581 = vpop.f32.mrf.mxu0
    %v6582 = vadd.f32 0.0, %v6581
    %v6583 = vpop.f32.mrf.mxu0
    %6584 = vmatprep.mubr.f32.mxu0 0.0
    %6585 = vmatmul.mubr.f32.gmra.mxu0 %v6442
    %v6586 = vpop.f32.mrf.mxu0
    %v6587 = vadd.f32 0.0, %v6586
    %v6588 = vpop.f32.mrf.mxu0
    %6589 = vmatprep.mubr.f32.mxu0 0.0
    %6590 = vmatmul.mubr.f32.gmra.mxu0 %v6447
    %v6591 = vpop.f32.mrf.mxu0
    %v6592 = vadd.f32 0.0, %v6591
    %v6593 = vpop.f32.mrf.mxu0
    %6594 = vmatprep.mubr.f32.mxu0 0.0
    %6595 = vmatmul.mubr.f32.gmra.mxu0 %v6452
    %v6596 = vpop.f32.mrf.mxu0
    %v6597 = vadd.f32 0.0, %v6596
    %v6598 = vpop.f32.mrf.mxu0
    %6599 = vmatprep.mubr.f32.mxu0 0.0
    %6600 = vmatmul.mubr.f32.gmra.mxu0 %v6457
    %v6601 = vpop.f32.mrf.mxu0
    %v6602 = vadd.f32 0.0, %v6601
    %v6603 = vpop.f32.mrf.mxu0
    %6604 = vmatprep.mubr.f32.mxu0 0.0
    %6605 = vmatmul.mubr.f32.gmra.mxu0 %v6462
    %v6606 = vpop.f32.mrf.mxu0
    %v6607 = vadd.f32 0.0, %v6606
    %v6608 = vpop.f32.mrf.mxu0
    %6609 = vmatprep.mubr.f32.mxu0 0.0
    %6610 = vmatmul.mubr.f32.gmra.mxu0 %v6467
    %v6611 = vpop.f32.mrf.mxu0
    %v6612 = vadd.f32 0.0, %v6611
    %v6613 = vpop.f32.mrf.mxu0
    %6614 = vmatprep.mubr.f32.mxu0 0.0
    %6615 = vmatmul.mubr.f32.gmra.mxu0 %v6472
    %v6616 = vpop.f32.mrf.mxu0
    %v6617 = vadd.f32 0.0, %v6616
    %v6618 = vpop.f32.mrf.mxu0
    %6619 = vmatprep.mubr.f32.mxu0 0.0
    %6620 = vmatmul.mubr.f32.gmra.mxu0 %v6477
    %v6621 = vpop.f32.mrf.mxu0
    %v6622 = vadd.f32 0.0, %v6621
    %v6623 = vpop.f32.mrf.mxu0
    %6624 = vmatprep.mubr.f32.mxu0 0.0
    %6625 = vmatmul.mubr.f32.gmra.mxu0 %v6482
    %v6626 = vpop.f32.mrf.mxu0
    %v6627 = vadd.f32 0.0, %v6626
    %v6628 = vpop.f32.mrf.mxu0
    %6629 = vdwg.mxu0
    %v6630 = vmul.f32 %v6552, 0.5
    %v6631 = vmul.f32 %v6557, 0.5
    %v6632 = vmul.f32 %v6562, 0.5
    %v6633 = vmul.f32 %v6567, 0.5
    %v6634 = vmul.f32 %v6572, 0.5
    %v6635 = vmul.f32 %v6577, 0.5
    %v6636 = vmul.f32 %v6582, 0.5
    %v6637 = vmul.f32 %v6587, 0.5
    %v6638 = vmul.f32 %v6592, 0.5
    %v6639 = vmul.f32 %v6597, 0.5
    %v6640 = vmul.f32 %v6602, 0.5
    %v6641 = vmul.f32 %v6607, 0.5
    %v6642 = vmul.f32 %v6612, 0.5
    %v6643 = vmul.f32 %v6617, 0.5
    %v6644 = vmul.f32 %v6622, 0.5
    %v6645 = vmul.f32 %v6627, 0.5
    %v6646 = vsub.f32 %v398, %v6630
    %v6647 = vsub.f32 %v399, %v6631
    %v6648 = vsub.f32 %v400, %v6632
    %v6649 = vsub.f32 %v401, %v6633
    %v6650 = vsub.f32 %v402, %v6634
    %v6651 = vsub.f32 %v403, %v6635
    %v6652 = vsub.f32 %v404, %v6636
    %v6653 = vsub.f32 %v405, %v6637
    %v6654 = vsub.f32 %v406, %v6638
    %v6655 = vsub.f32 %v407, %v6639
    %v6656 = vsub.f32 %v408, %v6640
    %v6657 = vsub.f32 %v409, %v6641
    %v6658 = vsub.f32 %v410, %v6642
    %v6659 = vsub.f32 %v411, %v6643
    %v6660 = vsub.f32 %v412, %v6644
    %v6661 = vsub.f32 %v413, %v6645
    %6662 = vmatprep.subr.mxu0 0.0
    %6663 = vmatpush1.msra.mxu0 %v6661
    %6664 = vmatprep.subr.mxu0 0.0
    %6665 = vmatpush1.msra.mxu0 %v6660
    %6666 = vmatprep.subr.mxu0 0.0
    %6667 = vmatpush1.msra.mxu0 %v6659
    %6668 = vmatprep.subr.mxu0 0.0
    %6669 = vmatpush1.msra.mxu0 %v6658
    %6670 = vmatprep.subr.mxu0 0.0
    %6671 = vmatpush1.msra.mxu0 %v6657
    %6672 = vmatprep.subr.mxu0 0.0
    %6673 = vmatpush1.msra.mxu0 %v6656
    %6674 = vmatprep.subr.mxu0 0.0
    %6675 = vmatpush1.msra.mxu0 %v6655
    %6676 = vmatprep.subr.mxu0 0.0
    %6677 = vmatpush1.msra.mxu0 %v6654
    %6678 = vmatprep.subr.mxu0 0.0
    %6679 = vmatpush1.msra.mxu0 %v6653
    %6680 = vmatprep.subr.mxu0 0.0
    %6681 = vmatpush1.msra.mxu0 %v6652
    %6682 = vmatprep.subr.mxu0 0.0
    %6683 = vmatpush1.msra.mxu0 %v6651
    %6684 = vmatprep.subr.mxu0 0.0
    %6685 = vmatpush1.msra.mxu0 %v6650
    %6686 = vmatprep.subr.mxu0 0.0
    %6687 = vmatpush1.msra.mxu0 %v6649
    %6688 = vmatprep.subr.mxu0 0.0
    %6689 = vmatpush1.msra.mxu0 %v6648
    %6690 = vmatprep.subr.mxu0 0.0
    %6691 = vmatpush1.msra.mxu0 %v6647
    %6692 = vmatprep.subr.mxu0 0.0
    %6693 = vmatpush1.msra.mxu0 %v6646
    %6694 = vmatprep.subr.mxu0 0.0
    %6695 = vmatpush2.msra.mxu0 0.0
    %6696 = vmatprep.subr.mxu0 0.0
    %6697 = vmatpush2.msra.mxu0 0.0
    %6698 = vmatprep.subr.mxu0 0.0
    %6699 = vmatpush2.msra.mxu0 0.0
    %6700 = vmatprep.subr.mxu0 0.0
    %6701 = vmatpush2.msra.mxu0 0.0
    %6702 = vmatprep.subr.mxu0 0.0
    %6703 = vmatpush2.msra.mxu0 0.0
    %6704 = vmatprep.subr.mxu0 0.0
    %6705 = vmatpush2.msra.mxu0 0.0
    %6706 = vmatprep.subr.mxu0 0.0
    %6707 = vmatpush2.msra.mxu0 0.0
    %6708 = vmatprep.subr.mxu0 0.0
    %6709 = vmatpush2.msra.mxu0 0.0
    %6710 = vmatprep.subr.mxu0 0.0
    %6711 = vmatpush2.msra.mxu0 0.0
    %6712 = vmatprep.subr.mxu0 0.0
    %6713 = vmatpush2.msra.mxu0 0.0
    %6714 = vmatprep.subr.mxu0 0.0
    %6715 = vmatpush2.msra.mxu0 0.0
    %6716 = vmatprep.subr.mxu0 0.0
    %6717 = vmatpush2.msra.mxu0 0.0
    %6718 = vmatprep.subr.mxu0 0.0
    %6719 = vmatpush2.msra.mxu0 0.0
    %6720 = vmatprep.subr.mxu0 0.0
    %6721 = vmatpush2.msra.mxu0 0.0
    %6722 = vmatprep.subr.mxu0 0.0
    %6723 = vmatpush2.msra.mxu0 0.0
    %6724 = vmatprep.subr.mxu0 0.0
    %6725 = vmatpush2.msra.mxu0 0.0
    %6726 = vmatprep.mubr.f32.mxu0 0.0
    %6727 = vmatmul.mubr.f32.gmra.mxu0 %v6262
    %v6728 = vpop.f32.mrf.mxu0
    %v6729 = vadd.f32 0.0, %v6728
    %v6730 = vpop.f32.mrf.mxu0
    %6731 = vmatprep.mubr.f32.mxu0 0.0
    %6732 = vmatmul.mubr.f32.gmra.mxu0 %v6267
    %v6733 = vpop.f32.mrf.mxu0
    %v6734 = vadd.f32 0.0, %v6733
    %v6735 = vpop.f32.mrf.mxu0
    %6736 = vmatprep.mubr.f32.mxu0 0.0
    %6737 = vmatmul.mubr.f32.gmra.mxu0 %v6272
    %v6738 = vpop.f32.mrf.mxu0
    %v6739 = vadd.f32 0.0, %v6738
    %v6740 = vpop.f32.mrf.mxu0
    %6741 = vmatprep.mubr.f32.mxu0 0.0
    %6742 = vmatmul.mubr.f32.gmra.mxu0 %v6277
    %v6743 = vpop.f32.mrf.mxu0
    %v6744 = vadd.f32 0.0, %v6743
    %v6745 = vpop.f32.mrf.mxu0
    %6746 = vmatprep.mubr.f32.mxu0 0.0
    %6747 = vmatmul.mubr.f32.gmra.mxu0 %v6282
    %v6748 = vpop.f32.mrf.mxu0
    %v6749 = vadd.f32 0.0, %v6748
    %v6750 = vpop.f32.mrf.mxu0
    %6751 = vmatprep.mubr.f32.mxu0 0.0
    %6752 = vmatmul.mubr.f32.gmra.mxu0 %v6287
    %v6753 = vpop.f32.mrf.mxu0
    %v6754 = vadd.f32 0.0, %v6753
    %v6755 = vpop.f32.mrf.mxu0
    %6756 = vmatprep.mubr.f32.mxu0 0.0
    %6757 = vmatmul.mubr.f32.gmra.mxu0 %v6292
    %v6758 = vpop.f32.mrf.mxu0
    %v6759 = vadd.f32 0.0, %v6758
    %v6760 = vpop.f32.mrf.mxu0
    %6761 = vmatprep.mubr.f32.mxu0 0.0
    %6762 = vmatmul.mubr.f32.gmra.mxu0 %v6297
    %v6763 = vpop.f32.mrf.mxu0
    %v6764 = vadd.f32 0.0, %v6763
    %v6765 = vpop.f32.mrf.mxu0
    %6766 = vmatprep.mubr.f32.mxu0 0.0
    %6767 = vmatmul.mubr.f32.gmra.mxu0 %v6302
    %v6768 = vpop.f32.mrf.mxu0
    %v6769 = vadd.f32 0.0, %v6768
    %v6770 = vpop.f32.mrf.mxu0
    %6771 = vmatprep.mubr.f32.mxu0 0.0
    %6772 = vmatmul.mubr.f32.gmra.mxu0 %v6307
    %v6773 = vpop.f32.mrf.mxu0
    %v6774 = vadd.f32 0.0, %v6773
    %v6775 = vpop.f32.mrf.mxu0
    %6776 = vmatprep.mubr.f32.mxu0 0.0
    %6777 = vmatmul.mubr.f32.gmra.mxu0 %v6312
    %v6778 = vpop.f32.mrf.mxu0
    %v6779 = vadd.f32 0.0, %v6778
    %v6780 = vpop.f32.mrf.mxu0
    %6781 = vmatprep.mubr.f32.mxu0 0.0
    %6782 = vmatmul.mubr.f32.gmra.mxu0 %v6317
    %v6783 = vpop.f32.mrf.mxu0
    %v6784 = vadd.f32 0.0, %v6783
    %v6785 = vpop.f32.mrf.mxu0
    %6786 = vmatprep.mubr.f32.mxu0 0.0
    %6787 = vmatmul.mubr.f32.gmra.mxu0 %v6322
    %v6788 = vpop.f32.mrf.mxu0
    %v6789 = vadd.f32 0.0, %v6788
    %v6790 = vpop.f32.mrf.mxu0
    %6791 = vmatprep.mubr.f32.mxu0 0.0
    %6792 = vmatmul.mubr.f32.gmra.mxu0 %v6327
    %v6793 = vpop.f32.mrf.mxu0
    %v6794 = vadd.f32 0.0, %v6793
    %v6795 = vpop.f32.mrf.mxu0
    %6796 = vmatprep.mubr.f32.mxu0 0.0
    %6797 = vmatmul.mubr.f32.gmra.mxu0 %v6332
    %v6798 = vpop.f32.mrf.mxu0
    %v6799 = vadd.f32 0.0, %v6798
    %v6800 = vpop.f32.mrf.mxu0
    %6801 = vmatprep.mubr.f32.mxu0 0.0
    %6802 = vmatmul.mubr.f32.gmra.mxu0 %v6337
    %v6803 = vpop.f32.mrf.mxu0
    %v6804 = vadd.f32 0.0, %v6803
    %v6805 = vpop.f32.mrf.mxu0
    %6806 = vdwg.mxu0
    %6807 = vmatprep.subr.mxu0 0.0
    %6808 = vmatpush1.msra.mxu0 %v6482
    %6809 = vmatprep.subr.mxu0 0.0
    %6810 = vmatpush1.msra.mxu0 %v6477
    %6811 = vmatprep.subr.mxu0 0.0
    %6812 = vmatpush1.msra.mxu0 %v6472
    %6813 = vmatprep.subr.mxu0 0.0
    %6814 = vmatpush1.msra.mxu0 %v6467
    %6815 = vmatprep.subr.mxu0 0.0
    %6816 = vmatpush1.msra.mxu0 %v6462
    %6817 = vmatprep.subr.mxu0 0.0
    %6818 = vmatpush1.msra.mxu0 %v6457
    %6819 = vmatprep.subr.mxu0 0.0
    %6820 = vmatpush1.msra.mxu0 %v6452
    %6821 = vmatprep.subr.mxu0 0.0
    %6822 = vmatpush1.msra.mxu0 %v6447
    %6823 = vmatprep.subr.mxu0 0.0
    %6824 = vmatpush1.msra.mxu0 %v6442
    %6825 = vmatprep.subr.mxu0 0.0
    %6826 = vmatpush1.msra.mxu0 %v6437
    %6827 = vmatprep.subr.mxu0 0.0
    %6828 = vmatpush1.msra.mxu0 %v6432
    %6829 = vmatprep.subr.mxu0 0.0
    %6830 = vmatpush1.msra.mxu0 %v6427
    %6831 = vmatprep.subr.mxu0 0.0
    %6832 = vmatpush1.msra.mxu0 %v6422
    %6833 = vmatprep.subr.mxu0 0.0
    %6834 = vmatpush1.msra.mxu0 %v6417
    %6835 = vmatprep.subr.mxu0 0.0
    %6836 = vmatpush1.msra.mxu0 %v6412
    %6837 = vmatprep.subr.mxu0 0.0
    %6838 = vmatpush1.msra.mxu0 %v6407
    %6839 = vmatprep.subr.mxu0 0.0
    %6840 = vmatpush2.msra.mxu0 0.0
    %6841 = vmatprep.subr.mxu0 0.0
    %6842 = vmatpush2.msra.mxu0 0.0
    %6843 = vmatprep.subr.mxu0 0.0
    %6844 = vmatpush2.msra.mxu0 0.0
    %6845 = vmatprep.subr.mxu0 0.0
    %6846 = vmatpush2.msra.mxu0 0.0
    %6847 = vmatprep.subr.mxu0 0.0
    %6848 = vmatpush2.msra.mxu0 0.0
    %6849 = vmatprep.subr.mxu0 0.0
    %6850 = vmatpush2.msra.mxu0 0.0
    %6851 = vmatprep.subr.mxu0 0.0
    %6852 = vmatpush2.msra.mxu0 0.0
    %6853 = vmatprep.subr.mxu0 0.0
    %6854 = vmatpush2.msra.mxu0 0.0
    %6855 = vmatprep.subr.mxu0 0.0
    %6856 = vmatpush2.msra.mxu0 0.0
    %6857 = vmatprep.subr.mxu0 0.0
    %6858 = vmatpush2.msra.mxu0 0.0
    %6859 = vmatprep.subr.mxu0 0.0
    %6860 = vmatpush2.msra.mxu0 0.0
    %6861 = vmatprep.subr.mxu0 0.0
    %6862 = vmatpush2.msra.mxu0 0.0
    %6863 = vmatprep.subr.mxu0 0.0
    %6864 = vmatpush2.msra.mxu0 0.0
    %6865 = vmatprep.subr.mxu0 0.0
    %6866 = vmatpush2.msra.mxu0 0.0
    %6867 = vmatprep.subr.mxu0 0.0
    %6868 = vmatpush2.msra.mxu0 0.0
    %6869 = vmatprep.subr.mxu0 0.0
    %6870 = vmatpush2.msra.mxu0 0.0
    %6871 = vmatprep.mubr.f32.mxu0 0.0
    %6872 = vmatmul.mubr.f32.gmra.mxu0 %v6646
    %v6873 = vpop.f32.mrf.mxu0
    %v6874 = vadd.f32 0.0, %v6873
    %v6875 = vpop.f32.mrf.mxu0
    %6876 = vmatprep.mubr.f32.mxu0 0.0
    %6877 = vmatmul.mubr.f32.gmra.mxu0 %v6647
    %v6878 = vpop.f32.mrf.mxu0
    %v6879 = vadd.f32 0.0, %v6878
    %v6880 = vpop.f32.mrf.mxu0
    %6881 = vmatprep.mubr.f32.mxu0 0.0
    %6882 = vmatmul.mubr.f32.gmra.mxu0 %v6648
    %v6883 = vpop.f32.mrf.mxu0
    %v6884 = vadd.f32 0.0, %v6883
    %v6885 = vpop.f32.mrf.mxu0
    %6886 = vmatprep.mubr.f32.mxu0 0.0
    %6887 = vmatmul.mubr.f32.gmra.mxu0 %v6649
    %v6888 = vpop.f32.mrf.mxu0
    %v6889 = vadd.f32 0.0, %v6888
    %v6890 = vpop.f32.mrf.mxu0
    %6891 = vmatprep.mubr.f32.mxu0 0.0
    %6892 = vmatmul.mubr.f32.gmra.mxu0 %v6650
    %v6893 = vpop.f32.mrf.mxu0
    %v6894 = vadd.f32 0.0, %v6893
    %v6895 = vpop.f32.mrf.mxu0
    %6896 = vmatprep.mubr.f32.mxu0 0.0
    %6897 = vmatmul.mubr.f32.gmra.mxu0 %v6651
    %v6898 = vpop.f32.mrf.mxu0
    %v6899 = vadd.f32 0.0, %v6898
    %v6900 = vpop.f32.mrf.mxu0
    %6901 = vmatprep.mubr.f32.mxu0 0.0
    %6902 = vmatmul.mubr.f32.gmra.mxu0 %v6652
    %v6903 = vpop.f32.mrf.mxu0
    %v6904 = vadd.f32 0.0, %v6903
    %v6905 = vpop.f32.mrf.mxu0
    %6906 = vmatprep.mubr.f32.mxu0 0.0
    %6907 = vmatmul.mubr.f32.gmra.mxu0 %v6653
    %v6908 = vpop.f32.mrf.mxu0
    %v6909 = vadd.f32 0.0, %v6908
    %v6910 = vpop.f32.mrf.mxu0
    %6911 = vmatprep.mubr.f32.mxu0 0.0
    %6912 = vmatmul.mubr.f32.gmra.mxu0 %v6654
    %v6913 = vpop.f32.mrf.mxu0
    %v6914 = vadd.f32 0.0, %v6913
    %v6915 = vpop.f32.mrf.mxu0
    %6916 = vmatprep.mubr.f32.mxu0 0.0
    %6917 = vmatmul.mubr.f32.gmra.mxu0 %v6655
    %v6918 = vpop.f32.mrf.mxu0
    %v6919 = vadd.f32 0.0, %v6918
    %v6920 = vpop.f32.mrf.mxu0
    %6921 = vmatprep.mubr.f32.mxu0 0.0
    %6922 = vmatmul.mubr.f32.gmra.mxu0 %v6656
    %v6923 = vpop.f32.mrf.mxu0
    %v6924 = vadd.f32 0.0, %v6923
    %v6925 = vpop.f32.mrf.mxu0
    %6926 = vmatprep.mubr.f32.mxu0 0.0
    %6927 = vmatmul.mubr.f32.gmra.mxu0 %v6657
    %v6928 = vpop.f32.mrf.mxu0
    %v6929 = vadd.f32 0.0, %v6928
    %v6930 = vpop.f32.mrf.mxu0
    %6931 = vmatprep.mubr.f32.mxu0 0.0
    %6932 = vmatmul.mubr.f32.gmra.mxu0 %v6658
    %v6933 = vpop.f32.mrf.mxu0
    %v6934 = vadd.f32 0.0, %v6933
    %v6935 = vpop.f32.mrf.mxu0
    %6936 = vmatprep.mubr.f32.mxu0 0.0
    %6937 = vmatmul.mubr.f32.gmra.mxu0 %v6659
    %v6938 = vpop.f32.mrf.mxu0
    %v6939 = vadd.f32 0.0, %v6938
    %v6940 = vpop.f32.mrf.mxu0
    %6941 = vmatprep.mubr.f32.mxu0 0.0
    %6942 = vmatmul.mubr.f32.gmra.mxu0 %v6660
    %v6943 = vpop.f32.mrf.mxu0
    %v6944 = vadd.f32 0.0, %v6943
    %v6945 = vpop.f32.mrf.mxu0
    %6946 = vmatprep.mubr.f32.mxu0 0.0
    %6947 = vmatmul.mubr.f32.gmra.mxu0 %v6661
    %v6948 = vpop.f32.mrf.mxu0
    %v6949 = vadd.f32 0.0, %v6948
    %v6950 = vpop.f32.mrf.mxu0
    %6951 = vdwg.mxu0
    %6952 = vmatprep.subr.mxu0 0.0
    %6953 = vmatpush1.msra.mxu0 %v6804
    %6954 = vmatprep.subr.mxu0 0.0
    %6955 = vmatpush1.msra.mxu0 %v6799
    %6956 = vmatprep.subr.mxu0 0.0
    %6957 = vmatpush1.msra.mxu0 %v6794
    %6958 = vmatprep.subr.mxu0 0.0
    %6959 = vmatpush1.msra.mxu0 %v6789
    %6960 = vmatprep.subr.mxu0 0.0
    %6961 = vmatpush1.msra.mxu0 %v6784
    %6962 = vmatprep.subr.mxu0 0.0
    %6963 = vmatpush1.msra.mxu0 %v6779
    %6964 = vmatprep.subr.mxu0 0.0
    %6965 = vmatpush1.msra.mxu0 %v6774
    %6966 = vmatprep.subr.mxu0 0.0
    %6967 = vmatpush1.msra.mxu0 %v6769
    %6968 = vmatprep.subr.mxu0 0.0
    %6969 = vmatpush1.msra.mxu0 %v6764
    %6970 = vmatprep.subr.mxu0 0.0
    %6971 = vmatpush1.msra.mxu0 %v6759
    %6972 = vmatprep.subr.mxu0 0.0
    %6973 = vmatpush1.msra.mxu0 %v6754
    %6974 = vmatprep.subr.mxu0 0.0
    %6975 = vmatpush1.msra.mxu0 %v6749
    %6976 = vmatprep.subr.mxu0 0.0
    %6977 = vmatpush1.msra.mxu0 %v6744
    %6978 = vmatprep.subr.mxu0 0.0
    %6979 = vmatpush1.msra.mxu0 %v6739
    %6980 = vmatprep.subr.mxu0 0.0
    %6981 = vmatpush1.msra.mxu0 %v6734
    %6982 = vmatprep.subr.mxu0 0.0
    %6983 = vmatpush1.msra.mxu0 %v6729
    %6984 = vmatprep.subr.mxu0 0.0
    %6985 = vmatpush2.msra.mxu0 0.0
    %6986 = vmatprep.subr.mxu0 0.0
    %6987 = vmatpush2.msra.mxu0 0.0
    %6988 = vmatprep.subr.mxu0 0.0
    %6989 = vmatpush2.msra.mxu0 0.0
    %6990 = vmatprep.subr.mxu0 0.0
    %6991 = vmatpush2.msra.mxu0 0.0
    %6992 = vmatprep.subr.mxu0 0.0
    %6993 = vmatpush2.msra.mxu0 0.0
    %6994 = vmatprep.subr.mxu0 0.0
    %6995 = vmatpush2.msra.mxu0 0.0
    %6996 = vmatprep.subr.mxu0 0.0
    %6997 = vmatpush2.msra.mxu0 0.0
    %6998 = vmatprep.subr.mxu0 0.0
    %6999 = vmatpush2.msra.mxu0 0.0
    %7000 = vmatprep.subr.mxu0 0.0
    %7001 = vmatpush2.msra.mxu0 0.0
    %7002 = vmatprep.subr.mxu0 0.0
    %7003 = vmatpush2.msra.mxu0 0.0
    %7004 = vmatprep.subr.mxu0 0.0
    %7005 = vmatpush2.msra.mxu0 0.0
    %7006 = vmatprep.subr.mxu0 0.0
    %7007 = vmatpush2.msra.mxu0 0.0
    %7008 = vmatprep.subr.mxu0 0.0
    %7009 = vmatpush2.msra.mxu0 0.0
    %7010 = vmatprep.subr.mxu0 0.0
    %7011 = vmatpush2.msra.mxu0 0.0
    %7012 = vmatprep.subr.mxu0 0.0
    %7013 = vmatpush2.msra.mxu0 0.0
    %7014 = vmatprep.subr.mxu0 0.0
    %7015 = vmatpush2.msra.mxu0 0.0
    %7016 = vmatprep.mubr.f32.mxu0 0.0
    %7017 = vmatmul.mubr.f32.gmra.mxu0 %v6874
    %v7018 = vpop.f32.mrf.mxu0
    %v7019 = vadd.f32 0.0, %v7018
    %v7020 = vpop.f32.mrf.mxu0
    %7021 = vmatprep.mubr.f32.mxu0 0.0
    %7022 = vmatmul.mubr.f32.gmra.mxu0 %v6879
    %v7023 = vpop.f32.mrf.mxu0
    %v7024 = vadd.f32 0.0, %v7023
    %v7025 = vpop.f32.mrf.mxu0
    %7026 = vmatprep.mubr.f32.mxu0 0.0
    %7027 = vmatmul.mubr.f32.gmra.mxu0 %v6884
    %v7028 = vpop.f32.mrf.mxu0
    %v7029 = vadd.f32 0.0, %v7028
    %v7030 = vpop.f32.mrf.mxu0
    %7031 = vmatprep.mubr.f32.mxu0 0.0
    %7032 = vmatmul.mubr.f32.gmra.mxu0 %v6889
    %v7033 = vpop.f32.mrf.mxu0
    %v7034 = vadd.f32 0.0, %v7033
    %v7035 = vpop.f32.mrf.mxu0
    %7036 = vmatprep.mubr.f32.mxu0 0.0
    %7037 = vmatmul.mubr.f32.gmra.mxu0 %v6894
    %v7038 = vpop.f32.mrf.mxu0
    %v7039 = vadd.f32 0.0, %v7038
    %v7040 = vpop.f32.mrf.mxu0
    %7041 = vmatprep.mubr.f32.mxu0 0.0
    %7042 = vmatmul.mubr.f32.gmra.mxu0 %v6899
    %v7043 = vpop.f32.mrf.mxu0
    %v7044 = vadd.f32 0.0, %v7043
    %v7045 = vpop.f32.mrf.mxu0
    %7046 = vmatprep.mubr.f32.mxu0 0.0
    %7047 = vmatmul.mubr.f32.gmra.mxu0 %v6904
    %v7048 = vpop.f32.mrf.mxu0
    %v7049 = vadd.f32 0.0, %v7048
    %v7050 = vpop.f32.mrf.mxu0
    %7051 = vmatprep.mubr.f32.mxu0 0.0
    %7052 = vmatmul.mubr.f32.gmra.mxu0 %v6909
    %v7053 = vpop.f32.mrf.mxu0
    %v7054 = vadd.f32 0.0, %v7053
    %v7055 = vpop.f32.mrf.mxu0
    %7056 = vmatprep.mubr.f32.mxu0 0.0
    %7057 = vmatmul.mubr.f32.gmra.mxu0 %v6914
    %v7058 = vpop.f32.mrf.mxu0
    %v7059 = vadd.f32 0.0, %v7058
    %v7060 = vpop.f32.mrf.mxu0
    %7061 = vmatprep.mubr.f32.mxu0 0.0
    %7062 = vmatmul.mubr.f32.gmra.mxu0 %v6919
    %v7063 = vpop.f32.mrf.mxu0
    %v7064 = vadd.f32 0.0, %v7063
    %v7065 = vpop.f32.mrf.mxu0
    %7066 = vmatprep.mubr.f32.mxu0 0.0
    %7067 = vmatmul.mubr.f32.gmra.mxu0 %v6924
    %v7068 = vpop.f32.mrf.mxu0
    %v7069 = vadd.f32 0.0, %v7068
    %v7070 = vpop.f32.mrf.mxu0
    %7071 = vmatprep.mubr.f32.mxu0 0.0
    %7072 = vmatmul.mubr.f32.gmra.mxu0 %v6929
    %v7073 = vpop.f32.mrf.mxu0
    %v7074 = vadd.f32 0.0, %v7073
    %v7075 = vpop.f32.mrf.mxu0
    %7076 = vmatprep.mubr.f32.mxu0 0.0
    %7077 = vmatmul.mubr.f32.gmra.mxu0 %v6934
    %v7078 = vpop.f32.mrf.mxu0
    %v7079 = vadd.f32 0.0, %v7078
    %v7080 = vpop.f32.mrf.mxu0
    %7081 = vmatprep.mubr.f32.mxu0 0.0
    %7082 = vmatmul.mubr.f32.gmra.mxu0 %v6939
    %v7083 = vpop.f32.mrf.mxu0
    %v7084 = vadd.f32 0.0, %v7083
    %v7085 = vpop.f32.mrf.mxu0
    %7086 = vmatprep.mubr.f32.mxu0 0.0
    %7087 = vmatmul.mubr.f32.gmra.mxu0 %v6944
    %v7088 = vpop.f32.mrf.mxu0
    %v7089 = vadd.f32 0.0, %v7088
    %v7090 = vpop.f32.mrf.mxu0
    %7091 = vmatprep.mubr.f32.mxu0 0.0
    %7092 = vmatmul.mubr.f32.gmra.mxu0 %v6949
    %v7093 = vpop.f32.mrf.mxu0
    %v7094 = vadd.f32 0.0, %v7093
    %v7095 = vpop.f32.mrf.mxu0
    %7096 = vdwg.mxu0
    %v7097 = vmul.f32 %v7019, 0.5
    %v7098 = vmul.f32 %v7024, 0.5
    %v7099 = vmul.f32 %v7029, 0.5
    %v7100 = vmul.f32 %v7034, 0.5
    %v7101 = vmul.f32 %v7039, 0.5
    %v7102 = vmul.f32 %v7044, 0.5
    %v7103 = vmul.f32 %v7049, 0.5
    %v7104 = vmul.f32 %v7054, 0.5
    %v7105 = vmul.f32 %v7059, 0.5
    %v7106 = vmul.f32 %v7064, 0.5
    %v7107 = vmul.f32 %v7069, 0.5
    %v7108 = vmul.f32 %v7074, 0.5
    %v7109 = vmul.f32 %v7079, 0.5
    %v7110 = vmul.f32 %v7084, 0.5
    %v7111 = vmul.f32 %v7089, 0.5
    %v7112 = vmul.f32 %v7094, 0.5
    %v7113 = vsub.f32 %v398, %v7097
    %v7114 = vsub.f32 %v399, %v7098
    %v7115 = vsub.f32 %v400, %v7099
    %v7116 = vsub.f32 %v401, %v7100
    %v7117 = vsub.f32 %v402, %v7101
    %v7118 = vsub.f32 %v403, %v7102
    %v7119 = vsub.f32 %v404, %v7103
    %v7120 = vsub.f32 %v405, %v7104
    %v7121 = vsub.f32 %v406, %v7105
    %v7122 = vsub.f32 %v407, %v7106
    %v7123 = vsub.f32 %v408, %v7107
    %v7124 = vsub.f32 %v409, %v7108
    %v7125 = vsub.f32 %v410, %v7109
    %v7126 = vsub.f32 %v411, %v7110
    %v7127 = vsub.f32 %v412, %v7111
    %v7128 = vsub.f32 %v413, %v7112
    %7129 = vmatprep.subr.mxu0 0.0
    %7130 = vmatpush1.msra.mxu0 %v7128
    %7131 = vmatprep.subr.mxu0 0.0
    %7132 = vmatpush1.msra.mxu0 %v7127
    %7133 = vmatprep.subr.mxu0 0.0
    %7134 = vmatpush1.msra.mxu0 %v7126
    %7135 = vmatprep.subr.mxu0 0.0
    %7136 = vmatpush1.msra.mxu0 %v7125
    %7137 = vmatprep.subr.mxu0 0.0
    %7138 = vmatpush1.msra.mxu0 %v7124
    %7139 = vmatprep.subr.mxu0 0.0
    %7140 = vmatpush1.msra.mxu0 %v7123
    %7141 = vmatprep.subr.mxu0 0.0
    %7142 = vmatpush1.msra.mxu0 %v7122
    %7143 = vmatprep.subr.mxu0 0.0
    %7144 = vmatpush1.msra.mxu0 %v7121
    %7145 = vmatprep.subr.mxu0 0.0
    %7146 = vmatpush1.msra.mxu0 %v7120
    %7147 = vmatprep.subr.mxu0 0.0
    %7148 = vmatpush1.msra.mxu0 %v7119
    %7149 = vmatprep.subr.mxu0 0.0
    %7150 = vmatpush1.msra.mxu0 %v7118
    %7151 = vmatprep.subr.mxu0 0.0
    %7152 = vmatpush1.msra.mxu0 %v7117
    %7153 = vmatprep.subr.mxu0 0.0
    %7154 = vmatpush1.msra.mxu0 %v7116
    %7155 = vmatprep.subr.mxu0 0.0
    %7156 = vmatpush1.msra.mxu0 %v7115
    %7157 = vmatprep.subr.mxu0 0.0
    %7158 = vmatpush1.msra.mxu0 %v7114
    %7159 = vmatprep.subr.mxu0 0.0
    %7160 = vmatpush1.msra.mxu0 %v7113
    %7161 = vmatprep.subr.mxu0 0.0
    %7162 = vmatpush2.msra.mxu0 0.0
    %7163 = vmatprep.subr.mxu0 0.0
    %7164 = vmatpush2.msra.mxu0 0.0
    %7165 = vmatprep.subr.mxu0 0.0
    %7166 = vmatpush2.msra.mxu0 0.0
    %7167 = vmatprep.subr.mxu0 0.0
    %7168 = vmatpush2.msra.mxu0 0.0
    %7169 = vmatprep.subr.mxu0 0.0
    %7170 = vmatpush2.msra.mxu0 0.0
    %7171 = vmatprep.subr.mxu0 0.0
    %7172 = vmatpush2.msra.mxu0 0.0
    %7173 = vmatprep.subr.mxu0 0.0
    %7174 = vmatpush2.msra.mxu0 0.0
    %7175 = vmatprep.subr.mxu0 0.0
    %7176 = vmatpush2.msra.mxu0 0.0
    %7177 = vmatprep.subr.mxu0 0.0
    %7178 = vmatpush2.msra.mxu0 0.0
    %7179 = vmatprep.subr.mxu0 0.0
    %7180 = vmatpush2.msra.mxu0 0.0
    %7181 = vmatprep.subr.mxu0 0.0
    %7182 = vmatpush2.msra.mxu0 0.0
    %7183 = vmatprep.subr.mxu0 0.0
    %7184 = vmatpush2.msra.mxu0 0.0
    %7185 = vmatprep.subr.mxu0 0.0
    %7186 = vmatpush2.msra.mxu0 0.0
    %7187 = vmatprep.subr.mxu0 0.0
    %7188 = vmatpush2.msra.mxu0 0.0
    %7189 = vmatprep.subr.mxu0 0.0
    %7190 = vmatpush2.msra.mxu0 0.0
    %7191 = vmatprep.subr.mxu0 0.0
    %7192 = vmatpush2.msra.mxu0 0.0
    %7193 = vmatprep.mubr.f32.mxu0 0.0
    %7194 = vmatmul.mubr.f32.gmra.mxu0 %v6729
    %v7195 = vpop.f32.mrf.mxu0
    %v7196 = vadd.f32 0.0, %v7195
    %v7197 = vpop.f32.mrf.mxu0
    %7198 = vmatprep.mubr.f32.mxu0 0.0
    %7199 = vmatmul.mubr.f32.gmra.mxu0 %v6734
    %v7200 = vpop.f32.mrf.mxu0
    %v7201 = vadd.f32 0.0, %v7200
    %v7202 = vpop.f32.mrf.mxu0
    %7203 = vmatprep.mubr.f32.mxu0 0.0
    %7204 = vmatmul.mubr.f32.gmra.mxu0 %v6739
    %v7205 = vpop.f32.mrf.mxu0
    %v7206 = vadd.f32 0.0, %v7205
    %v7207 = vpop.f32.mrf.mxu0
    %7208 = vmatprep.mubr.f32.mxu0 0.0
    %7209 = vmatmul.mubr.f32.gmra.mxu0 %v6744
    %v7210 = vpop.f32.mrf.mxu0
    %v7211 = vadd.f32 0.0, %v7210
    %v7212 = vpop.f32.mrf.mxu0
    %7213 = vmatprep.mubr.f32.mxu0 0.0
    %7214 = vmatmul.mubr.f32.gmra.mxu0 %v6749
    %v7215 = vpop.f32.mrf.mxu0
    %v7216 = vadd.f32 0.0, %v7215
    %v7217 = vpop.f32.mrf.mxu0
    %7218 = vmatprep.mubr.f32.mxu0 0.0
    %7219 = vmatmul.mubr.f32.gmra.mxu0 %v6754
    %v7220 = vpop.f32.mrf.mxu0
    %v7221 = vadd.f32 0.0, %v7220
    %v7222 = vpop.f32.mrf.mxu0
    %7223 = vmatprep.mubr.f32.mxu0 0.0
    %7224 = vmatmul.mubr.f32.gmra.mxu0 %v6759
    %v7225 = vpop.f32.mrf.mxu0
    %v7226 = vadd.f32 0.0, %v7225
    %v7227 = vpop.f32.mrf.mxu0
    %7228 = vmatprep.mubr.f32.mxu0 0.0
    %7229 = vmatmul.mubr.f32.gmra.mxu0 %v6764
    %v7230 = vpop.f32.mrf.mxu0
    %v7231 = vadd.f32 0.0, %v7230
    %v7232 = vpop.f32.mrf.mxu0
    %7233 = vmatprep.mubr.f32.mxu0 0.0
    %7234 = vmatmul.mubr.f32.gmra.mxu0 %v6769
    %v7235 = vpop.f32.mrf.mxu0
    %v7236 = vadd.f32 0.0, %v7235
    %v7237 = vpop.f32.mrf.mxu0
    %7238 = vmatprep.mubr.f32.mxu0 0.0
    %7239 = vmatmul.mubr.f32.gmra.mxu0 %v6774
    %v7240 = vpop.f32.mrf.mxu0
    %v7241 = vadd.f32 0.0, %v7240
    %v7242 = vpop.f32.mrf.mxu0
    %7243 = vmatprep.mubr.f32.mxu0 0.0
    %7244 = vmatmul.mubr.f32.gmra.mxu0 %v6779
    %v7245 = vpop.f32.mrf.mxu0
    %v7246 = vadd.f32 0.0, %v7245
    %v7247 = vpop.f32.mrf.mxu0
    %7248 = vmatprep.mubr.f32.mxu0 0.0
    %7249 = vmatmul.mubr.f32.gmra.mxu0 %v6784
    %v7250 = vpop.f32.mrf.mxu0
    %v7251 = vadd.f32 0.0, %v7250
    %v7252 = vpop.f32.mrf.mxu0
    %7253 = vmatprep.mubr.f32.mxu0 0.0
    %7254 = vmatmul.mubr.f32.gmra.mxu0 %v6789
    %v7255 = vpop.f32.mrf.mxu0
    %v7256 = vadd.f32 0.0, %v7255
    %v7257 = vpop.f32.mrf.mxu0
    %7258 = vmatprep.mubr.f32.mxu0 0.0
    %7259 = vmatmul.mubr.f32.gmra.mxu0 %v6794
    %v7260 = vpop.f32.mrf.mxu0
    %v7261 = vadd.f32 0.0, %v7260
    %v7262 = vpop.f32.mrf.mxu0
    %7263 = vmatprep.mubr.f32.mxu0 0.0
    %7264 = vmatmul.mubr.f32.gmra.mxu0 %v6799
    %v7265 = vpop.f32.mrf.mxu0
    %v7266 = vadd.f32 0.0, %v7265
    %v7267 = vpop.f32.mrf.mxu0
    %7268 = vmatprep.mubr.f32.mxu0 0.0
    %7269 = vmatmul.mubr.f32.gmra.mxu0 %v6804
    %v7270 = vpop.f32.mrf.mxu0
    %v7271 = vadd.f32 0.0, %v7270
    %v7272 = vpop.f32.mrf.mxu0
    %7273 = vdwg.mxu0
    %7274 = vmatprep.subr.mxu0 0.0
    %7275 = vmatpush1.msra.mxu0 %v6949
    %7276 = vmatprep.subr.mxu0 0.0
    %7277 = vmatpush1.msra.mxu0 %v6944
    %7278 = vmatprep.subr.mxu0 0.0
    %7279 = vmatpush1.msra.mxu0 %v6939
    %7280 = vmatprep.subr.mxu0 0.0
    %7281 = vmatpush1.msra.mxu0 %v6934
    %7282 = vmatprep.subr.mxu0 0.0
    %7283 = vmatpush1.msra.mxu0 %v6929
    %7284 = vmatprep.subr.mxu0 0.0
    %7285 = vmatpush1.msra.mxu0 %v6924
    %7286 = vmatprep.subr.mxu0 0.0
    %7287 = vmatpush1.msra.mxu0 %v6919
    %7288 = vmatprep.subr.mxu0 0.0
    %7289 = vmatpush1.msra.mxu0 %v6914
    %7290 = vmatprep.subr.mxu0 0.0
    %7291 = vmatpush1.msra.mxu0 %v6909
    %7292 = vmatprep.subr.mxu0 0.0
    %7293 = vmatpush1.msra.mxu0 %v6904
    %7294 = vmatprep.subr.mxu0 0.0
    %7295 = vmatpush1.msra.mxu0 %v6899
    %7296 = vmatprep.subr.mxu0 0.0
    %7297 = vmatpush1.msra.mxu0 %v6894
    %7298 = vmatprep.subr.mxu0 0.0
    %7299 = vmatpush1.msra.mxu0 %v6889
    %7300 = vmatprep.subr.mxu0 0.0
    %7301 = vmatpush1.msra.mxu0 %v6884
    %7302 = vmatprep.subr.mxu0 0.0
    %7303 = vmatpush1.msra.mxu0 %v6879
    %7304 = vmatprep.subr.mxu0 0.0
    %7305 = vmatpush1.msra.mxu0 %v6874
    %7306 = vmatprep.subr.mxu0 0.0
    %7307 = vmatpush2.msra.mxu0 0.0
    %7308 = vmatprep.subr.mxu0 0.0
    %7309 = vmatpush2.msra.mxu0 0.0
    %7310 = vmatprep.subr.mxu0 0.0
    %7311 = vmatpush2.msra.mxu0 0.0
    %7312 = vmatprep.subr.mxu0 0.0
    %7313 = vmatpush2.msra.mxu0 0.0
    %7314 = vmatprep.subr.mxu0 0.0
    %7315 = vmatpush2.msra.mxu0 0.0
    %7316 = vmatprep.subr.mxu0 0.0
    %7317 = vmatpush2.msra.mxu0 0.0
    %7318 = vmatprep.subr.mxu0 0.0
    %7319 = vmatpush2.msra.mxu0 0.0
    %7320 = vmatprep.subr.mxu0 0.0
    %7321 = vmatpush2.msra.mxu0 0.0
    %7322 = vmatprep.subr.mxu0 0.0
    %7323 = vmatpush2.msra.mxu0 0.0
    %7324 = vmatprep.subr.mxu0 0.0
    %7325 = vmatpush2.msra.mxu0 0.0
    %7326 = vmatprep.subr.mxu0 0.0
    %7327 = vmatpush2.msra.mxu0 0.0
    %7328 = vmatprep.subr.mxu0 0.0
    %7329 = vmatpush2.msra.mxu0 0.0
    %7330 = vmatprep.subr.mxu0 0.0
    %7331 = vmatpush2.msra.mxu0 0.0
    %7332 = vmatprep.subr.mxu0 0.0
    %7333 = vmatpush2.msra.mxu0 0.0
    %7334 = vmatprep.subr.mxu0 0.0
    %7335 = vmatpush2.msra.mxu0 0.0
    %7336 = vmatprep.subr.mxu0 0.0
    %7337 = vmatpush2.msra.mxu0 0.0
    %7338 = vmatprep.mubr.f32.mxu0 0.0
    %7339 = vmatmul.mubr.f32.gmra.mxu0 %v7113
    %v7340 = vpop.f32.mrf.mxu0
    %v7341 = vadd.f32 0.0, %v7340
    %v7342 = vpop.f32.mrf.mxu0
    %7343 = vmatprep.mubr.f32.mxu0 0.0
    %7344 = vmatmul.mubr.f32.gmra.mxu0 %v7114
    %v7345 = vpop.f32.mrf.mxu0
    %v7346 = vadd.f32 0.0, %v7345
    %v7347 = vpop.f32.mrf.mxu0
    %7348 = vmatprep.mubr.f32.mxu0 0.0
    %7349 = vmatmul.mubr.f32.gmra.mxu0 %v7115
    %v7350 = vpop.f32.mrf.mxu0
    %v7351 = vadd.f32 0.0, %v7350
    %v7352 = vpop.f32.mrf.mxu0
    %7353 = vmatprep.mubr.f32.mxu0 0.0
    %7354 = vmatmul.mubr.f32.gmra.mxu0 %v7116
    %v7355 = vpop.f32.mrf.mxu0
    %v7356 = vadd.f32 0.0, %v7355
    %v7357 = vpop.f32.mrf.mxu0
    %7358 = vmatprep.mubr.f32.mxu0 0.0
    %7359 = vmatmul.mubr.f32.gmra.mxu0 %v7117
    %v7360 = vpop.f32.mrf.mxu0
    %v7361 = vadd.f32 0.0, %v7360
    %v7362 = vpop.f32.mrf.mxu0
    %7363 = vmatprep.mubr.f32.mxu0 0.0
    %7364 = vmatmul.mubr.f32.gmra.mxu0 %v7118
    %v7365 = vpop.f32.mrf.mxu0
    %v7366 = vadd.f32 0.0, %v7365
    %v7367 = vpop.f32.mrf.mxu0
    %7368 = vmatprep.mubr.f32.mxu0 0.0
    %7369 = vmatmul.mubr.f32.gmra.mxu0 %v7119
    %v7370 = vpop.f32.mrf.mxu0
    %v7371 = vadd.f32 0.0, %v7370
    %v7372 = vpop.f32.mrf.mxu0
    %7373 = vmatprep.mubr.f32.mxu0 0.0
    %7374 = vmatmul.mubr.f32.gmra.mxu0 %v7120
    %v7375 = vpop.f32.mrf.mxu0
    %v7376 = vadd.f32 0.0, %v7375
    %v7377 = vpop.f32.mrf.mxu0
    %7378 = vmatprep.mubr.f32.mxu0 0.0
    %7379 = vmatmul.mubr.f32.gmra.mxu0 %v7121
    %v7380 = vpop.f32.mrf.mxu0
    %v7381 = vadd.f32 0.0, %v7380
    %v7382 = vpop.f32.mrf.mxu0
    %7383 = vmatprep.mubr.f32.mxu0 0.0
    %7384 = vmatmul.mubr.f32.gmra.mxu0 %v7122
    %v7385 = vpop.f32.mrf.mxu0
    %v7386 = vadd.f32 0.0, %v7385
    %v7387 = vpop.f32.mrf.mxu0
    %7388 = vmatprep.mubr.f32.mxu0 0.0
    %7389 = vmatmul.mubr.f32.gmra.mxu0 %v7123
    %v7390 = vpop.f32.mrf.mxu0
    %v7391 = vadd.f32 0.0, %v7390
    %v7392 = vpop.f32.mrf.mxu0
    %7393 = vmatprep.mubr.f32.mxu0 0.0
    %7394 = vmatmul.mubr.f32.gmra.mxu0 %v7124
    %v7395 = vpop.f32.mrf.mxu0
    %v7396 = vadd.f32 0.0, %v7395
    %v7397 = vpop.f32.mrf.mxu0
    %7398 = vmatprep.mubr.f32.mxu0 0.0
    %7399 = vmatmul.mubr.f32.gmra.mxu0 %v7125
    %v7400 = vpop.f32.mrf.mxu0
    %v7401 = vadd.f32 0.0, %v7400
    %v7402 = vpop.f32.mrf.mxu0
    %7403 = vmatprep.mubr.f32.mxu0 0.0
    %7404 = vmatmul.mubr.f32.gmra.mxu0 %v7126
    %v7405 = vpop.f32.mrf.mxu0
    %v7406 = vadd.f32 0.0, %v7405
    %v7407 = vpop.f32.mrf.mxu0
    %7408 = vmatprep.mubr.f32.mxu0 0.0
    %7409 = vmatmul.mubr.f32.gmra.mxu0 %v7127
    %v7410 = vpop.f32.mrf.mxu0
    %v7411 = vadd.f32 0.0, %v7410
    %v7412 = vpop.f32.mrf.mxu0
    %7413 = vmatprep.mubr.f32.mxu0 0.0
    %7414 = vmatmul.mubr.f32.gmra.mxu0 %v7128
    %v7415 = vpop.f32.mrf.mxu0
    %v7416 = vadd.f32 0.0, %v7415
    %v7417 = vpop.f32.mrf.mxu0
    %7418 = vdwg.mxu0
    %7419 = vmatprep.subr.mxu0 0.0
    %7420 = vmatpush1.msra.mxu0 %v7271
    %7421 = vmatprep.subr.mxu0 0.0
    %7422 = vmatpush1.msra.mxu0 %v7266
    %7423 = vmatprep.subr.mxu0 0.0
    %7424 = vmatpush1.msra.mxu0 %v7261
    %7425 = vmatprep.subr.mxu0 0.0
    %7426 = vmatpush1.msra.mxu0 %v7256
    %7427 = vmatprep.subr.mxu0 0.0
    %7428 = vmatpush1.msra.mxu0 %v7251
    %7429 = vmatprep.subr.mxu0 0.0
    %7430 = vmatpush1.msra.mxu0 %v7246
    %7431 = vmatprep.subr.mxu0 0.0
    %7432 = vmatpush1.msra.mxu0 %v7241
    %7433 = vmatprep.subr.mxu0 0.0
    %7434 = vmatpush1.msra.mxu0 %v7236
    %7435 = vmatprep.subr.mxu0 0.0
    %7436 = vmatpush1.msra.mxu0 %v7231
    %7437 = vmatprep.subr.mxu0 0.0
    %7438 = vmatpush1.msra.mxu0 %v7226
    %7439 = vmatprep.subr.mxu0 0.0
    %7440 = vmatpush1.msra.mxu0 %v7221
    %7441 = vmatprep.subr.mxu0 0.0
    %7442 = vmatpush1.msra.mxu0 %v7216
    %7443 = vmatprep.subr.mxu0 0.0
    %7444 = vmatpush1.msra.mxu0 %v7211
    %7445 = vmatprep.subr.mxu0 0.0
    %7446 = vmatpush1.msra.mxu0 %v7206
    %7447 = vmatprep.subr.mxu0 0.0
    %7448 = vmatpush1.msra.mxu0 %v7201
    %7449 = vmatprep.subr.mxu0 0.0
    %7450 = vmatpush1.msra.mxu0 %v7196
    %7451 = vmatprep.subr.mxu0 0.0
    %7452 = vmatpush2.msra.mxu0 0.0
    %7453 = vmatprep.subr.mxu0 0.0
    %7454 = vmatpush2.msra.mxu0 0.0
    %7455 = vmatprep.subr.mxu0 0.0
    %7456 = vmatpush2.msra.mxu0 0.0
    %7457 = vmatprep.subr.mxu0 0.0
    %7458 = vmatpush2.msra.mxu0 0.0
    %7459 = vmatprep.subr.mxu0 0.0
    %7460 = vmatpush2.msra.mxu0 0.0
    %7461 = vmatprep.subr.mxu0 0.0
    %7462 = vmatpush2.msra.mxu0 0.0
    %7463 = vmatprep.subr.mxu0 0.0
    %7464 = vmatpush2.msra.mxu0 0.0
    %7465 = vmatprep.subr.mxu0 0.0
    %7466 = vmatpush2.msra.mxu0 0.0
    %7467 = vmatprep.subr.mxu0 0.0
    %7468 = vmatpush2.msra.mxu0 0.0
    %7469 = vmatprep.subr.mxu0 0.0
    %7470 = vmatpush2.msra.mxu0 0.0
    %7471 = vmatprep.subr.mxu0 0.0
    %7472 = vmatpush2.msra.mxu0 0.0
    %7473 = vmatprep.subr.mxu0 0.0
    %7474 = vmatpush2.msra.mxu0 0.0
    %7475 = vmatprep.subr.mxu0 0.0
    %7476 = vmatpush2.msra.mxu0 0.0
    %7477 = vmatprep.subr.mxu0 0.0
    %7478 = vmatpush2.msra.mxu0 0.0
    %7479 = vmatprep.subr.mxu0 0.0
    %7480 = vmatpush2.msra.mxu0 0.0
    %7481 = vmatprep.subr.mxu0 0.0
    %7482 = vmatpush2.msra.mxu0 0.0
    %7483 = vmatprep.mubr.f32.mxu0 0.0
    %7484 = vmatmul.mubr.f32.gmra.mxu0 %v7341
    %v7485 = vpop.f32.mrf.mxu0
    %v7486 = vadd.f32 0.0, %v7485
    %v7487 = vpop.f32.mrf.mxu0
    %7488 = vmatprep.mubr.f32.mxu0 0.0
    %7489 = vmatmul.mubr.f32.gmra.mxu0 %v7346
    %v7490 = vpop.f32.mrf.mxu0
    %v7491 = vadd.f32 0.0, %v7490
    %v7492 = vpop.f32.mrf.mxu0
    %7493 = vmatprep.mubr.f32.mxu0 0.0
    %7494 = vmatmul.mubr.f32.gmra.mxu0 %v7351
    %v7495 = vpop.f32.mrf.mxu0
    %v7496 = vadd.f32 0.0, %v7495
    %v7497 = vpop.f32.mrf.mxu0
    %7498 = vmatprep.mubr.f32.mxu0 0.0
    %7499 = vmatmul.mubr.f32.gmra.mxu0 %v7356
    %v7500 = vpop.f32.mrf.mxu0
    %v7501 = vadd.f32 0.0, %v7500
    %v7502 = vpop.f32.mrf.mxu0
    %7503 = vmatprep.mubr.f32.mxu0 0.0
    %7504 = vmatmul.mubr.f32.gmra.mxu0 %v7361
    %v7505 = vpop.f32.mrf.mxu0
    %v7506 = vadd.f32 0.0, %v7505
    %v7507 = vpop.f32.mrf.mxu0
    %7508 = vmatprep.mubr.f32.mxu0 0.0
    %7509 = vmatmul.mubr.f32.gmra.mxu0 %v7366
    %v7510 = vpop.f32.mrf.mxu0
    %v7511 = vadd.f32 0.0, %v7510
    %v7512 = vpop.f32.mrf.mxu0
    %7513 = vmatprep.mubr.f32.mxu0 0.0
    %7514 = vmatmul.mubr.f32.gmra.mxu0 %v7371
    %v7515 = vpop.f32.mrf.mxu0
    %v7516 = vadd.f32 0.0, %v7515
    %v7517 = vpop.f32.mrf.mxu0
    %7518 = vmatprep.mubr.f32.mxu0 0.0
    %7519 = vmatmul.mubr.f32.gmra.mxu0 %v7376
    %v7520 = vpop.f32.mrf.mxu0
    %v7521 = vadd.f32 0.0, %v7520
    %v7522 = vpop.f32.mrf.mxu0
    %7523 = vmatprep.mubr.f32.mxu0 0.0
    %7524 = vmatmul.mubr.f32.gmra.mxu0 %v7381
    %v7525 = vpop.f32.mrf.mxu0
    %v7526 = vadd.f32 0.0, %v7525
    %v7527 = vpop.f32.mrf.mxu0
    %7528 = vmatprep.mubr.f32.mxu0 0.0
    %7529 = vmatmul.mubr.f32.gmra.mxu0 %v7386
    %v7530 = vpop.f32.mrf.mxu0
    %v7531 = vadd.f32 0.0, %v7530
    %v7532 = vpop.f32.mrf.mxu0
    %7533 = vmatprep.mubr.f32.mxu0 0.0
    %7534 = vmatmul.mubr.f32.gmra.mxu0 %v7391
    %v7535 = vpop.f32.mrf.mxu0
    %v7536 = vadd.f32 0.0, %v7535
    %v7537 = vpop.f32.mrf.mxu0
    %7538 = vmatprep.mubr.f32.mxu0 0.0
    %7539 = vmatmul.mubr.f32.gmra.mxu0 %v7396
    %v7540 = vpop.f32.mrf.mxu0
    %v7541 = vadd.f32 0.0, %v7540
    %v7542 = vpop.f32.mrf.mxu0
    %7543 = vmatprep.mubr.f32.mxu0 0.0
    %7544 = vmatmul.mubr.f32.gmra.mxu0 %v7401
    %v7545 = vpop.f32.mrf.mxu0
    %v7546 = vadd.f32 0.0, %v7545
    %v7547 = vpop.f32.mrf.mxu0
    %7548 = vmatprep.mubr.f32.mxu0 0.0
    %7549 = vmatmul.mubr.f32.gmra.mxu0 %v7406
    %v7550 = vpop.f32.mrf.mxu0
    %v7551 = vadd.f32 0.0, %v7550
    %v7552 = vpop.f32.mrf.mxu0
    %7553 = vmatprep.mubr.f32.mxu0 0.0
    %7554 = vmatmul.mubr.f32.gmra.mxu0 %v7411
    %v7555 = vpop.f32.mrf.mxu0
    %v7556 = vadd.f32 0.0, %v7555
    %v7557 = vpop.f32.mrf.mxu0
    %7558 = vmatprep.mubr.f32.mxu0 0.0
    %7559 = vmatmul.mubr.f32.gmra.mxu0 %v7416
    %v7560 = vpop.f32.mrf.mxu0
    %v7561 = vadd.f32 0.0, %v7560
    %v7562 = vpop.f32.mrf.mxu0
    %7563 = vdwg.mxu0
    %v7564 = vmul.f32 %v7486, 0.5
    %v7565 = vmul.f32 %v7491, 0.5
    %v7566 = vmul.f32 %v7496, 0.5
    %v7567 = vmul.f32 %v7501, 0.5
    %v7568 = vmul.f32 %v7506, 0.5
    %v7569 = vmul.f32 %v7511, 0.5
    %v7570 = vmul.f32 %v7516, 0.5
    %v7571 = vmul.f32 %v7521, 0.5
    %v7572 = vmul.f32 %v7526, 0.5
    %v7573 = vmul.f32 %v7531, 0.5
    %v7574 = vmul.f32 %v7536, 0.5
    %v7575 = vmul.f32 %v7541, 0.5
    %v7576 = vmul.f32 %v7546, 0.5
    %v7577 = vmul.f32 %v7551, 0.5
    %v7578 = vmul.f32 %v7556, 0.5
    %v7579 = vmul.f32 %v7561, 0.5
    %v7580 = vsub.f32 %v398, %v7564
    %v7581 = vsub.f32 %v399, %v7565
    %v7582 = vsub.f32 %v400, %v7566
    %v7583 = vsub.f32 %v401, %v7567
    %v7584 = vsub.f32 %v402, %v7568
    %v7585 = vsub.f32 %v403, %v7569
    %v7586 = vsub.f32 %v404, %v7570
    %v7587 = vsub.f32 %v405, %v7571
    %v7588 = vsub.f32 %v406, %v7572
    %v7589 = vsub.f32 %v407, %v7573
    %v7590 = vsub.f32 %v408, %v7574
    %v7591 = vsub.f32 %v409, %v7575
    %v7592 = vsub.f32 %v410, %v7576
    %v7593 = vsub.f32 %v411, %v7577
    %v7594 = vsub.f32 %v412, %v7578
    %v7595 = vsub.f32 %v413, %v7579
    %7596 = vmatprep.subr.mxu0 0.0
    %7597 = vmatpush1.msra.mxu0 %v7595
    %7598 = vmatprep.subr.mxu0 0.0
    %7599 = vmatpush1.msra.mxu0 %v7594
    %7600 = vmatprep.subr.mxu0 0.0
    %7601 = vmatpush1.msra.mxu0 %v7593
    %7602 = vmatprep.subr.mxu0 0.0
    %7603 = vmatpush1.msra.mxu0 %v7592
    %7604 = vmatprep.subr.mxu0 0.0
    %7605 = vmatpush1.msra.mxu0 %v7591
    %7606 = vmatprep.subr.mxu0 0.0
    %7607 = vmatpush1.msra.mxu0 %v7590
    %7608 = vmatprep.subr.mxu0 0.0
    %7609 = vmatpush1.msra.mxu0 %v7589
    %7610 = vmatprep.subr.mxu0 0.0
    %7611 = vmatpush1.msra.mxu0 %v7588
    %7612 = vmatprep.subr.mxu0 0.0
    %7613 = vmatpush1.msra.mxu0 %v7587
    %7614 = vmatprep.subr.mxu0 0.0
    %7615 = vmatpush1.msra.mxu0 %v7586
    %7616 = vmatprep.subr.mxu0 0.0
    %7617 = vmatpush1.msra.mxu0 %v7585
    %7618 = vmatprep.subr.mxu0 0.0
    %7619 = vmatpush1.msra.mxu0 %v7584
    %7620 = vmatprep.subr.mxu0 0.0
    %7621 = vmatpush1.msra.mxu0 %v7583
    %7622 = vmatprep.subr.mxu0 0.0
    %7623 = vmatpush1.msra.mxu0 %v7582
    %7624 = vmatprep.subr.mxu0 0.0
    %7625 = vmatpush1.msra.mxu0 %v7581
    %7626 = vmatprep.subr.mxu0 0.0
    %7627 = vmatpush1.msra.mxu0 %v7580
    %7628 = vmatprep.subr.mxu0 0.0
    %7629 = vmatpush2.msra.mxu0 0.0
    %7630 = vmatprep.subr.mxu0 0.0
    %7631 = vmatpush2.msra.mxu0 0.0
    %7632 = vmatprep.subr.mxu0 0.0
    %7633 = vmatpush2.msra.mxu0 0.0
    %7634 = vmatprep.subr.mxu0 0.0
    %7635 = vmatpush2.msra.mxu0 0.0
    %7636 = vmatprep.subr.mxu0 0.0
    %7637 = vmatpush2.msra.mxu0 0.0
    %7638 = vmatprep.subr.mxu0 0.0
    %7639 = vmatpush2.msra.mxu0 0.0
    %7640 = vmatprep.subr.mxu0 0.0
    %7641 = vmatpush2.msra.mxu0 0.0
    %7642 = vmatprep.subr.mxu0 0.0
    %7643 = vmatpush2.msra.mxu0 0.0
    %7644 = vmatprep.subr.mxu0 0.0
    %7645 = vmatpush2.msra.mxu0 0.0
    %7646 = vmatprep.subr.mxu0 0.0
    %7647 = vmatpush2.msra.mxu0 0.0
    %7648 = vmatprep.subr.mxu0 0.0
    %7649 = vmatpush2.msra.mxu0 0.0
    %7650 = vmatprep.subr.mxu0 0.0
    %7651 = vmatpush2.msra.mxu0 0.0
    %7652 = vmatprep.subr.mxu0 0.0
    %7653 = vmatpush2.msra.mxu0 0.0
    %7654 = vmatprep.subr.mxu0 0.0
    %7655 = vmatpush2.msra.mxu0 0.0
    %7656 = vmatprep.subr.mxu0 0.0
    %7657 = vmatpush2.msra.mxu0 0.0
    %7658 = vmatprep.subr.mxu0 0.0
    %7659 = vmatpush2.msra.mxu0 0.0
    %7660 = vmatprep.mubr.f32.mxu0 0.0
    %7661 = vmatmul.mubr.f32.gmra.mxu0 %v7196
    %v7662 = vpop.f32.mrf.mxu0
    %v7663 = vadd.f32 0.0, %v7662
    %v7664 = vpop.f32.mrf.mxu0
    %7665 = vmatprep.mubr.f32.mxu0 0.0
    %7666 = vmatmul.mubr.f32.gmra.mxu0 %v7201
    %v7667 = vpop.f32.mrf.mxu0
    %v7668 = vadd.f32 0.0, %v7667
    %v7669 = vpop.f32.mrf.mxu0
    %7670 = vmatprep.mubr.f32.mxu0 0.0
    %7671 = vmatmul.mubr.f32.gmra.mxu0 %v7206
    %v7672 = vpop.f32.mrf.mxu0
    %v7673 = vadd.f32 0.0, %v7672
    %v7674 = vpop.f32.mrf.mxu0
    %7675 = vmatprep.mubr.f32.mxu0 0.0
    %7676 = vmatmul.mubr.f32.gmra.mxu0 %v7211
    %v7677 = vpop.f32.mrf.mxu0
    %v7678 = vadd.f32 0.0, %v7677
    %v7679 = vpop.f32.mrf.mxu0
    %7680 = vmatprep.mubr.f32.mxu0 0.0
    %7681 = vmatmul.mubr.f32.gmra.mxu0 %v7216
    %v7682 = vpop.f32.mrf.mxu0
    %v7683 = vadd.f32 0.0, %v7682
    %v7684 = vpop.f32.mrf.mxu0
    %7685 = vmatprep.mubr.f32.mxu0 0.0
    %7686 = vmatmul.mubr.f32.gmra.mxu0 %v7221
    %v7687 = vpop.f32.mrf.mxu0
    %v7688 = vadd.f32 0.0, %v7687
    %v7689 = vpop.f32.mrf.mxu0
    %7690 = vmatprep.mubr.f32.mxu0 0.0
    %7691 = vmatmul.mubr.f32.gmra.mxu0 %v7226
    %v7692 = vpop.f32.mrf.mxu0
    %v7693 = vadd.f32 0.0, %v7692
    %v7694 = vpop.f32.mrf.mxu0
    %7695 = vmatprep.mubr.f32.mxu0 0.0
    %7696 = vmatmul.mubr.f32.gmra.mxu0 %v7231
    %v7697 = vpop.f32.mrf.mxu0
    %v7698 = vadd.f32 0.0, %v7697
    %v7699 = vpop.f32.mrf.mxu0
    %7700 = vmatprep.mubr.f32.mxu0 0.0
    %7701 = vmatmul.mubr.f32.gmra.mxu0 %v7236
    %v7702 = vpop.f32.mrf.mxu0
    %v7703 = vadd.f32 0.0, %v7702
    %v7704 = vpop.f32.mrf.mxu0
    %7705 = vmatprep.mubr.f32.mxu0 0.0
    %7706 = vmatmul.mubr.f32.gmra.mxu0 %v7241
    %v7707 = vpop.f32.mrf.mxu0
    %v7708 = vadd.f32 0.0, %v7707
    %v7709 = vpop.f32.mrf.mxu0
    %7710 = vmatprep.mubr.f32.mxu0 0.0
    %7711 = vmatmul.mubr.f32.gmra.mxu0 %v7246
    %v7712 = vpop.f32.mrf.mxu0
    %v7713 = vadd.f32 0.0, %v7712
    %v7714 = vpop.f32.mrf.mxu0
    %7715 = vmatprep.mubr.f32.mxu0 0.0
    %7716 = vmatmul.mubr.f32.gmra.mxu0 %v7251
    %v7717 = vpop.f32.mrf.mxu0
    %v7718 = vadd.f32 0.0, %v7717
    %v7719 = vpop.f32.mrf.mxu0
    %7720 = vmatprep.mubr.f32.mxu0 0.0
    %7721 = vmatmul.mubr.f32.gmra.mxu0 %v7256
    %v7722 = vpop.f32.mrf.mxu0
    %v7723 = vadd.f32 0.0, %v7722
    %v7724 = vpop.f32.mrf.mxu0
    %7725 = vmatprep.mubr.f32.mxu0 0.0
    %7726 = vmatmul.mubr.f32.gmra.mxu0 %v7261
    %v7727 = vpop.f32.mrf.mxu0
    %v7728 = vadd.f32 0.0, %v7727
    %v7729 = vpop.f32.mrf.mxu0
    %7730 = vmatprep.mubr.f32.mxu0 0.0
    %7731 = vmatmul.mubr.f32.gmra.mxu0 %v7266
    %v7732 = vpop.f32.mrf.mxu0
    %v7733 = vadd.f32 0.0, %v7732
    %v7734 = vpop.f32.mrf.mxu0
    %7735 = vmatprep.mubr.f32.mxu0 0.0
    %7736 = vmatmul.mubr.f32.gmra.mxu0 %v7271
    %v7737 = vpop.f32.mrf.mxu0
    %v7738 = vadd.f32 0.0, %v7737
    %v7739 = vpop.f32.mrf.mxu0
    %7740 = vdwg.mxu0
    %7741 = vmatprep.subr.mxu0 0.0
    %7742 = vmatpush1.msra.mxu0 %v7416
    %7743 = vmatprep.subr.mxu0 0.0
    %7744 = vmatpush1.msra.mxu0 %v7411
    %7745 = vmatprep.subr.mxu0 0.0
    %7746 = vmatpush1.msra.mxu0 %v7406
    %7747 = vmatprep.subr.mxu0 0.0
    %7748 = vmatpush1.msra.mxu0 %v7401
    %7749 = vmatprep.subr.mxu0 0.0
    %7750 = vmatpush1.msra.mxu0 %v7396
    %7751 = vmatprep.subr.mxu0 0.0
    %7752 = vmatpush1.msra.mxu0 %v7391
    %7753 = vmatprep.subr.mxu0 0.0
    %7754 = vmatpush1.msra.mxu0 %v7386
    %7755 = vmatprep.subr.mxu0 0.0
    %7756 = vmatpush1.msra.mxu0 %v7381
    %7757 = vmatprep.subr.mxu0 0.0
    %7758 = vmatpush1.msra.mxu0 %v7376
    %7759 = vmatprep.subr.mxu0 0.0
    %7760 = vmatpush1.msra.mxu0 %v7371
    %7761 = vmatprep.subr.mxu0 0.0
    %7762 = vmatpush1.msra.mxu0 %v7366
    %7763 = vmatprep.subr.mxu0 0.0
    %7764 = vmatpush1.msra.mxu0 %v7361
    %7765 = vmatprep.subr.mxu0 0.0
    %7766 = vmatpush1.msra.mxu0 %v7356
    %7767 = vmatprep.subr.mxu0 0.0
    %7768 = vmatpush1.msra.mxu0 %v7351
    %7769 = vmatprep.subr.mxu0 0.0
    %7770 = vmatpush1.msra.mxu0 %v7346
    %7771 = vmatprep.subr.mxu0 0.0
    %7772 = vmatpush1.msra.mxu0 %v7341
    %7773 = vmatprep.subr.mxu0 0.0
    %7774 = vmatpush2.msra.mxu0 0.0
    %7775 = vmatprep.subr.mxu0 0.0
    %7776 = vmatpush2.msra.mxu0 0.0
    %7777 = vmatprep.subr.mxu0 0.0
    %7778 = vmatpush2.msra.mxu0 0.0
    %7779 = vmatprep.subr.mxu0 0.0
    %7780 = vmatpush2.msra.mxu0 0.0
    %7781 = vmatprep.subr.mxu0 0.0
    %7782 = vmatpush2.msra.mxu0 0.0
    %7783 = vmatprep.subr.mxu0 0.0
    %7784 = vmatpush2.msra.mxu0 0.0
    %7785 = vmatprep.subr.mxu0 0.0
    %7786 = vmatpush2.msra.mxu0 0.0
    %7787 = vmatprep.subr.mxu0 0.0
    %7788 = vmatpush2.msra.mxu0 0.0
    %7789 = vmatprep.subr.mxu0 0.0
    %7790 = vmatpush2.msra.mxu0 0.0
    %7791 = vmatprep.subr.mxu0 0.0
    %7792 = vmatpush2.msra.mxu0 0.0
    %7793 = vmatprep.subr.mxu0 0.0
    %7794 = vmatpush2.msra.mxu0 0.0
    %7795 = vmatprep.subr.mxu0 0.0
    %7796 = vmatpush2.msra.mxu0 0.0
    %7797 = vmatprep.subr.mxu0 0.0
    %7798 = vmatpush2.msra.mxu0 0.0
    %7799 = vmatprep.subr.mxu0 0.0
    %7800 = vmatpush2.msra.mxu0 0.0
    %7801 = vmatprep.subr.mxu0 0.0
    %7802 = vmatpush2.msra.mxu0 0.0
    %7803 = vmatprep.subr.mxu0 0.0
    %7804 = vmatpush2.msra.mxu0 0.0
    %7805 = vmatprep.mubr.f32.mxu0 0.0
    %7806 = vmatmul.mubr.f32.gmra.mxu0 %v7580
    %v7807 = vpop.f32.mrf.mxu0
    %v7808 = vadd.f32 0.0, %v7807
    %v7809 = vpop.f32.mrf.mxu0
    %7810 = vmatprep.mubr.f32.mxu0 0.0
    %7811 = vmatmul.mubr.f32.gmra.mxu0 %v7581
    %v7812 = vpop.f32.mrf.mxu0
    %v7813 = vadd.f32 0.0, %v7812
    %v7814 = vpop.f32.mrf.mxu0
    %7815 = vmatprep.mubr.f32.mxu0 0.0
    %7816 = vmatmul.mubr.f32.gmra.mxu0 %v7582
    %v7817 = vpop.f32.mrf.mxu0
    %v7818 = vadd.f32 0.0, %v7817
    %v7819 = vpop.f32.mrf.mxu0
    %7820 = vmatprep.mubr.f32.mxu0 0.0
    %7821 = vmatmul.mubr.f32.gmra.mxu0 %v7583
    %v7822 = vpop.f32.mrf.mxu0
    %v7823 = vadd.f32 0.0, %v7822
    %v7824 = vpop.f32.mrf.mxu0
    %7825 = vmatprep.mubr.f32.mxu0 0.0
    %7826 = vmatmul.mubr.f32.gmra.mxu0 %v7584
    %v7827 = vpop.f32.mrf.mxu0
    %v7828 = vadd.f32 0.0, %v7827
    %v7829 = vpop.f32.mrf.mxu0
    %7830 = vmatprep.mubr.f32.mxu0 0.0
    %7831 = vmatmul.mubr.f32.gmra.mxu0 %v7585
    %v7832 = vpop.f32.mrf.mxu0
    %v7833 = vadd.f32 0.0, %v7832
    %v7834 = vpop.f32.mrf.mxu0
    %7835 = vmatprep.mubr.f32.mxu0 0.0
    %7836 = vmatmul.mubr.f32.gmra.mxu0 %v7586
    %v7837 = vpop.f32.mrf.mxu0
    %v7838 = vadd.f32 0.0, %v7837
    %v7839 = vpop.f32.mrf.mxu0
    %7840 = vmatprep.mubr.f32.mxu0 0.0
    %7841 = vmatmul.mubr.f32.gmra.mxu0 %v7587
    %v7842 = vpop.f32.mrf.mxu0
    %v7843 = vadd.f32 0.0, %v7842
    %v7844 = vpop.f32.mrf.mxu0
    %7845 = vmatprep.mubr.f32.mxu0 0.0
    %7846 = vmatmul.mubr.f32.gmra.mxu0 %v7588
    %v7847 = vpop.f32.mrf.mxu0
    %v7848 = vadd.f32 0.0, %v7847
    %v7849 = vpop.f32.mrf.mxu0
    %7850 = vmatprep.mubr.f32.mxu0 0.0
    %7851 = vmatmul.mubr.f32.gmra.mxu0 %v7589
    %v7852 = vpop.f32.mrf.mxu0
    %v7853 = vadd.f32 0.0, %v7852
    %v7854 = vpop.f32.mrf.mxu0
    %7855 = vmatprep.mubr.f32.mxu0 0.0
    %7856 = vmatmul.mubr.f32.gmra.mxu0 %v7590
    %v7857 = vpop.f32.mrf.mxu0
    %v7858 = vadd.f32 0.0, %v7857
    %v7859 = vpop.f32.mrf.mxu0
    %7860 = vmatprep.mubr.f32.mxu0 0.0
    %7861 = vmatmul.mubr.f32.gmra.mxu0 %v7591
    %v7862 = vpop.f32.mrf.mxu0
    %v7863 = vadd.f32 0.0, %v7862
    %v7864 = vpop.f32.mrf.mxu0
    %7865 = vmatprep.mubr.f32.mxu0 0.0
    %7866 = vmatmul.mubr.f32.gmra.mxu0 %v7592
    %v7867 = vpop.f32.mrf.mxu0
    %v7868 = vadd.f32 0.0, %v7867
    %v7869 = vpop.f32.mrf.mxu0
    %7870 = vmatprep.mubr.f32.mxu0 0.0
    %7871 = vmatmul.mubr.f32.gmra.mxu0 %v7593
    %v7872 = vpop.f32.mrf.mxu0
    %v7873 = vadd.f32 0.0, %v7872
    %v7874 = vpop.f32.mrf.mxu0
    %7875 = vmatprep.mubr.f32.mxu0 0.0
    %7876 = vmatmul.mubr.f32.gmra.mxu0 %v7594
    %v7877 = vpop.f32.mrf.mxu0
    %v7878 = vadd.f32 0.0, %v7877
    %v7879 = vpop.f32.mrf.mxu0
    %7880 = vmatprep.mubr.f32.mxu0 0.0
    %7881 = vmatmul.mubr.f32.gmra.mxu0 %v7595
    %v7882 = vpop.f32.mrf.mxu0
    %v7883 = vadd.f32 0.0, %v7882
    %v7884 = vpop.f32.mrf.mxu0
    %7885 = vdwg.mxu0
    %7886 = vmatprep.subr.mxu0 0.0
    %7887 = vmatpush1.msra.mxu0 %v7738
    %7888 = vmatprep.subr.mxu0 0.0
    %7889 = vmatpush1.msra.mxu0 %v7733
    %7890 = vmatprep.subr.mxu0 0.0
    %7891 = vmatpush1.msra.mxu0 %v7728
    %7892 = vmatprep.subr.mxu0 0.0
    %7893 = vmatpush1.msra.mxu0 %v7723
    %7894 = vmatprep.subr.mxu0 0.0
    %7895 = vmatpush1.msra.mxu0 %v7718
    %7896 = vmatprep.subr.mxu0 0.0
    %7897 = vmatpush1.msra.mxu0 %v7713
    %7898 = vmatprep.subr.mxu0 0.0
    %7899 = vmatpush1.msra.mxu0 %v7708
    %7900 = vmatprep.subr.mxu0 0.0
    %7901 = vmatpush1.msra.mxu0 %v7703
    %7902 = vmatprep.subr.mxu0 0.0
    %7903 = vmatpush1.msra.mxu0 %v7698
    %7904 = vmatprep.subr.mxu0 0.0
    %7905 = vmatpush1.msra.mxu0 %v7693
    %7906 = vmatprep.subr.mxu0 0.0
    %7907 = vmatpush1.msra.mxu0 %v7688
    %7908 = vmatprep.subr.mxu0 0.0
    %7909 = vmatpush1.msra.mxu0 %v7683
    %7910 = vmatprep.subr.mxu0 0.0
    %7911 = vmatpush1.msra.mxu0 %v7678
    %7912 = vmatprep.subr.mxu0 0.0
    %7913 = vmatpush1.msra.mxu0 %v7673
    %7914 = vmatprep.subr.mxu0 0.0
    %7915 = vmatpush1.msra.mxu0 %v7668
    %7916 = vmatprep.subr.mxu0 0.0
    %7917 = vmatpush1.msra.mxu0 %v7663
    %7918 = vmatprep.subr.mxu0 0.0
    %7919 = vmatpush2.msra.mxu0 0.0
    %7920 = vmatprep.subr.mxu0 0.0
    %7921 = vmatpush2.msra.mxu0 0.0
    %7922 = vmatprep.subr.mxu0 0.0
    %7923 = vmatpush2.msra.mxu0 0.0
    %7924 = vmatprep.subr.mxu0 0.0
    %7925 = vmatpush2.msra.mxu0 0.0
    %7926 = vmatprep.subr.mxu0 0.0
    %7927 = vmatpush2.msra.mxu0 0.0
    %7928 = vmatprep.subr.mxu0 0.0
    %7929 = vmatpush2.msra.mxu0 0.0
    %7930 = vmatprep.subr.mxu0 0.0
    %7931 = vmatpush2.msra.mxu0 0.0
    %7932 = vmatprep.subr.mxu0 0.0
    %7933 = vmatpush2.msra.mxu0 0.0
    %7934 = vmatprep.subr.mxu0 0.0
    %7935 = vmatpush2.msra.mxu0 0.0
    %7936 = vmatprep.subr.mxu0 0.0
    %7937 = vmatpush2.msra.mxu0 0.0
    %7938 = vmatprep.subr.mxu0 0.0
    %7939 = vmatpush2.msra.mxu0 0.0
    %7940 = vmatprep.subr.mxu0 0.0
    %7941 = vmatpush2.msra.mxu0 0.0
    %7942 = vmatprep.subr.mxu0 0.0
    %7943 = vmatpush2.msra.mxu0 0.0
    %7944 = vmatprep.subr.mxu0 0.0
    %7945 = vmatpush2.msra.mxu0 0.0
    %7946 = vmatprep.subr.mxu0 0.0
    %7947 = vmatpush2.msra.mxu0 0.0
    %7948 = vmatprep.subr.mxu0 0.0
    %7949 = vmatpush2.msra.mxu0 0.0
    %7950 = vmatprep.mubr.f32.mxu0 0.0
    %7951 = vmatmul.mubr.f32.gmra.mxu0 %v7808
    %v7952 = vpop.f32.mrf.mxu0
    %v7953 = vadd.f32 0.0, %v7952
    %v7954 = vpop.f32.mrf.mxu0
    %7955 = vmatprep.mubr.f32.mxu0 0.0
    %7956 = vmatmul.mubr.f32.gmra.mxu0 %v7813
    %v7957 = vpop.f32.mrf.mxu0
    %v7958 = vadd.f32 0.0, %v7957
    %v7959 = vpop.f32.mrf.mxu0
    %7960 = vmatprep.mubr.f32.mxu0 0.0
    %7961 = vmatmul.mubr.f32.gmra.mxu0 %v7818
    %v7962 = vpop.f32.mrf.mxu0
    %v7963 = vadd.f32 0.0, %v7962
    %v7964 = vpop.f32.mrf.mxu0
    %7965 = vmatprep.mubr.f32.mxu0 0.0
    %7966 = vmatmul.mubr.f32.gmra.mxu0 %v7823
    %v7967 = vpop.f32.mrf.mxu0
    %v7968 = vadd.f32 0.0, %v7967
    %v7969 = vpop.f32.mrf.mxu0
    %7970 = vmatprep.mubr.f32.mxu0 0.0
    %7971 = vmatmul.mubr.f32.gmra.mxu0 %v7828
    %v7972 = vpop.f32.mrf.mxu0
    %v7973 = vadd.f32 0.0, %v7972
    %v7974 = vpop.f32.mrf.mxu0
    %7975 = vmatprep.mubr.f32.mxu0 0.0
    %7976 = vmatmul.mubr.f32.gmra.mxu0 %v7833
    %v7977 = vpop.f32.mrf.mxu0
    %v7978 = vadd.f32 0.0, %v7977
    %v7979 = vpop.f32.mrf.mxu0
    %7980 = vmatprep.mubr.f32.mxu0 0.0
    %7981 = vmatmul.mubr.f32.gmra.mxu0 %v7838
    %v7982 = vpop.f32.mrf.mxu0
    %v7983 = vadd.f32 0.0, %v7982
    %v7984 = vpop.f32.mrf.mxu0
    %7985 = vmatprep.mubr.f32.mxu0 0.0
    %7986 = vmatmul.mubr.f32.gmra.mxu0 %v7843
    %v7987 = vpop.f32.mrf.mxu0
    %v7988 = vadd.f32 0.0, %v7987
    %v7989 = vpop.f32.mrf.mxu0
    %7990 = vmatprep.mubr.f32.mxu0 0.0
    %7991 = vmatmul.mubr.f32.gmra.mxu0 %v7848
    %v7992 = vpop.f32.mrf.mxu0
    %v7993 = vadd.f32 0.0, %v7992
    %v7994 = vpop.f32.mrf.mxu0
    %7995 = vmatprep.mubr.f32.mxu0 0.0
    %7996 = vmatmul.mubr.f32.gmra.mxu0 %v7853
    %v7997 = vpop.f32.mrf.mxu0
    %v7998 = vadd.f32 0.0, %v7997
    %v7999 = vpop.f32.mrf.mxu0
    %8000 = vmatprep.mubr.f32.mxu0 0.0
    %8001 = vmatmul.mubr.f32.gmra.mxu0 %v7858
    %v8002 = vpop.f32.mrf.mxu0
    %v8003 = vadd.f32 0.0, %v8002
    %v8004 = vpop.f32.mrf.mxu0
    %8005 = vmatprep.mubr.f32.mxu0 0.0
    %8006 = vmatmul.mubr.f32.gmra.mxu0 %v7863
    %v8007 = vpop.f32.mrf.mxu0
    %v8008 = vadd.f32 0.0, %v8007
    %v8009 = vpop.f32.mrf.mxu0
    %8010 = vmatprep.mubr.f32.mxu0 0.0
    %8011 = vmatmul.mubr.f32.gmra.mxu0 %v7868
    %v8012 = vpop.f32.mrf.mxu0
    %v8013 = vadd.f32 0.0, %v8012
    %v8014 = vpop.f32.mrf.mxu0
    %8015 = vmatprep.mubr.f32.mxu0 0.0
    %8016 = vmatmul.mubr.f32.gmra.mxu0 %v7873
    %v8017 = vpop.f32.mrf.mxu0
    %v8018 = vadd.f32 0.0, %v8017
    %v8019 = vpop.f32.mrf.mxu0
    %8020 = vmatprep.mubr.f32.mxu0 0.0
    %8021 = vmatmul.mubr.f32.gmra.mxu0 %v7878
    %v8022 = vpop.f32.mrf.mxu0
    %v8023 = vadd.f32 0.0, %v8022
    %v8024 = vpop.f32.mrf.mxu0
    %8025 = vmatprep.mubr.f32.mxu0 0.0
    %8026 = vmatmul.mubr.f32.gmra.mxu0 %v7883
    %v8027 = vpop.f32.mrf.mxu0
    %v8028 = vadd.f32 0.0, %v8027
    %v8029 = vpop.f32.mrf.mxu0
    %8030 = vdwg.mxu0
    %v8031 = vmul.f32 %v7953, 0.5
    %v8032 = vmul.f32 %v7958, 0.5
    %v8033 = vmul.f32 %v7963, 0.5
    %v8034 = vmul.f32 %v7968, 0.5
    %v8035 = vmul.f32 %v7973, 0.5
    %v8036 = vmul.f32 %v7978, 0.5
    %v8037 = vmul.f32 %v7983, 0.5
    %v8038 = vmul.f32 %v7988, 0.5
    %v8039 = vmul.f32 %v7993, 0.5
    %v8040 = vmul.f32 %v7998, 0.5
    %v8041 = vmul.f32 %v8003, 0.5
    %v8042 = vmul.f32 %v8008, 0.5
    %v8043 = vmul.f32 %v8013, 0.5
    %v8044 = vmul.f32 %v8018, 0.5
    %v8045 = vmul.f32 %v8023, 0.5
    %v8046 = vmul.f32 %v8028, 0.5
    %v8047 = vsub.f32 %v398, %v8031
    %v8048 = vsub.f32 %v399, %v8032
    %v8049 = vsub.f32 %v400, %v8033
    %v8050 = vsub.f32 %v401, %v8034
    %v8051 = vsub.f32 %v402, %v8035
    %v8052 = vsub.f32 %v403, %v8036
    %v8053 = vsub.f32 %v404, %v8037
    %v8054 = vsub.f32 %v405, %v8038
    %v8055 = vsub.f32 %v406, %v8039
    %v8056 = vsub.f32 %v407, %v8040
    %v8057 = vsub.f32 %v408, %v8041
    %v8058 = vsub.f32 %v409, %v8042
    %v8059 = vsub.f32 %v410, %v8043
    %v8060 = vsub.f32 %v411, %v8044
    %v8061 = vsub.f32 %v412, %v8045
    %v8062 = vsub.f32 %v413, %v8046
    %8063 = vmatprep.subr.mxu0 0.0
    %8064 = vmatpush1.msra.mxu0 %v8062
    %8065 = vmatprep.subr.mxu0 0.0
    %8066 = vmatpush1.msra.mxu0 %v8061
    %8067 = vmatprep.subr.mxu0 0.0
    %8068 = vmatpush1.msra.mxu0 %v8060
    %8069 = vmatprep.subr.mxu0 0.0
    %8070 = vmatpush1.msra.mxu0 %v8059
    %8071 = vmatprep.subr.mxu0 0.0
    %8072 = vmatpush1.msra.mxu0 %v8058
    %8073 = vmatprep.subr.mxu0 0.0
    %8074 = vmatpush1.msra.mxu0 %v8057
    %8075 = vmatprep.subr.mxu0 0.0
    %8076 = vmatpush1.msra.mxu0 %v8056
    %8077 = vmatprep.subr.mxu0 0.0
    %8078 = vmatpush1.msra.mxu0 %v8055
    %8079 = vmatprep.subr.mxu0 0.0
    %8080 = vmatpush1.msra.mxu0 %v8054
    %8081 = vmatprep.subr.mxu0 0.0
    %8082 = vmatpush1.msra.mxu0 %v8053
    %8083 = vmatprep.subr.mxu0 0.0
    %8084 = vmatpush1.msra.mxu0 %v8052
    %8085 = vmatprep.subr.mxu0 0.0
    %8086 = vmatpush1.msra.mxu0 %v8051
    %8087 = vmatprep.subr.mxu0 0.0
    %8088 = vmatpush1.msra.mxu0 %v8050
    %8089 = vmatprep.subr.mxu0 0.0
    %8090 = vmatpush1.msra.mxu0 %v8049
    %8091 = vmatprep.subr.mxu0 0.0
    %8092 = vmatpush1.msra.mxu0 %v8048
    %8093 = vmatprep.subr.mxu0 0.0
    %8094 = vmatpush1.msra.mxu0 %v8047
    %8095 = vmatprep.subr.mxu0 0.0
    %8096 = vmatpush2.msra.mxu0 0.0
    %8097 = vmatprep.subr.mxu0 0.0
    %8098 = vmatpush2.msra.mxu0 0.0
    %8099 = vmatprep.subr.mxu0 0.0
    %8100 = vmatpush2.msra.mxu0 0.0
    %8101 = vmatprep.subr.mxu0 0.0
    %8102 = vmatpush2.msra.mxu0 0.0
    %8103 = vmatprep.subr.mxu0 0.0
    %8104 = vmatpush2.msra.mxu0 0.0
    %8105 = vmatprep.subr.mxu0 0.0
    %8106 = vmatpush2.msra.mxu0 0.0
    %8107 = vmatprep.subr.mxu0 0.0
    %8108 = vmatpush2.msra.mxu0 0.0
    %8109 = vmatprep.subr.mxu0 0.0
    %8110 = vmatpush2.msra.mxu0 0.0
    %8111 = vmatprep.subr.mxu0 0.0
    %8112 = vmatpush2.msra.mxu0 0.0
    %8113 = vmatprep.subr.mxu0 0.0
    %8114 = vmatpush2.msra.mxu0 0.0
    %8115 = vmatprep.subr.mxu0 0.0
    %8116 = vmatpush2.msra.mxu0 0.0
    %8117 = vmatprep.subr.mxu0 0.0
    %8118 = vmatpush2.msra.mxu0 0.0
    %8119 = vmatprep.subr.mxu0 0.0
    %8120 = vmatpush2.msra.mxu0 0.0
    %8121 = vmatprep.subr.mxu0 0.0
    %8122 = vmatpush2.msra.mxu0 0.0
    %8123 = vmatprep.subr.mxu0 0.0
    %8124 = vmatpush2.msra.mxu0 0.0
    %8125 = vmatprep.subr.mxu0 0.0
    %8126 = vmatpush2.msra.mxu0 0.0
    %8127 = vmatprep.mubr.f32.mxu0 0.0
    %8128 = vmatmul.mubr.f32.gmra.mxu0 %v7663
    %v8129 = vpop.f32.mrf.mxu0
    %v8130 = vadd.f32 0.0, %v8129
    %v8131 = vpop.f32.mrf.mxu0
    %8132 = vmatprep.mubr.f32.mxu0 0.0
    %8133 = vmatmul.mubr.f32.gmra.mxu0 %v7668
    %v8134 = vpop.f32.mrf.mxu0
    %v8135 = vadd.f32 0.0, %v8134
    %v8136 = vpop.f32.mrf.mxu0
    %8137 = vmatprep.mubr.f32.mxu0 0.0
    %8138 = vmatmul.mubr.f32.gmra.mxu0 %v7673
    %v8139 = vpop.f32.mrf.mxu0
    %v8140 = vadd.f32 0.0, %v8139
    %v8141 = vpop.f32.mrf.mxu0
    %8142 = vmatprep.mubr.f32.mxu0 0.0
    %8143 = vmatmul.mubr.f32.gmra.mxu0 %v7678
    %v8144 = vpop.f32.mrf.mxu0
    %v8145 = vadd.f32 0.0, %v8144
    %v8146 = vpop.f32.mrf.mxu0
    %8147 = vmatprep.mubr.f32.mxu0 0.0
    %8148 = vmatmul.mubr.f32.gmra.mxu0 %v7683
    %v8149 = vpop.f32.mrf.mxu0
    %v8150 = vadd.f32 0.0, %v8149
    %v8151 = vpop.f32.mrf.mxu0
    %8152 = vmatprep.mubr.f32.mxu0 0.0
    %8153 = vmatmul.mubr.f32.gmra.mxu0 %v7688
    %v8154 = vpop.f32.mrf.mxu0
    %v8155 = vadd.f32 0.0, %v8154
    %v8156 = vpop.f32.mrf.mxu0
    %8157 = vmatprep.mubr.f32.mxu0 0.0
    %8158 = vmatmul.mubr.f32.gmra.mxu0 %v7693
    %v8159 = vpop.f32.mrf.mxu0
    %v8160 = vadd.f32 0.0, %v8159
    %v8161 = vpop.f32.mrf.mxu0
    %8162 = vmatprep.mubr.f32.mxu0 0.0
    %8163 = vmatmul.mubr.f32.gmra.mxu0 %v7698
    %v8164 = vpop.f32.mrf.mxu0
    %v8165 = vadd.f32 0.0, %v8164
    %v8166 = vpop.f32.mrf.mxu0
    %8167 = vmatprep.mubr.f32.mxu0 0.0
    %8168 = vmatmul.mubr.f32.gmra.mxu0 %v7703
    %v8169 = vpop.f32.mrf.mxu0
    %v8170 = vadd.f32 0.0, %v8169
    %v8171 = vpop.f32.mrf.mxu0
    %8172 = vmatprep.mubr.f32.mxu0 0.0
    %8173 = vmatmul.mubr.f32.gmra.mxu0 %v7708
    %v8174 = vpop.f32.mrf.mxu0
    %v8175 = vadd.f32 0.0, %v8174
    %v8176 = vpop.f32.mrf.mxu0
    %8177 = vmatprep.mubr.f32.mxu0 0.0
    %8178 = vmatmul.mubr.f32.gmra.mxu0 %v7713
    %v8179 = vpop.f32.mrf.mxu0
    %v8180 = vadd.f32 0.0, %v8179
    %v8181 = vpop.f32.mrf.mxu0
    %8182 = vmatprep.mubr.f32.mxu0 0.0
    %8183 = vmatmul.mubr.f32.gmra.mxu0 %v7718
    %v8184 = vpop.f32.mrf.mxu0
    %v8185 = vadd.f32 0.0, %v8184
    %v8186 = vpop.f32.mrf.mxu0
    %8187 = vmatprep.mubr.f32.mxu0 0.0
    %8188 = vmatmul.mubr.f32.gmra.mxu0 %v7723
    %v8189 = vpop.f32.mrf.mxu0
    %v8190 = vadd.f32 0.0, %v8189
    %v8191 = vpop.f32.mrf.mxu0
    %8192 = vmatprep.mubr.f32.mxu0 0.0
    %8193 = vmatmul.mubr.f32.gmra.mxu0 %v7728
    %v8194 = vpop.f32.mrf.mxu0
    %v8195 = vadd.f32 0.0, %v8194
    %v8196 = vpop.f32.mrf.mxu0
    %8197 = vmatprep.mubr.f32.mxu0 0.0
    %8198 = vmatmul.mubr.f32.gmra.mxu0 %v7733
    %v8199 = vpop.f32.mrf.mxu0
    %v8200 = vadd.f32 0.0, %v8199
    %v8201 = vpop.f32.mrf.mxu0
    %8202 = vmatprep.mubr.f32.mxu0 0.0
    %8203 = vmatmul.mubr.f32.gmra.mxu0 %v7738
    %v8204 = vpop.f32.mrf.mxu0
    %v8205 = vadd.f32 0.0, %v8204
    %v8206 = vpop.f32.mrf.mxu0
    %8207 = vdwg.mxu0
    %8208 = vmatprep.subr.mxu0 0.0
    %8209 = vmatpush1.msra.mxu0 %v7883
    %8210 = vmatprep.subr.mxu0 0.0
    %8211 = vmatpush1.msra.mxu0 %v7878
    %8212 = vmatprep.subr.mxu0 0.0
    %8213 = vmatpush1.msra.mxu0 %v7873
    %8214 = vmatprep.subr.mxu0 0.0
    %8215 = vmatpush1.msra.mxu0 %v7868
    %8216 = vmatprep.subr.mxu0 0.0
    %8217 = vmatpush1.msra.mxu0 %v7863
    %8218 = vmatprep.subr.mxu0 0.0
    %8219 = vmatpush1.msra.mxu0 %v7858
    %8220 = vmatprep.subr.mxu0 0.0
    %8221 = vmatpush1.msra.mxu0 %v7853
    %8222 = vmatprep.subr.mxu0 0.0
    %8223 = vmatpush1.msra.mxu0 %v7848
    %8224 = vmatprep.subr.mxu0 0.0
    %8225 = vmatpush1.msra.mxu0 %v7843
    %8226 = vmatprep.subr.mxu0 0.0
    %8227 = vmatpush1.msra.mxu0 %v7838
    %8228 = vmatprep.subr.mxu0 0.0
    %8229 = vmatpush1.msra.mxu0 %v7833
    %8230 = vmatprep.subr.mxu0 0.0
    %8231 = vmatpush1.msra.mxu0 %v7828
    %8232 = vmatprep.subr.mxu0 0.0
    %8233 = vmatpush1.msra.mxu0 %v7823
    %8234 = vmatprep.subr.mxu0 0.0
    %8235 = vmatpush1.msra.mxu0 %v7818
    %8236 = vmatprep.subr.mxu0 0.0
    %8237 = vmatpush1.msra.mxu0 %v7813
    %8238 = vmatprep.subr.mxu0 0.0
    %8239 = vmatpush1.msra.mxu0 %v7808
    %8240 = vmatprep.subr.mxu0 0.0
    %8241 = vmatpush2.msra.mxu0 0.0
    %8242 = vmatprep.subr.mxu0 0.0
    %8243 = vmatpush2.msra.mxu0 0.0
    %8244 = vmatprep.subr.mxu0 0.0
    %8245 = vmatpush2.msra.mxu0 0.0
    %8246 = vmatprep.subr.mxu0 0.0
    %8247 = vmatpush2.msra.mxu0 0.0
    %8248 = vmatprep.subr.mxu0 0.0
    %8249 = vmatpush2.msra.mxu0 0.0
    %8250 = vmatprep.subr.mxu0 0.0
    %8251 = vmatpush2.msra.mxu0 0.0
    %8252 = vmatprep.subr.mxu0 0.0
    %8253 = vmatpush2.msra.mxu0 0.0
    %8254 = vmatprep.subr.mxu0 0.0
    %8255 = vmatpush2.msra.mxu0 0.0
    %8256 = vmatprep.subr.mxu0 0.0
    %8257 = vmatpush2.msra.mxu0 0.0
    %8258 = vmatprep.subr.mxu0 0.0
    %8259 = vmatpush2.msra.mxu0 0.0
    %8260 = vmatprep.subr.mxu0 0.0
    %8261 = vmatpush2.msra.mxu0 0.0
    %8262 = vmatprep.subr.mxu0 0.0
    %8263 = vmatpush2.msra.mxu0 0.0
    %8264 = vmatprep.subr.mxu0 0.0
    %8265 = vmatpush2.msra.mxu0 0.0
    %8266 = vmatprep.subr.mxu0 0.0
    %8267 = vmatpush2.msra.mxu0 0.0
    %8268 = vmatprep.subr.mxu0 0.0
    %8269 = vmatpush2.msra.mxu0 0.0
    %8270 = vmatprep.subr.mxu0 0.0
    %8271 = vmatpush2.msra.mxu0 0.0
    %8272 = vmatprep.mubr.f32.mxu0 0.0
    %8273 = vmatmul.mubr.f32.gmra.mxu0 %v8047
    %v8274 = vpop.f32.mrf.mxu0
    %v8275 = vadd.f32 0.0, %v8274
    %v8276 = vpop.f32.mrf.mxu0
    %8277 = vmatprep.mubr.f32.mxu0 0.0
    %8278 = vmatmul.mubr.f32.gmra.mxu0 %v8048
    %v8279 = vpop.f32.mrf.mxu0
    %v8280 = vadd.f32 0.0, %v8279
    %v8281 = vpop.f32.mrf.mxu0
    %8282 = vmatprep.mubr.f32.mxu0 0.0
    %8283 = vmatmul.mubr.f32.gmra.mxu0 %v8049
    %v8284 = vpop.f32.mrf.mxu0
    %v8285 = vadd.f32 0.0, %v8284
    %v8286 = vpop.f32.mrf.mxu0
    %8287 = vmatprep.mubr.f32.mxu0 0.0
    %8288 = vmatmul.mubr.f32.gmra.mxu0 %v8050
    %v8289 = vpop.f32.mrf.mxu0
    %v8290 = vadd.f32 0.0, %v8289
    %v8291 = vpop.f32.mrf.mxu0
    %8292 = vmatprep.mubr.f32.mxu0 0.0
    %8293 = vmatmul.mubr.f32.gmra.mxu0 %v8051
    %v8294 = vpop.f32.mrf.mxu0
    %v8295 = vadd.f32 0.0, %v8294
    %v8296 = vpop.f32.mrf.mxu0
    %8297 = vmatprep.mubr.f32.mxu0 0.0
    %8298 = vmatmul.mubr.f32.gmra.mxu0 %v8052
    %v8299 = vpop.f32.mrf.mxu0
    %v8300 = vadd.f32 0.0, %v8299
    %v8301 = vpop.f32.mrf.mxu0
    %8302 = vmatprep.mubr.f32.mxu0 0.0
    %8303 = vmatmul.mubr.f32.gmra.mxu0 %v8053
    %v8304 = vpop.f32.mrf.mxu0
    %v8305 = vadd.f32 0.0, %v8304
    %v8306 = vpop.f32.mrf.mxu0
    %8307 = vmatprep.mubr.f32.mxu0 0.0
    %8308 = vmatmul.mubr.f32.gmra.mxu0 %v8054
    %v8309 = vpop.f32.mrf.mxu0
    %v8310 = vadd.f32 0.0, %v8309
    %v8311 = vpop.f32.mrf.mxu0
    %8312 = vmatprep.mubr.f32.mxu0 0.0
    %8313 = vmatmul.mubr.f32.gmra.mxu0 %v8055
    %v8314 = vpop.f32.mrf.mxu0
    %v8315 = vadd.f32 0.0, %v8314
    %v8316 = vpop.f32.mrf.mxu0
    %8317 = vmatprep.mubr.f32.mxu0 0.0
    %8318 = vmatmul.mubr.f32.gmra.mxu0 %v8056
    %v8319 = vpop.f32.mrf.mxu0
    %v8320 = vadd.f32 0.0, %v8319
    %v8321 = vpop.f32.mrf.mxu0
    %8322 = vmatprep.mubr.f32.mxu0 0.0
    %8323 = vmatmul.mubr.f32.gmra.mxu0 %v8057
    %v8324 = vpop.f32.mrf.mxu0
    %v8325 = vadd.f32 0.0, %v8324
    %v8326 = vpop.f32.mrf.mxu0
    %8327 = vmatprep.mubr.f32.mxu0 0.0
    %8328 = vmatmul.mubr.f32.gmra.mxu0 %v8058
    %v8329 = vpop.f32.mrf.mxu0
    %v8330 = vadd.f32 0.0, %v8329
    %v8331 = vpop.f32.mrf.mxu0
    %8332 = vmatprep.mubr.f32.mxu0 0.0
    %8333 = vmatmul.mubr.f32.gmra.mxu0 %v8059
    %v8334 = vpop.f32.mrf.mxu0
    %v8335 = vadd.f32 0.0, %v8334
    %v8336 = vpop.f32.mrf.mxu0
    %8337 = vmatprep.mubr.f32.mxu0 0.0
    %8338 = vmatmul.mubr.f32.gmra.mxu0 %v8060
    %v8339 = vpop.f32.mrf.mxu0
    %v8340 = vadd.f32 0.0, %v8339
    %v8341 = vpop.f32.mrf.mxu0
    %8342 = vmatprep.mubr.f32.mxu0 0.0
    %8343 = vmatmul.mubr.f32.gmra.mxu0 %v8061
    %v8344 = vpop.f32.mrf.mxu0
    %v8345 = vadd.f32 0.0, %v8344
    %v8346 = vpop.f32.mrf.mxu0
    %8347 = vmatprep.mubr.f32.mxu0 0.0
    %8348 = vmatmul.mubr.f32.gmra.mxu0 %v8062
    %v8349 = vpop.f32.mrf.mxu0
    %v8350 = vadd.f32 0.0, %v8349
    %v8351 = vpop.f32.mrf.mxu0
    %8352 = vdwg.mxu0
    %8353 = vmatprep.subr.mxu0 0.0
    %8354 = vmatpush1.msra.mxu0 %v8205
    %8355 = vmatprep.subr.mxu0 0.0
    %8356 = vmatpush1.msra.mxu0 %v8200
    %8357 = vmatprep.subr.mxu0 0.0
    %8358 = vmatpush1.msra.mxu0 %v8195
    %8359 = vmatprep.subr.mxu0 0.0
    %8360 = vmatpush1.msra.mxu0 %v8190
    %8361 = vmatprep.subr.mxu0 0.0
    %8362 = vmatpush1.msra.mxu0 %v8185
    %8363 = vmatprep.subr.mxu0 0.0
    %8364 = vmatpush1.msra.mxu0 %v8180
    %8365 = vmatprep.subr.mxu0 0.0
    %8366 = vmatpush1.msra.mxu0 %v8175
    %8367 = vmatprep.subr.mxu0 0.0
    %8368 = vmatpush1.msra.mxu0 %v8170
    %8369 = vmatprep.subr.mxu0 0.0
    %8370 = vmatpush1.msra.mxu0 %v8165
    %8371 = vmatprep.subr.mxu0 0.0
    %8372 = vmatpush1.msra.mxu0 %v8160
    %8373 = vmatprep.subr.mxu0 0.0
    %8374 = vmatpush1.msra.mxu0 %v8155
    %8375 = vmatprep.subr.mxu0 0.0
    %8376 = vmatpush1.msra.mxu0 %v8150
    %8377 = vmatprep.subr.mxu0 0.0
    %8378 = vmatpush1.msra.mxu0 %v8145
    %8379 = vmatprep.subr.mxu0 0.0
    %8380 = vmatpush1.msra.mxu0 %v8140
    %8381 = vmatprep.subr.mxu0 0.0
    %8382 = vmatpush1.msra.mxu0 %v8135
    %8383 = vmatprep.subr.mxu0 0.0
    %8384 = vmatpush1.msra.mxu0 %v8130
    %8385 = vmatprep.subr.mxu0 0.0
    %8386 = vmatpush2.msra.mxu0 0.0
    %8387 = vmatprep.subr.mxu0 0.0
    %8388 = vmatpush2.msra.mxu0 0.0
    %8389 = vmatprep.subr.mxu0 0.0
    %8390 = vmatpush2.msra.mxu0 0.0
    %8391 = vmatprep.subr.mxu0 0.0
    %8392 = vmatpush2.msra.mxu0 0.0
    %8393 = vmatprep.subr.mxu0 0.0
    %8394 = vmatpush2.msra.mxu0 0.0
    %8395 = vmatprep.subr.mxu0 0.0
    %8396 = vmatpush2.msra.mxu0 0.0
    %8397 = vmatprep.subr.mxu0 0.0
    %8398 = vmatpush2.msra.mxu0 0.0
    %8399 = vmatprep.subr.mxu0 0.0
    %8400 = vmatpush2.msra.mxu0 0.0
    %8401 = vmatprep.subr.mxu0 0.0
    %8402 = vmatpush2.msra.mxu0 0.0
    %8403 = vmatprep.subr.mxu0 0.0
    %8404 = vmatpush2.msra.mxu0 0.0
    %8405 = vmatprep.subr.mxu0 0.0
    %8406 = vmatpush2.msra.mxu0 0.0
    %8407 = vmatprep.subr.mxu0 0.0
    %8408 = vmatpush2.msra.mxu0 0.0
    %8409 = vmatprep.subr.mxu0 0.0
    %8410 = vmatpush2.msra.mxu0 0.0
    %8411 = vmatprep.subr.mxu0 0.0
    %8412 = vmatpush2.msra.mxu0 0.0
    %8413 = vmatprep.subr.mxu0 0.0
    %8414 = vmatpush2.msra.mxu0 0.0
    %8415 = vmatprep.subr.mxu0 0.0
    %8416 = vmatpush2.msra.mxu0 0.0
    %8417 = vmatprep.mubr.f32.mxu0 0.0
    %8418 = vmatmul.mubr.f32.gmra.mxu0 %v8275
    %v8419 = vpop.f32.mrf.mxu0
    %v8420 = vadd.f32 0.0, %v8419
    %v8421 = vpop.f32.mrf.mxu0
    %8422 = vmatprep.mubr.f32.mxu0 0.0
    %8423 = vmatmul.mubr.f32.gmra.mxu0 %v8280
    %v8424 = vpop.f32.mrf.mxu0
    %v8425 = vadd.f32 0.0, %v8424
    %v8426 = vpop.f32.mrf.mxu0
    %8427 = vmatprep.mubr.f32.mxu0 0.0
    %8428 = vmatmul.mubr.f32.gmra.mxu0 %v8285
    %v8429 = vpop.f32.mrf.mxu0
    %v8430 = vadd.f32 0.0, %v8429
    %v8431 = vpop.f32.mrf.mxu0
    %8432 = vmatprep.mubr.f32.mxu0 0.0
    %8433 = vmatmul.mubr.f32.gmra.mxu0 %v8290
    %v8434 = vpop.f32.mrf.mxu0
    %v8435 = vadd.f32 0.0, %v8434
    %v8436 = vpop.f32.mrf.mxu0
    %8437 = vmatprep.mubr.f32.mxu0 0.0
    %8438 = vmatmul.mubr.f32.gmra.mxu0 %v8295
    %v8439 = vpop.f32.mrf.mxu0
    %v8440 = vadd.f32 0.0, %v8439
    %v8441 = vpop.f32.mrf.mxu0
    %8442 = vmatprep.mubr.f32.mxu0 0.0
    %8443 = vmatmul.mubr.f32.gmra.mxu0 %v8300
    %v8444 = vpop.f32.mrf.mxu0
    %v8445 = vadd.f32 0.0, %v8444
    %v8446 = vpop.f32.mrf.mxu0
    %8447 = vmatprep.mubr.f32.mxu0 0.0
    %8448 = vmatmul.mubr.f32.gmra.mxu0 %v8305
    %v8449 = vpop.f32.mrf.mxu0
    %v8450 = vadd.f32 0.0, %v8449
    %v8451 = vpop.f32.mrf.mxu0
    %8452 = vmatprep.mubr.f32.mxu0 0.0
    %8453 = vmatmul.mubr.f32.gmra.mxu0 %v8310
    %v8454 = vpop.f32.mrf.mxu0
    %v8455 = vadd.f32 0.0, %v8454
    %v8456 = vpop.f32.mrf.mxu0
    %8457 = vmatprep.mubr.f32.mxu0 0.0
    %8458 = vmatmul.mubr.f32.gmra.mxu0 %v8315
    %v8459 = vpop.f32.mrf.mxu0
    %v8460 = vadd.f32 0.0, %v8459
    %v8461 = vpop.f32.mrf.mxu0
    %8462 = vmatprep.mubr.f32.mxu0 0.0
    %8463 = vmatmul.mubr.f32.gmra.mxu0 %v8320
    %v8464 = vpop.f32.mrf.mxu0
    %v8465 = vadd.f32 0.0, %v8464
    %v8466 = vpop.f32.mrf.mxu0
    %8467 = vmatprep.mubr.f32.mxu0 0.0
    %8468 = vmatmul.mubr.f32.gmra.mxu0 %v8325
    %v8469 = vpop.f32.mrf.mxu0
    %v8470 = vadd.f32 0.0, %v8469
    %v8471 = vpop.f32.mrf.mxu0
    %8472 = vmatprep.mubr.f32.mxu0 0.0
    %8473 = vmatmul.mubr.f32.gmra.mxu0 %v8330
    %v8474 = vpop.f32.mrf.mxu0
    %v8475 = vadd.f32 0.0, %v8474
    %v8476 = vpop.f32.mrf.mxu0
    %8477 = vmatprep.mubr.f32.mxu0 0.0
    %8478 = vmatmul.mubr.f32.gmra.mxu0 %v8335
    %v8479 = vpop.f32.mrf.mxu0
    %v8480 = vadd.f32 0.0, %v8479
    %v8481 = vpop.f32.mrf.mxu0
    %8482 = vmatprep.mubr.f32.mxu0 0.0
    %8483 = vmatmul.mubr.f32.gmra.mxu0 %v8340
    %v8484 = vpop.f32.mrf.mxu0
    %v8485 = vadd.f32 0.0, %v8484
    %v8486 = vpop.f32.mrf.mxu0
    %8487 = vmatprep.mubr.f32.mxu0 0.0
    %8488 = vmatmul.mubr.f32.gmra.mxu0 %v8345
    %v8489 = vpop.f32.mrf.mxu0
    %v8490 = vadd.f32 0.0, %v8489
    %v8491 = vpop.f32.mrf.mxu0
    %8492 = vmatprep.mubr.f32.mxu0 0.0
    %8493 = vmatmul.mubr.f32.gmra.mxu0 %v8350
    %v8494 = vpop.f32.mrf.mxu0
    %v8495 = vadd.f32 0.0, %v8494
    %v8496 = vpop.f32.mrf.mxu0
    %8497 = vdwg.mxu0
    %v8498 = vmul.f32 %v8420, 0.5
    %v8499 = vmul.f32 %v8425, 0.5
    %v8500 = vmul.f32 %v8430, 0.5
    %v8501 = vmul.f32 %v8435, 0.5
    %v8502 = vmul.f32 %v8440, 0.5
    %v8503 = vmul.f32 %v8445, 0.5
    %v8504 = vmul.f32 %v8450, 0.5
    %v8505 = vmul.f32 %v8455, 0.5
    %v8506 = vmul.f32 %v8460, 0.5
    %v8507 = vmul.f32 %v8465, 0.5
    %v8508 = vmul.f32 %v8470, 0.5
    %v8509 = vmul.f32 %v8475, 0.5
    %v8510 = vmul.f32 %v8480, 0.5
    %v8511 = vmul.f32 %v8485, 0.5
    %v8512 = vmul.f32 %v8490, 0.5
    %v8513 = vmul.f32 %v8495, 0.5
    %v8514 = vsub.f32 %v398, %v8498
    %v8515 = vsub.f32 %v399, %v8499
    %v8516 = vsub.f32 %v400, %v8500
    %v8517 = vsub.f32 %v401, %v8501
    %v8518 = vsub.f32 %v402, %v8502
    %v8519 = vsub.f32 %v403, %v8503
    %v8520 = vsub.f32 %v404, %v8504
    %v8521 = vsub.f32 %v405, %v8505
    %v8522 = vsub.f32 %v406, %v8506
    %v8523 = vsub.f32 %v407, %v8507
    %v8524 = vsub.f32 %v408, %v8508
    %v8525 = vsub.f32 %v409, %v8509
    %v8526 = vsub.f32 %v410, %v8510
    %v8527 = vsub.f32 %v411, %v8511
    %v8528 = vsub.f32 %v412, %v8512
    %v8529 = vsub.f32 %v413, %v8513
    %8530 = vmatprep.subr.mxu0 0.0
    %8531 = vmatpush1.msra.mxu0 %v8529
    %8532 = vmatprep.subr.mxu0 0.0
    %8533 = vmatpush1.msra.mxu0 %v8528
    %8534 = vmatprep.subr.mxu0 0.0
    %8535 = vmatpush1.msra.mxu0 %v8527
    %8536 = vmatprep.subr.mxu0 0.0
    %8537 = vmatpush1.msra.mxu0 %v8526
    %8538 = vmatprep.subr.mxu0 0.0
    %8539 = vmatpush1.msra.mxu0 %v8525
    %8540 = vmatprep.subr.mxu0 0.0
    %8541 = vmatpush1.msra.mxu0 %v8524
    %8542 = vmatprep.subr.mxu0 0.0
    %8543 = vmatpush1.msra.mxu0 %v8523
    %8544 = vmatprep.subr.mxu0 0.0
    %8545 = vmatpush1.msra.mxu0 %v8522
    %8546 = vmatprep.subr.mxu0 0.0
    %8547 = vmatpush1.msra.mxu0 %v8521
    %8548 = vmatprep.subr.mxu0 0.0
    %8549 = vmatpush1.msra.mxu0 %v8520
    %8550 = vmatprep.subr.mxu0 0.0
    %8551 = vmatpush1.msra.mxu0 %v8519
    %8552 = vmatprep.subr.mxu0 0.0
    %8553 = vmatpush1.msra.mxu0 %v8518
    %8554 = vmatprep.subr.mxu0 0.0
    %8555 = vmatpush1.msra.mxu0 %v8517
    %8556 = vmatprep.subr.mxu0 0.0
    %8557 = vmatpush1.msra.mxu0 %v8516
    %8558 = vmatprep.subr.mxu0 0.0
    %8559 = vmatpush1.msra.mxu0 %v8515
    %8560 = vmatprep.subr.mxu0 0.0
    %8561 = vmatpush1.msra.mxu0 %v8514
    %8562 = vmatprep.subr.mxu0 0.0
    %8563 = vmatpush2.msra.mxu0 0.0
    %8564 = vmatprep.subr.mxu0 0.0
    %8565 = vmatpush2.msra.mxu0 0.0
    %8566 = vmatprep.subr.mxu0 0.0
    %8567 = vmatpush2.msra.mxu0 0.0
    %8568 = vmatprep.subr.mxu0 0.0
    %8569 = vmatpush2.msra.mxu0 0.0
    %8570 = vmatprep.subr.mxu0 0.0
    %8571 = vmatpush2.msra.mxu0 0.0
    %8572 = vmatprep.subr.mxu0 0.0
    %8573 = vmatpush2.msra.mxu0 0.0
    %8574 = vmatprep.subr.mxu0 0.0
    %8575 = vmatpush2.msra.mxu0 0.0
    %8576 = vmatprep.subr.mxu0 0.0
    %8577 = vmatpush2.msra.mxu0 0.0
    %8578 = vmatprep.subr.mxu0 0.0
    %8579 = vmatpush2.msra.mxu0 0.0
    %8580 = vmatprep.subr.mxu0 0.0
    %8581 = vmatpush2.msra.mxu0 0.0
    %8582 = vmatprep.subr.mxu0 0.0
    %8583 = vmatpush2.msra.mxu0 0.0
    %8584 = vmatprep.subr.mxu0 0.0
    %8585 = vmatpush2.msra.mxu0 0.0
    %8586 = vmatprep.subr.mxu0 0.0
    %8587 = vmatpush2.msra.mxu0 0.0
    %8588 = vmatprep.subr.mxu0 0.0
    %8589 = vmatpush2.msra.mxu0 0.0
    %8590 = vmatprep.subr.mxu0 0.0
    %8591 = vmatpush2.msra.mxu0 0.0
    %8592 = vmatprep.subr.mxu0 0.0
    %8593 = vmatpush2.msra.mxu0 0.0
    %8594 = vmatprep.mubr.f32.mxu0 0.0
    %8595 = vmatmul.mubr.f32.gmra.mxu0 %v8130
    %v8596 = vpop.f32.mrf.mxu0
    %v8597 = vadd.f32 0.0, %v8596
    %v8598 = vpop.f32.mrf.mxu0
    %8599 = vmatprep.mubr.f32.mxu0 0.0
    %8600 = vmatmul.mubr.f32.gmra.mxu0 %v8135
    %v8601 = vpop.f32.mrf.mxu0
    %v8602 = vadd.f32 0.0, %v8601
    %v8603 = vpop.f32.mrf.mxu0
    %8604 = vmatprep.mubr.f32.mxu0 0.0
    %8605 = vmatmul.mubr.f32.gmra.mxu0 %v8140
    %v8606 = vpop.f32.mrf.mxu0
    %v8607 = vadd.f32 0.0, %v8606
    %v8608 = vpop.f32.mrf.mxu0
    %8609 = vmatprep.mubr.f32.mxu0 0.0
    %8610 = vmatmul.mubr.f32.gmra.mxu0 %v8145
    %v8611 = vpop.f32.mrf.mxu0
    %v8612 = vadd.f32 0.0, %v8611
    %v8613 = vpop.f32.mrf.mxu0
    %8614 = vmatprep.mubr.f32.mxu0 0.0
    %8615 = vmatmul.mubr.f32.gmra.mxu0 %v8150
    %v8616 = vpop.f32.mrf.mxu0
    %v8617 = vadd.f32 0.0, %v8616
    %v8618 = vpop.f32.mrf.mxu0
    %8619 = vmatprep.mubr.f32.mxu0 0.0
    %8620 = vmatmul.mubr.f32.gmra.mxu0 %v8155
    %v8621 = vpop.f32.mrf.mxu0
    %v8622 = vadd.f32 0.0, %v8621
    %v8623 = vpop.f32.mrf.mxu0
    %8624 = vmatprep.mubr.f32.mxu0 0.0
    %8625 = vmatmul.mubr.f32.gmra.mxu0 %v8160
    %v8626 = vpop.f32.mrf.mxu0
    %v8627 = vadd.f32 0.0, %v8626
    %v8628 = vpop.f32.mrf.mxu0
    %8629 = vmatprep.mubr.f32.mxu0 0.0
    %8630 = vmatmul.mubr.f32.gmra.mxu0 %v8165
    %v8631 = vpop.f32.mrf.mxu0
    %v8632 = vadd.f32 0.0, %v8631
    %v8633 = vpop.f32.mrf.mxu0
    %8634 = vmatprep.mubr.f32.mxu0 0.0
    %8635 = vmatmul.mubr.f32.gmra.mxu0 %v8170
    %v8636 = vpop.f32.mrf.mxu0
    %v8637 = vadd.f32 0.0, %v8636
    %v8638 = vpop.f32.mrf.mxu0
    %8639 = vmatprep.mubr.f32.mxu0 0.0
    %8640 = vmatmul.mubr.f32.gmra.mxu0 %v8175
    %v8641 = vpop.f32.mrf.mxu0
    %v8642 = vadd.f32 0.0, %v8641
    %v8643 = vpop.f32.mrf.mxu0
    %8644 = vmatprep.mubr.f32.mxu0 0.0
    %8645 = vmatmul.mubr.f32.gmra.mxu0 %v8180
    %v8646 = vpop.f32.mrf.mxu0
    %v8647 = vadd.f32 0.0, %v8646
    %v8648 = vpop.f32.mrf.mxu0
    %8649 = vmatprep.mubr.f32.mxu0 0.0
    %8650 = vmatmul.mubr.f32.gmra.mxu0 %v8185
    %v8651 = vpop.f32.mrf.mxu0
    %v8652 = vadd.f32 0.0, %v8651
    %v8653 = vpop.f32.mrf.mxu0
    %8654 = vmatprep.mubr.f32.mxu0 0.0
    %8655 = vmatmul.mubr.f32.gmra.mxu0 %v8190
    %v8656 = vpop.f32.mrf.mxu0
    %v8657 = vadd.f32 0.0, %v8656
    %v8658 = vpop.f32.mrf.mxu0
    %8659 = vmatprep.mubr.f32.mxu0 0.0
    %8660 = vmatmul.mubr.f32.gmra.mxu0 %v8195
    %v8661 = vpop.f32.mrf.mxu0
    %v8662 = vadd.f32 0.0, %v8661
    %v8663 = vpop.f32.mrf.mxu0
    %8664 = vmatprep.mubr.f32.mxu0 0.0
    %8665 = vmatmul.mubr.f32.gmra.mxu0 %v8200
    %v8666 = vpop.f32.mrf.mxu0
    %v8667 = vadd.f32 0.0, %v8666
    %v8668 = vpop.f32.mrf.mxu0
    %8669 = vmatprep.mubr.f32.mxu0 0.0
    %8670 = vmatmul.mubr.f32.gmra.mxu0 %v8205
    %v8671 = vpop.f32.mrf.mxu0
    %v8672 = vadd.f32 0.0, %v8671
    %v8673 = vpop.f32.mrf.mxu0
    %8674 = vdwg.mxu0
    %8675 = vmatprep.subr.mxu0 0.0
    %8676 = vmatpush1.msra.mxu0 %v8350
    %8677 = vmatprep.subr.mxu0 0.0
    %8678 = vmatpush1.msra.mxu0 %v8345
    %8679 = vmatprep.subr.mxu0 0.0
    %8680 = vmatpush1.msra.mxu0 %v8340
    %8681 = vmatprep.subr.mxu0 0.0
    %8682 = vmatpush1.msra.mxu0 %v8335
    %8683 = vmatprep.subr.mxu0 0.0
    %8684 = vmatpush1.msra.mxu0 %v8330
    %8685 = vmatprep.subr.mxu0 0.0
    %8686 = vmatpush1.msra.mxu0 %v8325
    %8687 = vmatprep.subr.mxu0 0.0
    %8688 = vmatpush1.msra.mxu0 %v8320
    %8689 = vmatprep.subr.mxu0 0.0
    %8690 = vmatpush1.msra.mxu0 %v8315
    %8691 = vmatprep.subr.mxu0 0.0
    %8692 = vmatpush1.msra.mxu0 %v8310
    %8693 = vmatprep.subr.mxu0 0.0
    %8694 = vmatpush1.msra.mxu0 %v8305
    %8695 = vmatprep.subr.mxu0 0.0
    %8696 = vmatpush1.msra.mxu0 %v8300
    %8697 = vmatprep.subr.mxu0 0.0
    %8698 = vmatpush1.msra.mxu0 %v8295
    %8699 = vmatprep.subr.mxu0 0.0
    %8700 = vmatpush1.msra.mxu0 %v8290
    %8701 = vmatprep.subr.mxu0 0.0
    %8702 = vmatpush1.msra.mxu0 %v8285
    %8703 = vmatprep.subr.mxu0 0.0
    %8704 = vmatpush1.msra.mxu0 %v8280
    %8705 = vmatprep.subr.mxu0 0.0
    %8706 = vmatpush1.msra.mxu0 %v8275
    %8707 = vmatprep.subr.mxu0 0.0
    %8708 = vmatpush2.msra.mxu0 0.0
    %8709 = vmatprep.subr.mxu0 0.0
    %8710 = vmatpush2.msra.mxu0 0.0
    %8711 = vmatprep.subr.mxu0 0.0
    %8712 = vmatpush2.msra.mxu0 0.0
    %8713 = vmatprep.subr.mxu0 0.0
    %8714 = vmatpush2.msra.mxu0 0.0
    %8715 = vmatprep.subr.mxu0 0.0
    %8716 = vmatpush2.msra.mxu0 0.0
    %8717 = vmatprep.subr.mxu0 0.0
    %8718 = vmatpush2.msra.mxu0 0.0
    %8719 = vmatprep.subr.mxu0 0.0
    %8720 = vmatpush2.msra.mxu0 0.0
    %8721 = vmatprep.subr.mxu0 0.0
    %8722 = vmatpush2.msra.mxu0 0.0
    %8723 = vmatprep.subr.mxu0 0.0
    %8724 = vmatpush2.msra.mxu0 0.0
    %8725 = vmatprep.subr.mxu0 0.0
    %8726 = vmatpush2.msra.mxu0 0.0
    %8727 = vmatprep.subr.mxu0 0.0
    %8728 = vmatpush2.msra.mxu0 0.0
    %8729 = vmatprep.subr.mxu0 0.0
    %8730 = vmatpush2.msra.mxu0 0.0
    %8731 = vmatprep.subr.mxu0 0.0
    %8732 = vmatpush2.msra.mxu0 0.0
    %8733 = vmatprep.subr.mxu0 0.0
    %8734 = vmatpush2.msra.mxu0 0.0
    %8735 = vmatprep.subr.mxu0 0.0
    %8736 = vmatpush2.msra.mxu0 0.0
    %8737 = vmatprep.subr.mxu0 0.0
    %8738 = vmatpush2.msra.mxu0 0.0
    %8739 = vmatprep.mubr.f32.mxu0 0.0
    %8740 = vmatmul.mubr.f32.gmra.mxu0 %v8514
    %v8741 = vpop.f32.mrf.mxu0
    %v8742 = vadd.f32 0.0, %v8741
    %v8743 = vpop.f32.mrf.mxu0
    %8744 = vmatprep.mubr.f32.mxu0 0.0
    %8745 = vmatmul.mubr.f32.gmra.mxu0 %v8515
    %v8746 = vpop.f32.mrf.mxu0
    %v8747 = vadd.f32 0.0, %v8746
    %v8748 = vpop.f32.mrf.mxu0
    %8749 = vmatprep.mubr.f32.mxu0 0.0
    %8750 = vmatmul.mubr.f32.gmra.mxu0 %v8516
    %v8751 = vpop.f32.mrf.mxu0
    %v8752 = vadd.f32 0.0, %v8751
    %v8753 = vpop.f32.mrf.mxu0
    %8754 = vmatprep.mubr.f32.mxu0 0.0
    %8755 = vmatmul.mubr.f32.gmra.mxu0 %v8517
    %v8756 = vpop.f32.mrf.mxu0
    %v8757 = vadd.f32 0.0, %v8756
    %v8758 = vpop.f32.mrf.mxu0
    %8759 = vmatprep.mubr.f32.mxu0 0.0
    %8760 = vmatmul.mubr.f32.gmra.mxu0 %v8518
    %v8761 = vpop.f32.mrf.mxu0
    %v8762 = vadd.f32 0.0, %v8761
    %v8763 = vpop.f32.mrf.mxu0
    %8764 = vmatprep.mubr.f32.mxu0 0.0
    %8765 = vmatmul.mubr.f32.gmra.mxu0 %v8519
    %v8766 = vpop.f32.mrf.mxu0
    %v8767 = vadd.f32 0.0, %v8766
    %v8768 = vpop.f32.mrf.mxu0
    %8769 = vmatprep.mubr.f32.mxu0 0.0
    %8770 = vmatmul.mubr.f32.gmra.mxu0 %v8520
    %v8771 = vpop.f32.mrf.mxu0
    %v8772 = vadd.f32 0.0, %v8771
    %v8773 = vpop.f32.mrf.mxu0
    %8774 = vmatprep.mubr.f32.mxu0 0.0
    %8775 = vmatmul.mubr.f32.gmra.mxu0 %v8521
    %v8776 = vpop.f32.mrf.mxu0
    %v8777 = vadd.f32 0.0, %v8776
    %v8778 = vpop.f32.mrf.mxu0
    %8779 = vmatprep.mubr.f32.mxu0 0.0
    %8780 = vmatmul.mubr.f32.gmra.mxu0 %v8522
    %v8781 = vpop.f32.mrf.mxu0
    %v8782 = vadd.f32 0.0, %v8781
    %v8783 = vpop.f32.mrf.mxu0
    %8784 = vmatprep.mubr.f32.mxu0 0.0
    %8785 = vmatmul.mubr.f32.gmra.mxu0 %v8523
    %v8786 = vpop.f32.mrf.mxu0
    %v8787 = vadd.f32 0.0, %v8786
    %v8788 = vpop.f32.mrf.mxu0
    %8789 = vmatprep.mubr.f32.mxu0 0.0
    %8790 = vmatmul.mubr.f32.gmra.mxu0 %v8524
    %v8791 = vpop.f32.mrf.mxu0
    %v8792 = vadd.f32 0.0, %v8791
    %v8793 = vpop.f32.mrf.mxu0
    %8794 = vmatprep.mubr.f32.mxu0 0.0
    %8795 = vmatmul.mubr.f32.gmra.mxu0 %v8525
    %v8796 = vpop.f32.mrf.mxu0
    %v8797 = vadd.f32 0.0, %v8796
    %v8798 = vpop.f32.mrf.mxu0
    %8799 = vmatprep.mubr.f32.mxu0 0.0
    %8800 = vmatmul.mubr.f32.gmra.mxu0 %v8526
    %v8801 = vpop.f32.mrf.mxu0
    %v8802 = vadd.f32 0.0, %v8801
    %v8803 = vpop.f32.mrf.mxu0
    %8804 = vmatprep.mubr.f32.mxu0 0.0
    %8805 = vmatmul.mubr.f32.gmra.mxu0 %v8527
    %v8806 = vpop.f32.mrf.mxu0
    %v8807 = vadd.f32 0.0, %v8806
    %v8808 = vpop.f32.mrf.mxu0
    %8809 = vmatprep.mubr.f32.mxu0 0.0
    %8810 = vmatmul.mubr.f32.gmra.mxu0 %v8528
    %v8811 = vpop.f32.mrf.mxu0
    %v8812 = vadd.f32 0.0, %v8811
    %v8813 = vpop.f32.mrf.mxu0
    %8814 = vmatprep.mubr.f32.mxu0 0.0
    %8815 = vmatmul.mubr.f32.gmra.mxu0 %v8529
    %v8816 = vpop.f32.mrf.mxu0
    %v8817 = vadd.f32 0.0, %v8816
    %v8818 = vpop.f32.mrf.mxu0
    %8819 = vdwg.mxu0
    %8820 = vmatprep.subr.mxu0 0.0
    %8821 = vmatpush1.msra.mxu0 %v8672
    %8822 = vmatprep.subr.mxu0 0.0
    %8823 = vmatpush1.msra.mxu0 %v8667
    %8824 = vmatprep.subr.mxu0 0.0
    %8825 = vmatpush1.msra.mxu0 %v8662
    %8826 = vmatprep.subr.mxu0 0.0
    %8827 = vmatpush1.msra.mxu0 %v8657
    %8828 = vmatprep.subr.mxu0 0.0
    %8829 = vmatpush1.msra.mxu0 %v8652
    %8830 = vmatprep.subr.mxu0 0.0
    %8831 = vmatpush1.msra.mxu0 %v8647
    %8832 = vmatprep.subr.mxu0 0.0
    %8833 = vmatpush1.msra.mxu0 %v8642
    %8834 = vmatprep.subr.mxu0 0.0
    %8835 = vmatpush1.msra.mxu0 %v8637
    %8836 = vmatprep.subr.mxu0 0.0
    %8837 = vmatpush1.msra.mxu0 %v8632
    %8838 = vmatprep.subr.mxu0 0.0
    %8839 = vmatpush1.msra.mxu0 %v8627
    %8840 = vmatprep.subr.mxu0 0.0
    %8841 = vmatpush1.msra.mxu0 %v8622
    %8842 = vmatprep.subr.mxu0 0.0
    %8843 = vmatpush1.msra.mxu0 %v8617
    %8844 = vmatprep.subr.mxu0 0.0
    %8845 = vmatpush1.msra.mxu0 %v8612
    %8846 = vmatprep.subr.mxu0 0.0
    %8847 = vmatpush1.msra.mxu0 %v8607
    %8848 = vmatprep.subr.mxu0 0.0
    %8849 = vmatpush1.msra.mxu0 %v8602
    %8850 = vmatprep.subr.mxu0 0.0
    %8851 = vmatpush1.msra.mxu0 %v8597
    %8852 = vmatprep.subr.mxu0 0.0
    %8853 = vmatpush2.msra.mxu0 0.0
    %8854 = vmatprep.subr.mxu0 0.0
    %8855 = vmatpush2.msra.mxu0 0.0
    %8856 = vmatprep.subr.mxu0 0.0
    %8857 = vmatpush2.msra.mxu0 0.0
    %8858 = vmatprep.subr.mxu0 0.0
    %8859 = vmatpush2.msra.mxu0 0.0
    %8860 = vmatprep.subr.mxu0 0.0
    %8861 = vmatpush2.msra.mxu0 0.0
    %8862 = vmatprep.subr.mxu0 0.0
    %8863 = vmatpush2.msra.mxu0 0.0
    %8864 = vmatprep.subr.mxu0 0.0
    %8865 = vmatpush2.msra.mxu0 0.0
    %8866 = vmatprep.subr.mxu0 0.0
    %8867 = vmatpush2.msra.mxu0 0.0
    %8868 = vmatprep.subr.mxu0 0.0
    %8869 = vmatpush2.msra.mxu0 0.0
    %8870 = vmatprep.subr.mxu0 0.0
    %8871 = vmatpush2.msra.mxu0 0.0
    %8872 = vmatprep.subr.mxu0 0.0
    %8873 = vmatpush2.msra.mxu0 0.0
    %8874 = vmatprep.subr.mxu0 0.0
    %8875 = vmatpush2.msra.mxu0 0.0
    %8876 = vmatprep.subr.mxu0 0.0
    %8877 = vmatpush2.msra.mxu0 0.0
    %8878 = vmatprep.subr.mxu0 0.0
    %8879 = vmatpush2.msra.mxu0 0.0
    %8880 = vmatprep.subr.mxu0 0.0
    %8881 = vmatpush2.msra.mxu0 0.0
    %8882 = vmatprep.subr.mxu0 0.0
    %8883 = vmatpush2.msra.mxu0 0.0
    %8884 = vmatprep.mubr.f32.mxu0 0.0
    %8885 = vmatmul.mubr.f32.gmra.mxu0 %v8742
    %v8886 = vpop.f32.mrf.mxu0
    %v8887 = vadd.f32 0.0, %v8886
    %v8888 = vpop.f32.mrf.mxu0
    %8889 = vmatprep.mubr.f32.mxu0 0.0
    %8890 = vmatmul.mubr.f32.gmra.mxu0 %v8747
    %v8891 = vpop.f32.mrf.mxu0
    %v8892 = vadd.f32 0.0, %v8891
    %v8893 = vpop.f32.mrf.mxu0
    %8894 = vmatprep.mubr.f32.mxu0 0.0
    %8895 = vmatmul.mubr.f32.gmra.mxu0 %v8752
    %v8896 = vpop.f32.mrf.mxu0
    %v8897 = vadd.f32 0.0, %v8896
    %v8898 = vpop.f32.mrf.mxu0
    %8899 = vmatprep.mubr.f32.mxu0 0.0
    %8900 = vmatmul.mubr.f32.gmra.mxu0 %v8757
    %v8901 = vpop.f32.mrf.mxu0
    %v8902 = vadd.f32 0.0, %v8901
    %v8903 = vpop.f32.mrf.mxu0
    %8904 = vmatprep.mubr.f32.mxu0 0.0
    %8905 = vmatmul.mubr.f32.gmra.mxu0 %v8762
    %v8906 = vpop.f32.mrf.mxu0
    %v8907 = vadd.f32 0.0, %v8906
    %v8908 = vpop.f32.mrf.mxu0
    %8909 = vmatprep.mubr.f32.mxu0 0.0
    %8910 = vmatmul.mubr.f32.gmra.mxu0 %v8767
    %v8911 = vpop.f32.mrf.mxu0
    %v8912 = vadd.f32 0.0, %v8911
    %v8913 = vpop.f32.mrf.mxu0
    %8914 = vmatprep.mubr.f32.mxu0 0.0
    %8915 = vmatmul.mubr.f32.gmra.mxu0 %v8772
    %v8916 = vpop.f32.mrf.mxu0
    %v8917 = vadd.f32 0.0, %v8916
    %v8918 = vpop.f32.mrf.mxu0
    %8919 = vmatprep.mubr.f32.mxu0 0.0
    %8920 = vmatmul.mubr.f32.gmra.mxu0 %v8777
    %v8921 = vpop.f32.mrf.mxu0
    %v8922 = vadd.f32 0.0, %v8921
    %v8923 = vpop.f32.mrf.mxu0
    %8924 = vmatprep.mubr.f32.mxu0 0.0
    %8925 = vmatmul.mubr.f32.gmra.mxu0 %v8782
    %v8926 = vpop.f32.mrf.mxu0
    %v8927 = vadd.f32 0.0, %v8926
    %v8928 = vpop.f32.mrf.mxu0
    %8929 = vmatprep.mubr.f32.mxu0 0.0
    %8930 = vmatmul.mubr.f32.gmra.mxu0 %v8787
    %v8931 = vpop.f32.mrf.mxu0
    %v8932 = vadd.f32 0.0, %v8931
    %v8933 = vpop.f32.mrf.mxu0
    %8934 = vmatprep.mubr.f32.mxu0 0.0
    %8935 = vmatmul.mubr.f32.gmra.mxu0 %v8792
    %v8936 = vpop.f32.mrf.mxu0
    %v8937 = vadd.f32 0.0, %v8936
    %v8938 = vpop.f32.mrf.mxu0
    %8939 = vmatprep.mubr.f32.mxu0 0.0
    %8940 = vmatmul.mubr.f32.gmra.mxu0 %v8797
    %v8941 = vpop.f32.mrf.mxu0
    %v8942 = vadd.f32 0.0, %v8941
    %v8943 = vpop.f32.mrf.mxu0
    %8944 = vmatprep.mubr.f32.mxu0 0.0
    %8945 = vmatmul.mubr.f32.gmra.mxu0 %v8802
    %v8946 = vpop.f32.mrf.mxu0
    %v8947 = vadd.f32 0.0, %v8946
    %v8948 = vpop.f32.mrf.mxu0
    %8949 = vmatprep.mubr.f32.mxu0 0.0
    %8950 = vmatmul.mubr.f32.gmra.mxu0 %v8807
    %v8951 = vpop.f32.mrf.mxu0
    %v8952 = vadd.f32 0.0, %v8951
    %v8953 = vpop.f32.mrf.mxu0
    %8954 = vmatprep.mubr.f32.mxu0 0.0
    %8955 = vmatmul.mubr.f32.gmra.mxu0 %v8812
    %v8956 = vpop.f32.mrf.mxu0
    %v8957 = vadd.f32 0.0, %v8956
    %v8958 = vpop.f32.mrf.mxu0
    %8959 = vmatprep.mubr.f32.mxu0 0.0
    %8960 = vmatmul.mubr.f32.gmra.mxu0 %v8817
    %v8961 = vpop.f32.mrf.mxu0
    %v8962 = vadd.f32 0.0, %v8961
    %v8963 = vpop.f32.mrf.mxu0
    %8964 = vdwg.mxu0
    %v8965 = vmul.f32 %v8887, 0.5
    %v8966 = vmul.f32 %v8892, 0.5
    %v8967 = vmul.f32 %v8897, 0.5
    %v8968 = vmul.f32 %v8902, 0.5
    %v8969 = vmul.f32 %v8907, 0.5
    %v8970 = vmul.f32 %v8912, 0.5
    %v8971 = vmul.f32 %v8917, 0.5
    %v8972 = vmul.f32 %v8922, 0.5
    %v8973 = vmul.f32 %v8927, 0.5
    %v8974 = vmul.f32 %v8932, 0.5
    %v8975 = vmul.f32 %v8937, 0.5
    %v8976 = vmul.f32 %v8942, 0.5
    %v8977 = vmul.f32 %v8947, 0.5
    %v8978 = vmul.f32 %v8952, 0.5
    %v8979 = vmul.f32 %v8957, 0.5
    %v8980 = vmul.f32 %v8962, 0.5
    %v8981 = vsub.f32 %v398, %v8965
    %v8982 = vsub.f32 %v399, %v8966
    %v8983 = vsub.f32 %v400, %v8967
    %v8984 = vsub.f32 %v401, %v8968
    %v8985 = vsub.f32 %v402, %v8969
    %v8986 = vsub.f32 %v403, %v8970
    %v8987 = vsub.f32 %v404, %v8971
    %v8988 = vsub.f32 %v405, %v8972
    %v8989 = vsub.f32 %v406, %v8973
    %v8990 = vsub.f32 %v407, %v8974
    %v8991 = vsub.f32 %v408, %v8975
    %v8992 = vsub.f32 %v409, %v8976
    %v8993 = vsub.f32 %v410, %v8977
    %v8994 = vsub.f32 %v411, %v8978
    %v8995 = vsub.f32 %v412, %v8979
    %v8996 = vsub.f32 %v413, %v8980
    %8997 = vmatprep.subr.mxu0 0.0
    %8998 = vmatpush1.msra.mxu0 %v8996
    %8999 = vmatprep.subr.mxu0 0.0
    %9000 = vmatpush1.msra.mxu0 %v8995
    %9001 = vmatprep.subr.mxu0 0.0
    %9002 = vmatpush1.msra.mxu0 %v8994
    %9003 = vmatprep.subr.mxu0 0.0
    %9004 = vmatpush1.msra.mxu0 %v8993
    %9005 = vmatprep.subr.mxu0 0.0
    %9006 = vmatpush1.msra.mxu0 %v8992
    %9007 = vmatprep.subr.mxu0 0.0
    %9008 = vmatpush1.msra.mxu0 %v8991
    %9009 = vmatprep.subr.mxu0 0.0
    %9010 = vmatpush1.msra.mxu0 %v8990
    %9011 = vmatprep.subr.mxu0 0.0
    %9012 = vmatpush1.msra.mxu0 %v8989
    %9013 = vmatprep.subr.mxu0 0.0
    %9014 = vmatpush1.msra.mxu0 %v8988
    %9015 = vmatprep.subr.mxu0 0.0
    %9016 = vmatpush1.msra.mxu0 %v8987
    %9017 = vmatprep.subr.mxu0 0.0
    %9018 = vmatpush1.msra.mxu0 %v8986
    %9019 = vmatprep.subr.mxu0 0.0
    %9020 = vmatpush1.msra.mxu0 %v8985
    %9021 = vmatprep.subr.mxu0 0.0
    %9022 = vmatpush1.msra.mxu0 %v8984
    %9023 = vmatprep.subr.mxu0 0.0
    %9024 = vmatpush1.msra.mxu0 %v8983
    %9025 = vmatprep.subr.mxu0 0.0
    %9026 = vmatpush1.msra.mxu0 %v8982
    %9027 = vmatprep.subr.mxu0 0.0
    %9028 = vmatpush1.msra.mxu0 %v8981
    %9029 = vmatprep.subr.mxu0 0.0
    %9030 = vmatpush2.msra.mxu0 0.0
    %9031 = vmatprep.subr.mxu0 0.0
    %9032 = vmatpush2.msra.mxu0 0.0
    %9033 = vmatprep.subr.mxu0 0.0
    %9034 = vmatpush2.msra.mxu0 0.0
    %9035 = vmatprep.subr.mxu0 0.0
    %9036 = vmatpush2.msra.mxu0 0.0
    %9037 = vmatprep.subr.mxu0 0.0
    %9038 = vmatpush2.msra.mxu0 0.0
    %9039 = vmatprep.subr.mxu0 0.0
    %9040 = vmatpush2.msra.mxu0 0.0
    %9041 = vmatprep.subr.mxu0 0.0
    %9042 = vmatpush2.msra.mxu0 0.0
    %9043 = vmatprep.subr.mxu0 0.0
    %9044 = vmatpush2.msra.mxu0 0.0
    %9045 = vmatprep.subr.mxu0 0.0
    %9046 = vmatpush2.msra.mxu0 0.0
    %9047 = vmatprep.subr.mxu0 0.0
    %9048 = vmatpush2.msra.mxu0 0.0
    %9049 = vmatprep.subr.mxu0 0.0
    %9050 = vmatpush2.msra.mxu0 0.0
    %9051 = vmatprep.subr.mxu0 0.0
    %9052 = vmatpush2.msra.mxu0 0.0
    %9053 = vmatprep.subr.mxu0 0.0
    %9054 = vmatpush2.msra.mxu0 0.0
    %9055 = vmatprep.subr.mxu0 0.0
    %9056 = vmatpush2.msra.mxu0 0.0
    %9057 = vmatprep.subr.mxu0 0.0
    %9058 = vmatpush2.msra.mxu0 0.0
    %9059 = vmatprep.subr.mxu0 0.0
    %9060 = vmatpush2.msra.mxu0 0.0
    %9061 = vmatprep.mubr.f32.mxu0 0.0
    %9062 = vmatmul.mubr.f32.gmra.mxu0 %v8597
    %v9063 = vpop.f32.mrf.mxu0
    %v9064 = vadd.f32 0.0, %v9063
    %v9065 = vpop.f32.mrf.mxu0
    %9066 = vmatprep.mubr.f32.mxu0 0.0
    %9067 = vmatmul.mubr.f32.gmra.mxu0 %v8602
    %v9068 = vpop.f32.mrf.mxu0
    %v9069 = vadd.f32 0.0, %v9068
    %v9070 = vpop.f32.mrf.mxu0
    %9071 = vmatprep.mubr.f32.mxu0 0.0
    %9072 = vmatmul.mubr.f32.gmra.mxu0 %v8607
    %v9073 = vpop.f32.mrf.mxu0
    %v9074 = vadd.f32 0.0, %v9073
    %v9075 = vpop.f32.mrf.mxu0
    %9076 = vmatprep.mubr.f32.mxu0 0.0
    %9077 = vmatmul.mubr.f32.gmra.mxu0 %v8612
    %v9078 = vpop.f32.mrf.mxu0
    %v9079 = vadd.f32 0.0, %v9078
    %v9080 = vpop.f32.mrf.mxu0
    %9081 = vmatprep.mubr.f32.mxu0 0.0
    %9082 = vmatmul.mubr.f32.gmra.mxu0 %v8617
    %v9083 = vpop.f32.mrf.mxu0
    %v9084 = vadd.f32 0.0, %v9083
    %v9085 = vpop.f32.mrf.mxu0
    %9086 = vmatprep.mubr.f32.mxu0 0.0
    %9087 = vmatmul.mubr.f32.gmra.mxu0 %v8622
    %v9088 = vpop.f32.mrf.mxu0
    %v9089 = vadd.f32 0.0, %v9088
    %v9090 = vpop.f32.mrf.mxu0
    %9091 = vmatprep.mubr.f32.mxu0 0.0
    %9092 = vmatmul.mubr.f32.gmra.mxu0 %v8627
    %v9093 = vpop.f32.mrf.mxu0
    %v9094 = vadd.f32 0.0, %v9093
    %v9095 = vpop.f32.mrf.mxu0
    %9096 = vmatprep.mubr.f32.mxu0 0.0
    %9097 = vmatmul.mubr.f32.gmra.mxu0 %v8632
    %v9098 = vpop.f32.mrf.mxu0
    %v9099 = vadd.f32 0.0, %v9098
    %v9100 = vpop.f32.mrf.mxu0
    %9101 = vmatprep.mubr.f32.mxu0 0.0
    %9102 = vmatmul.mubr.f32.gmra.mxu0 %v8637
    %v9103 = vpop.f32.mrf.mxu0
    %v9104 = vadd.f32 0.0, %v9103
    %v9105 = vpop.f32.mrf.mxu0
    %9106 = vmatprep.mubr.f32.mxu0 0.0
    %9107 = vmatmul.mubr.f32.gmra.mxu0 %v8642
    %v9108 = vpop.f32.mrf.mxu0
    %v9109 = vadd.f32 0.0, %v9108
    %v9110 = vpop.f32.mrf.mxu0
    %9111 = vmatprep.mubr.f32.mxu0 0.0
    %9112 = vmatmul.mubr.f32.gmra.mxu0 %v8647
    %v9113 = vpop.f32.mrf.mxu0
    %v9114 = vadd.f32 0.0, %v9113
    %v9115 = vpop.f32.mrf.mxu0
    %9116 = vmatprep.mubr.f32.mxu0 0.0
    %9117 = vmatmul.mubr.f32.gmra.mxu0 %v8652
    %v9118 = vpop.f32.mrf.mxu0
    %v9119 = vadd.f32 0.0, %v9118
    %v9120 = vpop.f32.mrf.mxu0
    %9121 = vmatprep.mubr.f32.mxu0 0.0
    %9122 = vmatmul.mubr.f32.gmra.mxu0 %v8657
    %v9123 = vpop.f32.mrf.mxu0
    %v9124 = vadd.f32 0.0, %v9123
    %v9125 = vpop.f32.mrf.mxu0
    %9126 = vmatprep.mubr.f32.mxu0 0.0
    %9127 = vmatmul.mubr.f32.gmra.mxu0 %v8662
    %v9128 = vpop.f32.mrf.mxu0
    %v9129 = vadd.f32 0.0, %v9128
    %v9130 = vpop.f32.mrf.mxu0
    %9131 = vmatprep.mubr.f32.mxu0 0.0
    %9132 = vmatmul.mubr.f32.gmra.mxu0 %v8667
    %v9133 = vpop.f32.mrf.mxu0
    %v9134 = vadd.f32 0.0, %v9133
    %v9135 = vpop.f32.mrf.mxu0
    %9136 = vmatprep.mubr.f32.mxu0 0.0
    %9137 = vmatmul.mubr.f32.gmra.mxu0 %v8672
    %v9138 = vpop.f32.mrf.mxu0
    %v9139 = vadd.f32 0.0, %v9138
    %v9140 = vpop.f32.mrf.mxu0
    %9141 = vdwg.mxu0
    %9142 = vmatprep.subr.mxu0 0.0
    %9143 = vmatpush1.msra.mxu0 %v8817
    %9144 = vmatprep.subr.mxu0 0.0
    %9145 = vmatpush1.msra.mxu0 %v8812
    %9146 = vmatprep.subr.mxu0 0.0
    %9147 = vmatpush1.msra.mxu0 %v8807
    %9148 = vmatprep.subr.mxu0 0.0
    %9149 = vmatpush1.msra.mxu0 %v8802
    %9150 = vmatprep.subr.mxu0 0.0
    %9151 = vmatpush1.msra.mxu0 %v8797
    %9152 = vmatprep.subr.mxu0 0.0
    %9153 = vmatpush1.msra.mxu0 %v8792
    %9154 = vmatprep.subr.mxu0 0.0
    %9155 = vmatpush1.msra.mxu0 %v8787
    %9156 = vmatprep.subr.mxu0 0.0
    %9157 = vmatpush1.msra.mxu0 %v8782
    %9158 = vmatprep.subr.mxu0 0.0
    %9159 = vmatpush1.msra.mxu0 %v8777
    %9160 = vmatprep.subr.mxu0 0.0
    %9161 = vmatpush1.msra.mxu0 %v8772
    %9162 = vmatprep.subr.mxu0 0.0
    %9163 = vmatpush1.msra.mxu0 %v8767
    %9164 = vmatprep.subr.mxu0 0.0
    %9165 = vmatpush1.msra.mxu0 %v8762
    %9166 = vmatprep.subr.mxu0 0.0
    %9167 = vmatpush1.msra.mxu0 %v8757
    %9168 = vmatprep.subr.mxu0 0.0
    %9169 = vmatpush1.msra.mxu0 %v8752
    %9170 = vmatprep.subr.mxu0 0.0
    %9171 = vmatpush1.msra.mxu0 %v8747
    %9172 = vmatprep.subr.mxu0 0.0
    %9173 = vmatpush1.msra.mxu0 %v8742
    %9174 = vmatprep.subr.mxu0 0.0
    %9175 = vmatpush2.msra.mxu0 0.0
    %9176 = vmatprep.subr.mxu0 0.0
    %9177 = vmatpush2.msra.mxu0 0.0
    %9178 = vmatprep.subr.mxu0 0.0
    %9179 = vmatpush2.msra.mxu0 0.0
    %9180 = vmatprep.subr.mxu0 0.0
    %9181 = vmatpush2.msra.mxu0 0.0
    %9182 = vmatprep.subr.mxu0 0.0
    %9183 = vmatpush2.msra.mxu0 0.0
    %9184 = vmatprep.subr.mxu0 0.0
    %9185 = vmatpush2.msra.mxu0 0.0
    %9186 = vmatprep.subr.mxu0 0.0
    %9187 = vmatpush2.msra.mxu0 0.0
    %9188 = vmatprep.subr.mxu0 0.0
    %9189 = vmatpush2.msra.mxu0 0.0
    %9190 = vmatprep.subr.mxu0 0.0
    %9191 = vmatpush2.msra.mxu0 0.0
    %9192 = vmatprep.subr.mxu0 0.0
    %9193 = vmatpush2.msra.mxu0 0.0
    %9194 = vmatprep.subr.mxu0 0.0
    %9195 = vmatpush2.msra.mxu0 0.0
    %9196 = vmatprep.subr.mxu0 0.0
    %9197 = vmatpush2.msra.mxu0 0.0
    %9198 = vmatprep.subr.mxu0 0.0
    %9199 = vmatpush2.msra.mxu0 0.0
    %9200 = vmatprep.subr.mxu0 0.0
    %9201 = vmatpush2.msra.mxu0 0.0
    %9202 = vmatprep.subr.mxu0 0.0
    %9203 = vmatpush2.msra.mxu0 0.0
    %9204 = vmatprep.subr.mxu0 0.0
    %9205 = vmatpush2.msra.mxu0 0.0
    %9206 = vmatprep.mubr.f32.mxu0 0.0
    %9207 = vmatmul.mubr.f32.gmra.mxu0 %v8981
    %v9208 = vpop.f32.mrf.mxu0
    %v9209 = vadd.f32 0.0, %v9208
    %v9210 = vpop.f32.mrf.mxu0
    %9211 = vmatprep.mubr.f32.mxu0 0.0
    %9212 = vmatmul.mubr.f32.gmra.mxu0 %v8982
    %v9213 = vpop.f32.mrf.mxu0
    %v9214 = vadd.f32 0.0, %v9213
    %v9215 = vpop.f32.mrf.mxu0
    %9216 = vmatprep.mubr.f32.mxu0 0.0
    %9217 = vmatmul.mubr.f32.gmra.mxu0 %v8983
    %v9218 = vpop.f32.mrf.mxu0
    %v9219 = vadd.f32 0.0, %v9218
    %v9220 = vpop.f32.mrf.mxu0
    %9221 = vmatprep.mubr.f32.mxu0 0.0
    %9222 = vmatmul.mubr.f32.gmra.mxu0 %v8984
    %v9223 = vpop.f32.mrf.mxu0
    %v9224 = vadd.f32 0.0, %v9223
    %v9225 = vpop.f32.mrf.mxu0
    %9226 = vmatprep.mubr.f32.mxu0 0.0
    %9227 = vmatmul.mubr.f32.gmra.mxu0 %v8985
    %v9228 = vpop.f32.mrf.mxu0
    %v9229 = vadd.f32 0.0, %v9228
    %v9230 = vpop.f32.mrf.mxu0
    %9231 = vmatprep.mubr.f32.mxu0 0.0
    %9232 = vmatmul.mubr.f32.gmra.mxu0 %v8986
    %v9233 = vpop.f32.mrf.mxu0
    %v9234 = vadd.f32 0.0, %v9233
    %v9235 = vpop.f32.mrf.mxu0
    %9236 = vmatprep.mubr.f32.mxu0 0.0
    %9237 = vmatmul.mubr.f32.gmra.mxu0 %v8987
    %v9238 = vpop.f32.mrf.mxu0
    %v9239 = vadd.f32 0.0, %v9238
    %v9240 = vpop.f32.mrf.mxu0
    %9241 = vmatprep.mubr.f32.mxu0 0.0
    %9242 = vmatmul.mubr.f32.gmra.mxu0 %v8988
    %v9243 = vpop.f32.mrf.mxu0
    %v9244 = vadd.f32 0.0, %v9243
    %v9245 = vpop.f32.mrf.mxu0
    %9246 = vmatprep.mubr.f32.mxu0 0.0
    %9247 = vmatmul.mubr.f32.gmra.mxu0 %v8989
    %v9248 = vpop.f32.mrf.mxu0
    %v9249 = vadd.f32 0.0, %v9248
    %v9250 = vpop.f32.mrf.mxu0
    %9251 = vmatprep.mubr.f32.mxu0 0.0
    %9252 = vmatmul.mubr.f32.gmra.mxu0 %v8990
    %v9253 = vpop.f32.mrf.mxu0
    %v9254 = vadd.f32 0.0, %v9253
    %v9255 = vpop.f32.mrf.mxu0
    %9256 = vmatprep.mubr.f32.mxu0 0.0
    %9257 = vmatmul.mubr.f32.gmra.mxu0 %v8991
    %v9258 = vpop.f32.mrf.mxu0
    %v9259 = vadd.f32 0.0, %v9258
    %v9260 = vpop.f32.mrf.mxu0
    %9261 = vmatprep.mubr.f32.mxu0 0.0
    %9262 = vmatmul.mubr.f32.gmra.mxu0 %v8992
    %v9263 = vpop.f32.mrf.mxu0
    %v9264 = vadd.f32 0.0, %v9263
    %v9265 = vpop.f32.mrf.mxu0
    %9266 = vmatprep.mubr.f32.mxu0 0.0
    %9267 = vmatmul.mubr.f32.gmra.mxu0 %v8993
    %v9268 = vpop.f32.mrf.mxu0
    %v9269 = vadd.f32 0.0, %v9268
    %v9270 = vpop.f32.mrf.mxu0
    %9271 = vmatprep.mubr.f32.mxu0 0.0
    %9272 = vmatmul.mubr.f32.gmra.mxu0 %v8994
    %v9273 = vpop.f32.mrf.mxu0
    %v9274 = vadd.f32 0.0, %v9273
    %v9275 = vpop.f32.mrf.mxu0
    %9276 = vmatprep.mubr.f32.mxu0 0.0
    %9277 = vmatmul.mubr.f32.gmra.mxu0 %v8995
    %v9278 = vpop.f32.mrf.mxu0
    %v9279 = vadd.f32 0.0, %v9278
    %v9280 = vpop.f32.mrf.mxu0
    %9281 = vmatprep.mubr.f32.mxu0 0.0
    %9282 = vmatmul.mubr.f32.gmra.mxu0 %v8996
    %v9283 = vpop.f32.mrf.mxu0
    %v9284 = vadd.f32 0.0, %v9283
    %v9285 = vpop.f32.mrf.mxu0
    %9286 = vdwg.mxu0
    %9287 = vmatprep.subr.mxu0 0.0
    %9288 = vmatpush1.msra.mxu0 %v9139
    %9289 = vmatprep.subr.mxu0 0.0
    %9290 = vmatpush1.msra.mxu0 %v9134
    %9291 = vmatprep.subr.mxu0 0.0
    %9292 = vmatpush1.msra.mxu0 %v9129
    %9293 = vmatprep.subr.mxu0 0.0
    %9294 = vmatpush1.msra.mxu0 %v9124
    %9295 = vmatprep.subr.mxu0 0.0
    %9296 = vmatpush1.msra.mxu0 %v9119
    %9297 = vmatprep.subr.mxu0 0.0
    %9298 = vmatpush1.msra.mxu0 %v9114
    %9299 = vmatprep.subr.mxu0 0.0
    %9300 = vmatpush1.msra.mxu0 %v9109
    %9301 = vmatprep.subr.mxu0 0.0
    %9302 = vmatpush1.msra.mxu0 %v9104
    %9303 = vmatprep.subr.mxu0 0.0
    %9304 = vmatpush1.msra.mxu0 %v9099
    %9305 = vmatprep.subr.mxu0 0.0
    %9306 = vmatpush1.msra.mxu0 %v9094
    %9307 = vmatprep.subr.mxu0 0.0
    %9308 = vmatpush1.msra.mxu0 %v9089
    %9309 = vmatprep.subr.mxu0 0.0
    %9310 = vmatpush1.msra.mxu0 %v9084
    %9311 = vmatprep.subr.mxu0 0.0
    %9312 = vmatpush1.msra.mxu0 %v9079
    %9313 = vmatprep.subr.mxu0 0.0
    %9314 = vmatpush1.msra.mxu0 %v9074
    %9315 = vmatprep.subr.mxu0 0.0
    %9316 = vmatpush1.msra.mxu0 %v9069
    %9317 = vmatprep.subr.mxu0 0.0
    %9318 = vmatpush1.msra.mxu0 %v9064
    %9319 = vmatprep.subr.mxu0 0.0
    %9320 = vmatpush2.msra.mxu0 0.0
    %9321 = vmatprep.subr.mxu0 0.0
    %9322 = vmatpush2.msra.mxu0 0.0
    %9323 = vmatprep.subr.mxu0 0.0
    %9324 = vmatpush2.msra.mxu0 0.0
    %9325 = vmatprep.subr.mxu0 0.0
    %9326 = vmatpush2.msra.mxu0 0.0
    %9327 = vmatprep.subr.mxu0 0.0
    %9328 = vmatpush2.msra.mxu0 0.0
    %9329 = vmatprep.subr.mxu0 0.0
    %9330 = vmatpush2.msra.mxu0 0.0
    %9331 = vmatprep.subr.mxu0 0.0
    %9332 = vmatpush2.msra.mxu0 0.0
    %9333 = vmatprep.subr.mxu0 0.0
    %9334 = vmatpush2.msra.mxu0 0.0
    %9335 = vmatprep.subr.mxu0 0.0
    %9336 = vmatpush2.msra.mxu0 0.0
    %9337 = vmatprep.subr.mxu0 0.0
    %9338 = vmatpush2.msra.mxu0 0.0
    %9339 = vmatprep.subr.mxu0 0.0
    %9340 = vmatpush2.msra.mxu0 0.0
    %9341 = vmatprep.subr.mxu0 0.0
    %9342 = vmatpush2.msra.mxu0 0.0
    %9343 = vmatprep.subr.mxu0 0.0
    %9344 = vmatpush2.msra.mxu0 0.0
    %9345 = vmatprep.subr.mxu0 0.0
    %9346 = vmatpush2.msra.mxu0 0.0
    %9347 = vmatprep.subr.mxu0 0.0
    %9348 = vmatpush2.msra.mxu0 0.0
    %9349 = vmatprep.subr.mxu0 0.0
    %9350 = vmatpush2.msra.mxu0 0.0
    %9351 = vmatprep.mubr.f32.mxu0 0.0
    %9352 = vmatmul.mubr.f32.gmra.mxu0 %v9209
    %v9353 = vpop.f32.mrf.mxu0
    %v9354 = vadd.f32 0.0, %v9353
    %v9355 = vpop.f32.mrf.mxu0
    %9356 = vmatprep.mubr.f32.mxu0 0.0
    %9357 = vmatmul.mubr.f32.gmra.mxu0 %v9214
    %v9358 = vpop.f32.mrf.mxu0
    %v9359 = vadd.f32 0.0, %v9358
    %v9360 = vpop.f32.mrf.mxu0
    %9361 = vmatprep.mubr.f32.mxu0 0.0
    %9362 = vmatmul.mubr.f32.gmra.mxu0 %v9219
    %v9363 = vpop.f32.mrf.mxu0
    %v9364 = vadd.f32 0.0, %v9363
    %v9365 = vpop.f32.mrf.mxu0
    %9366 = vmatprep.mubr.f32.mxu0 0.0
    %9367 = vmatmul.mubr.f32.gmra.mxu0 %v9224
    %v9368 = vpop.f32.mrf.mxu0
    %v9369 = vadd.f32 0.0, %v9368
    %v9370 = vpop.f32.mrf.mxu0
    %9371 = vmatprep.mubr.f32.mxu0 0.0
    %9372 = vmatmul.mubr.f32.gmra.mxu0 %v9229
    %v9373 = vpop.f32.mrf.mxu0
    %v9374 = vadd.f32 0.0, %v9373
    %v9375 = vpop.f32.mrf.mxu0
    %9376 = vmatprep.mubr.f32.mxu0 0.0
    %9377 = vmatmul.mubr.f32.gmra.mxu0 %v9234
    %v9378 = vpop.f32.mrf.mxu0
    %v9379 = vadd.f32 0.0, %v9378
    %v9380 = vpop.f32.mrf.mxu0
    %9381 = vmatprep.mubr.f32.mxu0 0.0
    %9382 = vmatmul.mubr.f32.gmra.mxu0 %v9239
    %v9383 = vpop.f32.mrf.mxu0
    %v9384 = vadd.f32 0.0, %v9383
    %v9385 = vpop.f32.mrf.mxu0
    %9386 = vmatprep.mubr.f32.mxu0 0.0
    %9387 = vmatmul.mubr.f32.gmra.mxu0 %v9244
    %v9388 = vpop.f32.mrf.mxu0
    %v9389 = vadd.f32 0.0, %v9388
    %v9390 = vpop.f32.mrf.mxu0
    %9391 = vmatprep.mubr.f32.mxu0 0.0
    %9392 = vmatmul.mubr.f32.gmra.mxu0 %v9249
    %v9393 = vpop.f32.mrf.mxu0
    %v9394 = vadd.f32 0.0, %v9393
    %v9395 = vpop.f32.mrf.mxu0
    %9396 = vmatprep.mubr.f32.mxu0 0.0
    %9397 = vmatmul.mubr.f32.gmra.mxu0 %v9254
    %v9398 = vpop.f32.mrf.mxu0
    %v9399 = vadd.f32 0.0, %v9398
    %v9400 = vpop.f32.mrf.mxu0
    %9401 = vmatprep.mubr.f32.mxu0 0.0
    %9402 = vmatmul.mubr.f32.gmra.mxu0 %v9259
    %v9403 = vpop.f32.mrf.mxu0
    %v9404 = vadd.f32 0.0, %v9403
    %v9405 = vpop.f32.mrf.mxu0
    %9406 = vmatprep.mubr.f32.mxu0 0.0
    %9407 = vmatmul.mubr.f32.gmra.mxu0 %v9264
    %v9408 = vpop.f32.mrf.mxu0
    %v9409 = vadd.f32 0.0, %v9408
    %v9410 = vpop.f32.mrf.mxu0
    %9411 = vmatprep.mubr.f32.mxu0 0.0
    %9412 = vmatmul.mubr.f32.gmra.mxu0 %v9269
    %v9413 = vpop.f32.mrf.mxu0
    %v9414 = vadd.f32 0.0, %v9413
    %v9415 = vpop.f32.mrf.mxu0
    %9416 = vmatprep.mubr.f32.mxu0 0.0
    %9417 = vmatmul.mubr.f32.gmra.mxu0 %v9274
    %v9418 = vpop.f32.mrf.mxu0
    %v9419 = vadd.f32 0.0, %v9418
    %v9420 = vpop.f32.mrf.mxu0
    %9421 = vmatprep.mubr.f32.mxu0 0.0
    %9422 = vmatmul.mubr.f32.gmra.mxu0 %v9279
    %v9423 = vpop.f32.mrf.mxu0
    %v9424 = vadd.f32 0.0, %v9423
    %v9425 = vpop.f32.mrf.mxu0
    %9426 = vmatprep.mubr.f32.mxu0 0.0
    %9427 = vmatmul.mubr.f32.gmra.mxu0 %v9284
    %v9428 = vpop.f32.mrf.mxu0
    %v9429 = vadd.f32 0.0, %v9428
    %v9430 = vpop.f32.mrf.mxu0
    %9431 = vdwg.mxu0
    %v9432 = vmul.f32 %v9354, 0.5
    %v9433 = vmul.f32 %v9359, 0.5
    %v9434 = vmul.f32 %v9364, 0.5
    %v9435 = vmul.f32 %v9369, 0.5
    %v9436 = vmul.f32 %v9374, 0.5
    %v9437 = vmul.f32 %v9379, 0.5
    %v9438 = vmul.f32 %v9384, 0.5
    %v9439 = vmul.f32 %v9389, 0.5
    %v9440 = vmul.f32 %v9394, 0.5
    %v9441 = vmul.f32 %v9399, 0.5
    %v9442 = vmul.f32 %v9404, 0.5
    %v9443 = vmul.f32 %v9409, 0.5
    %v9444 = vmul.f32 %v9414, 0.5
    %v9445 = vmul.f32 %v9419, 0.5
    %v9446 = vmul.f32 %v9424, 0.5
    %v9447 = vmul.f32 %v9429, 0.5
    %v9448 = vsub.f32 %v398, %v9432
    %v9449 = vsub.f32 %v399, %v9433
    %v9450 = vsub.f32 %v400, %v9434
    %v9451 = vsub.f32 %v401, %v9435
    %v9452 = vsub.f32 %v402, %v9436
    %v9453 = vsub.f32 %v403, %v9437
    %v9454 = vsub.f32 %v404, %v9438
    %v9455 = vsub.f32 %v405, %v9439
    %v9456 = vsub.f32 %v406, %v9440
    %v9457 = vsub.f32 %v407, %v9441
    %v9458 = vsub.f32 %v408, %v9442
    %v9459 = vsub.f32 %v409, %v9443
    %v9460 = vsub.f32 %v410, %v9444
    %v9461 = vsub.f32 %v411, %v9445
    %v9462 = vsub.f32 %v412, %v9446
    %v9463 = vsub.f32 %v413, %v9447
    %9464 = vmatprep.subr.mxu0 0.0
    %9465 = vmatpush1.msra.mxu0 %v9463
    %9466 = vmatprep.subr.mxu0 0.0
    %9467 = vmatpush1.msra.mxu0 %v9462
    %9468 = vmatprep.subr.mxu0 0.0
    %9469 = vmatpush1.msra.mxu0 %v9461
    %9470 = vmatprep.subr.mxu0 0.0
    %9471 = vmatpush1.msra.mxu0 %v9460
    %9472 = vmatprep.subr.mxu0 0.0
    %9473 = vmatpush1.msra.mxu0 %v9459
    %9474 = vmatprep.subr.mxu0 0.0
    %9475 = vmatpush1.msra.mxu0 %v9458
    %9476 = vmatprep.subr.mxu0 0.0
    %9477 = vmatpush1.msra.mxu0 %v9457
    %9478 = vmatprep.subr.mxu0 0.0
    %9479 = vmatpush1.msra.mxu0 %v9456
    %9480 = vmatprep.subr.mxu0 0.0
    %9481 = vmatpush1.msra.mxu0 %v9455
    %9482 = vmatprep.subr.mxu0 0.0
    %9483 = vmatpush1.msra.mxu0 %v9454
    %9484 = vmatprep.subr.mxu0 0.0
    %9485 = vmatpush1.msra.mxu0 %v9453
    %9486 = vmatprep.subr.mxu0 0.0
    %9487 = vmatpush1.msra.mxu0 %v9452
    %9488 = vmatprep.subr.mxu0 0.0
    %9489 = vmatpush1.msra.mxu0 %v9451
    %9490 = vmatprep.subr.mxu0 0.0
    %9491 = vmatpush1.msra.mxu0 %v9450
    %9492 = vmatprep.subr.mxu0 0.0
    %9493 = vmatpush1.msra.mxu0 %v9449
    %9494 = vmatprep.subr.mxu0 0.0
    %9495 = vmatpush1.msra.mxu0 %v9448
    %9496 = vmatprep.subr.mxu0 0.0
    %9497 = vmatpush2.msra.mxu0 0.0
    %9498 = vmatprep.subr.mxu0 0.0
    %9499 = vmatpush2.msra.mxu0 0.0
    %9500 = vmatprep.subr.mxu0 0.0
    %9501 = vmatpush2.msra.mxu0 0.0
    %9502 = vmatprep.subr.mxu0 0.0
    %9503 = vmatpush2.msra.mxu0 0.0
    %9504 = vmatprep.subr.mxu0 0.0
    %9505 = vmatpush2.msra.mxu0 0.0
    %9506 = vmatprep.subr.mxu0 0.0
    %9507 = vmatpush2.msra.mxu0 0.0
    %9508 = vmatprep.subr.mxu0 0.0
    %9509 = vmatpush2.msra.mxu0 0.0
    %9510 = vmatprep.subr.mxu0 0.0
    %9511 = vmatpush2.msra.mxu0 0.0
    %9512 = vmatprep.subr.mxu0 0.0
    %9513 = vmatpush2.msra.mxu0 0.0
    %9514 = vmatprep.subr.mxu0 0.0
    %9515 = vmatpush2.msra.mxu0 0.0
    %9516 = vmatprep.subr.mxu0 0.0
    %9517 = vmatpush2.msra.mxu0 0.0
    %9518 = vmatprep.subr.mxu0 0.0
    %9519 = vmatpush2.msra.mxu0 0.0
    %9520 = vmatprep.subr.mxu0 0.0
    %9521 = vmatpush2.msra.mxu0 0.0
    %9522 = vmatprep.subr.mxu0 0.0
    %9523 = vmatpush2.msra.mxu0 0.0
    %9524 = vmatprep.subr.mxu0 0.0
    %9525 = vmatpush2.msra.mxu0 0.0
    %9526 = vmatprep.subr.mxu0 0.0
    %9527 = vmatpush2.msra.mxu0 0.0
    %9528 = vmatprep.mubr.f32.mxu0 0.0
    %9529 = vmatmul.mubr.f32.gmra.mxu0 %v9064
    %v9530 = vpop.f32.mrf.mxu0
    %v9531 = vadd.f32 0.0, %v9530
    %v9532 = vpop.f32.mrf.mxu0
    %9533 = vmatprep.mubr.f32.mxu0 0.0
    %9534 = vmatmul.mubr.f32.gmra.mxu0 %v9069
    %v9535 = vpop.f32.mrf.mxu0
    %v9536 = vadd.f32 0.0, %v9535
    %v9537 = vpop.f32.mrf.mxu0
    %9538 = vmatprep.mubr.f32.mxu0 0.0
    %9539 = vmatmul.mubr.f32.gmra.mxu0 %v9074
    %v9540 = vpop.f32.mrf.mxu0
    %v9541 = vadd.f32 0.0, %v9540
    %v9542 = vpop.f32.mrf.mxu0
    %9543 = vmatprep.mubr.f32.mxu0 0.0
    %9544 = vmatmul.mubr.f32.gmra.mxu0 %v9079
    %v9545 = vpop.f32.mrf.mxu0
    %v9546 = vadd.f32 0.0, %v9545
    %v9547 = vpop.f32.mrf.mxu0
    %9548 = vmatprep.mubr.f32.mxu0 0.0
    %9549 = vmatmul.mubr.f32.gmra.mxu0 %v9084
    %v9550 = vpop.f32.mrf.mxu0
    %v9551 = vadd.f32 0.0, %v9550
    %v9552 = vpop.f32.mrf.mxu0
    %9553 = vmatprep.mubr.f32.mxu0 0.0
    %9554 = vmatmul.mubr.f32.gmra.mxu0 %v9089
    %v9555 = vpop.f32.mrf.mxu0
    %v9556 = vadd.f32 0.0, %v9555
    %v9557 = vpop.f32.mrf.mxu0
    %9558 = vmatprep.mubr.f32.mxu0 0.0
    %9559 = vmatmul.mubr.f32.gmra.mxu0 %v9094
    %v9560 = vpop.f32.mrf.mxu0
    %v9561 = vadd.f32 0.0, %v9560
    %v9562 = vpop.f32.mrf.mxu0
    %9563 = vmatprep.mubr.f32.mxu0 0.0
    %9564 = vmatmul.mubr.f32.gmra.mxu0 %v9099
    %v9565 = vpop.f32.mrf.mxu0
    %v9566 = vadd.f32 0.0, %v9565
    %v9567 = vpop.f32.mrf.mxu0
    %9568 = vmatprep.mubr.f32.mxu0 0.0
    %9569 = vmatmul.mubr.f32.gmra.mxu0 %v9104
    %v9570 = vpop.f32.mrf.mxu0
    %v9571 = vadd.f32 0.0, %v9570
    %v9572 = vpop.f32.mrf.mxu0
    %9573 = vmatprep.mubr.f32.mxu0 0.0
    %9574 = vmatmul.mubr.f32.gmra.mxu0 %v9109
    %v9575 = vpop.f32.mrf.mxu0
    %v9576 = vadd.f32 0.0, %v9575
    %v9577 = vpop.f32.mrf.mxu0
    %9578 = vmatprep.mubr.f32.mxu0 0.0
    %9579 = vmatmul.mubr.f32.gmra.mxu0 %v9114
    %v9580 = vpop.f32.mrf.mxu0
    %v9581 = vadd.f32 0.0, %v9580
    %v9582 = vpop.f32.mrf.mxu0
    %9583 = vmatprep.mubr.f32.mxu0 0.0
    %9584 = vmatmul.mubr.f32.gmra.mxu0 %v9119
    %v9585 = vpop.f32.mrf.mxu0
    %v9586 = vadd.f32 0.0, %v9585
    %v9587 = vpop.f32.mrf.mxu0
    %9588 = vmatprep.mubr.f32.mxu0 0.0
    %9589 = vmatmul.mubr.f32.gmra.mxu0 %v9124
    %v9590 = vpop.f32.mrf.mxu0
    %v9591 = vadd.f32 0.0, %v9590
    %v9592 = vpop.f32.mrf.mxu0
    %9593 = vmatprep.mubr.f32.mxu0 0.0
    %9594 = vmatmul.mubr.f32.gmra.mxu0 %v9129
    %v9595 = vpop.f32.mrf.mxu0
    %v9596 = vadd.f32 0.0, %v9595
    %v9597 = vpop.f32.mrf.mxu0
    %9598 = vmatprep.mubr.f32.mxu0 0.0
    %9599 = vmatmul.mubr.f32.gmra.mxu0 %v9134
    %v9600 = vpop.f32.mrf.mxu0
    %v9601 = vadd.f32 0.0, %v9600
    %v9602 = vpop.f32.mrf.mxu0
    %9603 = vmatprep.mubr.f32.mxu0 0.0
    %9604 = vmatmul.mubr.f32.gmra.mxu0 %v9139
    %v9605 = vpop.f32.mrf.mxu0
    %v9606 = vadd.f32 0.0, %v9605
    %v9607 = vpop.f32.mrf.mxu0
    %9608 = vdwg.mxu0
    %v9609 = vstv %s377
    %v9610 = vrsqrt.pop %v9609
    %v9611 = vmul.f32 %v9609, %v9610
    %vm9612 = vcmp.eq.f32.partialorder %v9609, inf
    %v9613 = vsel %vm9612, %v9609, %v9611
    %vm9614 = vcmp.eq.f32.partialorder %v9609, 0.0
    %v9615 = vand.u32 %v9609, 2147483648
    %v9616 = vsel %vm9614, %v9615, %v9613
    %s9617 = vtos %v9616
    %v9618 = vmul.f32 %v9531, %v71
    %v9619 = vmul.f32 %v9536, %v72
    %v9620 = vmul.f32 %v9541, %v73
    %v9621 = vmul.f32 %v9546, %v74
    %v9622 = vmul.f32 %v9551, %v75
    %v9623 = vmul.f32 %v9556, %v76
    %v9624 = vmul.f32 %v9561, %v77
    %v9625 = vmul.f32 %v9566, %v78
    %v9626 = vmul.f32 %v9571, %v79
    %v9627 = vmul.f32 %v9576, %v80
    %v9628 = vmul.f32 %v9581, %v81
    %v9629 = vmul.f32 %v9586, %v82
    %v9630 = vmul.f32 %v9591, %v83
    %v9631 = vmul.f32 %v9596, %v84
    %v9632 = vmul.f32 %v9601, %v85
    %v9633 = vmul.f32 %v9606, %v86
    %v9634 = vadd.f32 %v9618, %v9619
    %v9635 = vadd.f32 %v9634, %v9620
    %v9636 = vadd.f32 %v9635, %v9621
    %v9637 = vadd.f32 %v9636, %v9622
    %v9638 = vadd.f32 %v9637, %v9623
    %v9639 = vadd.f32 %v9638, %v9624
    %v9640 = vadd.f32 %v9639, %v9625
    %v9641 = vadd.f32 %v9640, %v9626
    %v9642 = vadd.f32 %v9641, %v9627
    %v9643 = vadd.f32 %v9642, %v9628
    %v9644 = vadd.f32 %v9643, %v9629
    %v9645 = vadd.f32 %v9644, %v9630
    %v9646 = vadd.f32 %v9645, %v9631
    %v9647 = vadd.f32 %v9646, %v9632
    %v9648 = vadd.f32 %v9647, %v9633
    %9649 = vadd.xlane.f32.xlu0 %v9648
    %v9650 = vpop.xlane.xlu0 %9649
    %v9651 = vrot.slane %v9650, 4
    %v9652 = vadd.f32 %v9650, %v9651
    %v9653 = vrot.slane %v9652, 2
    %v9654 = vadd.f32 %v9652, %v9653
    %v9655 = vrot.slane %v9654, 1
    %v9656 = vadd.f32 %v9654, %v9655
    %s9657 = vtos %v9656
    %s9658 = smul.f32 %s9617, %s9657
    %s9659 = smul.f32 %s9658, -2.0
    %s9660 = scalar_lea.smem [#allocation5], 0
    %9661 = sst [smem:[%s9660]] %s9659
    // Predicated region
    $region10: #{tpu_custom_call.1} parent=1 // pred_check
      _
    $region11: #{tpu_custom_call.1} parent=1 // pred_check_branch
      %9663 = sbr.rel (0) target = $region13
    $region12: #{tpu_custom_call.1} parent=1 // pred_region
      %s9665 = ssub.s32 16, 16
      %9666 = vsyncadd [#allocation6], %s9665
      %9669 = dma.smem_to_hbm [#allocation5], 16, %s2, [#allocation6]
    $region13: #{tpu_custom_call.1} parent=1 // pred_fallthru
      _
    // Predicated region
    $region14: #{tpu_custom_call.1} parent=1 // pred_check
      _
    $region15: #{tpu_custom_call.1} parent=1 // pred_check_branch
      %9671 = sbr.rel (0) target = $region17
    $region16: #{tpu_custom_call.1} parent=1 // pred_region
      %9672 = dma.done [#allocation6], 16
    $region17: #{tpu_custom_call.1} parent=1 // pred_fallthru
      _
    %9673 = sfence
    %9674 = vsyncpa [#allocation6], 1
  %9675 = vsyncmov [#allocation4]
  %s9676 = vpop.sfrf %9675
  %p9677 = scmp.eq.s32.totalorder %s9676, 0
  %p9678 = pneg %p9677
  %9680 = shalt.err (%p9678)
  %s9681 = scalar_lea.sflag [#allocation4], 1
  %9682 = vsyncmov %s9681
  %s9683 = vpop.sfrf %9682
  %p9684 = scmp.eq.s32.totalorder %s9683, 0
  %p9685 = pneg %p9684
  %9687 = shalt.err (%p9685)

</llo_original>
